<compile_context>
chip_gen: v7x
topology: tpu7x:2x2x1
jax: 0.10.0
libtpu: 0.0.40
codegen_flags: <defaults>
</compile_context>

<pallas_src>
import functools

import jax
import jax.numpy as jnp
from jax.experimental import pallas as pl
from jax.experimental.pallas import tpu as pltpu


def _round_up(x, m):
    return (x + m - 1) // m * m


def _vae_kernel(x_ref, eps_ref,
                w1_ref, b1_ref,
                wh_ref, bh_ref,
                w3_ref, b3_ref,
                w4_ref, b4_ref,
                recon_ref, ml_ref,
                *, zdims):
    bf16 = jnp.bfloat16
    x = x_ref[...]                                    # [TB, 784] bf16

    # encode: h1 = relu(x @ W1 + b1)      (bf16 MXU, f32 accumulate)
    h1 = jnp.dot(x, w1_ref[...], preferred_element_type=jnp.float32) + b1_ref[...]
    h1 = jnp.maximum(h1, 0.0)

    # fused heads: [mu || logvar || zero-pad] -> lane-dense 128-wide output
    ml = jnp.dot(h1.astype(bf16), wh_ref[...],
                 preferred_element_type=jnp.float32) + bh_ref[...]
    ml_ref[...] = ml

    mu = ml[:, :zdims]
    logvar = ml[:, zdims:2 * zdims]

    # reparameterize (training mode): z = mu + eps * exp(0.5 * logvar)
    z = mu + eps_ref[...] * jnp.exp(0.5 * logvar)

    # decode: h3 = relu(z @ W3 + b3); recon = sigmoid(h3 @ W4 + b4)
    h3 = jnp.dot(z.astype(bf16), w3_ref[...],
                 preferred_element_type=jnp.float32) + b3_ref[...]
    h3 = jnp.maximum(h3, 0.0)
    logits = jnp.dot(h3.astype(bf16), w4_ref[...],
                     preferred_element_type=jnp.float32) + b4_ref[...]

    # sigmoid: exp on EUP, divide via EUP approximate reciprocal
    recon = pl.reciprocal(1.0 + jnp.exp(-logits), approx=True)
    recon_ref[...] = recon.astype(recon_ref.dtype)


@functools.partial(jax.jit, static_argnames=("tile_b",))
def vae_forward(x, eps, params, *, tile_b=256):
    """x: [B, 1, 28, 28] (NCHW) or [B, 784]. Returns (recon, mu, logvar)."""
    B = x.shape[0]
    zdims = params["w21"].shape[1]
    P = _round_up(2 * zdims, 128)                      # lane-dense fused-head width
    bf16 = jnp.bfloat16

    # -- pack / cast parameters ------------------------------------------------
    w1 = params["w1"].astype(bf16)
    b1 = params["b1"].astype(jnp.float32)
    wh = jnp.zeros((400, P), bf16).at[:, :2 * zdims].set(
        jnp.concatenate([params["w21"], params["w22"]], axis=1).astype(bf16))
    bh = jnp.zeros((1, P), jnp.float32).at[:, :2 * zdims].set(
        jnp.concatenate([params["b21"], params["b22"]], axis=1).astype(jnp.float32))
    w3 = params["w3"].astype(bf16)
    b3 = params["b3"].astype(jnp.float32)
    w4 = params["w4"].astype(bf16)
    b4 = params["b4"].astype(jnp.float32)

    # -- flatten + pad batch to a multiple of the tile --------------------------
    x_flat = x.reshape(B, 784).astype(bf16)            # bf16 halves input DMA
    eps_f = eps.astype(jnp.float32)
    B_pad = _round_up(max(B, 1), tile_b)
    if B_pad != B:
        x_flat = jnp.pad(x_flat, ((0, B_pad - B), (0, 0)))
        eps_f = jnp.pad(eps_f, ((0, B_pad - B), (0, 0)))
    n_tiles = B_pad // tile_b

    def tiled(shape):
        return pl.BlockSpec(shape, lambda i: (i, 0))

    def resident(shape):                               # weights: constant block
        return pl.BlockSpec(shape, lambda i: (0, 0))

    recon_pad, ml = pl.pallas_call(
        functools.partial(_vae_kernel, zdims=zdims),
        out_shape=(
            jax.ShapeDtypeStruct((B_pad, 784), jnp.float32),
            jax.ShapeDtypeStruct((B_pad, P), jnp.float32),
        ),
        grid=(n_tiles,),
        in_specs=[
            tiled((tile_b, 784)),       # x
            tiled((tile_b, zdims)),     # eps
            resident((784, 400)),       # w1
            resident((1, 400)),         # b1
            resident((400, P)),         # fused heads weight
            resident((1, P)),           # fused heads bias
            resident((zdims, 400)),     # w3
            resident((1, 400)),         # b3
            resident((400, 784)),       # w4
            resident((1, 784)),         # b4
        ],
        out_specs=(
            tiled((tile_b, 784)),       # recon
            tiled((tile_b, P)),         # [mu || logvar || pad]
        ),
        compiler_params=pltpu.CompilerParams(
            dimension_semantics=("parallel",),
            vmem_limit_bytes=32 << 20,
        ),
    )(x_flat, eps_f, w1, b1, wh, bh, w3, b3, w4, b4)

    recon = recon_pad[:B]
    mu = ml[:B, :zdims]
    logvar = ml[:B, zdims:2 * zdims]
    return recon, mu, logvar


def init_params(key, zdims):
    """Deterministic init mimicking nn.Linear (uniform +/- 1/sqrt(fan_in)).
    Weights stored transposed as [in_features, out_features]."""
    def linear(k, fan_in, fan_out):
        kw, kb = jax.random.split(k)
        bound = 1.0 / jnp.sqrt(fan_in)
        w = jax.random.uniform(kw, (fan_in, fan_out), jnp.float32, -bound, bound)
        b = jax.random.uniform(kb, (1, fan_out), jnp.float32, -bound, bound)
        return w, b

    k1, k21, k22, k3, k4 = jax.random.split(key, 5)
    w1, b1 = linear(k1, 784, 400)
    w21, b21 = linear(k21, 400, zdims)
    w22, b22 = linear(k22, 400, zdims)
    w3, b3 = linear(k3, zdims, 400)
    w4, b4 = linear(k4, 400, 784)
    return dict(w1=w1, b1=b1, w21=w21, b21=b21, w22=w22, b22=b22,
                w3=w3, b3=b3, w4=w4, b4=b4)


def vae_forward_ref(x, eps, params):
    """Pure-JAX reference with the same bf16-input / f32-accumulate matmuls."""
    B = x.shape[0]
    bf = jnp.bfloat16
    xf = x.reshape(B, 784).astype(bf)
    h1 = jax.nn.relu(
        jnp.dot(xf, params["w1"].astype(bf),
                preferred_element_type=jnp.float32) + params["b1"])
    h1b = h1.astype(bf)
    mu = jnp.dot(h1b, params["w21"].astype(bf),
                 preferred_element_type=jnp.float32) + params["b21"]
    logvar = jnp.dot(h1b, params["w22"].astype(bf),
                     preferred_element_type=jnp.float32) + params["b22"]
    z = mu + eps.astype(jnp.float32) * jnp.exp(0.5 * logvar)
    h3 = jax.nn.relu(
        jnp.dot(z.astype(bf), params["w3"].astype(bf),
                preferred_element_type=jnp.float32) + params["b3"])
    logits = jnp.dot(h3.astype(bf), params["w4"].astype(bf),
                     preferred_element_type=jnp.float32) + params["b4"]
    recon = jax.nn.sigmoid(logits)
    return recon, mu, logvar


if __name__ == "__main__":
    ZDIMS = 32
    B = 300   # not a multiple of the batch tile -> exercises padding + a 2-step grid

    key = jax.random.PRNGKey(0)
    kx, keps, kparams = jax.random.split(key, 3)

    x = jax.random.uniform(kx, (B, 1, 28, 28), jnp.float32)   # MNIST-like NCHW
    eps = jax.random.normal(keps, (B, ZDIMS), jnp.float32)    # reparam noise
    params = init_params(kparams, ZDIMS)

    recon, mu, logvar = vae_forward(x, eps, params)
    jax.block_until_ready((recon, mu, logvar))

    # sanity check against the pure-JAX reference
    recon_r, mu_r, logvar_r = vae_forward_ref(x, eps, params)
    assert recon.shape == (B, 784)
    assert mu.shape == (B, ZDIMS) and logvar.shape == (B, ZDIMS)
    assert jnp.allclose(mu, mu_r, atol=1e-2, rtol=1e-2), \
        float(jnp.max(jnp.abs(mu - mu_r)))
    assert jnp.allclose(logvar, logvar_r, atol=1e-2, rtol=1e-2), \
        float(jnp.max(jnp.abs(logvar - logvar_r)))
    assert jnp.allclose(recon, recon_r, atol=1e-2), \
        float(jnp.max(jnp.abs(recon - recon_r)))

    print("KERNEL_OK")
</pallas_src>

<mosaic_0001>
module attributes {stable_mosaic.version = 11 : i64} {
  func.func @_vae_kernel(%arg0: i32, %arg1: memref<256x784xbf16, #tpu.memory_space<vmem>>, %arg2: memref<256x32xf32, #tpu.memory_space<vmem>>, %arg3: memref<784x400xbf16, #tpu.memory_space<vmem>>, %arg4: memref<1x400xf32, #tpu.memory_space<vmem>>, %arg5: memref<400x128xbf16, #tpu.memory_space<vmem>>, %arg6: memref<1x128xf32, #tpu.memory_space<vmem>>, %arg7: memref<32x400xbf16, #tpu.memory_space<vmem>>, %arg8: memref<1x400xf32, #tpu.memory_space<vmem>>, %arg9: memref<400x784xbf16, #tpu.memory_space<vmem>>, %arg10: memref<1x784xf32, #tpu.memory_space<vmem>>, %arg11: memref<256x784xf32, #tpu.memory_space<vmem>>, %arg12: memref<256x128xf32, #tpu.memory_space<vmem>>) attributes {dimension_semantics = [#tpu.dimension_semantics<parallel>], iteration_bounds = array<i64: 2>, scalar_prefetch = 0 : i64, scratch_operands = 0 : i64, tpu.core_type = #tpu.core_type<tc>, window_params = [{transform_indices = @transform_0, window_bounds = array<i64: 256, 784>}, {transform_indices = @transform_1, window_bounds = array<i64: 256, 32>}, {pipeline_mode = #tpu.pipeline_mode<synchronous>, transform_indices = @transform_2, window_bounds = array<i64: 784, 400>}, {pipeline_mode = #tpu.pipeline_mode<synchronous>, transform_indices = @transform_3, window_bounds = array<i64: 1, 400>}, {pipeline_mode = #tpu.pipeline_mode<synchronous>, transform_indices = @transform_4, window_bounds = array<i64: 400, 128>}, {pipeline_mode = #tpu.pipeline_mode<synchronous>, transform_indices = @transform_5, window_bounds = array<i64: 1, 128>}, {pipeline_mode = #tpu.pipeline_mode<synchronous>, transform_indices = @transform_6, window_bounds = array<i64: 32, 400>}, {pipeline_mode = #tpu.pipeline_mode<synchronous>, transform_indices = @transform_7, window_bounds = array<i64: 1, 400>}, {pipeline_mode = #tpu.pipeline_mode<synchronous>, transform_indices = @transform_8, window_bounds = array<i64: 400, 784>}, {pipeline_mode = #tpu.pipeline_mode<synchronous>, transform_indices = @transform_9, window_bounds = array<i64: 1, 784>}, {transform_indices = @transform_10, window_bounds = array<i64: 256, 784>}, {transform_indices = @transform_11, window_bounds = array<i64: 256, 128>}]} {
    %c0 = arith.constant 0 : index
    %c0_0 = arith.constant 0 : index
    %0 = vector.load %arg1[%c0, %c0_0] : memref<256x784xbf16, #tpu.memory_space<vmem>>, vector<256x784xbf16>
    %c0_1 = arith.constant 0 : index
    %c0_2 = arith.constant 0 : index
    %1 = vector.load %arg3[%c0_1, %c0_2] : memref<784x400xbf16, #tpu.memory_space<vmem>>, vector<784x400xbf16>
    %cst = arith.constant dense<0.000000e+00> : vector<256x400xf32>
    %2 = tpu.matmul %0, %1, %cst {dimension_numbers = #tpu.dot_dimension_numbers<[1], [0], [0], [1], [0, 0, 1, 1], [], []>} : vector<256x784xbf16>, vector<784x400xbf16>, vector<256x400xf32> -> vector<256x400xf32>
    %c0_3 = arith.constant 0 : index
    %c0_4 = arith.constant 0 : index
    %3 = vector.load %arg4[%c0_3, %c0_4] : memref<1x400xf32, #tpu.memory_space<vmem>>, vector<1x400xf32>
    %4 = vector.broadcast %3 : vector<1x400xf32> to vector<256x400xf32>
    %5 = arith.addf %2, %4 : vector<256x400xf32>
    %cst_5 = arith.constant 0.000000e+00 : f32
    %6 = vector.broadcast %cst_5 : f32 to vector<256x400xf32>
    %7 = arith.maximumf %5, %6 : vector<256x400xf32>
    %8 = arith.truncf %7 : vector<256x400xf32> to vector<256x400xbf16>
    %c0_6 = arith.constant 0 : index
    %c0_7 = arith.constant 0 : index
    %9 = vector.load %arg5[%c0_6, %c0_7] : memref<400x128xbf16, #tpu.memory_space<vmem>>, vector<400x128xbf16>
    %cst_8 = arith.constant dense<0.000000e+00> : vector<256x128xf32>
    %10 = tpu.matmul %8, %9, %cst_8 {dimension_numbers = #tpu.dot_dimension_numbers<[1], [0], [0], [1], [0, 0, 1, 1], [], []>} : vector<256x400xbf16>, vector<400x128xbf16>, vector<256x128xf32> -> vector<256x128xf32>
    %c0_9 = arith.constant 0 : index
    %c0_10 = arith.constant 0 : index
    %11 = vector.load %arg6[%c0_9, %c0_10] : memref<1x128xf32, #tpu.memory_space<vmem>>, vector<1x128xf32>
    %12 = vector.broadcast %11 : vector<1x128xf32> to vector<256x128xf32>
    %13 = arith.addf %10, %12 : vector<256x128xf32>
    %c0_11 = arith.constant 0 : index
    %c0_12 = arith.constant 0 : index
    %14 = vector.load %arg12[%c0_11, %c0_12] : memref<256x128xf32, #tpu.memory_space<vmem>>, vector<256x128xf32>
    tpu.vector_store %arg12[%c0_11, %c0_12], %13 {strides = array<i32>} : memref<256x128xf32, #tpu.memory_space<vmem>>, vector<256x128xf32>,
    %15 = vector.extract_strided_slice %13 {offsets = [0, 0], sizes = [256, 32], strides = [1, 1]} : vector<256x128xf32> to vector<256x32xf32>
    %16 = vector.extract_strided_slice %13 {offsets = [0, 32], sizes = [256, 32], strides = [1, 1]} : vector<256x128xf32> to vector<256x32xf32>
    %c0_13 = arith.constant 0 : index
    %c0_14 = arith.constant 0 : index
    %17 = vector.load %arg2[%c0_13, %c0_14] : memref<256x32xf32, #tpu.memory_space<vmem>>, vector<256x32xf32>
    %cst_15 = arith.constant 5.000000e-01 : f32
    %18 = vector.broadcast %cst_15 : f32 to vector<256x32xf32>
    %19 = arith.mulf %18, %16 : vector<256x32xf32>
    %20 = math.exp %19 : vector<256x32xf32>
    %21 = arith.mulf %17, %20 : vector<256x32xf32>
    %22 = arith.addf %15, %21 : vector<256x32xf32>
    %23 = arith.truncf %22 : vector<256x32xf32> to vector<256x32xbf16>
    %c0_16 = arith.constant 0 : index
    %c0_17 = arith.constant 0 : index
    %24 = vector.load %arg7[%c0_16, %c0_17] : memref<32x400xbf16, #tpu.memory_space<vmem>>, vector<32x400xbf16>
    %cst_18 = arith.constant dense<0.000000e+00> : vector<256x400xf32>
    %25 = tpu.matmul %23, %24, %cst_18 {dimension_numbers = #tpu.dot_dimension_numbers<[1], [0], [0], [1], [0, 0, 1, 1], [], []>} : vector<256x32xbf16>, vector<32x400xbf16>, vector<256x400xf32> -> vector<256x400xf32>
    %c0_19 = arith.constant 0 : index
    %c0_20 = arith.constant 0 : index
    %26 = vector.load %arg8[%c0_19, %c0_20] : memref<1x400xf32, #tpu.memory_space<vmem>>, vector<1x400xf32>
    %27 = vector.broadcast %26 : vector<1x400xf32> to vector<256x400xf32>
    %28 = arith.addf %25, %27 : vector<256x400xf32>
    %cst_21 = arith.constant 0.000000e+00 : f32
    %29 = vector.broadcast %cst_21 : f32 to vector<256x400xf32>
    %30 = arith.maximumf %28, %29 : vector<256x400xf32>
    %31 = arith.truncf %30 : vector<256x400xf32> to vector<256x400xbf16>
    %c0_22 = arith.constant 0 : index
    %c0_23 = arith.constant 0 : index
    %32 = vector.load %arg9[%c0_22, %c0_23] : memref<400x784xbf16, #tpu.memory_space<vmem>>, vector<400x784xbf16>
    %cst_24 = arith.constant dense<0.000000e+00> : vector<256x784xf32>
    %33 = tpu.matmul %31, %32, %cst_24 {dimension_numbers = #tpu.dot_dimension_numbers<[1], [0], [0], [1], [0, 0, 1, 1], [], []>} : vector<256x400xbf16>, vector<400x784xbf16>, vector<256x784xf32> -> vector<256x784xf32>
    %c0_25 = arith.constant 0 : index
    %c0_26 = arith.constant 0 : index
    %34 = vector.load %arg10[%c0_25, %c0_26] : memref<1x784xf32, #tpu.memory_space<vmem>>, vector<1x784xf32>
    %35 = vector.broadcast %34 : vector<1x784xf32> to vector<256x784xf32>
    %36 = arith.addf %33, %35 : vector<256x784xf32>
    %cst_27 = arith.constant 0.000000e+00 : f32
    %37 = vector.broadcast %cst_27 : f32 to vector<256x784xf32>
    %38 = arith.subf %37, %36 : vector<256x784xf32>
    %39 = math.exp %38 : vector<256x784xf32>
    %cst_28 = arith.constant 1.000000e+00 : f32
    %40 = vector.broadcast %cst_28 : f32 to vector<256x784xf32>
    %41 = arith.addf %40, %39 : vector<256x784xf32>
    %42 = tpu.reciprocal %41 {approx = true} : vector<256x784xf32> -> vector<256x784xf32>
    %c0_29 = arith.constant 0 : index
    %c0_30 = arith.constant 0 : index
    %43 = vector.load %arg11[%c0_29, %c0_30] : memref<256x784xf32, #tpu.memory_space<vmem>>, vector<256x784xf32>
    tpu.vector_store %arg11[%c0_29, %c0_30], %42 {strides = array<i32>} : memref<256x784xf32, #tpu.memory_space<vmem>>, vector<256x784xf32>,
    return
  }
  func.func @transform_0(%arg0: i32) -> (i32, i32) {
    %c0_i32 = arith.constant 0 : i32
    %c0_i32_0 = arith.constant 0 : i32
    return %arg0, %c0_i32 : i32, i32
  }
  func.func @transform_1(%arg0: i32) -> (i32, i32) {
    %c0_i32 = arith.constant 0 : i32
    %c0_i32_0 = arith.constant 0 : i32
    return %arg0, %c0_i32 : i32, i32
  }
  func.func @transform_2(%arg0: i32) -> (i32, i32) {
    %c0_i32 = arith.constant 0 : i32
    %c0_i32_0 = arith.constant 0 : i32
    %c0_i32_1 = arith.constant 0 : i32
    return %c0_i32, %c0_i32_0 : i32, i32
  }
  func.func @transform_3(%arg0: i32) -> (i32, i32) {
    %c0_i32 = arith.constant 0 : i32
    %c0_i32_0 = arith.constant 0 : i32
    %c0_i32_1 = arith.constant 0 : i32
    return %c0_i32, %c0_i32_0 : i32, i32
  }
  func.func @transform_4(%arg0: i32) -> (i32, i32) {
    %c0_i32 = arith.constant 0 : i32
    %c0_i32_0 = arith.constant 0 : i32
    %c0_i32_1 = arith.constant 0 : i32
    return %c0_i32, %c0_i32_0 : i32, i32
  }
  func.func @transform_5(%arg0: i32) -> (i32, i32) {
    %c0_i32 = arith.constant 0 : i32
    %c0_i32_0 = arith.constant 0 : i32
    %c0_i32_1 = arith.constant 0 : i32
    return %c0_i32, %c0_i32_0 : i32, i32
  }
  func.func @transform_6(%arg0: i32) -> (i32, i32) {
    %c0_i32 = arith.constant 0 : i32
    %c0_i32_0 = arith.constant 0 : i32
    %c0_i32_1 = arith.constant 0 : i32
    return %c0_i32, %c0_i32_0 : i32, i32
  }
  func.func @transform_7(%arg0: i32) -> (i32, i32) {
    %c0_i32 = arith.constant 0 : i32
    %c0_i32_0 = arith.constant 0 : i32
    %c0_i32_1 = arith.constant 0 : i32
    return %c0_i32, %c0_i32_0 : i32, i32
  }
  func.func @transform_8(%arg0: i32) -> (i32, i32) {
    %c0_i32 = arith.constant 0 : i32
    %c0_i32_0 = arith.constant 0 : i32
    %c0_i32_1 = arith.constant 0 : i32
    return %c0_i32, %c0_i32_0 : i32, i32
  }
  func.func @transform_9(%arg0: i32) -> (i32, i32) {
    %c0_i32 = arith.constant 0 : i32
    %c0_i32_0 = arith.constant 0 : i32
    %c0_i32_1 = arith.constant 0 : i32
    return %c0_i32, %c0_i32_0 : i32, i32
  }
  func.func @transform_10(%arg0: i32) -> (i32, i32) {
    %c0_i32 = arith.constant 0 : i32
    %c0_i32_0 = arith.constant 0 : i32
    return %arg0, %c0_i32 : i32, i32
  }
  func.func @transform_11(%arg0: i32) -> (i32, i32) {
    %c0_i32 = arith.constant 0 : i32
    %c0_i32_0 = arith.constant 0 : i32
    return %arg0, %c0_i32 : i32, i32
  }
}

</mosaic_0001>

<llo_original>
// kernel: vae_forward.1
$region0: #{vae_forward.1}
  #allocation0 [shape = 'u32[]', space=smem, size = 0x4, offset = 0x4, fixed_abs, tag = 'smem constant byte address 0x4 - core index']
  #allocation1 [shape = 'u32[144,128]{1,0:T(1,128)}', space=vmem, size = 0x12000, scoped, tag = 'internal scratch']
  %s0 = inlined_call_operand.vmem [shape: bf16[512,784], index: 0, kind: input, shape index: {}]
  %s1 = inlined_call_operand.vmem [shape: f32[512,32], index: 1, kind: input, shape index: {}]
  %s2 = inlined_call_operand.vmem [shape: bf16[784,400], index: 2, kind: input, shape index: {}]
  %s3 = inlined_call_operand.vmem [shape: f32[1,400], index: 3, kind: input, shape index: {}]
  %s4 = inlined_call_operand.vmem [shape: bf16[400,128], index: 4, kind: input, shape index: {}]
  %s5 = inlined_call_operand.vmem [shape: f32[1,128], index: 5, kind: input, shape index: {}]
  %s6 = inlined_call_operand.vmem [shape: bf16[32,400], index: 6, kind: input, shape index: {}]
  %s7 = inlined_call_operand.vmem [shape: f32[1,400], index: 7, kind: input, shape index: {}]
  %s8 = inlined_call_operand.vmem [shape: bf16[400,784], index: 8, kind: input, shape index: {}]
  %s9 = inlined_call_operand.vmem [shape: f32[1,784], index: 9, kind: input, shape index: {}]
  %s10 = inlined_call_operand.vmem [shape: f32[512,784], index: 10, kind: output, shape index: {0}]
  %s11 = inlined_call_operand.vmem [shape: f32[512,128], index: 11, kind: output, shape index: {1}]
  %12 = xla_tuple %s10, %s11
  %s13 = sld [smem:[#allocation0]]
  $region81: #{vae_forward.1} parent=0
    _
  %s15 = ssub.s32 1, %s13
  %s16 = scalar_select 0, %s15, %s13
  loop: start=0, step=1, limit=4
  $region2: #{vae_forward.1} parent=0 // loop_pre_header
    _
  $region3: #{vae_forward.1} parent=0 // loop_header
    %s18 = sphi 0, %s22
    %p19 = scmp.ge.s32.totalorder %s18, 4
    %s28 = sphi 0, %s30
    %s31 = sphi 0, %s28
    %s32 = sphi 0, %s31
    %s48 = sphi 0, %s32
    %s54 = sphi 0, %s56
    %s57 = sphi 0, %s54
    %s58 = sphi 0, %s57
    %s74 = sphi 0, %s58
    %s78 = sphi 0, %s78
    %s80 = sphi 0, %s78
    %s81 = sphi 0, %s80
    %s95 = sphi 0, %s81
    %s99 = sphi 0, %s99
    %s101 = sphi 0, %s99
    %s102 = sphi 0, %s101
    %s116 = sphi 0, %s102
    %s120 = sphi 0, %s120
    %s122 = sphi 0, %s120
    %s123 = sphi 0, %s122
    %s137 = sphi 0, %s123
    %s141 = sphi 0, %s141
    %s143 = sphi 0, %s141
    %s144 = sphi 0, %s143
    %s158 = sphi 0, %s144
    %s162 = sphi 0, %s162
    %s164 = sphi 0, %s162
    %s165 = sphi 0, %s164
    %s179 = sphi 0, %s165
    %s183 = sphi 0, %s183
    %s185 = sphi 0, %s183
    %s186 = sphi 0, %s185
    %s200 = sphi 0, %s186
    %s204 = sphi 0, %s204
    %s206 = sphi 0, %s204
    %s207 = sphi 0, %s206
    %s221 = sphi 0, %s207
    %s225 = sphi 0, %s225
    %s227 = sphi 0, %s225
    %s228 = sphi 0, %s227
    %s242 = sphi 0, %s228
    %s248 = sphi 0, %s250
    %s251 = sphi 0, %s248
    %s252 = sphi 0, %s251
    %s268 = sphi 0, %s252
    %s274 = sphi 0, %s276
    %s277 = sphi 0, %s274
    %s278 = sphi 0, %s277
    %s294 = sphi 0, %s278
  $region4: #{vae_forward.1} parent=0 // loop_header_branch
    %21 = sbr.rel (%p19) target = $region8
  $region5: #{vae_forward.1} parent=0 // loop_body
    %s23 = ssub.s32 %s18, 1
    %s24 = ssub.s32 %s18, 2
    %s25 = sadd.s32 %s18, 1
    %s26 = ssub.s32 %s18, %s25
    %p27 = scmp.eq.s32.totalorder %s26, 0
    %s29 = sadd.s32 %s28, 1
    %s30 = scalar_select %p27, %s28, %s29
    %p33 = pneg %p27
    %p34 = scmp.eq.s32.totalorder %s18, 1
    %p35 = por %p33, %p34
    %p36 = scmp.ne.s32.totalorder %s28, %s31
    %p37 = scmp.eq.s32.totalorder %s18, 0
    %p38 = por %p36, %p37
    %p39 = scmp.ne.s32.totalorder %s28, %s31
    %p40 = scmp.eq.s32.totalorder %s23, 1
    %p41 = por %p39, %p40
    %p42 = scmp.ne.s32.totalorder %s31, %s32
    %p43 = scmp.eq.s32.totalorder %s23, 0
    %p44 = por %p42, %p43
    %p45 = scmp.ne.s32.totalorder %s31, %s32
    %p46 = scmp.eq.s32.totalorder %s24, 1
    %p47 = por %p45, %p46
    %p49 = scmp.ne.s32.totalorder %s32, %s48
    %p50 = scmp.eq.s32.totalorder %s24, 0
    %p51 = por %p49, %p50
    %s52 = ssub.s32 %s18, %s25
    %p53 = scmp.eq.s32.totalorder %s52, 0
    %s55 = sadd.s32 %s54, 1
    %s56 = scalar_select %p53, %s54, %s55
    %p59 = pneg %p53
    %p60 = scmp.eq.s32.totalorder %s18, 1
    %p61 = por %p59, %p60
    %p62 = scmp.ne.s32.totalorder %s54, %s57
    %p63 = scmp.eq.s32.totalorder %s18, 0
    %p64 = por %p62, %p63
    %p65 = scmp.ne.s32.totalorder %s54, %s57
    %p66 = scmp.eq.s32.totalorder %s23, 1
    %p67 = por %p65, %p66
    %p68 = scmp.ne.s32.totalorder %s57, %s58
    %p69 = scmp.eq.s32.totalorder %s23, 0
    %p70 = por %p68, %p69
    %p71 = scmp.ne.s32.totalorder %s57, %s58
    %p72 = scmp.eq.s32.totalorder %s24, 1
    %p73 = por %p71, %p72
    %p75 = scmp.ne.s32.totalorder %s58, %s74
    %p76 = scmp.eq.s32.totalorder %s24, 0
    %p77 = por %p75, %p76
    %s79 = sadd.s32 %s78, 1
    %p82 = scmp.eq.s32.totalorder %s18, 1
    %p83 = scmp.ne.s32.totalorder %s78, %s80
    %p84 = scmp.eq.s32.totalorder %s18, 0
    %p85 = por %p83, %p84
    %p86 = scmp.ne.s32.totalorder %s78, %s80
    %p87 = scmp.eq.s32.totalorder %s23, 1
    %p88 = por %p86, %p87
    %p89 = scmp.ne.s32.totalorder %s80, %s81
    %p90 = scmp.eq.s32.totalorder %s23, 0
    %p91 = por %p89, %p90
    %p92 = scmp.ne.s32.totalorder %s80, %s81
    %p93 = scmp.eq.s32.totalorder %s24, 1
    %p94 = por %p92, %p93
    %p96 = scmp.ne.s32.totalorder %s81, %s95
    %p97 = scmp.eq.s32.totalorder %s24, 0
    %p98 = por %p96, %p97
    %s100 = sadd.s32 %s99, 1
    %p103 = scmp.eq.s32.totalorder %s18, 1
    %p104 = scmp.ne.s32.totalorder %s99, %s101
    %p105 = scmp.eq.s32.totalorder %s18, 0
    %p106 = por %p104, %p105
    %p107 = scmp.ne.s32.totalorder %s99, %s101
    %p108 = scmp.eq.s32.totalorder %s23, 1
    %p109 = por %p107, %p108
    %p110 = scmp.ne.s32.totalorder %s101, %s102
    %p111 = scmp.eq.s32.totalorder %s23, 0
    %p112 = por %p110, %p111
    %p113 = scmp.ne.s32.totalorder %s101, %s102
    %p114 = scmp.eq.s32.totalorder %s24, 1
    %p115 = por %p113, %p114
    %p117 = scmp.ne.s32.totalorder %s102, %s116
    %p118 = scmp.eq.s32.totalorder %s24, 0
    %p119 = por %p117, %p118
    %s121 = sadd.s32 %s120, 1
    %p124 = scmp.eq.s32.totalorder %s18, 1
    %p125 = scmp.ne.s32.totalorder %s120, %s122
    %p126 = scmp.eq.s32.totalorder %s18, 0
    %p127 = por %p125, %p126
    %p128 = scmp.ne.s32.totalorder %s120, %s122
    %p129 = scmp.eq.s32.totalorder %s23, 1
    %p130 = por %p128, %p129
    %p131 = scmp.ne.s32.totalorder %s122, %s123
    %p132 = scmp.eq.s32.totalorder %s23, 0
    %p133 = por %p131, %p132
    %p134 = scmp.ne.s32.totalorder %s122, %s123
    %p135 = scmp.eq.s32.totalorder %s24, 1
    %p136 = por %p134, %p135
    %p138 = scmp.ne.s32.totalorder %s123, %s137
    %p139 = scmp.eq.s32.totalorder %s24, 0
    %p140 = por %p138, %p139
    %s142 = sadd.s32 %s141, 1
    %p145 = scmp.eq.s32.totalorder %s18, 1
    %p146 = scmp.ne.s32.totalorder %s141, %s143
    %p147 = scmp.eq.s32.totalorder %s18, 0
    %p148 = por %p146, %p147
    %p149 = scmp.ne.s32.totalorder %s141, %s143
    %p150 = scmp.eq.s32.totalorder %s23, 1
    %p151 = por %p149, %p150
    %p152 = scmp.ne.s32.totalorder %s143, %s144
    %p153 = scmp.eq.s32.totalorder %s23, 0
    %p154 = por %p152, %p153
    %p155 = scmp.ne.s32.totalorder %s143, %s144
    %p156 = scmp.eq.s32.totalorder %s24, 1
    %p157 = por %p155, %p156
    %p159 = scmp.ne.s32.totalorder %s144, %s158
    %p160 = scmp.eq.s32.totalorder %s24, 0
    %p161 = por %p159, %p160
    %s163 = sadd.s32 %s162, 1
    %p166 = scmp.eq.s32.totalorder %s18, 1
    %p167 = scmp.ne.s32.totalorder %s162, %s164
    %p168 = scmp.eq.s32.totalorder %s18, 0
    %p169 = por %p167, %p168
    %p170 = scmp.ne.s32.totalorder %s162, %s164
    %p171 = scmp.eq.s32.totalorder %s23, 1
    %p172 = por %p170, %p171
    %p173 = scmp.ne.s32.totalorder %s164, %s165
    %p174 = scmp.eq.s32.totalorder %s23, 0
    %p175 = por %p173, %p174
    %p176 = scmp.ne.s32.totalorder %s164, %s165
    %p177 = scmp.eq.s32.totalorder %s24, 1
    %p178 = por %p176, %p177
    %p180 = scmp.ne.s32.totalorder %s165, %s179
    %p181 = scmp.eq.s32.totalorder %s24, 0
    %p182 = por %p180, %p181
    %s184 = sadd.s32 %s183, 1
    %p187 = scmp.eq.s32.totalorder %s18, 1
    %p188 = scmp.ne.s32.totalorder %s183, %s185
    %p189 = scmp.eq.s32.totalorder %s18, 0
    %p190 = por %p188, %p189
    %p191 = scmp.ne.s32.totalorder %s183, %s185
    %p192 = scmp.eq.s32.totalorder %s23, 1
    %p193 = por %p191, %p192
    %p194 = scmp.ne.s32.totalorder %s185, %s186
    %p195 = scmp.eq.s32.totalorder %s23, 0
    %p196 = por %p194, %p195
    %p197 = scmp.ne.s32.totalorder %s185, %s186
    %p198 = scmp.eq.s32.totalorder %s24, 1
    %p199 = por %p197, %p198
    %p201 = scmp.ne.s32.totalorder %s186, %s200
    %p202 = scmp.eq.s32.totalorder %s24, 0
    %p203 = por %p201, %p202
    %s205 = sadd.s32 %s204, 1
    %p208 = scmp.eq.s32.totalorder %s18, 1
    %p209 = scmp.ne.s32.totalorder %s204, %s206
    %p210 = scmp.eq.s32.totalorder %s18, 0
    %p211 = por %p209, %p210
    %p212 = scmp.ne.s32.totalorder %s204, %s206
    %p213 = scmp.eq.s32.totalorder %s23, 1
    %p214 = por %p212, %p213
    %p215 = scmp.ne.s32.totalorder %s206, %s207
    %p216 = scmp.eq.s32.totalorder %s23, 0
    %p217 = por %p215, %p216
    %p218 = scmp.ne.s32.totalorder %s206, %s207
    %p219 = scmp.eq.s32.totalorder %s24, 1
    %p220 = por %p218, %p219
    %p222 = scmp.ne.s32.totalorder %s207, %s221
    %p223 = scmp.eq.s32.totalorder %s24, 0
    %p224 = por %p222, %p223
    %s226 = sadd.s32 %s225, 1
    %p229 = scmp.eq.s32.totalorder %s18, 1
    %p230 = scmp.ne.s32.totalorder %s225, %s227
    %p231 = scmp.eq.s32.totalorder %s18, 0
    %p232 = por %p230, %p231
    %p233 = scmp.ne.s32.totalorder %s225, %s227
    %p234 = scmp.eq.s32.totalorder %s23, 1
    %p235 = por %p233, %p234
    %p236 = scmp.ne.s32.totalorder %s227, %s228
    %p237 = scmp.eq.s32.totalorder %s23, 0
    %p238 = por %p236, %p237
    %p239 = scmp.ne.s32.totalorder %s227, %s228
    %p240 = scmp.eq.s32.totalorder %s24, 1
    %p241 = por %p239, %p240
    %p243 = scmp.ne.s32.totalorder %s228, %s242
    %p244 = scmp.eq.s32.totalorder %s24, 0
    %p245 = por %p243, %p244
    %s246 = ssub.s32 %s18, %s25
    %p247 = scmp.eq.s32.totalorder %s246, 0
    %s249 = sadd.s32 %s248, 1
    %s250 = scalar_select %p247, %s248, %s249
    %p253 = pneg %p247
    %p254 = scmp.eq.s32.totalorder %s18, 1
    %p255 = por %p253, %p254
    %p256 = scmp.ne.s32.totalorder %s248, %s251
    %p257 = scmp.eq.s32.totalorder %s18, 0
    %p258 = por %p256, %p257
    %p259 = scmp.ne.s32.totalorder %s248, %s251
    %p260 = scmp.eq.s32.totalorder %s23, 1
    %p261 = por %p259, %p260
    %p262 = scmp.ne.s32.totalorder %s251, %s252
    %p263 = scmp.eq.s32.totalorder %s23, 0
    %p264 = por %p262, %p263
    %p265 = scmp.ne.s32.totalorder %s251, %s252
    %p266 = scmp.eq.s32.totalorder %s24, 1
    %p267 = por %p265, %p266
    %p269 = scmp.ne.s32.totalorder %s252, %s268
    %p270 = scmp.eq.s32.totalorder %s24, 0
    %p271 = por %p269, %p270
    %s272 = ssub.s32 %s18, %s25
    %p273 = scmp.eq.s32.totalorder %s272, 0
    %s275 = sadd.s32 %s274, 1
    %s276 = scalar_select %p273, %s274, %s275
    %p279 = pneg %p273
    %p280 = scmp.eq.s32.totalorder %s18, 1
    %p281 = por %p279, %p280
    %p282 = scmp.ne.s32.totalorder %s274, %s277
    %p283 = scmp.eq.s32.totalorder %s18, 0
    %p284 = por %p282, %p283
    %p285 = scmp.ne.s32.totalorder %s274, %s277
    %p286 = scmp.eq.s32.totalorder %s23, 1
    %p287 = por %p285, %p286
    %p288 = scmp.ne.s32.totalorder %s277, %s278
    %p289 = scmp.eq.s32.totalorder %s23, 0
    %p290 = por %p288, %p289
    %p291 = scmp.ne.s32.totalorder %s277, %s278
    %p292 = scmp.eq.s32.totalorder %s24, 1
    %p293 = por %p291, %p292
    %p295 = scmp.ne.s32.totalorder %s278, %s294
    %p296 = scmp.eq.s32.totalorder %s24, 0
    %p297 = por %p295, %p296
    %p298 = scmp.le.s32.totalorder 1, %s18
    %p299 = scmp.lt.s32.totalorder %s18, 3
    %p300 = pnand %p298, %p299
    %p301 = pneg %p300
    // Predicated region
    $region9: #{vae_forward.1} parent=5 // pred_check
      _
    $region10: #{vae_forward.1} parent=5 // pred_check_branch
      %303 = sbr.rel (%p300) target = $region12
    $region11: #{vae_forward.1} parent=5 // pred_region
      %s304 = ssub.s32 %s18, 1
      // Predicated region
      $region13: #{vae_forward.1} parent=11 // pred_check
        %p305 = pneg %p91
      $region14: #{vae_forward.1} parent=11 // pred_check_branch
        %307 = sbr.rel (%p305) target = $region16
      $region15: #{vae_forward.1} parent=11 // pred_region
        _
      $region16: #{vae_forward.1} parent=11 // pred_fallthru
        _
      // Predicated region
      $region17: #{vae_forward.1} parent=11 // pred_check
        %p308 = pneg %p112
      $region18: #{vae_forward.1} parent=11 // pred_check_branch
        %310 = sbr.rel (%p308) target = $region20
      $region19: #{vae_forward.1} parent=11 // pred_region
        _
      $region20: #{vae_forward.1} parent=11 // pred_fallthru
        _
      // Predicated region
      $region21: #{vae_forward.1} parent=11 // pred_check
        %p311 = pneg %p133
      $region22: #{vae_forward.1} parent=11 // pred_check_branch
        %313 = sbr.rel (%p311) target = $region24
      $region23: #{vae_forward.1} parent=11 // pred_region
        _
      $region24: #{vae_forward.1} parent=11 // pred_fallthru
        _
      // Predicated region
      $region25: #{vae_forward.1} parent=11 // pred_check
        %p314 = pneg %p154
      $region26: #{vae_forward.1} parent=11 // pred_check_branch
        %316 = sbr.rel (%p314) target = $region28
      $region27: #{vae_forward.1} parent=11 // pred_region
        _
      $region28: #{vae_forward.1} parent=11 // pred_fallthru
        _
      // Predicated region
      $region29: #{vae_forward.1} parent=11 // pred_check
        %p317 = pneg %p175
      $region30: #{vae_forward.1} parent=11 // pred_check_branch
        %319 = sbr.rel (%p317) target = $region32
      $region31: #{vae_forward.1} parent=11 // pred_region
        _
      $region32: #{vae_forward.1} parent=11 // pred_fallthru
        _
      // Predicated region
      $region33: #{vae_forward.1} parent=11 // pred_check
        %p320 = pneg %p196
      $region34: #{vae_forward.1} parent=11 // pred_check_branch
        %322 = sbr.rel (%p320) target = $region36
      $region35: #{vae_forward.1} parent=11 // pred_region
        _
      $region36: #{vae_forward.1} parent=11 // pred_fallthru
        _
      // Predicated region
      $region37: #{vae_forward.1} parent=11 // pred_check
        %p323 = pneg %p217
      $region38: #{vae_forward.1} parent=11 // pred_check_branch
        %325 = sbr.rel (%p323) target = $region40
      $region39: #{vae_forward.1} parent=11 // pred_region
        _
      $region40: #{vae_forward.1} parent=11 // pred_fallthru
        _
      // Predicated region
      $region41: #{vae_forward.1} parent=11 // pred_check
        %p326 = pneg %p238
      $region42: #{vae_forward.1} parent=11 // pred_check_branch
        %328 = sbr.rel (%p326) target = $region44
      $region43: #{vae_forward.1} parent=11 // pred_region
        _
      $region44: #{vae_forward.1} parent=11 // pred_fallthru
        _
    $region12: #{vae_forward.1} parent=5 // pred_fallthru
      _
    %p329 = scmp.lt.s32.totalorder %s18, 2
    // Predicated region
    $region45: #{vae_forward.1} parent=5 // pred_check
      %p330 = pneg %p329
    $region46: #{vae_forward.1} parent=5 // pred_check_branch
      %332 = sbr.rel (%p330) target = $region48
    $region47: #{vae_forward.1} parent=5 // pred_region
      // Predicated region
      $region49: #{vae_forward.1} parent=47 // pred_check
        %p333 = pneg %p38
      $region50: #{vae_forward.1} parent=47 // pred_check_branch
        %335 = sbr.rel (%p333) target = $region52
      $region51: #{vae_forward.1} parent=47 // pred_region
        %s336 = smul.u32 32, %s18
        %p337 = scmp.lt.s32.totalorder %s336, 63
        %s338 = scalar_select %p337, %s336, 63
        %s339 = smul.addr %s338, 7
        %s340 = smul.addr %s339, 4
        %s341 = scalar_lea.vmem %s0, %s340
        %s342 = smul.u32 32, %s18
      $region52: #{vae_forward.1} parent=47 // pred_fallthru
        _
      // Predicated region
      $region53: #{vae_forward.1} parent=47 // pred_check
        %p343 = pneg %p64
      $region54: #{vae_forward.1} parent=47 // pred_check_branch
        %345 = sbr.rel (%p343) target = $region56
      $region55: #{vae_forward.1} parent=47 // pred_region
        %s346 = smul.u32 32, %s18
        %p347 = scmp.lt.s32.totalorder %s346, 63
        %s348 = scalar_select %p347, %s346, 63
        %s349 = smul.addr %s348, 8
        %s350 = scalar_lea.vmem %s1, %s349
        %s351 = smul.u32 32, %s18
      $region56: #{vae_forward.1} parent=47 // pred_fallthru
        _
    $region48: #{vae_forward.1} parent=5 // pred_fallthru
      _
    %p352 = scmp.le.s32.totalorder 1, %s18
    %p353 = scmp.lt.s32.totalorder %s18, 3
    %p354 = pnand %p352, %p353
    %p355 = pneg %p354
    // Predicated region
    $region57: #{vae_forward.1} parent=5 // pred_check
      _
    $region58: #{vae_forward.1} parent=5 // pred_check_branch
      %357 = sbr.rel (%p354) target = $region60
    $region59: #{vae_forward.1} parent=5 // pred_region
      %s358 = ssub.s32 %s18, 1
      %s359 = smul.u32 32, %s23
      %p360 = scmp.lt.s32.totalorder %s359, 63
      %s361 = scalar_select %p360, %s359, 63
      %s362 = smul.addr %s361, 7
      %s363 = smul.addr %s362, 4
      %s364 = scalar_lea.vmem %s0, %s363
      %p365 = pneg %p44
      %p366 = pneg %p41
      %s367 = smul.u32 32, %s23
      %p368 = scmp.lt.s32.totalorder %s367, 63
      %s369 = scalar_select %p368, %s367, 63
      %s370 = smul.addr %s369, 8
      %s371 = scalar_lea.vmem %s1, %s370
      %p372 = pneg %p70
      %p373 = pneg %p67
      %p374 = pneg %p91
      %p375 = pneg %p88
      %p376 = pneg %p112
      %p377 = pneg %p109
      %p378 = pneg %p133
      %p379 = pneg %p130
      %p380 = pneg %p154
      %p381 = pneg %p151
      %p382 = pneg %p175
      %p383 = pneg %p172
      %p384 = pneg %p196
      %p385 = pneg %p193
      %p386 = pneg %p217
      %p387 = pneg %p214
      %p388 = pneg %p238
      %p389 = pneg %p235
      %p390 = pneg %p264
      %p391 = pneg %p261
      %s392 = smul.u32 32, %s23
      %p393 = scmp.lt.s32.totalorder %s392, 63
      %s394 = scalar_select %p393, %s392, 63
      %s395 = smul.addr %s394, 7
      %s396 = smul.addr %s395, 8
      %s397 = scalar_lea.vmem %s10, %s396
      %p398 = pneg %p290
      %p399 = pneg %p287
      %s400 = smul.u32 32, %s23
      %p401 = scmp.lt.s32.totalorder %s400, 63
      %s402 = scalar_select %p401, %s400, 63
      %s403 = smul.addr %s402, 8
      %s404 = scalar_lea.vmem %s11, %s403
      %s405 = smul.u32 32, %s23
      %p406 = scmp.lt.s32.totalorder %s405, 63
      %s407 = scalar_select %p406, %s405, 63
      %s408 = smul.addr %s407, 7
      %s409 = smul.addr %s408, 4
      %s410 = scalar_lea.vmem %s0, %s409
      %s411 = smul.u32 32, %s23
      %s412 = smul.u32 32, %s23
      %p413 = scmp.lt.s32.totalorder %s412, 63
      %s414 = scalar_select %p413, %s412, 63
      %s415 = smul.addr %s414, 8
      %s416 = scalar_lea.vmem %s1, %s415
      %s417 = smul.u32 32, %s23
      %s418 = smul.u32 32, %s23
      %p419 = scmp.lt.s32.totalorder %s418, 63
      %s420 = scalar_select %p419, %s418, 63
      %s421 = smul.addr %s420, 7
      %s422 = smul.addr %s421, 8
      %s423 = scalar_lea.vmem %s10, %s422
      %s424 = smul.u32 32, %s23
      %s425 = smul.u32 32, %s23
      %p426 = scmp.lt.s32.totalorder %s425, 63
      %s427 = scalar_select %p426, %s425, 63
      %s428 = smul.addr %s427, 8
      %s429 = scalar_lea.vmem %s11, %s428
      %s430 = smul.u32 32, %s23
      %v432 = vld [vmem:[%s410] sm:$0xff]
      %v433 = vld [vmem:[%s410 + $0x8] sm:$0xff]
      %v434 = vld [vmem:[%s410 + $0x10] sm:$0xff]
      %v435 = vld [vmem:[%s410 + $0x18] sm:$0xf]
      %v436 = vld [vmem:[%s410 + $0x1c] sm:$0xff]
      %v437 = vld [vmem:[%s410 + $0x24] sm:$0xff]
      %v438 = vld [vmem:[%s410 + $0x2c] sm:$0xff]
      %v439 = vld [vmem:[%s410 + $0x34] sm:$0xf]
      %v440 = vld [vmem:[%s410 + $0x38] sm:$0xff]
      %v441 = vld [vmem:[%s410 + $0x40] sm:$0xff]
      %v442 = vld [vmem:[%s410 + $0x48] sm:$0xff]
      %v443 = vld [vmem:[%s410 + $0x50] sm:$0xf]
      %v444 = vld [vmem:[%s410 + $0x54] sm:$0xff]
      %v445 = vld [vmem:[%s410 + $0x5c] sm:$0xff]
      %v446 = vld [vmem:[%s410 + $0x64] sm:$0xff]
      %v447 = vld [vmem:[%s410 + $0x6c] sm:$0xf]
      %v448 = vld [vmem:[%s410 + $0x70] sm:$0xff]
      %v449 = vld [vmem:[%s410 + $0x78] sm:$0xff]
      %v450 = vld [vmem:[%s410 + $0x80] sm:$0xff]
      %v451 = vld [vmem:[%s410 + $0x88] sm:$0xf]
      %v452 = vld [vmem:[%s410 + $0x8c] sm:$0xff]
      %v453 = vld [vmem:[%s410 + $0x94] sm:$0xff]
      %v454 = vld [vmem:[%s410 + $0x9c] sm:$0xff]
      %v455 = vld [vmem:[%s410 + $0xa4] sm:$0xf]
      %v456 = vld [vmem:[%s410 + $0xa8] sm:$0xff]
      %v457 = vld [vmem:[%s410 + $0xb0] sm:$0xff]
      %v458 = vld [vmem:[%s410 + $0xb8] sm:$0xff]
      %v459 = vld [vmem:[%s410 + $0xc0] sm:$0xf]
      %v460 = vld [vmem:[%s410 + $0xc4] sm:$0xff]
      %v461 = vld [vmem:[%s410 + $0xcc] sm:$0xff]
      %v462 = vld [vmem:[%s410 + $0xd4] sm:$0xff]
      %v463 = vld [vmem:[%s410 + $0xdc] sm:$0xf]
      %v464 = vld [vmem:[%s410 + $0xe0] sm:$0xff]
      %v465 = vld [vmem:[%s410 + $0xe8] sm:$0xff]
      %v466 = vld [vmem:[%s410 + $0xf0] sm:$0xff]
      %v467 = vld [vmem:[%s410 + $0xf8] sm:$0xf]
      %v468 = vld [vmem:[%s410 + $0xfc] sm:$0xff]
      %v469 = vld [vmem:[%s410 + $0x104] sm:$0xff]
      %v470 = vld [vmem:[%s410 + $0x10c] sm:$0xff]
      %v471 = vld [vmem:[%s410 + $0x114] sm:$0xf]
      %v472 = vld [vmem:[%s410 + $0x118] sm:$0xff]
      %v473 = vld [vmem:[%s410 + $0x120] sm:$0xff]
      %v474 = vld [vmem:[%s410 + $0x128] sm:$0xff]
      %v475 = vld [vmem:[%s410 + $0x130] sm:$0xf]
      %v476 = vld [vmem:[%s410 + $0x134] sm:$0xff]
      %v477 = vld [vmem:[%s410 + $0x13c] sm:$0xff]
      %v478 = vld [vmem:[%s410 + $0x144] sm:$0xff]
      %v479 = vld [vmem:[%s410 + $0x14c] sm:$0xf]
      %v480 = vld [vmem:[%s410 + $0x150] sm:$0xff]
      %v481 = vld [vmem:[%s410 + $0x158] sm:$0xff]
      %v482 = vld [vmem:[%s410 + $0x160] sm:$0xff]
      %v483 = vld [vmem:[%s410 + $0x168] sm:$0xf]
      %v484 = vld [vmem:[%s410 + $0x16c] sm:$0xff]
      %v485 = vld [vmem:[%s410 + $0x174] sm:$0xff]
      %v486 = vld [vmem:[%s410 + $0x17c] sm:$0xff]
      %v487 = vld [vmem:[%s410 + $0x184] sm:$0xf]
      %v488 = vld [vmem:[%s410 + $0x188] sm:$0xff]
      %v489 = vld [vmem:[%s410 + $0x190] sm:$0xff]
      %v490 = vld [vmem:[%s410 + $0x198] sm:$0xff]
      %v491 = vld [vmem:[%s410 + $0x1a0] sm:$0xf]
      %v492 = vld [vmem:[%s410 + $0x1a4] sm:$0xff]
      %v493 = vld [vmem:[%s410 + $0x1ac] sm:$0xff]
      %v494 = vld [vmem:[%s410 + $0x1b4] sm:$0xff]
      %v495 = vld [vmem:[%s410 + $0x1bc] sm:$0xf]
      %v496 = vld [vmem:[%s410 + $0x1c0] sm:$0xff]
      %v497 = vld [vmem:[%s410 + $0x1c8] sm:$0xff]
      %v498 = vld [vmem:[%s410 + $0x1d0] sm:$0xff]
      %v499 = vld [vmem:[%s410 + $0x1d8] sm:$0xf]
      %v500 = vld [vmem:[%s410 + $0x1dc] sm:$0xff]
      %v501 = vld [vmem:[%s410 + $0x1e4] sm:$0xff]
      %v502 = vld [vmem:[%s410 + $0x1ec] sm:$0xff]
      %v503 = vld [vmem:[%s410 + $0x1f4] sm:$0xf]
      %v504 = vld [vmem:[%s410 + $0x1f8] sm:$0xff]
      %v505 = vld [vmem:[%s410 + $0x200] sm:$0xff]
      %v506 = vld [vmem:[%s410 + $0x208] sm:$0xff]
      %v507 = vld [vmem:[%s410 + $0x210] sm:$0xf]
      %v508 = vld [vmem:[%s410 + $0x214] sm:$0xff]
      %v509 = vld [vmem:[%s410 + $0x21c] sm:$0xff]
      %v510 = vld [vmem:[%s410 + $0x224] sm:$0xff]
      %v511 = vld [vmem:[%s410 + $0x22c] sm:$0xf]
      %v512 = vld [vmem:[%s410 + $0x230] sm:$0xff]
      %v513 = vld [vmem:[%s410 + $0x238] sm:$0xff]
      %v514 = vld [vmem:[%s410 + $0x240] sm:$0xff]
      %v515 = vld [vmem:[%s410 + $0x248] sm:$0xf]
      %v516 = vld [vmem:[%s410 + $0x24c] sm:$0xff]
      %v517 = vld [vmem:[%s410 + $0x254] sm:$0xff]
      %v518 = vld [vmem:[%s410 + $0x25c] sm:$0xff]
      %v519 = vld [vmem:[%s410 + $0x264] sm:$0xf]
      %v520 = vld [vmem:[%s410 + $0x268] sm:$0xff]
      %v521 = vld [vmem:[%s410 + $0x270] sm:$0xff]
      %v522 = vld [vmem:[%s410 + $0x278] sm:$0xff]
      %v523 = vld [vmem:[%s410 + $0x280] sm:$0xf]
      %v524 = vld [vmem:[%s410 + $0x284] sm:$0xff]
      %v525 = vld [vmem:[%s410 + $0x28c] sm:$0xff]
      %v526 = vld [vmem:[%s410 + $0x294] sm:$0xff]
      %v527 = vld [vmem:[%s410 + $0x29c] sm:$0xf]
      %v528 = vld [vmem:[%s410 + $0x2a0] sm:$0xff]
      %v529 = vld [vmem:[%s410 + $0x2a8] sm:$0xff]
      %v530 = vld [vmem:[%s410 + $0x2b0] sm:$0xff]
      %v531 = vld [vmem:[%s410 + $0x2b8] sm:$0xf]
      %v532 = vld [vmem:[%s410 + $0x2bc] sm:$0xff]
      %v533 = vld [vmem:[%s410 + $0x2c4] sm:$0xff]
      %v534 = vld [vmem:[%s410 + $0x2cc] sm:$0xff]
      %v535 = vld [vmem:[%s410 + $0x2d4] sm:$0xf]
      %v536 = vld [vmem:[%s410 + $0x2d8] sm:$0xff]
      %v537 = vld [vmem:[%s410 + $0x2e0] sm:$0xff]
      %v538 = vld [vmem:[%s410 + $0x2e8] sm:$0xff]
      %v539 = vld [vmem:[%s410 + $0x2f0] sm:$0xf]
      %v540 = vld [vmem:[%s410 + $0x2f4] sm:$0xff]
      %v541 = vld [vmem:[%s410 + $0x2fc] sm:$0xff]
      %v542 = vld [vmem:[%s410 + $0x304] sm:$0xff]
      %v543 = vld [vmem:[%s410 + $0x30c] sm:$0xf]
      %v544 = vld [vmem:[%s410 + $0x310] sm:$0xff]
      %v545 = vld [vmem:[%s410 + $0x318] sm:$0xff]
      %v546 = vld [vmem:[%s410 + $0x320] sm:$0xff]
      %v547 = vld [vmem:[%s410 + $0x328] sm:$0xf]
      %v548 = vld [vmem:[%s410 + $0x32c] sm:$0xff]
      %v549 = vld [vmem:[%s410 + $0x334] sm:$0xff]
      %v550 = vld [vmem:[%s410 + $0x33c] sm:$0xff]
      %v551 = vld [vmem:[%s410 + $0x344] sm:$0xf]
      %v552 = vld [vmem:[%s410 + $0x348] sm:$0xff]
      %v553 = vld [vmem:[%s410 + $0x350] sm:$0xff]
      %v554 = vld [vmem:[%s410 + $0x358] sm:$0xff]
      %v555 = vld [vmem:[%s410 + $0x360] sm:$0xf]
      %v556 = vld [vmem:[%s410 + $0x364] sm:$0xff]
      %v557 = vld [vmem:[%s410 + $0x36c] sm:$0xff]
      %v558 = vld [vmem:[%s410 + $0x374] sm:$0xff]
      %v559 = vld [vmem:[%s410 + $0x37c] sm:$0xf]
      %v560 = vld [vmem:[%s2] sm:$0xff]
      %v561 = vld [vmem:[%s2 + $0x8] sm:$0xff]
      %v562 = vld [vmem:[%s2 + $0x10] sm:$0xff]
      %v563 = vld [vmem:[%s2 + $0x18] sm:$0xff]
      %v564 = vld [vmem:[%s2 + $0x20] sm:$0xff]
      %v565 = vld [vmem:[%s2 + $0x28] sm:$0xff]
      %v566 = vld [vmem:[%s2 + $0x30] sm:$0xff]
      %v567 = vld [vmem:[%s2 + $0x38] sm:$0xff]
      %v568 = vld [vmem:[%s2 + $0x40] sm:$0xff]
      %v569 = vld [vmem:[%s2 + $0x48] sm:$0xff]
      %v570 = vld [vmem:[%s2 + $0x50] sm:$0xff]
      %v571 = vld [vmem:[%s2 + $0x58] sm:$0xff]
      %v572 = vld [vmem:[%s2 + $0x60] sm:$0xff]
      %v573 = vld [vmem:[%s2 + $0x68] sm:$0xff]
      %v574 = vld [vmem:[%s2 + $0x70] sm:$0xff]
      %v575 = vld [vmem:[%s2 + $0x78] sm:$0xff]
      %v576 = vld [vmem:[%s2 + $0x80] sm:$0xff]
      %v577 = vld [vmem:[%s2 + $0x88] sm:$0xff]
      %v578 = vld [vmem:[%s2 + $0x90] sm:$0xff]
      %v579 = vld [vmem:[%s2 + $0x98] sm:$0xff]
      %v580 = vld [vmem:[%s2 + $0xa0] sm:$0xff]
      %v581 = vld [vmem:[%s2 + $0xa8] sm:$0xff]
      %v582 = vld [vmem:[%s2 + $0xb0] sm:$0xff]
      %v583 = vld [vmem:[%s2 + $0xb8] sm:$0xff]
      %v584 = vld [vmem:[%s2 + $0xc0] sm:$0xff]
      %v585 = vld [vmem:[%s2 + $0xc8] sm:$0xff]
      %v586 = vld [vmem:[%s2 + $0xd0] sm:$0xff]
      %v587 = vld [vmem:[%s2 + $0xd8] sm:$0xff]
      %v588 = vld [vmem:[%s2 + $0xe0] sm:$0xff]
      %v589 = vld [vmem:[%s2 + $0xe8] sm:$0xff]
      %v590 = vld [vmem:[%s2 + $0xf0] sm:$0xff]
      %v591 = vld [vmem:[%s2 + $0xf8] sm:$0xff]
      %v592 = vld [vmem:[%s2 + $0x100] sm:$0xff]
      %v593 = vld [vmem:[%s2 + $0x108] sm:$0xff]
      %v594 = vld [vmem:[%s2 + $0x110] sm:$0xff]
      %v595 = vld [vmem:[%s2 + $0x118] sm:$0xff]
      %v596 = vld [vmem:[%s2 + $0x120] sm:$0xff]
      %v597 = vld [vmem:[%s2 + $0x128] sm:$0xff]
      %v598 = vld [vmem:[%s2 + $0x130] sm:$0xff]
      %v599 = vld [vmem:[%s2 + $0x138] sm:$0xff]
      %v600 = vld [vmem:[%s2 + $0x140] sm:$0xff]
      %v601 = vld [vmem:[%s2 + $0x148] sm:$0xff]
      %v602 = vld [vmem:[%s2 + $0x150] sm:$0xff]
      %v603 = vld [vmem:[%s2 + $0x158] sm:$0xff]
      %v604 = vld [vmem:[%s2 + $0x160] sm:$0xff]
      %v605 = vld [vmem:[%s2 + $0x168] sm:$0xff]
      %v606 = vld [vmem:[%s2 + $0x170] sm:$0xff]
      %v607 = vld [vmem:[%s2 + $0x178] sm:$0xff]
      %v608 = vld [vmem:[%s2 + $0x180] sm:$0xff]
      %v609 = vld [vmem:[%s2 + $0x188] sm:$0xff]
      %v610 = vld [vmem:[%s2 + $0x190] sm:$0xff]
      %v611 = vld [vmem:[%s2 + $0x198] sm:$0xff]
      %v612 = vld [vmem:[%s2 + $0x1a0] sm:$0xff]
      %v613 = vld [vmem:[%s2 + $0x1a8] sm:$0xff]
      %v614 = vld [vmem:[%s2 + $0x1b0] sm:$0xff]
      %v615 = vld [vmem:[%s2 + $0x1b8] sm:$0xff]
      %v616 = vld [vmem:[%s2 + $0x1c0] sm:$0xff]
      %v617 = vld [vmem:[%s2 + $0x1c8] sm:$0xff]
      %v618 = vld [vmem:[%s2 + $0x1d0] sm:$0xff]
      %v619 = vld [vmem:[%s2 + $0x1d8] sm:$0xff]
      %v620 = vld [vmem:[%s2 + $0x1e0] sm:$0xff]
      %v621 = vld [vmem:[%s2 + $0x1e8] sm:$0xff]
      %v622 = vld [vmem:[%s2 + $0x1f0] sm:$0xff]
      %v623 = vld [vmem:[%s2 + $0x1f8] sm:$0xff]
      %v624 = vld [vmem:[%s2 + $0x200] sm:$0xff]
      %v625 = vld [vmem:[%s2 + $0x208] sm:$0xff]
      %v626 = vld [vmem:[%s2 + $0x210] sm:$0xff]
      %v627 = vld [vmem:[%s2 + $0x218] sm:$0xff]
      %v628 = vld [vmem:[%s2 + $0x220] sm:$0xff]
      %v629 = vld [vmem:[%s2 + $0x228] sm:$0xff]
      %v630 = vld [vmem:[%s2 + $0x230] sm:$0xff]
      %v631 = vld [vmem:[%s2 + $0x238] sm:$0xff]
      %v632 = vld [vmem:[%s2 + $0x240] sm:$0xff]
      %v633 = vld [vmem:[%s2 + $0x248] sm:$0xff]
      %v634 = vld [vmem:[%s2 + $0x250] sm:$0xff]
      %v635 = vld [vmem:[%s2 + $0x258] sm:$0xff]
      %v636 = vld [vmem:[%s2 + $0x260] sm:$0xff]
      %v637 = vld [vmem:[%s2 + $0x268] sm:$0xff]
      %v638 = vld [vmem:[%s2 + $0x270] sm:$0xff]
      %v639 = vld [vmem:[%s2 + $0x278] sm:$0xff]
      %v640 = vld [vmem:[%s2 + $0x280] sm:$0xff]
      %v641 = vld [vmem:[%s2 + $0x288] sm:$0xff]
      %v642 = vld [vmem:[%s2 + $0x290] sm:$0xff]
      %v643 = vld [vmem:[%s2 + $0x298] sm:$0xff]
      %v644 = vld [vmem:[%s2 + $0x2a0] sm:$0xff]
      %v645 = vld [vmem:[%s2 + $0x2a8] sm:$0xff]
      %v646 = vld [vmem:[%s2 + $0x2b0] sm:$0xff]
      %v647 = vld [vmem:[%s2 + $0x2b8] sm:$0xff]
      %v648 = vld [vmem:[%s2 + $0x2c0] sm:$0xff]
      %v649 = vld [vmem:[%s2 + $0x2c8] sm:$0xff]
      %v650 = vld [vmem:[%s2 + $0x2d0] sm:$0xff]
      %v651 = vld [vmem:[%s2 + $0x2d8] sm:$0xff]
      %v652 = vld [vmem:[%s2 + $0x2e0] sm:$0xff]
      %v653 = vld [vmem:[%s2 + $0x2e8] sm:$0xff]
      %v654 = vld [vmem:[%s2 + $0x2f0] sm:$0xff]
      %v655 = vld [vmem:[%s2 + $0x2f8] sm:$0xff]
      %v656 = vld [vmem:[%s2 + $0x300] sm:$0xff]
      %v657 = vld [vmem:[%s2 + $0x308] sm:$0xff]
      %v658 = vld [vmem:[%s2 + $0x310] sm:$0xff]
      %v659 = vld [vmem:[%s2 + $0x318] sm:$0xff]
      %v660 = vld [vmem:[%s2 + $0x320] sm:$0xff]
      %v661 = vld [vmem:[%s2 + $0x328] sm:$0xff]
      %v662 = vld [vmem:[%s2 + $0x330] sm:$0xff]
      %v663 = vld [vmem:[%s2 + $0x338] sm:$0xff]
      %v664 = vld [vmem:[%s2 + $0x340] sm:$0xff]
      %v665 = vld [vmem:[%s2 + $0x348] sm:$0xff]
      %v666 = vld [vmem:[%s2 + $0x350] sm:$0xff]
      %v667 = vld [vmem:[%s2 + $0x358] sm:$0xff]
      %v668 = vld [vmem:[%s2 + $0x360] sm:$0xff]
      %v669 = vld [vmem:[%s2 + $0x368] sm:$0xff]
      %v670 = vld [vmem:[%s2 + $0x370] sm:$0xff]
      %v671 = vld [vmem:[%s2 + $0x378] sm:$0xff]
      %v672 = vld [vmem:[%s2 + $0x380] sm:$0xff]
      %v673 = vld [vmem:[%s2 + $0x388] sm:$0xff]
      %v674 = vld [vmem:[%s2 + $0x390] sm:$0xff]
      %v675 = vld [vmem:[%s2 + $0x398] sm:$0xff]
      %v676 = vld [vmem:[%s2 + $0x3a0] sm:$0xff]
      %v677 = vld [vmem:[%s2 + $0x3a8] sm:$0xff]
      %v678 = vld [vmem:[%s2 + $0x3b0] sm:$0xff]
      %v679 = vld [vmem:[%s2 + $0x3b8] sm:$0xff]
      %v680 = vld [vmem:[%s2 + $0x3c0] sm:$0xff]
      %v681 = vld [vmem:[%s2 + $0x3c8] sm:$0xff]
      %v682 = vld [vmem:[%s2 + $0x3d0] sm:$0xff]
      %v683 = vld [vmem:[%s2 + $0x3d8] sm:$0xff]
      %v684 = vld [vmem:[%s2 + $0x3e0] sm:$0xff]
      %v685 = vld [vmem:[%s2 + $0x3e8] sm:$0xff]
      %v686 = vld [vmem:[%s2 + $0x3f0] sm:$0xff]
      %v687 = vld [vmem:[%s2 + $0x3f8] sm:$0xff]
      %v688 = vld [vmem:[%s2 + $0x400] sm:$0xff]
      %v689 = vld [vmem:[%s2 + $0x408] sm:$0xff]
      %v690 = vld [vmem:[%s2 + $0x410] sm:$0xff]
      %v691 = vld [vmem:[%s2 + $0x418] sm:$0xff]
      %v692 = vld [vmem:[%s2 + $0x420] sm:$0xff]
      %v693 = vld [vmem:[%s2 + $0x428] sm:$0xff]
      %v694 = vld [vmem:[%s2 + $0x430] sm:$0xff]
      %v695 = vld [vmem:[%s2 + $0x438] sm:$0xff]
      %v696 = vld [vmem:[%s2 + $0x440] sm:$0xff]
      %v697 = vld [vmem:[%s2 + $0x448] sm:$0xff]
      %v698 = vld [vmem:[%s2 + $0x450] sm:$0xff]
      %v699 = vld [vmem:[%s2 + $0x458] sm:$0xff]
      %v700 = vld [vmem:[%s2 + $0x460] sm:$0xff]
      %v701 = vld [vmem:[%s2 + $0x468] sm:$0xff]
      %v702 = vld [vmem:[%s2 + $0x470] sm:$0xff]
      %v703 = vld [vmem:[%s2 + $0x478] sm:$0xff]
      %v704 = vld [vmem:[%s2 + $0x480] sm:$0xff]
      %v705 = vld [vmem:[%s2 + $0x488] sm:$0xff]
      %v706 = vld [vmem:[%s2 + $0x490] sm:$0xff]
      %v707 = vld [vmem:[%s2 + $0x498] sm:$0xff]
      %v708 = vld [vmem:[%s2 + $0x4a0] sm:$0xff]
      %v709 = vld [vmem:[%s2 + $0x4a8] sm:$0xff]
      %v710 = vld [vmem:[%s2 + $0x4b0] sm:$0xff]
      %v711 = vld [vmem:[%s2 + $0x4b8] sm:$0xff]
      %v712 = vld [vmem:[%s2 + $0x4c0] sm:$0xff]
      %v713 = vld [vmem:[%s2 + $0x4c8] sm:$0xff]
      %v714 = vld [vmem:[%s2 + $0x4d0] sm:$0xff]
      %v715 = vld [vmem:[%s2 + $0x4d8] sm:$0xff]
      %v716 = vld [vmem:[%s2 + $0x4e0] sm:$0xff]
      %v717 = vld [vmem:[%s2 + $0x4e8] sm:$0xff]
      %v718 = vld [vmem:[%s2 + $0x4f0] sm:$0xff]
      %v719 = vld [vmem:[%s2 + $0x4f8] sm:$0xff]
      %v720 = vld [vmem:[%s2 + $0x500] sm:$0xff]
      %v721 = vld [vmem:[%s2 + $0x508] sm:$0xff]
      %v722 = vld [vmem:[%s2 + $0x510] sm:$0xff]
      %v723 = vld [vmem:[%s2 + $0x518] sm:$0xff]
      %v724 = vld [vmem:[%s2 + $0x520] sm:$0xff]
      %v725 = vld [vmem:[%s2 + $0x528] sm:$0xff]
      %v726 = vld [vmem:[%s2 + $0x530] sm:$0xff]
      %v727 = vld [vmem:[%s2 + $0x538] sm:$0xff]
      %v728 = vld [vmem:[%s2 + $0x540] sm:$0xff]
      %v729 = vld [vmem:[%s2 + $0x548] sm:$0xff]
      %v730 = vld [vmem:[%s2 + $0x550] sm:$0xff]
      %v731 = vld [vmem:[%s2 + $0x558] sm:$0xff]
      %v732 = vld [vmem:[%s2 + $0x560] sm:$0xff]
      %v733 = vld [vmem:[%s2 + $0x568] sm:$0xff]
      %v734 = vld [vmem:[%s2 + $0x570] sm:$0xff]
      %v735 = vld [vmem:[%s2 + $0x578] sm:$0xff]
      %v736 = vld [vmem:[%s2 + $0x580] sm:$0xff]
      %v737 = vld [vmem:[%s2 + $0x588] sm:$0xff]
      %v738 = vld [vmem:[%s2 + $0x590] sm:$0xff]
      %v739 = vld [vmem:[%s2 + $0x598] sm:$0xff]
      %v740 = vld [vmem:[%s2 + $0x5a0] sm:$0xff]
      %v741 = vld [vmem:[%s2 + $0x5a8] sm:$0xff]
      %v742 = vld [vmem:[%s2 + $0x5b0] sm:$0xff]
      %v743 = vld [vmem:[%s2 + $0x5b8] sm:$0xff]
      %v744 = vld [vmem:[%s2 + $0x5c0] sm:$0xff]
      %v745 = vld [vmem:[%s2 + $0x5c8] sm:$0xff]
      %v746 = vld [vmem:[%s2 + $0x5d0] sm:$0xff]
      %v747 = vld [vmem:[%s2 + $0x5d8] sm:$0xff]
      %v748 = vld [vmem:[%s2 + $0x5e0] sm:$0xff]
      %v749 = vld [vmem:[%s2 + $0x5e8] sm:$0xff]
      %v750 = vld [vmem:[%s2 + $0x5f0] sm:$0xff]
      %v751 = vld [vmem:[%s2 + $0x5f8] sm:$0xff]
      %v752 = vld [vmem:[%s2 + $0x600] sm:$0xff]
      %v753 = vld [vmem:[%s2 + $0x608] sm:$0xff]
      %v754 = vld [vmem:[%s2 + $0x610] sm:$0xff]
      %v755 = vld [vmem:[%s2 + $0x618] sm:$0xff]
      %v756 = vld [vmem:[%s3] sm:$0xf]
      %v758 = vlaneseq
      %v759 = vshrl.u32 %v758, 7
      %v760 = vsub.s32 0, %v759
      %v761 = vrot.slane %v756, %v760
      %v762 = vlaneseq
      %v763 = vshrl.u32 %v762, 7
      %v764 = vsub.s32 1, %v763
      %v765 = vrot.slane %v756, %v764
      %v766 = vlaneseq
      %v767 = vshrl.u32 %v766, 7
      %v768 = vsub.s32 2, %v767
      %v769 = vrot.slane %v756, %v768
      %v770 = vlaneseq
      %v771 = vshrl.u32 %v770, 7
      %v772 = vsub.s32 3, %v771
      %v773 = vrot.slane %v756, %v772
      %v906 = vunpack.c.l.b16 %v432
      %v907 = vunpack.c.h.b16 %v432
      %v908 = vunpack.c.l.b16 %v433
      %v909 = vunpack.c.h.b16 %v433
      %v910 = vunpack.c.l.b16 %v434
      %v911 = vunpack.c.h.b16 %v434
      %v912 = vunpack.c.l.b16 %v435
      %v913 = vunpack.c.l.b16 %v436
      %v914 = vunpack.c.h.b16 %v436
      %v915 = vunpack.c.l.b16 %v437
      %v916 = vunpack.c.h.b16 %v437
      %v917 = vunpack.c.l.b16 %v438
      %v918 = vunpack.c.h.b16 %v438
      %v919 = vunpack.c.l.b16 %v439
      %v920 = vunpack.c.l.b16 %v440
      %v921 = vunpack.c.h.b16 %v440
      %v922 = vunpack.c.l.b16 %v441
      %v923 = vunpack.c.h.b16 %v441
      %v924 = vunpack.c.l.b16 %v442
      %v925 = vunpack.c.h.b16 %v442
      %v926 = vunpack.c.l.b16 %v443
      %v927 = vunpack.c.l.b16 %v444
      %v928 = vunpack.c.h.b16 %v444
      %v929 = vunpack.c.l.b16 %v445
      %v930 = vunpack.c.h.b16 %v445
      %v931 = vunpack.c.l.b16 %v446
      %v932 = vunpack.c.h.b16 %v446
      %v933 = vunpack.c.l.b16 %v447
      %v934 = vunpack.c.l.b16 %v448
      %v935 = vunpack.c.h.b16 %v448
      %v936 = vunpack.c.l.b16 %v449
      %v937 = vunpack.c.h.b16 %v449
      %v938 = vunpack.c.l.b16 %v450
      %v939 = vunpack.c.h.b16 %v450
      %v940 = vunpack.c.l.b16 %v451
      %v941 = vunpack.c.l.b16 %v452
      %v942 = vunpack.c.h.b16 %v452
      %v943 = vunpack.c.l.b16 %v453
      %v944 = vunpack.c.h.b16 %v453
      %v945 = vunpack.c.l.b16 %v454
      %v946 = vunpack.c.h.b16 %v454
      %v947 = vunpack.c.l.b16 %v455
      %v948 = vunpack.c.l.b16 %v456
      %v949 = vunpack.c.h.b16 %v456
      %v950 = vunpack.c.l.b16 %v457
      %v951 = vunpack.c.h.b16 %v457
      %v952 = vunpack.c.l.b16 %v458
      %v953 = vunpack.c.h.b16 %v458
      %v954 = vunpack.c.l.b16 %v459
      %v955 = vunpack.c.l.b16 %v460
      %v956 = vunpack.c.h.b16 %v460
      %v957 = vunpack.c.l.b16 %v461
      %v958 = vunpack.c.h.b16 %v461
      %v959 = vunpack.c.l.b16 %v462
      %v960 = vunpack.c.h.b16 %v462
      %v961 = vunpack.c.l.b16 %v463
      %v962 = vunpack.c.l.b16 %v464
      %v963 = vunpack.c.h.b16 %v464
      %v964 = vunpack.c.l.b16 %v465
      %v965 = vunpack.c.h.b16 %v465
      %v966 = vunpack.c.l.b16 %v466
      %v967 = vunpack.c.h.b16 %v466
      %v968 = vunpack.c.l.b16 %v467
      %v969 = vunpack.c.l.b16 %v468
      %v970 = vunpack.c.h.b16 %v468
      %v971 = vunpack.c.l.b16 %v469
      %v972 = vunpack.c.h.b16 %v469
      %v973 = vunpack.c.l.b16 %v470
      %v974 = vunpack.c.h.b16 %v470
      %v975 = vunpack.c.l.b16 %v471
      %v976 = vunpack.c.l.b16 %v472
      %v977 = vunpack.c.h.b16 %v472
      %v978 = vunpack.c.l.b16 %v473
      %v979 = vunpack.c.h.b16 %v473
      %v980 = vunpack.c.l.b16 %v474
      %v981 = vunpack.c.h.b16 %v474
      %v982 = vunpack.c.l.b16 %v475
      %v983 = vunpack.c.l.b16 %v476
      %v984 = vunpack.c.h.b16 %v476
      %v985 = vunpack.c.l.b16 %v477
      %v986 = vunpack.c.h.b16 %v477
      %v987 = vunpack.c.l.b16 %v478
      %v988 = vunpack.c.h.b16 %v478
      %v989 = vunpack.c.l.b16 %v479
      %v990 = vunpack.c.l.b16 %v480
      %v991 = vunpack.c.h.b16 %v480
      %v992 = vunpack.c.l.b16 %v481
      %v993 = vunpack.c.h.b16 %v481
      %v994 = vunpack.c.l.b16 %v482
      %v995 = vunpack.c.h.b16 %v482
      %v996 = vunpack.c.l.b16 %v483
      %v997 = vunpack.c.l.b16 %v484
      %v998 = vunpack.c.h.b16 %v484
      %v999 = vunpack.c.l.b16 %v485
      %v1000 = vunpack.c.h.b16 %v485
      %v1001 = vunpack.c.l.b16 %v486
      %v1002 = vunpack.c.h.b16 %v486
      %v1003 = vunpack.c.l.b16 %v487
      %v1004 = vunpack.c.l.b16 %v488
      %v1005 = vunpack.c.h.b16 %v488
      %v1006 = vunpack.c.l.b16 %v489
      %v1007 = vunpack.c.h.b16 %v489
      %v1008 = vunpack.c.l.b16 %v490
      %v1009 = vunpack.c.h.b16 %v490
      %v1010 = vunpack.c.l.b16 %v491
      %v1011 = vunpack.c.l.b16 %v492
      %v1012 = vunpack.c.h.b16 %v492
      %v1013 = vunpack.c.l.b16 %v493
      %v1014 = vunpack.c.h.b16 %v493
      %v1015 = vunpack.c.l.b16 %v494
      %v1016 = vunpack.c.h.b16 %v494
      %v1017 = vunpack.c.l.b16 %v495
      %v1018 = vunpack.c.l.b16 %v496
      %v1019 = vunpack.c.h.b16 %v496
      %v1020 = vunpack.c.l.b16 %v497
      %v1021 = vunpack.c.h.b16 %v497
      %v1022 = vunpack.c.l.b16 %v498
      %v1023 = vunpack.c.h.b16 %v498
      %v1024 = vunpack.c.l.b16 %v499
      %v1025 = vunpack.c.l.b16 %v500
      %v1026 = vunpack.c.h.b16 %v500
      %v1027 = vunpack.c.l.b16 %v501
      %v1028 = vunpack.c.h.b16 %v501
      %v1029 = vunpack.c.l.b16 %v502
      %v1030 = vunpack.c.h.b16 %v502
      %v1031 = vunpack.c.l.b16 %v503
      %v1032 = vunpack.c.l.b16 %v504
      %v1033 = vunpack.c.h.b16 %v504
      %v1034 = vunpack.c.l.b16 %v505
      %v1035 = vunpack.c.h.b16 %v505
      %v1036 = vunpack.c.l.b16 %v506
      %v1037 = vunpack.c.h.b16 %v506
      %v1038 = vunpack.c.l.b16 %v507
      %v1039 = vunpack.c.l.b16 %v508
      %v1040 = vunpack.c.h.b16 %v508
      %v1041 = vunpack.c.l.b16 %v509
      %v1042 = vunpack.c.h.b16 %v509
      %v1043 = vunpack.c.l.b16 %v510
      %v1044 = vunpack.c.h.b16 %v510
      %v1045 = vunpack.c.l.b16 %v511
      %v1046 = vunpack.c.l.b16 %v512
      %v1047 = vunpack.c.h.b16 %v512
      %v1048 = vunpack.c.l.b16 %v513
      %v1049 = vunpack.c.h.b16 %v513
      %v1050 = vunpack.c.l.b16 %v514
      %v1051 = vunpack.c.h.b16 %v514
      %v1052 = vunpack.c.l.b16 %v515
      %v1053 = vunpack.c.l.b16 %v516
      %v1054 = vunpack.c.h.b16 %v516
      %v1055 = vunpack.c.l.b16 %v517
      %v1056 = vunpack.c.h.b16 %v517
      %v1057 = vunpack.c.l.b16 %v518
      %v1058 = vunpack.c.h.b16 %v518
      %v1059 = vunpack.c.l.b16 %v519
      %v1060 = vunpack.c.l.b16 %v520
      %v1061 = vunpack.c.h.b16 %v520
      %v1062 = vunpack.c.l.b16 %v521
      %v1063 = vunpack.c.h.b16 %v521
      %v1064 = vunpack.c.l.b16 %v522
      %v1065 = vunpack.c.h.b16 %v522
      %v1066 = vunpack.c.l.b16 %v523
      %v1067 = vunpack.c.l.b16 %v524
      %v1068 = vunpack.c.h.b16 %v524
      %v1069 = vunpack.c.l.b16 %v525
      %v1070 = vunpack.c.h.b16 %v525
      %v1071 = vunpack.c.l.b16 %v526
      %v1072 = vunpack.c.h.b16 %v526
      %v1073 = vunpack.c.l.b16 %v527
      %v1074 = vunpack.c.l.b16 %v528
      %v1075 = vunpack.c.h.b16 %v528
      %v1076 = vunpack.c.l.b16 %v529
      %v1077 = vunpack.c.h.b16 %v529
      %v1078 = vunpack.c.l.b16 %v530
      %v1079 = vunpack.c.h.b16 %v530
      %v1080 = vunpack.c.l.b16 %v531
      %v1081 = vunpack.c.l.b16 %v532
      %v1082 = vunpack.c.h.b16 %v532
      %v1083 = vunpack.c.l.b16 %v533
      %v1084 = vunpack.c.h.b16 %v533
      %v1085 = vunpack.c.l.b16 %v534
      %v1086 = vunpack.c.h.b16 %v534
      %v1087 = vunpack.c.l.b16 %v535
      %v1088 = vunpack.c.l.b16 %v536
      %v1089 = vunpack.c.h.b16 %v536
      %v1090 = vunpack.c.l.b16 %v537
      %v1091 = vunpack.c.h.b16 %v537
      %v1092 = vunpack.c.l.b16 %v538
      %v1093 = vunpack.c.h.b16 %v538
      %v1094 = vunpack.c.l.b16 %v539
      %v1095 = vunpack.c.l.b16 %v540
      %v1096 = vunpack.c.h.b16 %v540
      %v1097 = vunpack.c.l.b16 %v541
      %v1098 = vunpack.c.h.b16 %v541
      %v1099 = vunpack.c.l.b16 %v542
      %v1100 = vunpack.c.h.b16 %v542
      %v1101 = vunpack.c.l.b16 %v543
      %v1102 = vunpack.c.l.b16 %v544
      %v1103 = vunpack.c.h.b16 %v544
      %v1104 = vunpack.c.l.b16 %v545
      %v1105 = vunpack.c.h.b16 %v545
      %v1106 = vunpack.c.l.b16 %v546
      %v1107 = vunpack.c.h.b16 %v546
      %v1108 = vunpack.c.l.b16 %v547
      %v1109 = vunpack.c.l.b16 %v548
      %v1110 = vunpack.c.h.b16 %v548
      %v1111 = vunpack.c.l.b16 %v549
      %v1112 = vunpack.c.h.b16 %v549
      %v1113 = vunpack.c.l.b16 %v550
      %v1114 = vunpack.c.h.b16 %v550
      %v1115 = vunpack.c.l.b16 %v551
      %v1116 = vunpack.c.l.b16 %v552
      %v1117 = vunpack.c.h.b16 %v552
      %v1118 = vunpack.c.l.b16 %v553
      %v1119 = vunpack.c.h.b16 %v553
      %v1120 = vunpack.c.l.b16 %v554
      %v1121 = vunpack.c.h.b16 %v554
      %v1122 = vunpack.c.l.b16 %v555
      %v1123 = vunpack.c.l.b16 %v556
      %v1124 = vunpack.c.h.b16 %v556
      %v1125 = vunpack.c.l.b16 %v557
      %v1126 = vunpack.c.h.b16 %v557
      %v1127 = vunpack.c.l.b16 %v558
      %v1128 = vunpack.c.h.b16 %v558
      %v1129 = vunpack.c.l.b16 %v559
      %v1130 = vpack.c.b16 %v913, %v906
      %v1131 = vpack.c.b16 %v914, %v907
      %v1132 = vpack.c.b16 %v915, %v908
      %v1133 = vpack.c.b16 %v916, %v909
      %v1134 = vpack.c.b16 %v917, %v910
      %v1135 = vpack.c.b16 %v918, %v911
      %v1136 = vpack.c.b16 %v919, %v912
      %v1137 = vpack.c.b16 %v927, %v920
      %v1138 = vpack.c.b16 %v928, %v921
      %v1139 = vpack.c.b16 %v929, %v922
      %v1140 = vpack.c.b16 %v930, %v923
      %v1141 = vpack.c.b16 %v931, %v924
      %v1142 = vpack.c.b16 %v932, %v925
      %v1143 = vpack.c.b16 %v933, %v926
      %v1144 = vpack.c.b16 %v941, %v934
      %v1145 = vpack.c.b16 %v942, %v935
      %v1146 = vpack.c.b16 %v943, %v936
      %v1147 = vpack.c.b16 %v944, %v937
      %v1148 = vpack.c.b16 %v945, %v938
      %v1149 = vpack.c.b16 %v946, %v939
      %v1150 = vpack.c.b16 %v947, %v940
      %v1151 = vpack.c.b16 %v955, %v948
      %v1152 = vpack.c.b16 %v956, %v949
      %v1153 = vpack.c.b16 %v957, %v950
      %v1154 = vpack.c.b16 %v958, %v951
      %v1155 = vpack.c.b16 %v959, %v952
      %v1156 = vpack.c.b16 %v960, %v953
      %v1157 = vpack.c.b16 %v961, %v954
      %v1158 = vpack.c.b16 %v969, %v962
      %v1159 = vpack.c.b16 %v970, %v963
      %v1160 = vpack.c.b16 %v971, %v964
      %v1161 = vpack.c.b16 %v972, %v965
      %v1162 = vpack.c.b16 %v973, %v966
      %v1163 = vpack.c.b16 %v974, %v967
      %v1164 = vpack.c.b16 %v975, %v968
      %v1165 = vpack.c.b16 %v983, %v976
      %v1166 = vpack.c.b16 %v984, %v977
      %v1167 = vpack.c.b16 %v985, %v978
      %v1168 = vpack.c.b16 %v986, %v979
      %v1169 = vpack.c.b16 %v987, %v980
      %v1170 = vpack.c.b16 %v988, %v981
      %v1171 = vpack.c.b16 %v989, %v982
      %v1172 = vpack.c.b16 %v997, %v990
      %v1173 = vpack.c.b16 %v998, %v991
      %v1174 = vpack.c.b16 %v999, %v992
      %v1175 = vpack.c.b16 %v1000, %v993
      %v1176 = vpack.c.b16 %v1001, %v994
      %v1177 = vpack.c.b16 %v1002, %v995
      %v1178 = vpack.c.b16 %v1003, %v996
      %v1179 = vpack.c.b16 %v1011, %v1004
      %v1180 = vpack.c.b16 %v1012, %v1005
      %v1181 = vpack.c.b16 %v1013, %v1006
      %v1182 = vpack.c.b16 %v1014, %v1007
      %v1183 = vpack.c.b16 %v1015, %v1008
      %v1184 = vpack.c.b16 %v1016, %v1009
      %v1185 = vpack.c.b16 %v1017, %v1010
      %v1186 = vpack.c.b16 %v1025, %v1018
      %v1187 = vpack.c.b16 %v1026, %v1019
      %v1188 = vpack.c.b16 %v1027, %v1020
      %v1189 = vpack.c.b16 %v1028, %v1021
      %v1190 = vpack.c.b16 %v1029, %v1022
      %v1191 = vpack.c.b16 %v1030, %v1023
      %v1192 = vpack.c.b16 %v1031, %v1024
      %v1193 = vpack.c.b16 %v1039, %v1032
      %v1194 = vpack.c.b16 %v1040, %v1033
      %v1195 = vpack.c.b16 %v1041, %v1034
      %v1196 = vpack.c.b16 %v1042, %v1035
      %v1197 = vpack.c.b16 %v1043, %v1036
      %v1198 = vpack.c.b16 %v1044, %v1037
      %v1199 = vpack.c.b16 %v1045, %v1038
      %v1200 = vpack.c.b16 %v1053, %v1046
      %v1201 = vpack.c.b16 %v1054, %v1047
      %v1202 = vpack.c.b16 %v1055, %v1048
      %v1203 = vpack.c.b16 %v1056, %v1049
      %v1204 = vpack.c.b16 %v1057, %v1050
      %v1205 = vpack.c.b16 %v1058, %v1051
      %v1206 = vpack.c.b16 %v1059, %v1052
      %v1207 = vpack.c.b16 %v1067, %v1060
      %v1208 = vpack.c.b16 %v1068, %v1061
      %v1209 = vpack.c.b16 %v1069, %v1062
      %v1210 = vpack.c.b16 %v1070, %v1063
      %v1211 = vpack.c.b16 %v1071, %v1064
      %v1212 = vpack.c.b16 %v1072, %v1065
      %v1213 = vpack.c.b16 %v1073, %v1066
      %v1214 = vpack.c.b16 %v1081, %v1074
      %v1215 = vpack.c.b16 %v1082, %v1075
      %v1216 = vpack.c.b16 %v1083, %v1076
      %v1217 = vpack.c.b16 %v1084, %v1077
      %v1218 = vpack.c.b16 %v1085, %v1078
      %v1219 = vpack.c.b16 %v1086, %v1079
      %v1220 = vpack.c.b16 %v1087, %v1080
      %v1221 = vpack.c.b16 %v1095, %v1088
      %v1222 = vpack.c.b16 %v1096, %v1089
      %v1223 = vpack.c.b16 %v1097, %v1090
      %v1224 = vpack.c.b16 %v1098, %v1091
      %v1225 = vpack.c.b16 %v1099, %v1092
      %v1226 = vpack.c.b16 %v1100, %v1093
      %v1227 = vpack.c.b16 %v1101, %v1094
      %v1228 = vpack.c.b16 %v1109, %v1102
      %v1229 = vpack.c.b16 %v1110, %v1103
      %v1230 = vpack.c.b16 %v1111, %v1104
      %v1231 = vpack.c.b16 %v1112, %v1105
      %v1232 = vpack.c.b16 %v1113, %v1106
      %v1233 = vpack.c.b16 %v1114, %v1107
      %v1234 = vpack.c.b16 %v1115, %v1108
      %v1235 = vpack.c.b16 %v1123, %v1116
      %v1236 = vpack.c.b16 %v1124, %v1117
      %v1237 = vpack.c.b16 %v1125, %v1118
      %v1238 = vpack.c.b16 %v1126, %v1119
      %v1239 = vpack.c.b16 %v1127, %v1120
      %v1240 = vpack.c.b16 %v1128, %v1121
      %v1241 = vpack.c.b16 %v1129, %v1122
      %v1534 = vunpack.c.l.b16 %v560
      %v1535 = vunpack.c.h.b16 %v560
      %v1536 = vunpack.c.l.b16 %v561
      %v1537 = vunpack.c.h.b16 %v561
      %v1538 = vunpack.c.l.b16 %v562
      %v1539 = vunpack.c.h.b16 %v562
      %v1540 = vunpack.c.l.b16 %v563
      %v1541 = vunpack.c.h.b16 %v563
      %v1542 = vunpack.c.l.b16 %v564
      %v1543 = vunpack.c.h.b16 %v564
      %v1544 = vunpack.c.l.b16 %v565
      %v1545 = vunpack.c.h.b16 %v565
      %v1546 = vunpack.c.l.b16 %v566
      %v1547 = vunpack.c.h.b16 %v566
      %v1548 = vunpack.c.l.b16 %v567
      %v1549 = vunpack.c.h.b16 %v567
      %v1550 = vunpack.c.l.b16 %v568
      %v1551 = vunpack.c.h.b16 %v568
      %v1552 = vunpack.c.l.b16 %v569
      %v1553 = vunpack.c.h.b16 %v569
      %v1554 = vunpack.c.l.b16 %v570
      %v1555 = vunpack.c.h.b16 %v570
      %v1556 = vunpack.c.l.b16 %v571
      %v1557 = vunpack.c.h.b16 %v571
      %v1558 = vunpack.c.l.b16 %v572
      %v1559 = vunpack.c.h.b16 %v572
      %v1560 = vunpack.c.l.b16 %v573
      %v1561 = vunpack.c.h.b16 %v573
      %v1562 = vunpack.c.l.b16 %v574
      %v1563 = vunpack.c.h.b16 %v574
      %v1564 = vunpack.c.l.b16 %v575
      %v1565 = vunpack.c.h.b16 %v575
      %v1566 = vunpack.c.l.b16 %v576
      %v1567 = vunpack.c.h.b16 %v576
      %v1568 = vunpack.c.l.b16 %v577
      %v1569 = vunpack.c.h.b16 %v577
      %v1570 = vunpack.c.l.b16 %v578
      %v1571 = vunpack.c.h.b16 %v578
      %v1572 = vunpack.c.l.b16 %v579
      %v1573 = vunpack.c.h.b16 %v579
      %v1574 = vunpack.c.l.b16 %v580
      %v1575 = vunpack.c.h.b16 %v580
      %v1576 = vunpack.c.l.b16 %v581
      %v1577 = vunpack.c.h.b16 %v581
      %v1578 = vunpack.c.l.b16 %v582
      %v1579 = vunpack.c.h.b16 %v582
      %v1580 = vunpack.c.l.b16 %v583
      %v1581 = vunpack.c.h.b16 %v583
      %v1582 = vunpack.c.l.b16 %v584
      %v1583 = vunpack.c.h.b16 %v584
      %v1584 = vunpack.c.l.b16 %v585
      %v1585 = vunpack.c.h.b16 %v585
      %v1586 = vunpack.c.l.b16 %v586
      %v1587 = vunpack.c.h.b16 %v586
      %v1588 = vunpack.c.l.b16 %v587
      %v1589 = vunpack.c.h.b16 %v587
      %v1590 = vunpack.c.l.b16 %v588
      %v1591 = vunpack.c.h.b16 %v588
      %v1592 = vunpack.c.l.b16 %v589
      %v1593 = vunpack.c.h.b16 %v589
      %v1594 = vunpack.c.l.b16 %v590
      %v1595 = vunpack.c.h.b16 %v590
      %v1596 = vunpack.c.l.b16 %v591
      %v1597 = vunpack.c.h.b16 %v591
      %v1598 = vunpack.c.l.b16 %v592
      %v1599 = vunpack.c.h.b16 %v592
      %v1600 = vunpack.c.l.b16 %v593
      %v1601 = vunpack.c.h.b16 %v593
      %v1602 = vunpack.c.l.b16 %v594
      %v1603 = vunpack.c.h.b16 %v594
      %v1604 = vunpack.c.l.b16 %v595
      %v1605 = vunpack.c.h.b16 %v595
      %v1606 = vunpack.c.l.b16 %v596
      %v1607 = vunpack.c.h.b16 %v596
      %v1608 = vunpack.c.l.b16 %v597
      %v1609 = vunpack.c.h.b16 %v597
      %v1610 = vunpack.c.l.b16 %v598
      %v1611 = vunpack.c.h.b16 %v598
      %v1612 = vunpack.c.l.b16 %v599
      %v1613 = vunpack.c.h.b16 %v599
      %v1614 = vunpack.c.l.b16 %v600
      %v1615 = vunpack.c.h.b16 %v600
      %v1616 = vunpack.c.l.b16 %v601
      %v1617 = vunpack.c.h.b16 %v601
      %v1618 = vunpack.c.l.b16 %v602
      %v1619 = vunpack.c.h.b16 %v602
      %v1620 = vunpack.c.l.b16 %v603
      %v1621 = vunpack.c.h.b16 %v603
      %v1622 = vunpack.c.l.b16 %v604
      %v1623 = vunpack.c.h.b16 %v604
      %v1624 = vunpack.c.l.b16 %v605
      %v1625 = vunpack.c.h.b16 %v605
      %v1626 = vunpack.c.l.b16 %v606
      %v1627 = vunpack.c.h.b16 %v606
      %v1628 = vunpack.c.l.b16 %v607
      %v1629 = vunpack.c.h.b16 %v607
      %v1630 = vunpack.c.l.b16 %v608
      %v1631 = vunpack.c.h.b16 %v608
      %v1632 = vunpack.c.l.b16 %v609
      %v1633 = vunpack.c.h.b16 %v609
      %v1634 = vunpack.c.l.b16 %v610
      %v1635 = vunpack.c.h.b16 %v610
      %v1636 = vunpack.c.l.b16 %v611
      %v1637 = vunpack.c.h.b16 %v611
      %v1638 = vunpack.c.l.b16 %v612
      %v1639 = vunpack.c.h.b16 %v612
      %v1640 = vunpack.c.l.b16 %v613
      %v1641 = vunpack.c.h.b16 %v613
      %v1642 = vunpack.c.l.b16 %v614
      %v1643 = vunpack.c.h.b16 %v614
      %v1644 = vunpack.c.l.b16 %v615
      %v1645 = vunpack.c.h.b16 %v615
      %v1646 = vunpack.c.l.b16 %v616
      %v1647 = vunpack.c.h.b16 %v616
      %v1648 = vunpack.c.l.b16 %v617
      %v1649 = vunpack.c.h.b16 %v617
      %v1650 = vunpack.c.l.b16 %v618
      %v1651 = vunpack.c.h.b16 %v618
      %v1652 = vunpack.c.l.b16 %v619
      %v1653 = vunpack.c.h.b16 %v619
      %v1654 = vunpack.c.l.b16 %v620
      %v1655 = vunpack.c.h.b16 %v620
      %v1656 = vunpack.c.l.b16 %v621
      %v1657 = vunpack.c.h.b16 %v621
      %v1658 = vunpack.c.l.b16 %v622
      %v1659 = vunpack.c.h.b16 %v622
      %v1660 = vunpack.c.l.b16 %v623
      %v1661 = vunpack.c.h.b16 %v623
      %v1662 = vunpack.c.l.b16 %v624
      %v1663 = vunpack.c.h.b16 %v624
      %v1664 = vunpack.c.l.b16 %v625
      %v1665 = vunpack.c.h.b16 %v625
      %v1666 = vunpack.c.l.b16 %v626
      %v1667 = vunpack.c.h.b16 %v626
      %v1668 = vunpack.c.l.b16 %v627
      %v1669 = vunpack.c.h.b16 %v627
      %v1670 = vunpack.c.l.b16 %v628
      %v1671 = vunpack.c.h.b16 %v628
      %v1672 = vunpack.c.l.b16 %v629
      %v1673 = vunpack.c.h.b16 %v629
      %v1674 = vunpack.c.l.b16 %v630
      %v1675 = vunpack.c.h.b16 %v630
      %v1676 = vunpack.c.l.b16 %v631
      %v1677 = vunpack.c.h.b16 %v631
      %v1678 = vunpack.c.l.b16 %v632
      %v1679 = vunpack.c.h.b16 %v632
      %v1680 = vunpack.c.l.b16 %v633
      %v1681 = vunpack.c.h.b16 %v633
      %v1682 = vunpack.c.l.b16 %v634
      %v1683 = vunpack.c.h.b16 %v634
      %v1684 = vunpack.c.l.b16 %v635
      %v1685 = vunpack.c.h.b16 %v635
      %v1686 = vunpack.c.l.b16 %v636
      %v1687 = vunpack.c.h.b16 %v636
      %v1688 = vunpack.c.l.b16 %v637
      %v1689 = vunpack.c.h.b16 %v637
      %v1690 = vunpack.c.l.b16 %v638
      %v1691 = vunpack.c.h.b16 %v638
      %v1692 = vunpack.c.l.b16 %v639
      %v1693 = vunpack.c.h.b16 %v639
      %v1694 = vunpack.c.l.b16 %v640
      %v1695 = vunpack.c.h.b16 %v640
      %v1696 = vunpack.c.l.b16 %v641
      %v1697 = vunpack.c.h.b16 %v641
      %v1698 = vunpack.c.l.b16 %v642
      %v1699 = vunpack.c.h.b16 %v642
      %v1700 = vunpack.c.l.b16 %v643
      %v1701 = vunpack.c.h.b16 %v643
      %v1702 = vunpack.c.l.b16 %v644
      %v1703 = vunpack.c.h.b16 %v644
      %v1704 = vunpack.c.l.b16 %v645
      %v1705 = vunpack.c.h.b16 %v645
      %v1706 = vunpack.c.l.b16 %v646
      %v1707 = vunpack.c.h.b16 %v646
      %v1708 = vunpack.c.l.b16 %v647
      %v1709 = vunpack.c.h.b16 %v647
      %v1710 = vunpack.c.l.b16 %v648
      %v1711 = vunpack.c.h.b16 %v648
      %v1712 = vunpack.c.l.b16 %v649
      %v1713 = vunpack.c.h.b16 %v649
      %v1714 = vunpack.c.l.b16 %v650
      %v1715 = vunpack.c.h.b16 %v650
      %v1716 = vunpack.c.l.b16 %v651
      %v1717 = vunpack.c.h.b16 %v651
      %v1718 = vunpack.c.l.b16 %v652
      %v1719 = vunpack.c.h.b16 %v652
      %v1720 = vunpack.c.l.b16 %v653
      %v1721 = vunpack.c.h.b16 %v653
      %v1722 = vunpack.c.l.b16 %v654
      %v1723 = vunpack.c.h.b16 %v654
      %v1724 = vunpack.c.l.b16 %v655
      %v1725 = vunpack.c.h.b16 %v655
      %v1726 = vunpack.c.l.b16 %v656
      %v1727 = vunpack.c.h.b16 %v656
      %v1728 = vunpack.c.l.b16 %v657
      %v1729 = vunpack.c.h.b16 %v657
      %v1730 = vunpack.c.l.b16 %v658
      %v1731 = vunpack.c.h.b16 %v658
      %v1732 = vunpack.c.l.b16 %v659
      %v1733 = vunpack.c.h.b16 %v659
      %v1734 = vunpack.c.l.b16 %v660
      %v1735 = vunpack.c.h.b16 %v660
      %v1736 = vunpack.c.l.b16 %v661
      %v1737 = vunpack.c.h.b16 %v661
      %v1738 = vunpack.c.l.b16 %v662
      %v1739 = vunpack.c.h.b16 %v662
      %v1740 = vunpack.c.l.b16 %v663
      %v1741 = vunpack.c.h.b16 %v663
      %v1742 = vunpack.c.l.b16 %v664
      %v1743 = vunpack.c.h.b16 %v664
      %v1744 = vunpack.c.l.b16 %v665
      %v1745 = vunpack.c.h.b16 %v665
      %v1746 = vunpack.c.l.b16 %v666
      %v1747 = vunpack.c.h.b16 %v666
      %v1748 = vunpack.c.l.b16 %v667
      %v1749 = vunpack.c.h.b16 %v667
      %v1750 = vunpack.c.l.b16 %v668
      %v1751 = vunpack.c.h.b16 %v668
      %v1752 = vunpack.c.l.b16 %v669
      %v1753 = vunpack.c.h.b16 %v669
      %v1754 = vunpack.c.l.b16 %v670
      %v1755 = vunpack.c.h.b16 %v670
      %v1756 = vunpack.c.l.b16 %v671
      %v1757 = vunpack.c.h.b16 %v671
      %v1758 = vunpack.c.l.b16 %v672
      %v1759 = vunpack.c.h.b16 %v672
      %v1760 = vunpack.c.l.b16 %v673
      %v1761 = vunpack.c.h.b16 %v673
      %v1762 = vunpack.c.l.b16 %v674
      %v1763 = vunpack.c.h.b16 %v674
      %v1764 = vunpack.c.l.b16 %v675
      %v1765 = vunpack.c.h.b16 %v675
      %v1766 = vunpack.c.l.b16 %v676
      %v1767 = vunpack.c.h.b16 %v676
      %v1768 = vunpack.c.l.b16 %v677
      %v1769 = vunpack.c.h.b16 %v677
      %v1770 = vunpack.c.l.b16 %v678
      %v1771 = vunpack.c.h.b16 %v678
      %v1772 = vunpack.c.l.b16 %v679
      %v1773 = vunpack.c.h.b16 %v679
      %v1774 = vunpack.c.l.b16 %v680
      %v1775 = vunpack.c.h.b16 %v680
      %v1776 = vunpack.c.l.b16 %v681
      %v1777 = vunpack.c.h.b16 %v681
      %v1778 = vunpack.c.l.b16 %v682
      %v1779 = vunpack.c.h.b16 %v682
      %v1780 = vunpack.c.l.b16 %v683
      %v1781 = vunpack.c.h.b16 %v683
      %v1782 = vunpack.c.l.b16 %v684
      %v1783 = vunpack.c.h.b16 %v684
      %v1784 = vunpack.c.l.b16 %v685
      %v1785 = vunpack.c.h.b16 %v685
      %v1786 = vunpack.c.l.b16 %v686
      %v1787 = vunpack.c.h.b16 %v686
      %v1788 = vunpack.c.l.b16 %v687
      %v1789 = vunpack.c.h.b16 %v687
      %v1790 = vunpack.c.l.b16 %v688
      %v1791 = vunpack.c.h.b16 %v688
      %v1792 = vunpack.c.l.b16 %v689
      %v1793 = vunpack.c.h.b16 %v689
      %v1794 = vunpack.c.l.b16 %v690
      %v1795 = vunpack.c.h.b16 %v690
      %v1796 = vunpack.c.l.b16 %v691
      %v1797 = vunpack.c.h.b16 %v691
      %v1798 = vunpack.c.l.b16 %v692
      %v1799 = vunpack.c.h.b16 %v692
      %v1800 = vunpack.c.l.b16 %v693
      %v1801 = vunpack.c.h.b16 %v693
      %v1802 = vunpack.c.l.b16 %v694
      %v1803 = vunpack.c.h.b16 %v694
      %v1804 = vunpack.c.l.b16 %v695
      %v1805 = vunpack.c.h.b16 %v695
      %v1806 = vunpack.c.l.b16 %v696
      %v1807 = vunpack.c.h.b16 %v696
      %v1808 = vunpack.c.l.b16 %v697
      %v1809 = vunpack.c.h.b16 %v697
      %v1810 = vunpack.c.l.b16 %v698
      %v1811 = vunpack.c.h.b16 %v698
      %v1812 = vunpack.c.l.b16 %v699
      %v1813 = vunpack.c.h.b16 %v699
      %v1814 = vunpack.c.l.b16 %v700
      %v1815 = vunpack.c.h.b16 %v700
      %v1816 = vunpack.c.l.b16 %v701
      %v1817 = vunpack.c.h.b16 %v701
      %v1818 = vunpack.c.l.b16 %v702
      %v1819 = vunpack.c.h.b16 %v702
      %v1820 = vunpack.c.l.b16 %v703
      %v1821 = vunpack.c.h.b16 %v703
      %v1822 = vunpack.c.l.b16 %v704
      %v1823 = vunpack.c.h.b16 %v704
      %v1824 = vunpack.c.l.b16 %v705
      %v1825 = vunpack.c.h.b16 %v705
      %v1826 = vunpack.c.l.b16 %v706
      %v1827 = vunpack.c.h.b16 %v706
      %v1828 = vunpack.c.l.b16 %v707
      %v1829 = vunpack.c.h.b16 %v707
      %v1830 = vunpack.c.l.b16 %v708
      %v1831 = vunpack.c.h.b16 %v708
      %v1832 = vunpack.c.l.b16 %v709
      %v1833 = vunpack.c.h.b16 %v709
      %v1834 = vunpack.c.l.b16 %v710
      %v1835 = vunpack.c.h.b16 %v710
      %v1836 = vunpack.c.l.b16 %v711
      %v1837 = vunpack.c.h.b16 %v711
      %v1838 = vunpack.c.l.b16 %v712
      %v1839 = vunpack.c.h.b16 %v712
      %v1840 = vunpack.c.l.b16 %v713
      %v1841 = vunpack.c.h.b16 %v713
      %v1842 = vunpack.c.l.b16 %v714
      %v1843 = vunpack.c.h.b16 %v714
      %v1844 = vunpack.c.l.b16 %v715
      %v1845 = vunpack.c.h.b16 %v715
      %v1846 = vunpack.c.l.b16 %v716
      %v1847 = vunpack.c.h.b16 %v716
      %v1848 = vunpack.c.l.b16 %v717
      %v1849 = vunpack.c.h.b16 %v717
      %v1850 = vunpack.c.l.b16 %v718
      %v1851 = vunpack.c.h.b16 %v718
      %v1852 = vunpack.c.l.b16 %v719
      %v1853 = vunpack.c.h.b16 %v719
      %v1854 = vunpack.c.l.b16 %v720
      %v1855 = vunpack.c.h.b16 %v720
      %v1856 = vunpack.c.l.b16 %v721
      %v1857 = vunpack.c.h.b16 %v721
      %v1858 = vunpack.c.l.b16 %v722
      %v1859 = vunpack.c.h.b16 %v722
      %v1860 = vunpack.c.l.b16 %v723
      %v1861 = vunpack.c.h.b16 %v723
      %v1862 = vunpack.c.l.b16 %v724
      %v1863 = vunpack.c.h.b16 %v724
      %v1864 = vunpack.c.l.b16 %v725
      %v1865 = vunpack.c.h.b16 %v725
      %v1866 = vunpack.c.l.b16 %v726
      %v1867 = vunpack.c.h.b16 %v726
      %v1868 = vunpack.c.l.b16 %v727
      %v1869 = vunpack.c.h.b16 %v727
      %v1870 = vunpack.c.l.b16 %v728
      %v1871 = vunpack.c.h.b16 %v728
      %v1872 = vunpack.c.l.b16 %v729
      %v1873 = vunpack.c.h.b16 %v729
      %v1874 = vunpack.c.l.b16 %v730
      %v1875 = vunpack.c.h.b16 %v730
      %v1876 = vunpack.c.l.b16 %v731
      %v1877 = vunpack.c.h.b16 %v731
      %v1878 = vunpack.c.l.b16 %v732
      %v1879 = vunpack.c.h.b16 %v732
      %v1880 = vunpack.c.l.b16 %v733
      %v1881 = vunpack.c.h.b16 %v733
      %v1882 = vunpack.c.l.b16 %v734
      %v1883 = vunpack.c.h.b16 %v734
      %v1884 = vunpack.c.l.b16 %v735
      %v1885 = vunpack.c.h.b16 %v735
      %v1886 = vunpack.c.l.b16 %v736
      %v1887 = vunpack.c.h.b16 %v736
      %v1888 = vunpack.c.l.b16 %v737
      %v1889 = vunpack.c.h.b16 %v737
      %v1890 = vunpack.c.l.b16 %v738
      %v1891 = vunpack.c.h.b16 %v738
      %v1892 = vunpack.c.l.b16 %v739
      %v1893 = vunpack.c.h.b16 %v739
      %v1894 = vunpack.c.l.b16 %v740
      %v1895 = vunpack.c.h.b16 %v740
      %v1896 = vunpack.c.l.b16 %v741
      %v1897 = vunpack.c.h.b16 %v741
      %v1898 = vunpack.c.l.b16 %v742
      %v1899 = vunpack.c.h.b16 %v742
      %v1900 = vunpack.c.l.b16 %v743
      %v1901 = vunpack.c.h.b16 %v743
      %v1902 = vunpack.c.l.b16 %v744
      %v1903 = vunpack.c.h.b16 %v744
      %v1904 = vunpack.c.l.b16 %v745
      %v1905 = vunpack.c.h.b16 %v745
      %v1906 = vunpack.c.l.b16 %v746
      %v1907 = vunpack.c.h.b16 %v746
      %v1908 = vunpack.c.l.b16 %v747
      %v1909 = vunpack.c.h.b16 %v747
      %v1910 = vunpack.c.l.b16 %v748
      %v1911 = vunpack.c.h.b16 %v748
      %v1912 = vunpack.c.l.b16 %v749
      %v1913 = vunpack.c.h.b16 %v749
      %v1914 = vunpack.c.l.b16 %v750
      %v1915 = vunpack.c.h.b16 %v750
      %v1916 = vunpack.c.l.b16 %v751
      %v1917 = vunpack.c.h.b16 %v751
      %v1918 = vunpack.c.l.b16 %v752
      %v1919 = vunpack.c.h.b16 %v752
      %v1920 = vunpack.c.l.b16 %v753
      %v1921 = vunpack.c.h.b16 %v753
      %v1922 = vunpack.c.l.b16 %v754
      %v1923 = vunpack.c.h.b16 %v754
      %v1924 = vunpack.c.l.b16 %v755
      %v1925 = vunpack.c.h.b16 %v755
      %v1926 = vpack.c.b16 %v1538, %v1534
      %v1927 = vpack.c.b16 %v1539, %v1535
      %v1928 = vpack.c.b16 %v1540, %v1536
      %v1929 = vpack.c.b16 %v1541, %v1537
      %v1930 = vpack.c.b16 %v1546, %v1542
      %v1931 = vpack.c.b16 %v1547, %v1543
      %v1932 = vpack.c.b16 %v1548, %v1544
      %v1933 = vpack.c.b16 %v1549, %v1545
      %v1934 = vpack.c.b16 %v1554, %v1550
      %v1935 = vpack.c.b16 %v1555, %v1551
      %v1936 = vpack.c.b16 %v1556, %v1552
      %v1937 = vpack.c.b16 %v1557, %v1553
      %v1938 = vpack.c.b16 %v1562, %v1558
      %v1939 = vpack.c.b16 %v1563, %v1559
      %v1940 = vpack.c.b16 %v1564, %v1560
      %v1941 = vpack.c.b16 %v1565, %v1561
      %v1942 = vpack.c.b16 %v1570, %v1566
      %v1943 = vpack.c.b16 %v1571, %v1567
      %v1944 = vpack.c.b16 %v1572, %v1568
      %v1945 = vpack.c.b16 %v1573, %v1569
      %v1946 = vpack.c.b16 %v1578, %v1574
      %v1947 = vpack.c.b16 %v1579, %v1575
      %v1948 = vpack.c.b16 %v1580, %v1576
      %v1949 = vpack.c.b16 %v1581, %v1577
      %v1950 = vpack.c.b16 %v1586, %v1582
      %v1951 = vpack.c.b16 %v1587, %v1583
      %v1952 = vpack.c.b16 %v1588, %v1584
      %v1953 = vpack.c.b16 %v1589, %v1585
      %v1954 = vpack.c.b16 %v1594, %v1590
      %v1955 = vpack.c.b16 %v1595, %v1591
      %v1956 = vpack.c.b16 %v1596, %v1592
      %v1957 = vpack.c.b16 %v1597, %v1593
      %v1958 = vpack.c.b16 %v1602, %v1598
      %v1959 = vpack.c.b16 %v1603, %v1599
      %v1960 = vpack.c.b16 %v1604, %v1600
      %v1961 = vpack.c.b16 %v1605, %v1601
      %v1962 = vpack.c.b16 %v1610, %v1606
      %v1963 = vpack.c.b16 %v1611, %v1607
      %v1964 = vpack.c.b16 %v1612, %v1608
      %v1965 = vpack.c.b16 %v1613, %v1609
      %v1966 = vpack.c.b16 %v1618, %v1614
      %v1967 = vpack.c.b16 %v1619, %v1615
      %v1968 = vpack.c.b16 %v1620, %v1616
      %v1969 = vpack.c.b16 %v1621, %v1617
      %v1970 = vpack.c.b16 %v1626, %v1622
      %v1971 = vpack.c.b16 %v1627, %v1623
      %v1972 = vpack.c.b16 %v1628, %v1624
      %v1973 = vpack.c.b16 %v1629, %v1625
      %v1974 = vpack.c.b16 %v1634, %v1630
      %v1975 = vpack.c.b16 %v1635, %v1631
      %v1976 = vpack.c.b16 %v1636, %v1632
      %v1977 = vpack.c.b16 %v1637, %v1633
      %v1978 = vpack.c.b16 %v1642, %v1638
      %v1979 = vpack.c.b16 %v1643, %v1639
      %v1980 = vpack.c.b16 %v1644, %v1640
      %v1981 = vpack.c.b16 %v1645, %v1641
      %v1982 = vpack.c.b16 %v1650, %v1646
      %v1983 = vpack.c.b16 %v1651, %v1647
      %v1984 = vpack.c.b16 %v1652, %v1648
      %v1985 = vpack.c.b16 %v1653, %v1649
      %v1986 = vpack.c.b16 %v1658, %v1654
      %v1987 = vpack.c.b16 %v1659, %v1655
      %v1988 = vpack.c.b16 %v1660, %v1656
      %v1989 = vpack.c.b16 %v1661, %v1657
      %v1990 = vpack.c.b16 %v1666, %v1662
      %v1991 = vpack.c.b16 %v1667, %v1663
      %v1992 = vpack.c.b16 %v1668, %v1664
      %v1993 = vpack.c.b16 %v1669, %v1665
      %v1994 = vpack.c.b16 %v1674, %v1670
      %v1995 = vpack.c.b16 %v1675, %v1671
      %v1996 = vpack.c.b16 %v1676, %v1672
      %v1997 = vpack.c.b16 %v1677, %v1673
      %v1998 = vpack.c.b16 %v1682, %v1678
      %v1999 = vpack.c.b16 %v1683, %v1679
      %v2000 = vpack.c.b16 %v1684, %v1680
      %v2001 = vpack.c.b16 %v1685, %v1681
      %v2002 = vpack.c.b16 %v1690, %v1686
      %v2003 = vpack.c.b16 %v1691, %v1687
      %v2004 = vpack.c.b16 %v1692, %v1688
      %v2005 = vpack.c.b16 %v1693, %v1689
      %v2006 = vpack.c.b16 %v1698, %v1694
      %v2007 = vpack.c.b16 %v1699, %v1695
      %v2008 = vpack.c.b16 %v1700, %v1696
      %v2009 = vpack.c.b16 %v1701, %v1697
      %v2010 = vpack.c.b16 %v1706, %v1702
      %v2011 = vpack.c.b16 %v1707, %v1703
      %v2012 = vpack.c.b16 %v1708, %v1704
      %v2013 = vpack.c.b16 %v1709, %v1705
      %v2014 = vpack.c.b16 %v1714, %v1710
      %v2015 = vpack.c.b16 %v1715, %v1711
      %v2016 = vpack.c.b16 %v1716, %v1712
      %v2017 = vpack.c.b16 %v1717, %v1713
      %v2018 = vpack.c.b16 %v1722, %v1718
      %v2019 = vpack.c.b16 %v1723, %v1719
      %v2020 = vpack.c.b16 %v1724, %v1720
      %v2021 = vpack.c.b16 %v1725, %v1721
      %v2022 = vpack.c.b16 %v1730, %v1726
      %v2023 = vpack.c.b16 %v1731, %v1727
      %v2024 = vpack.c.b16 %v1732, %v1728
      %v2025 = vpack.c.b16 %v1733, %v1729
      %v2026 = vpack.c.b16 %v1738, %v1734
      %v2027 = vpack.c.b16 %v1739, %v1735
      %v2028 = vpack.c.b16 %v1740, %v1736
      %v2029 = vpack.c.b16 %v1741, %v1737
      %v2030 = vpack.c.b16 %v1746, %v1742
      %v2031 = vpack.c.b16 %v1747, %v1743
      %v2032 = vpack.c.b16 %v1748, %v1744
      %v2033 = vpack.c.b16 %v1749, %v1745
      %v2034 = vpack.c.b16 %v1754, %v1750
      %v2035 = vpack.c.b16 %v1755, %v1751
      %v2036 = vpack.c.b16 %v1756, %v1752
      %v2037 = vpack.c.b16 %v1757, %v1753
      %v2038 = vpack.c.b16 %v1762, %v1758
      %v2039 = vpack.c.b16 %v1763, %v1759
      %v2040 = vpack.c.b16 %v1764, %v1760
      %v2041 = vpack.c.b16 %v1765, %v1761
      %v2042 = vpack.c.b16 %v1770, %v1766
      %v2043 = vpack.c.b16 %v1771, %v1767
      %v2044 = vpack.c.b16 %v1772, %v1768
      %v2045 = vpack.c.b16 %v1773, %v1769
      %v2046 = vpack.c.b16 %v1778, %v1774
      %v2047 = vpack.c.b16 %v1779, %v1775
      %v2048 = vpack.c.b16 %v1780, %v1776
      %v2049 = vpack.c.b16 %v1781, %v1777
      %v2050 = vpack.c.b16 %v1786, %v1782
      %v2051 = vpack.c.b16 %v1787, %v1783
      %v2052 = vpack.c.b16 %v1788, %v1784
      %v2053 = vpack.c.b16 %v1789, %v1785
      %v2054 = vpack.c.b16 %v1794, %v1790
      %v2055 = vpack.c.b16 %v1795, %v1791
      %v2056 = vpack.c.b16 %v1796, %v1792
      %v2057 = vpack.c.b16 %v1797, %v1793
      %v2058 = vpack.c.b16 %v1802, %v1798
      %v2059 = vpack.c.b16 %v1803, %v1799
      %v2060 = vpack.c.b16 %v1804, %v1800
      %v2061 = vpack.c.b16 %v1805, %v1801
      %v2062 = vpack.c.b16 %v1810, %v1806
      %v2063 = vpack.c.b16 %v1811, %v1807
      %v2064 = vpack.c.b16 %v1812, %v1808
      %v2065 = vpack.c.b16 %v1813, %v1809
      %v2066 = vpack.c.b16 %v1818, %v1814
      %v2067 = vpack.c.b16 %v1819, %v1815
      %v2068 = vpack.c.b16 %v1820, %v1816
      %v2069 = vpack.c.b16 %v1821, %v1817
      %v2070 = vpack.c.b16 %v1826, %v1822
      %v2071 = vpack.c.b16 %v1827, %v1823
      %v2072 = vpack.c.b16 %v1828, %v1824
      %v2073 = vpack.c.b16 %v1829, %v1825
      %v2074 = vpack.c.b16 %v1834, %v1830
      %v2075 = vpack.c.b16 %v1835, %v1831
      %v2076 = vpack.c.b16 %v1836, %v1832
      %v2077 = vpack.c.b16 %v1837, %v1833
      %v2078 = vpack.c.b16 %v1842, %v1838
      %v2079 = vpack.c.b16 %v1843, %v1839
      %v2080 = vpack.c.b16 %v1844, %v1840
      %v2081 = vpack.c.b16 %v1845, %v1841
      %v2082 = vpack.c.b16 %v1850, %v1846
      %v2083 = vpack.c.b16 %v1851, %v1847
      %v2084 = vpack.c.b16 %v1852, %v1848
      %v2085 = vpack.c.b16 %v1853, %v1849
      %v2086 = vpack.c.b16 %v1858, %v1854
      %v2087 = vpack.c.b16 %v1859, %v1855
      %v2088 = vpack.c.b16 %v1860, %v1856
      %v2089 = vpack.c.b16 %v1861, %v1857
      %v2090 = vpack.c.b16 %v1866, %v1862
      %v2091 = vpack.c.b16 %v1867, %v1863
      %v2092 = vpack.c.b16 %v1868, %v1864
      %v2093 = vpack.c.b16 %v1869, %v1865
      %v2094 = vpack.c.b16 %v1874, %v1870
      %v2095 = vpack.c.b16 %v1875, %v1871
      %v2096 = vpack.c.b16 %v1876, %v1872
      %v2097 = vpack.c.b16 %v1877, %v1873
      %v2098 = vpack.c.b16 %v1882, %v1878
      %v2099 = vpack.c.b16 %v1883, %v1879
      %v2100 = vpack.c.b16 %v1884, %v1880
      %v2101 = vpack.c.b16 %v1885, %v1881
      %v2102 = vpack.c.b16 %v1890, %v1886
      %v2103 = vpack.c.b16 %v1891, %v1887
      %v2104 = vpack.c.b16 %v1892, %v1888
      %v2105 = vpack.c.b16 %v1893, %v1889
      %v2106 = vpack.c.b16 %v1898, %v1894
      %v2107 = vpack.c.b16 %v1899, %v1895
      %v2108 = vpack.c.b16 %v1900, %v1896
      %v2109 = vpack.c.b16 %v1901, %v1897
      %v2110 = vpack.c.b16 %v1906, %v1902
      %v2111 = vpack.c.b16 %v1907, %v1903
      %v2112 = vpack.c.b16 %v1908, %v1904
      %v2113 = vpack.c.b16 %v1909, %v1905
      %v2114 = vpack.c.b16 %v1914, %v1910
      %v2115 = vpack.c.b16 %v1915, %v1911
      %v2116 = vpack.c.b16 %v1916, %v1912
      %v2117 = vpack.c.b16 %v1917, %v1913
      %v2118 = vpack.c.b16 %v1922, %v1918
      %v2119 = vpack.c.b16 %v1923, %v1919
      %v2120 = vpack.c.b16 %v1924, %v1920
      %v2121 = vpack.c.b16 %v1925, %v1921
      %vm2318 = vcmask 130048
      %v2320 = vsel %vm2318, %v1136, 0
      %v2323 = vsel %vm2318, %v1143, 0
      %v2326 = vsel %vm2318, %v1150, 0
      %v2329 = vsel %vm2318, %v1157, 0
      %v2332 = vsel %vm2318, %v1164, 0
      %v2335 = vsel %vm2318, %v1171, 0
      %v2338 = vsel %vm2318, %v1178, 0
      %v2341 = vsel %vm2318, %v1185, 0
      %v2344 = vsel %vm2318, %v1192, 0
      %v2347 = vsel %vm2318, %v1199, 0
      %v2350 = vsel %vm2318, %v1206, 0
      %v2353 = vsel %vm2318, %v1213, 0
      %v2356 = vsel %vm2318, %v1220, 0
      %v2359 = vsel %vm2318, %v1227, 0
      %v2362 = vsel %vm2318, %v1234, 0
      %v2365 = vsel %vm2318, %v1241, 0
      %2367 = vmatprep.subr.bf16.mxu0 %v1927
      %2368 = vmatpush1.bf16.msra.mxu0 %v1926
      %2369 = vmatprep.subr.bf16.mxu0 %v1931
      %2370 = vmatpush1.bf16.msra.mxu0 %v1930
      %2371 = vmatprep.subr.bf16.mxu0 %v1935
      %2372 = vmatpush1.bf16.msra.mxu0 %v1934
      %2373 = vmatprep.subr.bf16.mxu0 %v1939
      %2374 = vmatpush1.bf16.msra.mxu0 %v1938
      %2375 = vmatprep.subr.bf16.mxu0 %v1943
      %2376 = vmatpush1.bf16.msra.mxu0 %v1942
      %2377 = vmatprep.subr.bf16.mxu0 %v1947
      %2378 = vmatpush1.bf16.msra.mxu0 %v1946
      %2379 = vmatprep.subr.bf16.mxu0 %v1951
      %2380 = vmatpush1.bf16.msra.mxu0 %v1950
      %2381 = vmatprep.subr.bf16.mxu0 %v1955
      %2382 = vmatpush1.bf16.msra.mxu0 %v1954
      %2383 = vmatprep.subr.bf16.mxu0 %v1959
      %2384 = vmatpush1.bf16.msra.mxu0 %v1958
      %2385 = vmatprep.subr.bf16.mxu0 %v1963
      %2386 = vmatpush1.bf16.msra.mxu0 %v1962
      %2387 = vmatprep.subr.bf16.mxu0 %v1967
      %2388 = vmatpush1.bf16.msra.mxu0 %v1966
      %2389 = vmatprep.subr.bf16.mxu0 %v1971
      %2390 = vmatpush1.bf16.msra.mxu0 %v1970
      %2391 = vmatprep.subr.bf16.mxu0 %v1975
      %2392 = vmatpush1.bf16.msra.mxu0 %v1974
      %2393 = vmatprep.subr.bf16.mxu0 %v1979
      %2394 = vmatpush1.bf16.msra.mxu0 %v1978
      %2395 = vmatprep.subr.bf16.mxu0 %v1983
      %2396 = vmatpush1.bf16.msra.mxu0 %v1982
      %2397 = vmatprep.subr.bf16.mxu0 %v1987
      %2398 = vmatpush1.bf16.msra.mxu0 %v1986
      %2399 = vmatprep.mubr.bf16.mxu0 %v1131
      %2400 = vmatmul.mubr.bf16.gmra.mrb[0].mxu0 %v1130
      %v2401 = vpop.f32.mrb[0].mxu0
      %v2402 = vadd.f32 %v761, %v2401
      %v2403 = vpop.f32.mrb[0].mxu0
      %v2404 = vadd.f32 %v765, %v2403
      %v2405 = vpop.f32.mrb[0].mxu0
      %v2406 = vadd.f32 %v761, %v2405
      %v2407 = vpop.f32.mrb[0].mxu0
      %v2408 = vadd.f32 %v765, %v2407
      %2409 = vmatprep.mubr.bf16.mxu0 %v1138
      %2410 = vmatmul.mubr.bf16.gmra.mrb[0].mxu0 %v1137
      %v2411 = vpop.f32.mrb[0].mxu0
      %v2412 = vadd.f32 %v761, %v2411
      %v2413 = vpop.f32.mrb[0].mxu0
      %v2414 = vadd.f32 %v765, %v2413
      %v2415 = vpop.f32.mrb[0].mxu0
      %v2416 = vadd.f32 %v761, %v2415
      %v2417 = vpop.f32.mrb[0].mxu0
      %v2418 = vadd.f32 %v765, %v2417
      %2419 = vmatprep.mubr.bf16.mxu0 %v1145
      %2420 = vmatmul.mubr.bf16.gmra.mrb[0].mxu0 %v1144
      %v2421 = vpop.f32.mrb[0].mxu0
      %v2422 = vadd.f32 %v761, %v2421
      %v2423 = vpop.f32.mrb[0].mxu0
      %v2424 = vadd.f32 %v765, %v2423
      %v2425 = vpop.f32.mrb[0].mxu0
      %v2426 = vadd.f32 %v761, %v2425
      %v2427 = vpop.f32.mrb[0].mxu0
      %v2428 = vadd.f32 %v765, %v2427
      %2429 = vmatprep.mubr.bf16.mxu0 %v1152
      %2430 = vmatmul.mubr.bf16.gmra.mrb[0].mxu0 %v1151
      %v2431 = vpop.f32.mrb[0].mxu0
      %v2432 = vadd.f32 %v761, %v2431
      %v2433 = vpop.f32.mrb[0].mxu0
      %v2434 = vadd.f32 %v765, %v2433
      %v2435 = vpop.f32.mrb[0].mxu0
      %v2436 = vadd.f32 %v761, %v2435
      %v2437 = vpop.f32.mrb[0].mxu0
      %v2438 = vadd.f32 %v765, %v2437
      %2439 = vmatprep.mubr.bf16.mxu0 %v1159
      %2440 = vmatmul.mubr.bf16.gmra.mrb[0].mxu0 %v1158
      %v2441 = vpop.f32.mrb[0].mxu0
      %v2442 = vadd.f32 %v761, %v2441
      %v2443 = vpop.f32.mrb[0].mxu0
      %v2444 = vadd.f32 %v765, %v2443
      %v2445 = vpop.f32.mrb[0].mxu0
      %v2446 = vadd.f32 %v761, %v2445
      %v2447 = vpop.f32.mrb[0].mxu0
      %v2448 = vadd.f32 %v765, %v2447
      %2449 = vmatprep.mubr.bf16.mxu0 %v1166
      %2450 = vmatmul.mubr.bf16.gmra.mrb[0].mxu0 %v1165
      %v2451 = vpop.f32.mrb[0].mxu0
      %v2452 = vadd.f32 %v761, %v2451
      %v2453 = vpop.f32.mrb[0].mxu0
      %v2454 = vadd.f32 %v765, %v2453
      %v2455 = vpop.f32.mrb[0].mxu0
      %v2456 = vadd.f32 %v761, %v2455
      %v2457 = vpop.f32.mrb[0].mxu0
      %v2458 = vadd.f32 %v765, %v2457
      %2459 = vmatprep.mubr.bf16.mxu0 %v1173
      %2460 = vmatmul.mubr.bf16.gmra.mrb[0].mxu0 %v1172
      %v2461 = vpop.f32.mrb[0].mxu0
      %v2462 = vadd.f32 %v761, %v2461
      %v2463 = vpop.f32.mrb[0].mxu0
      %v2464 = vadd.f32 %v765, %v2463
      %v2465 = vpop.f32.mrb[0].mxu0
      %v2466 = vadd.f32 %v761, %v2465
      %v2467 = vpop.f32.mrb[0].mxu0
      %v2468 = vadd.f32 %v765, %v2467
      %2469 = vmatprep.mubr.bf16.mxu0 %v1180
      %2470 = vmatmul.mubr.bf16.gmra.mrb[0].mxu0 %v1179
      %v2471 = vpop.f32.mrb[0].mxu0
      %v2472 = vadd.f32 %v761, %v2471
      %v2473 = vpop.f32.mrb[0].mxu0
      %v2474 = vadd.f32 %v765, %v2473
      %v2475 = vpop.f32.mrb[0].mxu0
      %v2476 = vadd.f32 %v761, %v2475
      %v2477 = vpop.f32.mrb[0].mxu0
      %v2478 = vadd.f32 %v765, %v2477
      %2479 = vmatprep.mubr.bf16.mxu0 %v1187
      %2480 = vmatmul.mubr.bf16.gmra.mrb[0].mxu0 %v1186
      %v2481 = vpop.f32.mrb[0].mxu0
      %v2482 = vadd.f32 %v761, %v2481
      %v2483 = vpop.f32.mrb[0].mxu0
      %v2484 = vadd.f32 %v765, %v2483
      %v2485 = vpop.f32.mrb[0].mxu0
      %v2486 = vadd.f32 %v761, %v2485
      %v2487 = vpop.f32.mrb[0].mxu0
      %v2488 = vadd.f32 %v765, %v2487
      %2489 = vmatprep.mubr.bf16.mxu0 %v1194
      %2490 = vmatmul.mubr.bf16.gmra.mrb[0].mxu0 %v1193
      %v2491 = vpop.f32.mrb[0].mxu0
      %v2492 = vadd.f32 %v761, %v2491
      %v2493 = vpop.f32.mrb[0].mxu0
      %v2494 = vadd.f32 %v765, %v2493
      %v2495 = vpop.f32.mrb[0].mxu0
      %v2496 = vadd.f32 %v761, %v2495
      %v2497 = vpop.f32.mrb[0].mxu0
      %v2498 = vadd.f32 %v765, %v2497
      %2499 = vmatprep.mubr.bf16.mxu0 %v1201
      %2500 = vmatmul.mubr.bf16.gmra.mrb[0].mxu0 %v1200
      %v2501 = vpop.f32.mrb[0].mxu0
      %v2502 = vadd.f32 %v761, %v2501
      %v2503 = vpop.f32.mrb[0].mxu0
      %v2504 = vadd.f32 %v765, %v2503
      %v2505 = vpop.f32.mrb[0].mxu0
      %v2506 = vadd.f32 %v761, %v2505
      %v2507 = vpop.f32.mrb[0].mxu0
      %v2508 = vadd.f32 %v765, %v2507
      %2509 = vmatprep.mubr.bf16.mxu0 %v1208
      %2510 = vmatmul.mubr.bf16.gmra.mrb[0].mxu0 %v1207
      %v2511 = vpop.f32.mrb[0].mxu0
      %v2512 = vadd.f32 %v761, %v2511
      %v2513 = vpop.f32.mrb[0].mxu0
      %v2514 = vadd.f32 %v765, %v2513
      %v2515 = vpop.f32.mrb[0].mxu0
      %v2516 = vadd.f32 %v761, %v2515
      %v2517 = vpop.f32.mrb[0].mxu0
      %v2518 = vadd.f32 %v765, %v2517
      %2519 = vmatprep.mubr.bf16.mxu0 %v1215
      %2520 = vmatmul.mubr.bf16.gmra.mrb[0].mxu0 %v1214
      %v2521 = vpop.f32.mrb[0].mxu0
      %v2522 = vadd.f32 %v761, %v2521
      %v2523 = vpop.f32.mrb[0].mxu0
      %v2524 = vadd.f32 %v765, %v2523
      %v2525 = vpop.f32.mrb[0].mxu0
      %v2526 = vadd.f32 %v761, %v2525
      %v2527 = vpop.f32.mrb[0].mxu0
      %v2528 = vadd.f32 %v765, %v2527
      %2529 = vmatprep.mubr.bf16.mxu0 %v1222
      %2530 = vmatmul.mubr.bf16.gmra.mrb[0].mxu0 %v1221
      %v2531 = vpop.f32.mrb[0].mxu0
      %v2532 = vadd.f32 %v761, %v2531
      %v2533 = vpop.f32.mrb[0].mxu0
      %v2534 = vadd.f32 %v765, %v2533
      %v2535 = vpop.f32.mrb[0].mxu0
      %v2536 = vadd.f32 %v761, %v2535
      %v2537 = vpop.f32.mrb[0].mxu0
      %v2538 = vadd.f32 %v765, %v2537
      %2539 = vmatprep.mubr.bf16.mxu0 %v1229
      %2540 = vmatmul.mubr.bf16.gmra.mrb[0].mxu0 %v1228
      %v2541 = vpop.f32.mrb[0].mxu0
      %v2542 = vadd.f32 %v761, %v2541
      %v2543 = vpop.f32.mrb[0].mxu0
      %v2544 = vadd.f32 %v765, %v2543
      %v2545 = vpop.f32.mrb[0].mxu0
      %v2546 = vadd.f32 %v761, %v2545
      %v2547 = vpop.f32.mrb[0].mxu0
      %v2548 = vadd.f32 %v765, %v2547
      %2549 = vmatprep.mubr.bf16.mxu0 %v1236
      %2550 = vmatmul.mubr.bf16.gmra.mrb[0].mxu0 %v1235
      %v2551 = vpop.f32.mrb[0].mxu0
      %v2552 = vadd.f32 %v761, %v2551
      %v2553 = vpop.f32.mrb[0].mxu0
      %v2554 = vadd.f32 %v765, %v2553
      %v2555 = vpop.f32.mrb[0].mxu0
      %v2556 = vadd.f32 %v761, %v2555
      %v2557 = vpop.f32.mrb[0].mxu0
      %v2558 = vadd.f32 %v765, %v2557
      %2559 = vdwg.mxu0
      %2560 = vmatprep.subr.bf16.mxu0 %v1991
      %2561 = vmatpush1.bf16.msra.mxu0 %v1990
      %2562 = vmatprep.subr.bf16.mxu0 %v1995
      %2563 = vmatpush1.bf16.msra.mxu0 %v1994
      %2564 = vmatprep.subr.bf16.mxu0 %v1999
      %2565 = vmatpush1.bf16.msra.mxu0 %v1998
      %2566 = vmatprep.subr.bf16.mxu0 %v2003
      %2567 = vmatpush1.bf16.msra.mxu0 %v2002
      %2568 = vmatprep.subr.bf16.mxu0 %v2007
      %2569 = vmatpush1.bf16.msra.mxu0 %v2006
      %2570 = vmatprep.subr.bf16.mxu0 %v2011
      %2571 = vmatpush1.bf16.msra.mxu0 %v2010
      %2572 = vmatprep.subr.bf16.mxu0 %v2015
      %2573 = vmatpush1.bf16.msra.mxu0 %v2014
      %2574 = vmatprep.subr.bf16.mxu0 %v2019
      %2575 = vmatpush1.bf16.msra.mxu0 %v2018
      %2576 = vmatprep.subr.bf16.mxu0 %v2023
      %2577 = vmatpush1.bf16.msra.mxu0 %v2022
      %2578 = vmatprep.subr.bf16.mxu0 %v2027
      %2579 = vmatpush1.bf16.msra.mxu0 %v2026
      %2580 = vmatprep.subr.bf16.mxu0 %v2031
      %2581 = vmatpush1.bf16.msra.mxu0 %v2030
      %2582 = vmatprep.subr.bf16.mxu0 %v2035
      %2583 = vmatpush1.bf16.msra.mxu0 %v2034
      %2584 = vmatprep.subr.bf16.mxu0 %v2039
      %2585 = vmatpush1.bf16.msra.mxu0 %v2038
      %2586 = vmatprep.subr.bf16.mxu0 %v2043
      %2587 = vmatpush1.bf16.msra.mxu0 %v2042
      %2588 = vmatprep.subr.bf16.mxu0 %v2047
      %2589 = vmatpush1.bf16.msra.mxu0 %v2046
      %2590 = vmatprep.subr.bf16.mxu0 %v2051
      %2591 = vmatpush1.bf16.msra.mxu0 %v2050
      %2592 = vmatprep.mubr.bf16.mxu0 %v1133
      %2593 = vmatmul.mubr.bf16.gmra.mrb[0].mxu0 %v1132
      %v2594 = vpop.f32.mrb[0].mxu0
      %v2595 = vadd.f32 %v2402, %v2594
      %v2596 = vpop.f32.mrb[0].mxu0
      %v2597 = vadd.f32 %v2404, %v2596
      %v2598 = vpop.f32.mrb[0].mxu0
      %v2599 = vadd.f32 %v2406, %v2598
      %v2600 = vpop.f32.mrb[0].mxu0
      %v2601 = vadd.f32 %v2408, %v2600
      %2602 = vmatprep.mubr.bf16.mxu0 %v1140
      %2603 = vmatmul.mubr.bf16.gmra.mrb[0].mxu0 %v1139
      %v2604 = vpop.f32.mrb[0].mxu0
      %v2605 = vadd.f32 %v2412, %v2604
      %v2606 = vpop.f32.mrb[0].mxu0
      %v2607 = vadd.f32 %v2414, %v2606
      %v2608 = vpop.f32.mrb[0].mxu0
      %v2609 = vadd.f32 %v2416, %v2608
      %v2610 = vpop.f32.mrb[0].mxu0
      %v2611 = vadd.f32 %v2418, %v2610
      %2612 = vmatprep.mubr.bf16.mxu0 %v1147
      %2613 = vmatmul.mubr.bf16.gmra.mrb[0].mxu0 %v1146
      %v2614 = vpop.f32.mrb[0].mxu0
      %v2615 = vadd.f32 %v2422, %v2614
      %v2616 = vpop.f32.mrb[0].mxu0
      %v2617 = vadd.f32 %v2424, %v2616
      %v2618 = vpop.f32.mrb[0].mxu0
      %v2619 = vadd.f32 %v2426, %v2618
      %v2620 = vpop.f32.mrb[0].mxu0
      %v2621 = vadd.f32 %v2428, %v2620
      %2622 = vmatprep.mubr.bf16.mxu0 %v1154
      %2623 = vmatmul.mubr.bf16.gmra.mrb[0].mxu0 %v1153
      %v2624 = vpop.f32.mrb[0].mxu0
      %v2625 = vadd.f32 %v2432, %v2624
      %v2626 = vpop.f32.mrb[0].mxu0
      %v2627 = vadd.f32 %v2434, %v2626
      %v2628 = vpop.f32.mrb[0].mxu0
      %v2629 = vadd.f32 %v2436, %v2628
      %v2630 = vpop.f32.mrb[0].mxu0
      %v2631 = vadd.f32 %v2438, %v2630
      %2632 = vmatprep.mubr.bf16.mxu0 %v1161
      %2633 = vmatmul.mubr.bf16.gmra.mrb[0].mxu0 %v1160
      %v2634 = vpop.f32.mrb[0].mxu0
      %v2635 = vadd.f32 %v2442, %v2634
      %v2636 = vpop.f32.mrb[0].mxu0
      %v2637 = vadd.f32 %v2444, %v2636
      %v2638 = vpop.f32.mrb[0].mxu0
      %v2639 = vadd.f32 %v2446, %v2638
      %v2640 = vpop.f32.mrb[0].mxu0
      %v2641 = vadd.f32 %v2448, %v2640
      %2642 = vmatprep.mubr.bf16.mxu0 %v1168
      %2643 = vmatmul.mubr.bf16.gmra.mrb[0].mxu0 %v1167
      %v2644 = vpop.f32.mrb[0].mxu0
      %v2645 = vadd.f32 %v2452, %v2644
      %v2646 = vpop.f32.mrb[0].mxu0
      %v2647 = vadd.f32 %v2454, %v2646
      %v2648 = vpop.f32.mrb[0].mxu0
      %v2649 = vadd.f32 %v2456, %v2648
      %v2650 = vpop.f32.mrb[0].mxu0
      %v2651 = vadd.f32 %v2458, %v2650
      %2652 = vmatprep.mubr.bf16.mxu0 %v1175
      %2653 = vmatmul.mubr.bf16.gmra.mrb[0].mxu0 %v1174
      %v2654 = vpop.f32.mrb[0].mxu0
      %v2655 = vadd.f32 %v2462, %v2654
      %v2656 = vpop.f32.mrb[0].mxu0
      %v2657 = vadd.f32 %v2464, %v2656
      %v2658 = vpop.f32.mrb[0].mxu0
      %v2659 = vadd.f32 %v2466, %v2658
      %v2660 = vpop.f32.mrb[0].mxu0
      %v2661 = vadd.f32 %v2468, %v2660
      %2662 = vmatprep.mubr.bf16.mxu0 %v1182
      %2663 = vmatmul.mubr.bf16.gmra.mrb[0].mxu0 %v1181
      %v2664 = vpop.f32.mrb[0].mxu0
      %v2665 = vadd.f32 %v2472, %v2664
      %v2666 = vpop.f32.mrb[0].mxu0
      %v2667 = vadd.f32 %v2474, %v2666
      %v2668 = vpop.f32.mrb[0].mxu0
      %v2669 = vadd.f32 %v2476, %v2668
      %v2670 = vpop.f32.mrb[0].mxu0
      %v2671 = vadd.f32 %v2478, %v2670
      %2672 = vmatprep.mubr.bf16.mxu0 %v1189
      %2673 = vmatmul.mubr.bf16.gmra.mrb[0].mxu0 %v1188
      %v2674 = vpop.f32.mrb[0].mxu0
      %v2675 = vadd.f32 %v2482, %v2674
      %v2676 = vpop.f32.mrb[0].mxu0
      %v2677 = vadd.f32 %v2484, %v2676
      %v2678 = vpop.f32.mrb[0].mxu0
      %v2679 = vadd.f32 %v2486, %v2678
      %v2680 = vpop.f32.mrb[0].mxu0
      %v2681 = vadd.f32 %v2488, %v2680
      %2682 = vmatprep.mubr.bf16.mxu0 %v1196
      %2683 = vmatmul.mubr.bf16.gmra.mrb[0].mxu0 %v1195
      %v2684 = vpop.f32.mrb[0].mxu0
      %v2685 = vadd.f32 %v2492, %v2684
      %v2686 = vpop.f32.mrb[0].mxu0
      %v2687 = vadd.f32 %v2494, %v2686
      %v2688 = vpop.f32.mrb[0].mxu0
      %v2689 = vadd.f32 %v2496, %v2688
      %v2690 = vpop.f32.mrb[0].mxu0
      %v2691 = vadd.f32 %v2498, %v2690
      %2692 = vmatprep.mubr.bf16.mxu0 %v1203
      %2693 = vmatmul.mubr.bf16.gmra.mrb[0].mxu0 %v1202
      %v2694 = vpop.f32.mrb[0].mxu0
      %v2695 = vadd.f32 %v2502, %v2694
      %v2696 = vpop.f32.mrb[0].mxu0
      %v2697 = vadd.f32 %v2504, %v2696
      %v2698 = vpop.f32.mrb[0].mxu0
      %v2699 = vadd.f32 %v2506, %v2698
      %v2700 = vpop.f32.mrb[0].mxu0
      %v2701 = vadd.f32 %v2508, %v2700
      %2702 = vmatprep.mubr.bf16.mxu0 %v1210
      %2703 = vmatmul.mubr.bf16.gmra.mrb[0].mxu0 %v1209
      %v2704 = vpop.f32.mrb[0].mxu0
      %v2705 = vadd.f32 %v2512, %v2704
      %v2706 = vpop.f32.mrb[0].mxu0
      %v2707 = vadd.f32 %v2514, %v2706
      %v2708 = vpop.f32.mrb[0].mxu0
      %v2709 = vadd.f32 %v2516, %v2708
      %v2710 = vpop.f32.mrb[0].mxu0
      %v2711 = vadd.f32 %v2518, %v2710
      %2712 = vmatprep.mubr.bf16.mxu0 %v1217
      %2713 = vmatmul.mubr.bf16.gmra.mrb[0].mxu0 %v1216
      %v2714 = vpop.f32.mrb[0].mxu0
      %v2715 = vadd.f32 %v2522, %v2714
      %v2716 = vpop.f32.mrb[0].mxu0
      %v2717 = vadd.f32 %v2524, %v2716
      %v2718 = vpop.f32.mrb[0].mxu0
      %v2719 = vadd.f32 %v2526, %v2718
      %v2720 = vpop.f32.mrb[0].mxu0
      %v2721 = vadd.f32 %v2528, %v2720
      %2722 = vmatprep.mubr.bf16.mxu0 %v1224
      %2723 = vmatmul.mubr.bf16.gmra.mrb[0].mxu0 %v1223
      %v2724 = vpop.f32.mrb[0].mxu0
      %v2725 = vadd.f32 %v2532, %v2724
      %v2726 = vpop.f32.mrb[0].mxu0
      %v2727 = vadd.f32 %v2534, %v2726
      %v2728 = vpop.f32.mrb[0].mxu0
      %v2729 = vadd.f32 %v2536, %v2728
      %v2730 = vpop.f32.mrb[0].mxu0
      %v2731 = vadd.f32 %v2538, %v2730
      %2732 = vmatprep.mubr.bf16.mxu0 %v1231
      %2733 = vmatmul.mubr.bf16.gmra.mrb[0].mxu0 %v1230
      %v2734 = vpop.f32.mrb[0].mxu0
      %v2735 = vadd.f32 %v2542, %v2734
      %v2736 = vpop.f32.mrb[0].mxu0
      %v2737 = vadd.f32 %v2544, %v2736
      %v2738 = vpop.f32.mrb[0].mxu0
      %v2739 = vadd.f32 %v2546, %v2738
      %v2740 = vpop.f32.mrb[0].mxu0
      %v2741 = vadd.f32 %v2548, %v2740
      %2742 = vmatprep.mubr.bf16.mxu0 %v1238
      %2743 = vmatmul.mubr.bf16.gmra.mrb[0].mxu0 %v1237
      %v2744 = vpop.f32.mrb[0].mxu0
      %v2745 = vadd.f32 %v2552, %v2744
      %v2746 = vpop.f32.mrb[0].mxu0
      %v2747 = vadd.f32 %v2554, %v2746
      %v2748 = vpop.f32.mrb[0].mxu0
      %v2749 = vadd.f32 %v2556, %v2748
      %v2750 = vpop.f32.mrb[0].mxu0
      %v2751 = vadd.f32 %v2558, %v2750
      %2752 = vdwg.mxu0
      %2753 = vmatprep.subr.bf16.mxu0 %v2055
      %2754 = vmatpush1.bf16.msra.mxu0 %v2054
      %2755 = vmatprep.subr.bf16.mxu0 %v2059
      %2756 = vmatpush1.bf16.msra.mxu0 %v2058
      %2757 = vmatprep.subr.bf16.mxu0 %v2063
      %2758 = vmatpush1.bf16.msra.mxu0 %v2062
      %2759 = vmatprep.subr.bf16.mxu0 %v2067
      %2760 = vmatpush1.bf16.msra.mxu0 %v2066
      %2761 = vmatprep.subr.bf16.mxu0 %v2071
      %2762 = vmatpush1.bf16.msra.mxu0 %v2070
      %2763 = vmatprep.subr.bf16.mxu0 %v2075
      %2764 = vmatpush1.bf16.msra.mxu0 %v2074
      %2765 = vmatprep.subr.bf16.mxu0 %v2079
      %2766 = vmatpush1.bf16.msra.mxu0 %v2078
      %2767 = vmatprep.subr.bf16.mxu0 %v2083
      %2768 = vmatpush1.bf16.msra.mxu0 %v2082
      %2769 = vmatprep.subr.bf16.mxu0 %v2087
      %2770 = vmatpush1.bf16.msra.mxu0 %v2086
      %2771 = vmatprep.subr.bf16.mxu0 %v2091
      %2772 = vmatpush1.bf16.msra.mxu0 %v2090
      %2773 = vmatprep.subr.bf16.mxu0 %v2095
      %2774 = vmatpush1.bf16.msra.mxu0 %v2094
      %2775 = vmatprep.subr.bf16.mxu0 %v2099
      %2776 = vmatpush1.bf16.msra.mxu0 %v2098
      %2777 = vmatprep.subr.bf16.mxu0 %v2103
      %2778 = vmatpush1.bf16.msra.mxu0 %v2102
      %2779 = vmatprep.subr.bf16.mxu0 %v2107
      %2780 = vmatpush1.bf16.msra.mxu0 %v2106
      %2781 = vmatprep.subr.bf16.mxu0 %v2111
      %2782 = vmatpush1.bf16.msra.mxu0 %v2110
      %2783 = vmatprep.subr.bf16.mxu0 %v2115
      %2784 = vmatpush1.bf16.msra.mxu0 %v2114
      %2785 = vmatprep.mubr.bf16.mxu0 %v1135
      %2786 = vmatmul.mubr.bf16.gmra.mrb[0].mxu0 %v1134
      %v2787 = vpop.f32.mrb[0].mxu0
      %v2788 = vadd.f32 %v2595, %v2787
      %v2789 = vpop.f32.mrb[0].mxu0
      %v2790 = vadd.f32 %v2597, %v2789
      %v2791 = vpop.f32.mrb[0].mxu0
      %v2792 = vadd.f32 %v2599, %v2791
      %v2793 = vpop.f32.mrb[0].mxu0
      %v2794 = vadd.f32 %v2601, %v2793
      %2795 = vmatprep.mubr.bf16.mxu0 %v1142
      %2796 = vmatmul.mubr.bf16.gmra.mrb[0].mxu0 %v1141
      %v2797 = vpop.f32.mrb[0].mxu0
      %v2798 = vadd.f32 %v2605, %v2797
      %v2799 = vpop.f32.mrb[0].mxu0
      %v2800 = vadd.f32 %v2607, %v2799
      %v2801 = vpop.f32.mrb[0].mxu0
      %v2802 = vadd.f32 %v2609, %v2801
      %v2803 = vpop.f32.mrb[0].mxu0
      %v2804 = vadd.f32 %v2611, %v2803
      %2805 = vmatprep.mubr.bf16.mxu0 %v1149
      %2806 = vmatmul.mubr.bf16.gmra.mrb[0].mxu0 %v1148
      %v2807 = vpop.f32.mrb[0].mxu0
      %v2808 = vadd.f32 %v2615, %v2807
      %v2809 = vpop.f32.mrb[0].mxu0
      %v2810 = vadd.f32 %v2617, %v2809
      %v2811 = vpop.f32.mrb[0].mxu0
      %v2812 = vadd.f32 %v2619, %v2811
      %v2813 = vpop.f32.mrb[0].mxu0
      %v2814 = vadd.f32 %v2621, %v2813
      %2815 = vmatprep.mubr.bf16.mxu0 %v1156
      %2816 = vmatmul.mubr.bf16.gmra.mrb[0].mxu0 %v1155
      %v2817 = vpop.f32.mrb[0].mxu0
      %v2818 = vadd.f32 %v2625, %v2817
      %v2819 = vpop.f32.mrb[0].mxu0
      %v2820 = vadd.f32 %v2627, %v2819
      %v2821 = vpop.f32.mrb[0].mxu0
      %v2822 = vadd.f32 %v2629, %v2821
      %v2823 = vpop.f32.mrb[0].mxu0
      %v2824 = vadd.f32 %v2631, %v2823
      %2825 = vmatprep.mubr.bf16.mxu0 %v1163
      %2826 = vmatmul.mubr.bf16.gmra.mrb[0].mxu0 %v1162
      %v2827 = vpop.f32.mrb[0].mxu0
      %v2828 = vadd.f32 %v2635, %v2827
      %v2829 = vpop.f32.mrb[0].mxu0
      %v2830 = vadd.f32 %v2637, %v2829
      %v2831 = vpop.f32.mrb[0].mxu0
      %v2832 = vadd.f32 %v2639, %v2831
      %v2833 = vpop.f32.mrb[0].mxu0
      %v2834 = vadd.f32 %v2641, %v2833
      %2835 = vmatprep.mubr.bf16.mxu0 %v1170
      %2836 = vmatmul.mubr.bf16.gmra.mrb[0].mxu0 %v1169
      %v2837 = vpop.f32.mrb[0].mxu0
      %v2838 = vadd.f32 %v2645, %v2837
      %v2839 = vpop.f32.mrb[0].mxu0
      %v2840 = vadd.f32 %v2647, %v2839
      %v2841 = vpop.f32.mrb[0].mxu0
      %v2842 = vadd.f32 %v2649, %v2841
      %v2843 = vpop.f32.mrb[0].mxu0
      %v2844 = vadd.f32 %v2651, %v2843
      %2845 = vmatprep.mubr.bf16.mxu0 %v1177
      %2846 = vmatmul.mubr.bf16.gmra.mrb[0].mxu0 %v1176
      %v2847 = vpop.f32.mrb[0].mxu0
      %v2848 = vadd.f32 %v2655, %v2847
      %v2849 = vpop.f32.mrb[0].mxu0
      %v2850 = vadd.f32 %v2657, %v2849
      %v2851 = vpop.f32.mrb[0].mxu0
      %v2852 = vadd.f32 %v2659, %v2851
      %v2853 = vpop.f32.mrb[0].mxu0
      %v2854 = vadd.f32 %v2661, %v2853
      %2855 = vmatprep.mubr.bf16.mxu0 %v1184
      %2856 = vmatmul.mubr.bf16.gmra.mrb[0].mxu0 %v1183
      %v2857 = vpop.f32.mrb[0].mxu0
      %v2858 = vadd.f32 %v2665, %v2857
      %v2859 = vpop.f32.mrb[0].mxu0
      %v2860 = vadd.f32 %v2667, %v2859
      %v2861 = vpop.f32.mrb[0].mxu0
      %v2862 = vadd.f32 %v2669, %v2861
      %v2863 = vpop.f32.mrb[0].mxu0
      %v2864 = vadd.f32 %v2671, %v2863
      %2865 = vmatprep.mubr.bf16.mxu0 %v1191
      %2866 = vmatmul.mubr.bf16.gmra.mrb[0].mxu0 %v1190
      %v2867 = vpop.f32.mrb[0].mxu0
      %v2868 = vadd.f32 %v2675, %v2867
      %v2869 = vpop.f32.mrb[0].mxu0
      %v2870 = vadd.f32 %v2677, %v2869
      %v2871 = vpop.f32.mrb[0].mxu0
      %v2872 = vadd.f32 %v2679, %v2871
      %v2873 = vpop.f32.mrb[0].mxu0
      %v2874 = vadd.f32 %v2681, %v2873
      %2875 = vmatprep.mubr.bf16.mxu0 %v1198
      %2876 = vmatmul.mubr.bf16.gmra.mrb[0].mxu0 %v1197
      %v2877 = vpop.f32.mrb[0].mxu0
      %v2878 = vadd.f32 %v2685, %v2877
      %v2879 = vpop.f32.mrb[0].mxu0
      %v2880 = vadd.f32 %v2687, %v2879
      %v2881 = vpop.f32.mrb[0].mxu0
      %v2882 = vadd.f32 %v2689, %v2881
      %v2883 = vpop.f32.mrb[0].mxu0
      %v2884 = vadd.f32 %v2691, %v2883
      %2885 = vmatprep.mubr.bf16.mxu0 %v1205
      %2886 = vmatmul.mubr.bf16.gmra.mrb[0].mxu0 %v1204
      %v2887 = vpop.f32.mrb[0].mxu0
      %v2888 = vadd.f32 %v2695, %v2887
      %v2889 = vpop.f32.mrb[0].mxu0
      %v2890 = vadd.f32 %v2697, %v2889
      %v2891 = vpop.f32.mrb[0].mxu0
      %v2892 = vadd.f32 %v2699, %v2891
      %v2893 = vpop.f32.mrb[0].mxu0
      %v2894 = vadd.f32 %v2701, %v2893
      %2895 = vmatprep.mubr.bf16.mxu0 %v1212
      %2896 = vmatmul.mubr.bf16.gmra.mrb[0].mxu0 %v1211
      %v2897 = vpop.f32.mrb[0].mxu0
      %v2898 = vadd.f32 %v2705, %v2897
      %v2899 = vpop.f32.mrb[0].mxu0
      %v2900 = vadd.f32 %v2707, %v2899
      %v2901 = vpop.f32.mrb[0].mxu0
      %v2902 = vadd.f32 %v2709, %v2901
      %v2903 = vpop.f32.mrb[0].mxu0
      %v2904 = vadd.f32 %v2711, %v2903
      %2905 = vmatprep.mubr.bf16.mxu0 %v1219
      %2906 = vmatmul.mubr.bf16.gmra.mrb[0].mxu0 %v1218
      %v2907 = vpop.f32.mrb[0].mxu0
      %v2908 = vadd.f32 %v2715, %v2907
      %v2909 = vpop.f32.mrb[0].mxu0
      %v2910 = vadd.f32 %v2717, %v2909
      %v2911 = vpop.f32.mrb[0].mxu0
      %v2912 = vadd.f32 %v2719, %v2911
      %v2913 = vpop.f32.mrb[0].mxu0
      %v2914 = vadd.f32 %v2721, %v2913
      %2915 = vmatprep.mubr.bf16.mxu0 %v1226
      %2916 = vmatmul.mubr.bf16.gmra.mrb[0].mxu0 %v1225
      %v2917 = vpop.f32.mrb[0].mxu0
      %v2918 = vadd.f32 %v2725, %v2917
      %v2919 = vpop.f32.mrb[0].mxu0
      %v2920 = vadd.f32 %v2727, %v2919
      %v2921 = vpop.f32.mrb[0].mxu0
      %v2922 = vadd.f32 %v2729, %v2921
      %v2923 = vpop.f32.mrb[0].mxu0
      %v2924 = vadd.f32 %v2731, %v2923
      %2925 = vmatprep.mubr.bf16.mxu0 %v1233
      %2926 = vmatmul.mubr.bf16.gmra.mrb[0].mxu0 %v1232
      %v2927 = vpop.f32.mrb[0].mxu0
      %v2928 = vadd.f32 %v2735, %v2927
      %v2929 = vpop.f32.mrb[0].mxu0
      %v2930 = vadd.f32 %v2737, %v2929
      %v2931 = vpop.f32.mrb[0].mxu0
      %v2932 = vadd.f32 %v2739, %v2931
      %v2933 = vpop.f32.mrb[0].mxu0
      %v2934 = vadd.f32 %v2741, %v2933
      %2935 = vmatprep.mubr.bf16.mxu0 %v1240
      %2936 = vmatmul.mubr.bf16.gmra.mrb[0].mxu0 %v1239
      %v2937 = vpop.f32.mrb[0].mxu0
      %v2938 = vadd.f32 %v2745, %v2937
      %v2939 = vpop.f32.mrb[0].mxu0
      %v2940 = vadd.f32 %v2747, %v2939
      %v2941 = vpop.f32.mrb[0].mxu0
      %v2942 = vadd.f32 %v2749, %v2941
      %v2943 = vpop.f32.mrb[0].mxu0
      %v2944 = vadd.f32 %v2751, %v2943
      %2945 = vdwg.mxu0
      %2946 = vmatprep.subr.bf16.mxu0 %v2119
      %2947 = vmatpush1.bf16.msra.mxu0 %v2118
      %2948 = vmatprep.subr.bf16.mxu0 0
      %2949 = vmatpush1.bf16.msra.mxu0 0
      %2950 = vmatprep.subr.bf16.mxu0 0
      %2951 = vmatpush1.bf16.msra.mxu0 0
      %2952 = vmatprep.subr.bf16.mxu0 0
      %2953 = vmatpush1.bf16.msra.mxu0 0
      %2954 = vmatprep.subr.bf16.mxu0 0
      %2955 = vmatpush1.bf16.msra.mxu0 0
      %2956 = vmatprep.subr.bf16.mxu0 0
      %2957 = vmatpush1.bf16.msra.mxu0 0
      %2958 = vmatprep.subr.bf16.mxu0 0
      %2959 = vmatpush1.bf16.msra.mxu0 0
      %2960 = vmatprep.subr.bf16.mxu0 0
      %2961 = vmatpush1.bf16.msra.mxu0 0
      %2962 = vmatprep.subr.bf16.mxu0 0
      %2963 = vmatpush1.bf16.msra.mxu0 0
      %2964 = vmatprep.subr.bf16.mxu0 0
      %2965 = vmatpush1.bf16.msra.mxu0 0
      %2966 = vmatprep.subr.bf16.mxu0 0
      %2967 = vmatpush1.bf16.msra.mxu0 0
      %2968 = vmatprep.subr.bf16.mxu0 0
      %2969 = vmatpush1.bf16.msra.mxu0 0
      %2970 = vmatprep.subr.bf16.mxu0 0
      %2971 = vmatpush1.bf16.msra.mxu0 0
      %2972 = vmatprep.subr.bf16.mxu0 0
      %2973 = vmatpush1.bf16.msra.mxu0 0
      %2974 = vmatprep.subr.bf16.mxu0 0
      %2975 = vmatpush1.bf16.msra.mxu0 0
      %2976 = vmatprep.subr.bf16.mxu0 0
      %2977 = vmatpush1.bf16.msra.mxu0 0
      %2978 = vmatprep.mubr.bf16.mxu0 0
      %2979 = vmatmul.mubr.bf16.gmra.mrb[0].mxu0 %v2320
      %v2980 = vpop.f32.mrb[0].mxu0
      %v2981 = vadd.f32 %v2788, %v2980
      %v2982 = vpop.f32.mrb[0].mxu0
      %v2983 = vadd.f32 %v2790, %v2982
      %v2984 = vpop.f32.mrb[0].mxu0
      %v2985 = vadd.f32 %v2792, %v2984
      %v2986 = vpop.f32.mrb[0].mxu0
      %v2987 = vadd.f32 %v2794, %v2986
      %2988 = vmatprep.mubr.bf16.mxu0 0
      %2989 = vmatmul.mubr.bf16.gmra.mrb[0].mxu0 %v2323
      %v2990 = vpop.f32.mrb[0].mxu0
      %v2991 = vadd.f32 %v2798, %v2990
      %v2992 = vpop.f32.mrb[0].mxu0
      %v2993 = vadd.f32 %v2800, %v2992
      %v2994 = vpop.f32.mrb[0].mxu0
      %v2995 = vadd.f32 %v2802, %v2994
      %v2996 = vpop.f32.mrb[0].mxu0
      %v2997 = vadd.f32 %v2804, %v2996
      %2998 = vmatprep.mubr.bf16.mxu0 0
      %2999 = vmatmul.mubr.bf16.gmra.mrb[0].mxu0 %v2326
      %v3000 = vpop.f32.mrb[0].mxu0
      %v3001 = vadd.f32 %v2808, %v3000
      %v3002 = vpop.f32.mrb[0].mxu0
      %v3003 = vadd.f32 %v2810, %v3002
      %v3004 = vpop.f32.mrb[0].mxu0
      %v3005 = vadd.f32 %v2812, %v3004
      %v3006 = vpop.f32.mrb[0].mxu0
      %v3007 = vadd.f32 %v2814, %v3006
      %3008 = vmatprep.mubr.bf16.mxu0 0
      %3009 = vmatmul.mubr.bf16.gmra.mrb[0].mxu0 %v2329
      %v3010 = vpop.f32.mrb[0].mxu0
      %v3011 = vadd.f32 %v2818, %v3010
      %v3012 = vpop.f32.mrb[0].mxu0
      %v3013 = vadd.f32 %v2820, %v3012
      %v3014 = vpop.f32.mrb[0].mxu0
      %v3015 = vadd.f32 %v2822, %v3014
      %v3016 = vpop.f32.mrb[0].mxu0
      %v3017 = vadd.f32 %v2824, %v3016
      %3018 = vmatprep.mubr.bf16.mxu0 0
      %3019 = vmatmul.mubr.bf16.gmra.mrb[0].mxu0 %v2332
      %v3020 = vpop.f32.mrb[0].mxu0
      %v3021 = vadd.f32 %v2828, %v3020
      %v3022 = vpop.f32.mrb[0].mxu0
      %v3023 = vadd.f32 %v2830, %v3022
      %v3024 = vpop.f32.mrb[0].mxu0
      %v3025 = vadd.f32 %v2832, %v3024
      %v3026 = vpop.f32.mrb[0].mxu0
      %v3027 = vadd.f32 %v2834, %v3026
      %3028 = vmatprep.mubr.bf16.mxu0 0
      %3029 = vmatmul.mubr.bf16.gmra.mrb[0].mxu0 %v2335
      %v3030 = vpop.f32.mrb[0].mxu0
      %v3031 = vadd.f32 %v2838, %v3030
      %v3032 = vpop.f32.mrb[0].mxu0
      %v3033 = vadd.f32 %v2840, %v3032
      %v3034 = vpop.f32.mrb[0].mxu0
      %v3035 = vadd.f32 %v2842, %v3034
      %v3036 = vpop.f32.mrb[0].mxu0
      %v3037 = vadd.f32 %v2844, %v3036
      %3038 = vmatprep.mubr.bf16.mxu0 0
      %3039 = vmatmul.mubr.bf16.gmra.mrb[0].mxu0 %v2338
      %v3040 = vpop.f32.mrb[0].mxu0
      %v3041 = vadd.f32 %v2848, %v3040
      %v3042 = vpop.f32.mrb[0].mxu0
      %v3043 = vadd.f32 %v2850, %v3042
      %v3044 = vpop.f32.mrb[0].mxu0
      %v3045 = vadd.f32 %v2852, %v3044
      %v3046 = vpop.f32.mrb[0].mxu0
      %v3047 = vadd.f32 %v2854, %v3046
      %3048 = vmatprep.mubr.bf16.mxu0 0
      %3049 = vmatmul.mubr.bf16.gmra.mrb[0].mxu0 %v2341
      %v3050 = vpop.f32.mrb[0].mxu0
      %v3051 = vadd.f32 %v2858, %v3050
      %v3052 = vpop.f32.mrb[0].mxu0
      %v3053 = vadd.f32 %v2860, %v3052
      %v3054 = vpop.f32.mrb[0].mxu0
      %v3055 = vadd.f32 %v2862, %v3054
      %v3056 = vpop.f32.mrb[0].mxu0
      %v3057 = vadd.f32 %v2864, %v3056
      %3058 = vmatprep.mubr.bf16.mxu0 0
      %3059 = vmatmul.mubr.bf16.gmra.mrb[0].mxu0 %v2344
      %v3060 = vpop.f32.mrb[0].mxu0
      %v3061 = vadd.f32 %v2868, %v3060
      %v3062 = vpop.f32.mrb[0].mxu0
      %v3063 = vadd.f32 %v2870, %v3062
      %v3064 = vpop.f32.mrb[0].mxu0
      %v3065 = vadd.f32 %v2872, %v3064
      %v3066 = vpop.f32.mrb[0].mxu0
      %v3067 = vadd.f32 %v2874, %v3066
      %3068 = vmatprep.mubr.bf16.mxu0 0
      %3069 = vmatmul.mubr.bf16.gmra.mrb[0].mxu0 %v2347
      %v3070 = vpop.f32.mrb[0].mxu0
      %v3071 = vadd.f32 %v2878, %v3070
      %v3072 = vpop.f32.mrb[0].mxu0
      %v3073 = vadd.f32 %v2880, %v3072
      %v3074 = vpop.f32.mrb[0].mxu0
      %v3075 = vadd.f32 %v2882, %v3074
      %v3076 = vpop.f32.mrb[0].mxu0
      %v3077 = vadd.f32 %v2884, %v3076
      %3078 = vmatprep.mubr.bf16.mxu0 0
      %3079 = vmatmul.mubr.bf16.gmra.mrb[0].mxu0 %v2350
      %v3080 = vpop.f32.mrb[0].mxu0
      %v3081 = vadd.f32 %v2888, %v3080
      %v3082 = vpop.f32.mrb[0].mxu0
      %v3083 = vadd.f32 %v2890, %v3082
      %v3084 = vpop.f32.mrb[0].mxu0
      %v3085 = vadd.f32 %v2892, %v3084
      %v3086 = vpop.f32.mrb[0].mxu0
      %v3087 = vadd.f32 %v2894, %v3086
      %3088 = vmatprep.mubr.bf16.mxu0 0
      %3089 = vmatmul.mubr.bf16.gmra.mrb[0].mxu0 %v2353
      %v3090 = vpop.f32.mrb[0].mxu0
      %v3091 = vadd.f32 %v2898, %v3090
      %v3092 = vpop.f32.mrb[0].mxu0
      %v3093 = vadd.f32 %v2900, %v3092
      %v3094 = vpop.f32.mrb[0].mxu0
      %v3095 = vadd.f32 %v2902, %v3094
      %v3096 = vpop.f32.mrb[0].mxu0
      %v3097 = vadd.f32 %v2904, %v3096
      %3098 = vmatprep.mubr.bf16.mxu0 0
      %3099 = vmatmul.mubr.bf16.gmra.mrb[0].mxu0 %v2356
      %v3100 = vpop.f32.mrb[0].mxu0
      %v3101 = vadd.f32 %v2908, %v3100
      %v3102 = vpop.f32.mrb[0].mxu0
      %v3103 = vadd.f32 %v2910, %v3102
      %v3104 = vpop.f32.mrb[0].mxu0
      %v3105 = vadd.f32 %v2912, %v3104
      %v3106 = vpop.f32.mrb[0].mxu0
      %v3107 = vadd.f32 %v2914, %v3106
      %3108 = vmatprep.mubr.bf16.mxu0 0
      %3109 = vmatmul.mubr.bf16.gmra.mrb[0].mxu0 %v2359
      %v3110 = vpop.f32.mrb[0].mxu0
      %v3111 = vadd.f32 %v2918, %v3110
      %v3112 = vpop.f32.mrb[0].mxu0
      %v3113 = vadd.f32 %v2920, %v3112
      %v3114 = vpop.f32.mrb[0].mxu0
      %v3115 = vadd.f32 %v2922, %v3114
      %v3116 = vpop.f32.mrb[0].mxu0
      %v3117 = vadd.f32 %v2924, %v3116
      %3118 = vmatprep.mubr.bf16.mxu0 0
      %3119 = vmatmul.mubr.bf16.gmra.mrb[0].mxu0 %v2362
      %v3120 = vpop.f32.mrb[0].mxu0
      %v3121 = vadd.f32 %v2928, %v3120
      %v3122 = vpop.f32.mrb[0].mxu0
      %v3123 = vadd.f32 %v2930, %v3122
      %v3124 = vpop.f32.mrb[0].mxu0
      %v3125 = vadd.f32 %v2932, %v3124
      %v3126 = vpop.f32.mrb[0].mxu0
      %v3127 = vadd.f32 %v2934, %v3126
      %3128 = vmatprep.mubr.bf16.mxu0 0
      %3129 = vmatmul.mubr.bf16.gmra.mrb[0].mxu0 %v2365
      %v3130 = vpop.f32.mrb[0].mxu0
      %v3131 = vadd.f32 %v2938, %v3130
      %v3132 = vpop.f32.mrb[0].mxu0
      %v3133 = vadd.f32 %v2940, %v3132
      %v3134 = vpop.f32.mrb[0].mxu0
      %v3135 = vadd.f32 %v2942, %v3134
      %v3136 = vpop.f32.mrb[0].mxu0
      %v3137 = vadd.f32 %v2944, %v3136
      %3138 = vdwg.mxu0
      %3139 = vmatprep.subr.bf16.mxu0 %v1929
      %3140 = vmatpush1.bf16.msra.mxu0 %v1928
      %3141 = vmatprep.subr.bf16.mxu0 %v1933
      %3142 = vmatpush1.bf16.msra.mxu0 %v1932
      %3143 = vmatprep.subr.bf16.mxu0 %v1937
      %3144 = vmatpush1.bf16.msra.mxu0 %v1936
      %3145 = vmatprep.subr.bf16.mxu0 %v1941
      %3146 = vmatpush1.bf16.msra.mxu0 %v1940
      %3147 = vmatprep.subr.bf16.mxu0 %v1945
      %3148 = vmatpush1.bf16.msra.mxu0 %v1944
      %3149 = vmatprep.subr.bf16.mxu0 %v1949
      %3150 = vmatpush1.bf16.msra.mxu0 %v1948
      %3151 = vmatprep.subr.bf16.mxu0 %v1953
      %3152 = vmatpush1.bf16.msra.mxu0 %v1952
      %3153 = vmatprep.subr.bf16.mxu0 %v1957
      %3154 = vmatpush1.bf16.msra.mxu0 %v1956
      %3155 = vmatprep.subr.bf16.mxu0 %v1961
      %3156 = vmatpush1.bf16.msra.mxu0 %v1960
      %3157 = vmatprep.subr.bf16.mxu0 %v1965
      %3158 = vmatpush1.bf16.msra.mxu0 %v1964
      %3159 = vmatprep.subr.bf16.mxu0 %v1969
      %3160 = vmatpush1.bf16.msra.mxu0 %v1968
      %3161 = vmatprep.subr.bf16.mxu0 %v1973
      %3162 = vmatpush1.bf16.msra.mxu0 %v1972
      %3163 = vmatprep.subr.bf16.mxu0 %v1977
      %3164 = vmatpush1.bf16.msra.mxu0 %v1976
      %3165 = vmatprep.subr.bf16.mxu0 %v1981
      %3166 = vmatpush1.bf16.msra.mxu0 %v1980
      %3167 = vmatprep.subr.bf16.mxu0 %v1985
      %3168 = vmatpush1.bf16.msra.mxu0 %v1984
      %3169 = vmatprep.subr.bf16.mxu0 %v1989
      %3170 = vmatpush1.bf16.msra.mxu0 %v1988
      %3171 = vmatprep.mubr.bf16.mxu0 %v1131
      %3172 = vmatmul.mubr.bf16.gmra.mrb[0].mxu0 %v1130
      %v3173 = vpop.f32.mrb[0].mxu0
      %v3174 = vadd.f32 %v769, %v3173
      %v3175 = vpop.f32.mrb[0].mxu0
      %v3176 = vadd.f32 %v773, %v3175
      %v3177 = vpop.f32.mrb[0].mxu0
      %v3178 = vadd.f32 %v769, %v3177
      %v3179 = vpop.f32.mrb[0].mxu0
      %v3180 = vadd.f32 %v773, %v3179
      %3181 = vmatprep.mubr.bf16.mxu0 %v1138
      %3182 = vmatmul.mubr.bf16.gmra.mrb[0].mxu0 %v1137
      %v3183 = vpop.f32.mrb[0].mxu0
      %v3184 = vadd.f32 %v769, %v3183
      %v3185 = vpop.f32.mrb[0].mxu0
      %v3186 = vadd.f32 %v773, %v3185
      %v3187 = vpop.f32.mrb[0].mxu0
      %v3188 = vadd.f32 %v769, %v3187
      %v3189 = vpop.f32.mrb[0].mxu0
      %v3190 = vadd.f32 %v773, %v3189
      %3191 = vmatprep.mubr.bf16.mxu0 %v1145
      %3192 = vmatmul.mubr.bf16.gmra.mrb[0].mxu0 %v1144
      %v3193 = vpop.f32.mrb[0].mxu0
      %v3194 = vadd.f32 %v769, %v3193
      %v3195 = vpop.f32.mrb[0].mxu0
      %v3196 = vadd.f32 %v773, %v3195
      %v3197 = vpop.f32.mrb[0].mxu0
      %v3198 = vadd.f32 %v769, %v3197
      %v3199 = vpop.f32.mrb[0].mxu0
      %v3200 = vadd.f32 %v773, %v3199
      %3201 = vmatprep.mubr.bf16.mxu0 %v1152
      %3202 = vmatmul.mubr.bf16.gmra.mrb[0].mxu0 %v1151
      %v3203 = vpop.f32.mrb[0].mxu0
      %v3204 = vadd.f32 %v769, %v3203
      %v3205 = vpop.f32.mrb[0].mxu0
      %v3206 = vadd.f32 %v773, %v3205
      %v3207 = vpop.f32.mrb[0].mxu0
      %v3208 = vadd.f32 %v769, %v3207
      %v3209 = vpop.f32.mrb[0].mxu0
      %v3210 = vadd.f32 %v773, %v3209
      %3211 = vmatprep.mubr.bf16.mxu0 %v1159
      %3212 = vmatmul.mubr.bf16.gmra.mrb[0].mxu0 %v1158
      %v3213 = vpop.f32.mrb[0].mxu0
      %v3214 = vadd.f32 %v769, %v3213
      %v3215 = vpop.f32.mrb[0].mxu0
      %v3216 = vadd.f32 %v773, %v3215
      %v3217 = vpop.f32.mrb[0].mxu0
      %v3218 = vadd.f32 %v769, %v3217
      %v3219 = vpop.f32.mrb[0].mxu0
      %v3220 = vadd.f32 %v773, %v3219
      %3221 = vmatprep.mubr.bf16.mxu0 %v1166
      %3222 = vmatmul.mubr.bf16.gmra.mrb[0].mxu0 %v1165
      %v3223 = vpop.f32.mrb[0].mxu0
      %v3224 = vadd.f32 %v769, %v3223
      %v3225 = vpop.f32.mrb[0].mxu0
      %v3226 = vadd.f32 %v773, %v3225
      %v3227 = vpop.f32.mrb[0].mxu0
      %v3228 = vadd.f32 %v769, %v3227
      %v3229 = vpop.f32.mrb[0].mxu0
      %v3230 = vadd.f32 %v773, %v3229
      %3231 = vmatprep.mubr.bf16.mxu0 %v1173
      %3232 = vmatmul.mubr.bf16.gmra.mrb[0].mxu0 %v1172
      %v3233 = vpop.f32.mrb[0].mxu0
      %v3234 = vadd.f32 %v769, %v3233
      %v3235 = vpop.f32.mrb[0].mxu0
      %v3236 = vadd.f32 %v773, %v3235
      %v3237 = vpop.f32.mrb[0].mxu0
      %v3238 = vadd.f32 %v769, %v3237
      %v3239 = vpop.f32.mrb[0].mxu0
      %v3240 = vadd.f32 %v773, %v3239
      %3241 = vmatprep.mubr.bf16.mxu0 %v1180
      %3242 = vmatmul.mubr.bf16.gmra.mrb[0].mxu0 %v1179
      %v3243 = vpop.f32.mrb[0].mxu0
      %v3244 = vadd.f32 %v769, %v3243
      %v3245 = vpop.f32.mrb[0].mxu0
      %v3246 = vadd.f32 %v773, %v3245
      %v3247 = vpop.f32.mrb[0].mxu0
      %v3248 = vadd.f32 %v769, %v3247
      %v3249 = vpop.f32.mrb[0].mxu0
      %v3250 = vadd.f32 %v773, %v3249
      %3251 = vmatprep.mubr.bf16.mxu0 %v1187
      %3252 = vmatmul.mubr.bf16.gmra.mrb[0].mxu0 %v1186
      %v3253 = vpop.f32.mrb[0].mxu0
      %v3254 = vadd.f32 %v769, %v3253
      %v3255 = vpop.f32.mrb[0].mxu0
      %v3256 = vadd.f32 %v773, %v3255
      %v3257 = vpop.f32.mrb[0].mxu0
      %v3258 = vadd.f32 %v769, %v3257
      %v3259 = vpop.f32.mrb[0].mxu0
      %v3260 = vadd.f32 %v773, %v3259
      %3261 = vmatprep.mubr.bf16.mxu0 %v1194
      %3262 = vmatmul.mubr.bf16.gmra.mrb[0].mxu0 %v1193
      %v3263 = vpop.f32.mrb[0].mxu0
      %v3264 = vadd.f32 %v769, %v3263
      %v3265 = vpop.f32.mrb[0].mxu0
      %v3266 = vadd.f32 %v773, %v3265
      %v3267 = vpop.f32.mrb[0].mxu0
      %v3268 = vadd.f32 %v769, %v3267
      %v3269 = vpop.f32.mrb[0].mxu0
      %v3270 = vadd.f32 %v773, %v3269
      %3271 = vmatprep.mubr.bf16.mxu0 %v1201
      %3272 = vmatmul.mubr.bf16.gmra.mrb[0].mxu0 %v1200
      %v3273 = vpop.f32.mrb[0].mxu0
      %v3274 = vadd.f32 %v769, %v3273
      %v3275 = vpop.f32.mrb[0].mxu0
      %v3276 = vadd.f32 %v773, %v3275
      %v3277 = vpop.f32.mrb[0].mxu0
      %v3278 = vadd.f32 %v769, %v3277
      %v3279 = vpop.f32.mrb[0].mxu0
      %v3280 = vadd.f32 %v773, %v3279
      %3281 = vmatprep.mubr.bf16.mxu0 %v1208
      %3282 = vmatmul.mubr.bf16.gmra.mrb[0].mxu0 %v1207
      %v3283 = vpop.f32.mrb[0].mxu0
      %v3284 = vadd.f32 %v769, %v3283
      %v3285 = vpop.f32.mrb[0].mxu0
      %v3286 = vadd.f32 %v773, %v3285
      %v3287 = vpop.f32.mrb[0].mxu0
      %v3288 = vadd.f32 %v769, %v3287
      %v3289 = vpop.f32.mrb[0].mxu0
      %v3290 = vadd.f32 %v773, %v3289
      %3291 = vmatprep.mubr.bf16.mxu0 %v1215
      %3292 = vmatmul.mubr.bf16.gmra.mrb[0].mxu0 %v1214
      %v3293 = vpop.f32.mrb[0].mxu0
      %v3294 = vadd.f32 %v769, %v3293
      %v3295 = vpop.f32.mrb[0].mxu0
      %v3296 = vadd.f32 %v773, %v3295
      %v3297 = vpop.f32.mrb[0].mxu0
      %v3298 = vadd.f32 %v769, %v3297
      %v3299 = vpop.f32.mrb[0].mxu0
      %v3300 = vadd.f32 %v773, %v3299
      %3301 = vmatprep.mubr.bf16.mxu0 %v1222
      %3302 = vmatmul.mubr.bf16.gmra.mrb[0].mxu0 %v1221
      %v3303 = vpop.f32.mrb[0].mxu0
      %v3304 = vadd.f32 %v769, %v3303
      %v3305 = vpop.f32.mrb[0].mxu0
      %v3306 = vadd.f32 %v773, %v3305
      %v3307 = vpop.f32.mrb[0].mxu0
      %v3308 = vadd.f32 %v769, %v3307
      %v3309 = vpop.f32.mrb[0].mxu0
      %v3310 = vadd.f32 %v773, %v3309
      %3311 = vmatprep.mubr.bf16.mxu0 %v1229
      %3312 = vmatmul.mubr.bf16.gmra.mrb[0].mxu0 %v1228
      %v3313 = vpop.f32.mrb[0].mxu0
      %v3314 = vadd.f32 %v769, %v3313
      %v3315 = vpop.f32.mrb[0].mxu0
      %v3316 = vadd.f32 %v773, %v3315
      %v3317 = vpop.f32.mrb[0].mxu0
      %v3318 = vadd.f32 %v769, %v3317
      %v3319 = vpop.f32.mrb[0].mxu0
      %v3320 = vadd.f32 %v773, %v3319
      %3321 = vmatprep.mubr.bf16.mxu0 %v1236
      %3322 = vmatmul.mubr.bf16.gmra.mrb[0].mxu0 %v1235
      %v3323 = vpop.f32.mrb[0].mxu0
      %v3324 = vadd.f32 %v769, %v3323
      %v3325 = vpop.f32.mrb[0].mxu0
      %v3326 = vadd.f32 %v773, %v3325
      %v3327 = vpop.f32.mrb[0].mxu0
      %v3328 = vadd.f32 %v769, %v3327
      %v3329 = vpop.f32.mrb[0].mxu0
      %v3330 = vadd.f32 %v773, %v3329
      %3331 = vdwg.mxu0
      %3332 = vmatprep.subr.bf16.mxu0 %v1993
      %3333 = vmatpush1.bf16.msra.mxu0 %v1992
      %3334 = vmatprep.subr.bf16.mxu0 %v1997
      %3335 = vmatpush1.bf16.msra.mxu0 %v1996
      %3336 = vmatprep.subr.bf16.mxu0 %v2001
      %3337 = vmatpush1.bf16.msra.mxu0 %v2000
      %3338 = vmatprep.subr.bf16.mxu0 %v2005
      %3339 = vmatpush1.bf16.msra.mxu0 %v2004
      %3340 = vmatprep.subr.bf16.mxu0 %v2009
      %3341 = vmatpush1.bf16.msra.mxu0 %v2008
      %3342 = vmatprep.subr.bf16.mxu0 %v2013
      %3343 = vmatpush1.bf16.msra.mxu0 %v2012
      %3344 = vmatprep.subr.bf16.mxu0 %v2017
      %3345 = vmatpush1.bf16.msra.mxu0 %v2016
      %3346 = vmatprep.subr.bf16.mxu0 %v2021
      %3347 = vmatpush1.bf16.msra.mxu0 %v2020
      %3348 = vmatprep.subr.bf16.mxu0 %v2025
      %3349 = vmatpush1.bf16.msra.mxu0 %v2024
      %3350 = vmatprep.subr.bf16.mxu0 %v2029
      %3351 = vmatpush1.bf16.msra.mxu0 %v2028
      %3352 = vmatprep.subr.bf16.mxu0 %v2033
      %3353 = vmatpush1.bf16.msra.mxu0 %v2032
      %3354 = vmatprep.subr.bf16.mxu0 %v2037
      %3355 = vmatpush1.bf16.msra.mxu0 %v2036
      %3356 = vmatprep.subr.bf16.mxu0 %v2041
      %3357 = vmatpush1.bf16.msra.mxu0 %v2040
      %3358 = vmatprep.subr.bf16.mxu0 %v2045
      %3359 = vmatpush1.bf16.msra.mxu0 %v2044
      %3360 = vmatprep.subr.bf16.mxu0 %v2049
      %3361 = vmatpush1.bf16.msra.mxu0 %v2048
      %3362 = vmatprep.subr.bf16.mxu0 %v2053
      %3363 = vmatpush1.bf16.msra.mxu0 %v2052
      %3364 = vmatprep.mubr.bf16.mxu0 %v1133
      %3365 = vmatmul.mubr.bf16.gmra.mrb[0].mxu0 %v1132
      %v3366 = vpop.f32.mrb[0].mxu0
      %v3367 = vadd.f32 %v3174, %v3366
      %v3368 = vpop.f32.mrb[0].mxu0
      %v3369 = vadd.f32 %v3176, %v3368
      %v3370 = vpop.f32.mrb[0].mxu0
      %v3371 = vadd.f32 %v3178, %v3370
      %v3372 = vpop.f32.mrb[0].mxu0
      %v3373 = vadd.f32 %v3180, %v3372
      %3374 = vmatprep.mubr.bf16.mxu0 %v1140
      %3375 = vmatmul.mubr.bf16.gmra.mrb[0].mxu0 %v1139
      %v3376 = vpop.f32.mrb[0].mxu0
      %v3377 = vadd.f32 %v3184, %v3376
      %v3378 = vpop.f32.mrb[0].mxu0
      %v3379 = vadd.f32 %v3186, %v3378
      %v3380 = vpop.f32.mrb[0].mxu0
      %v3381 = vadd.f32 %v3188, %v3380
      %v3382 = vpop.f32.mrb[0].mxu0
      %v3383 = vadd.f32 %v3190, %v3382
      %3384 = vmatprep.mubr.bf16.mxu0 %v1147
      %3385 = vmatmul.mubr.bf16.gmra.mrb[0].mxu0 %v1146
      %v3386 = vpop.f32.mrb[0].mxu0
      %v3387 = vadd.f32 %v3194, %v3386
      %v3388 = vpop.f32.mrb[0].mxu0
      %v3389 = vadd.f32 %v3196, %v3388
      %v3390 = vpop.f32.mrb[0].mxu0
      %v3391 = vadd.f32 %v3198, %v3390
      %v3392 = vpop.f32.mrb[0].mxu0
      %v3393 = vadd.f32 %v3200, %v3392
      %3394 = vmatprep.mubr.bf16.mxu0 %v1154
      %3395 = vmatmul.mubr.bf16.gmra.mrb[0].mxu0 %v1153
      %v3396 = vpop.f32.mrb[0].mxu0
      %v3397 = vadd.f32 %v3204, %v3396
      %v3398 = vpop.f32.mrb[0].mxu0
      %v3399 = vadd.f32 %v3206, %v3398
      %v3400 = vpop.f32.mrb[0].mxu0
      %v3401 = vadd.f32 %v3208, %v3400
      %v3402 = vpop.f32.mrb[0].mxu0
      %v3403 = vadd.f32 %v3210, %v3402
      %3404 = vmatprep.mubr.bf16.mxu0 %v1161
      %3405 = vmatmul.mubr.bf16.gmra.mrb[0].mxu0 %v1160
      %v3406 = vpop.f32.mrb[0].mxu0
      %v3407 = vadd.f32 %v3214, %v3406
      %v3408 = vpop.f32.mrb[0].mxu0
      %v3409 = vadd.f32 %v3216, %v3408
      %v3410 = vpop.f32.mrb[0].mxu0
      %v3411 = vadd.f32 %v3218, %v3410
      %v3412 = vpop.f32.mrb[0].mxu0
      %v3413 = vadd.f32 %v3220, %v3412
      %3414 = vmatprep.mubr.bf16.mxu0 %v1168
      %3415 = vmatmul.mubr.bf16.gmra.mrb[0].mxu0 %v1167
      %v3416 = vpop.f32.mrb[0].mxu0
      %v3417 = vadd.f32 %v3224, %v3416
      %v3418 = vpop.f32.mrb[0].mxu0
      %v3419 = vadd.f32 %v3226, %v3418
      %v3420 = vpop.f32.mrb[0].mxu0
      %v3421 = vadd.f32 %v3228, %v3420
      %v3422 = vpop.f32.mrb[0].mxu0
      %v3423 = vadd.f32 %v3230, %v3422
      %3424 = vmatprep.mubr.bf16.mxu0 %v1175
      %3425 = vmatmul.mubr.bf16.gmra.mrb[0].mxu0 %v1174
      %v3426 = vpop.f32.mrb[0].mxu0
      %v3427 = vadd.f32 %v3234, %v3426
      %v3428 = vpop.f32.mrb[0].mxu0
      %v3429 = vadd.f32 %v3236, %v3428
      %v3430 = vpop.f32.mrb[0].mxu0
      %v3431 = vadd.f32 %v3238, %v3430
      %v3432 = vpop.f32.mrb[0].mxu0
      %v3433 = vadd.f32 %v3240, %v3432
      %3434 = vmatprep.mubr.bf16.mxu0 %v1182
      %3435 = vmatmul.mubr.bf16.gmra.mrb[0].mxu0 %v1181
      %v3436 = vpop.f32.mrb[0].mxu0
      %v3437 = vadd.f32 %v3244, %v3436
      %v3438 = vpop.f32.mrb[0].mxu0
      %v3439 = vadd.f32 %v3246, %v3438
      %v3440 = vpop.f32.mrb[0].mxu0
      %v3441 = vadd.f32 %v3248, %v3440
      %v3442 = vpop.f32.mrb[0].mxu0
      %v3443 = vadd.f32 %v3250, %v3442
      %3444 = vmatprep.mubr.bf16.mxu0 %v1189
      %3445 = vmatmul.mubr.bf16.gmra.mrb[0].mxu0 %v1188
      %v3446 = vpop.f32.mrb[0].mxu0
      %v3447 = vadd.f32 %v3254, %v3446
      %v3448 = vpop.f32.mrb[0].mxu0
      %v3449 = vadd.f32 %v3256, %v3448
      %v3450 = vpop.f32.mrb[0].mxu0
      %v3451 = vadd.f32 %v3258, %v3450
      %v3452 = vpop.f32.mrb[0].mxu0
      %v3453 = vadd.f32 %v3260, %v3452
      %3454 = vmatprep.mubr.bf16.mxu0 %v1196
      %3455 = vmatmul.mubr.bf16.gmra.mrb[0].mxu0 %v1195
      %v3456 = vpop.f32.mrb[0].mxu0
      %v3457 = vadd.f32 %v3264, %v3456
      %v3458 = vpop.f32.mrb[0].mxu0
      %v3459 = vadd.f32 %v3266, %v3458
      %v3460 = vpop.f32.mrb[0].mxu0
      %v3461 = vadd.f32 %v3268, %v3460
      %v3462 = vpop.f32.mrb[0].mxu0
      %v3463 = vadd.f32 %v3270, %v3462
      %3464 = vmatprep.mubr.bf16.mxu0 %v1203
      %3465 = vmatmul.mubr.bf16.gmra.mrb[0].mxu0 %v1202
      %v3466 = vpop.f32.mrb[0].mxu0
      %v3467 = vadd.f32 %v3274, %v3466
      %v3468 = vpop.f32.mrb[0].mxu0
      %v3469 = vadd.f32 %v3276, %v3468
      %v3470 = vpop.f32.mrb[0].mxu0
      %v3471 = vadd.f32 %v3278, %v3470
      %v3472 = vpop.f32.mrb[0].mxu0
      %v3473 = vadd.f32 %v3280, %v3472
      %3474 = vmatprep.mubr.bf16.mxu0 %v1210
      %3475 = vmatmul.mubr.bf16.gmra.mrb[0].mxu0 %v1209
      %v3476 = vpop.f32.mrb[0].mxu0
      %v3477 = vadd.f32 %v3284, %v3476
      %v3478 = vpop.f32.mrb[0].mxu0
      %v3479 = vadd.f32 %v3286, %v3478
      %v3480 = vpop.f32.mrb[0].mxu0
      %v3481 = vadd.f32 %v3288, %v3480
      %v3482 = vpop.f32.mrb[0].mxu0
      %v3483 = vadd.f32 %v3290, %v3482
      %3484 = vmatprep.mubr.bf16.mxu0 %v1217
      %3485 = vmatmul.mubr.bf16.gmra.mrb[0].mxu0 %v1216
      %v3486 = vpop.f32.mrb[0].mxu0
      %v3487 = vadd.f32 %v3294, %v3486
      %v3488 = vpop.f32.mrb[0].mxu0
      %v3489 = vadd.f32 %v3296, %v3488
      %v3490 = vpop.f32.mrb[0].mxu0
      %v3491 = vadd.f32 %v3298, %v3490
      %v3492 = vpop.f32.mrb[0].mxu0
      %v3493 = vadd.f32 %v3300, %v3492
      %3494 = vmatprep.mubr.bf16.mxu0 %v1224
      %3495 = vmatmul.mubr.bf16.gmra.mrb[0].mxu0 %v1223
      %v3496 = vpop.f32.mrb[0].mxu0
      %v3497 = vadd.f32 %v3304, %v3496
      %v3498 = vpop.f32.mrb[0].mxu0
      %v3499 = vadd.f32 %v3306, %v3498
      %v3500 = vpop.f32.mrb[0].mxu0
      %v3501 = vadd.f32 %v3308, %v3500
      %v3502 = vpop.f32.mrb[0].mxu0
      %v3503 = vadd.f32 %v3310, %v3502
      %3504 = vmatprep.mubr.bf16.mxu0 %v1231
      %3505 = vmatmul.mubr.bf16.gmra.mrb[0].mxu0 %v1230
      %v3506 = vpop.f32.mrb[0].mxu0
      %v3507 = vadd.f32 %v3314, %v3506
      %v3508 = vpop.f32.mrb[0].mxu0
      %v3509 = vadd.f32 %v3316, %v3508
      %v3510 = vpop.f32.mrb[0].mxu0
      %v3511 = vadd.f32 %v3318, %v3510
      %v3512 = vpop.f32.mrb[0].mxu0
      %v3513 = vadd.f32 %v3320, %v3512
      %3514 = vmatprep.mubr.bf16.mxu0 %v1238
      %3515 = vmatmul.mubr.bf16.gmra.mrb[0].mxu0 %v1237
      %v3516 = vpop.f32.mrb[0].mxu0
      %v3517 = vadd.f32 %v3324, %v3516
      %v3518 = vpop.f32.mrb[0].mxu0
      %v3519 = vadd.f32 %v3326, %v3518
      %v3520 = vpop.f32.mrb[0].mxu0
      %v3521 = vadd.f32 %v3328, %v3520
      %v3522 = vpop.f32.mrb[0].mxu0
      %v3523 = vadd.f32 %v3330, %v3522
      %3524 = vdwg.mxu0
      %3525 = vmatprep.subr.bf16.mxu0 %v2057
      %3526 = vmatpush1.bf16.msra.mxu0 %v2056
      %3527 = vmatprep.subr.bf16.mxu0 %v2061
      %3528 = vmatpush1.bf16.msra.mxu0 %v2060
      %3529 = vmatprep.subr.bf16.mxu0 %v2065
      %3530 = vmatpush1.bf16.msra.mxu0 %v2064
      %3531 = vmatprep.subr.bf16.mxu0 %v2069
      %3532 = vmatpush1.bf16.msra.mxu0 %v2068
      %3533 = vmatprep.subr.bf16.mxu0 %v2073
      %3534 = vmatpush1.bf16.msra.mxu0 %v2072
      %3535 = vmatprep.subr.bf16.mxu0 %v2077
      %3536 = vmatpush1.bf16.msra.mxu0 %v2076
      %3537 = vmatprep.subr.bf16.mxu0 %v2081
      %3538 = vmatpush1.bf16.msra.mxu0 %v2080
      %3539 = vmatprep.subr.bf16.mxu0 %v2085
      %3540 = vmatpush1.bf16.msra.mxu0 %v2084
      %3541 = vmatprep.subr.bf16.mxu0 %v2089
      %3542 = vmatpush1.bf16.msra.mxu0 %v2088
      %3543 = vmatprep.subr.bf16.mxu0 %v2093
      %3544 = vmatpush1.bf16.msra.mxu0 %v2092
      %3545 = vmatprep.subr.bf16.mxu0 %v2097
      %3546 = vmatpush1.bf16.msra.mxu0 %v2096
      %3547 = vmatprep.subr.bf16.mxu0 %v2101
      %3548 = vmatpush1.bf16.msra.mxu0 %v2100
      %3549 = vmatprep.subr.bf16.mxu0 %v2105
      %3550 = vmatpush1.bf16.msra.mxu0 %v2104
      %3551 = vmatprep.subr.bf16.mxu0 %v2109
      %3552 = vmatpush1.bf16.msra.mxu0 %v2108
      %3553 = vmatprep.subr.bf16.mxu0 %v2113
      %3554 = vmatpush1.bf16.msra.mxu0 %v2112
      %3555 = vmatprep.subr.bf16.mxu0 %v2117
      %3556 = vmatpush1.bf16.msra.mxu0 %v2116
      %3557 = vmatprep.mubr.bf16.mxu0 %v1135
      %3558 = vmatmul.mubr.bf16.gmra.mrb[0].mxu0 %v1134
      %v3559 = vpop.f32.mrb[0].mxu0
      %v3560 = vadd.f32 %v3367, %v3559
      %v3561 = vpop.f32.mrb[0].mxu0
      %v3562 = vadd.f32 %v3369, %v3561
      %v3563 = vpop.f32.mrb[0].mxu0
      %v3564 = vadd.f32 %v3371, %v3563
      %v3565 = vpop.f32.mrb[0].mxu0
      %v3566 = vadd.f32 %v3373, %v3565
      %3567 = vmatprep.mubr.bf16.mxu0 %v1142
      %3568 = vmatmul.mubr.bf16.gmra.mrb[0].mxu0 %v1141
      %v3569 = vpop.f32.mrb[0].mxu0
      %v3570 = vadd.f32 %v3377, %v3569
      %v3571 = vpop.f32.mrb[0].mxu0
      %v3572 = vadd.f32 %v3379, %v3571
      %v3573 = vpop.f32.mrb[0].mxu0
      %v3574 = vadd.f32 %v3381, %v3573
      %v3575 = vpop.f32.mrb[0].mxu0
      %v3576 = vadd.f32 %v3383, %v3575
      %3577 = vmatprep.mubr.bf16.mxu0 %v1149
      %3578 = vmatmul.mubr.bf16.gmra.mrb[0].mxu0 %v1148
      %v3579 = vpop.f32.mrb[0].mxu0
      %v3580 = vadd.f32 %v3387, %v3579
      %v3581 = vpop.f32.mrb[0].mxu0
      %v3582 = vadd.f32 %v3389, %v3581
      %v3583 = vpop.f32.mrb[0].mxu0
      %v3584 = vadd.f32 %v3391, %v3583
      %v3585 = vpop.f32.mrb[0].mxu0
      %v3586 = vadd.f32 %v3393, %v3585
      %3587 = vmatprep.mubr.bf16.mxu0 %v1156
      %3588 = vmatmul.mubr.bf16.gmra.mrb[0].mxu0 %v1155
      %v3589 = vpop.f32.mrb[0].mxu0
      %v3590 = vadd.f32 %v3397, %v3589
      %v3591 = vpop.f32.mrb[0].mxu0
      %v3592 = vadd.f32 %v3399, %v3591
      %v3593 = vpop.f32.mrb[0].mxu0
      %v3594 = vadd.f32 %v3401, %v3593
      %v3595 = vpop.f32.mrb[0].mxu0
      %v3596 = vadd.f32 %v3403, %v3595
      %3597 = vmatprep.mubr.bf16.mxu0 %v1163
      %3598 = vmatmul.mubr.bf16.gmra.mrb[0].mxu0 %v1162
      %v3599 = vpop.f32.mrb[0].mxu0
      %v3600 = vadd.f32 %v3407, %v3599
      %v3601 = vpop.f32.mrb[0].mxu0
      %v3602 = vadd.f32 %v3409, %v3601
      %v3603 = vpop.f32.mrb[0].mxu0
      %v3604 = vadd.f32 %v3411, %v3603
      %v3605 = vpop.f32.mrb[0].mxu0
      %v3606 = vadd.f32 %v3413, %v3605
      %3607 = vmatprep.mubr.bf16.mxu0 %v1170
      %3608 = vmatmul.mubr.bf16.gmra.mrb[0].mxu0 %v1169
      %v3609 = vpop.f32.mrb[0].mxu0
      %v3610 = vadd.f32 %v3417, %v3609
      %v3611 = vpop.f32.mrb[0].mxu0
      %v3612 = vadd.f32 %v3419, %v3611
      %v3613 = vpop.f32.mrb[0].mxu0
      %v3614 = vadd.f32 %v3421, %v3613
      %v3615 = vpop.f32.mrb[0].mxu0
      %v3616 = vadd.f32 %v3423, %v3615
      %3617 = vmatprep.mubr.bf16.mxu0 %v1177
      %3618 = vmatmul.mubr.bf16.gmra.mrb[0].mxu0 %v1176
      %v3619 = vpop.f32.mrb[0].mxu0
      %v3620 = vadd.f32 %v3427, %v3619
      %v3621 = vpop.f32.mrb[0].mxu0
      %v3622 = vadd.f32 %v3429, %v3621
      %v3623 = vpop.f32.mrb[0].mxu0
      %v3624 = vadd.f32 %v3431, %v3623
      %v3625 = vpop.f32.mrb[0].mxu0
      %v3626 = vadd.f32 %v3433, %v3625
      %3627 = vmatprep.mubr.bf16.mxu0 %v1184
      %3628 = vmatmul.mubr.bf16.gmra.mrb[0].mxu0 %v1183
      %v3629 = vpop.f32.mrb[0].mxu0
      %v3630 = vadd.f32 %v3437, %v3629
      %v3631 = vpop.f32.mrb[0].mxu0
      %v3632 = vadd.f32 %v3439, %v3631
      %v3633 = vpop.f32.mrb[0].mxu0
      %v3634 = vadd.f32 %v3441, %v3633
      %v3635 = vpop.f32.mrb[0].mxu0
      %v3636 = vadd.f32 %v3443, %v3635
      %3637 = vmatprep.mubr.bf16.mxu0 %v1191
      %3638 = vmatmul.mubr.bf16.gmra.mrb[0].mxu0 %v1190
      %v3639 = vpop.f32.mrb[0].mxu0
      %v3640 = vadd.f32 %v3447, %v3639
      %v3641 = vpop.f32.mrb[0].mxu0
      %v3642 = vadd.f32 %v3449, %v3641
      %v3643 = vpop.f32.mrb[0].mxu0
      %v3644 = vadd.f32 %v3451, %v3643
      %v3645 = vpop.f32.mrb[0].mxu0
      %v3646 = vadd.f32 %v3453, %v3645
      %3647 = vmatprep.mubr.bf16.mxu0 %v1198
      %3648 = vmatmul.mubr.bf16.gmra.mrb[0].mxu0 %v1197
      %v3649 = vpop.f32.mrb[0].mxu0
      %v3650 = vadd.f32 %v3457, %v3649
      %v3651 = vpop.f32.mrb[0].mxu0
      %v3652 = vadd.f32 %v3459, %v3651
      %v3653 = vpop.f32.mrb[0].mxu0
      %v3654 = vadd.f32 %v3461, %v3653
      %v3655 = vpop.f32.mrb[0].mxu0
      %v3656 = vadd.f32 %v3463, %v3655
      %3657 = vmatprep.mubr.bf16.mxu0 %v1205
      %3658 = vmatmul.mubr.bf16.gmra.mrb[0].mxu0 %v1204
      %v3659 = vpop.f32.mrb[0].mxu0
      %v3660 = vadd.f32 %v3467, %v3659
      %v3661 = vpop.f32.mrb[0].mxu0
      %v3662 = vadd.f32 %v3469, %v3661
      %v3663 = vpop.f32.mrb[0].mxu0
      %v3664 = vadd.f32 %v3471, %v3663
      %v3665 = vpop.f32.mrb[0].mxu0
      %v3666 = vadd.f32 %v3473, %v3665
      %3667 = vmatprep.mubr.bf16.mxu0 %v1212
      %3668 = vmatmul.mubr.bf16.gmra.mrb[0].mxu0 %v1211
      %v3669 = vpop.f32.mrb[0].mxu0
      %v3670 = vadd.f32 %v3477, %v3669
      %v3671 = vpop.f32.mrb[0].mxu0
      %v3672 = vadd.f32 %v3479, %v3671
      %v3673 = vpop.f32.mrb[0].mxu0
      %v3674 = vadd.f32 %v3481, %v3673
      %v3675 = vpop.f32.mrb[0].mxu0
      %v3676 = vadd.f32 %v3483, %v3675
      %3677 = vmatprep.mubr.bf16.mxu0 %v1219
      %3678 = vmatmul.mubr.bf16.gmra.mrb[0].mxu0 %v1218
      %v3679 = vpop.f32.mrb[0].mxu0
      %v3680 = vadd.f32 %v3487, %v3679
      %v3681 = vpop.f32.mrb[0].mxu0
      %v3682 = vadd.f32 %v3489, %v3681
      %v3683 = vpop.f32.mrb[0].mxu0
      %v3684 = vadd.f32 %v3491, %v3683
      %v3685 = vpop.f32.mrb[0].mxu0
      %v3686 = vadd.f32 %v3493, %v3685
      %3687 = vmatprep.mubr.bf16.mxu0 %v1226
      %3688 = vmatmul.mubr.bf16.gmra.mrb[0].mxu0 %v1225
      %v3689 = vpop.f32.mrb[0].mxu0
      %v3690 = vadd.f32 %v3497, %v3689
      %v3691 = vpop.f32.mrb[0].mxu0
      %v3692 = vadd.f32 %v3499, %v3691
      %v3693 = vpop.f32.mrb[0].mxu0
      %v3694 = vadd.f32 %v3501, %v3693
      %v3695 = vpop.f32.mrb[0].mxu0
      %v3696 = vadd.f32 %v3503, %v3695
      %3697 = vmatprep.mubr.bf16.mxu0 %v1233
      %3698 = vmatmul.mubr.bf16.gmra.mrb[0].mxu0 %v1232
      %v3699 = vpop.f32.mrb[0].mxu0
      %v3700 = vadd.f32 %v3507, %v3699
      %v3701 = vpop.f32.mrb[0].mxu0
      %v3702 = vadd.f32 %v3509, %v3701
      %v3703 = vpop.f32.mrb[0].mxu0
      %v3704 = vadd.f32 %v3511, %v3703
      %v3705 = vpop.f32.mrb[0].mxu0
      %v3706 = vadd.f32 %v3513, %v3705
      %3707 = vmatprep.mubr.bf16.mxu0 %v1240
      %3708 = vmatmul.mubr.bf16.gmra.mrb[0].mxu0 %v1239
      %v3709 = vpop.f32.mrb[0].mxu0
      %v3710 = vadd.f32 %v3517, %v3709
      %v3711 = vpop.f32.mrb[0].mxu0
      %v3712 = vadd.f32 %v3519, %v3711
      %v3713 = vpop.f32.mrb[0].mxu0
      %v3714 = vadd.f32 %v3521, %v3713
      %v3715 = vpop.f32.mrb[0].mxu0
      %v3716 = vadd.f32 %v3523, %v3715
      %3717 = vdwg.mxu0
      %3718 = vmatprep.subr.bf16.mxu0 %v2121
      %3719 = vmatpush1.bf16.msra.mxu0 %v2120
      %3720 = vmatprep.subr.bf16.mxu0 0
      %3721 = vmatpush1.bf16.msra.mxu0 0
      %3722 = vmatprep.subr.bf16.mxu0 0
      %3723 = vmatpush1.bf16.msra.mxu0 0
      %3724 = vmatprep.subr.bf16.mxu0 0
      %3725 = vmatpush1.bf16.msra.mxu0 0
      %3726 = vmatprep.subr.bf16.mxu0 0
      %3727 = vmatpush1.bf16.msra.mxu0 0
      %3728 = vmatprep.subr.bf16.mxu0 0
      %3729 = vmatpush1.bf16.msra.mxu0 0
      %3730 = vmatprep.subr.bf16.mxu0 0
      %3731 = vmatpush1.bf16.msra.mxu0 0
      %3732 = vmatprep.subr.bf16.mxu0 0
      %3733 = vmatpush1.bf16.msra.mxu0 0
      %3734 = vmatprep.subr.bf16.mxu0 0
      %3735 = vmatpush1.bf16.msra.mxu0 0
      %3736 = vmatprep.subr.bf16.mxu0 0
      %3737 = vmatpush1.bf16.msra.mxu0 0
      %3738 = vmatprep.subr.bf16.mxu0 0
      %3739 = vmatpush1.bf16.msra.mxu0 0
      %3740 = vmatprep.subr.bf16.mxu0 0
      %3741 = vmatpush1.bf16.msra.mxu0 0
      %3742 = vmatprep.subr.bf16.mxu0 0
      %3743 = vmatpush1.bf16.msra.mxu0 0
      %3744 = vmatprep.subr.bf16.mxu0 0
      %3745 = vmatpush1.bf16.msra.mxu0 0
      %3746 = vmatprep.subr.bf16.mxu0 0
      %3747 = vmatpush1.bf16.msra.mxu0 0
      %3748 = vmatprep.subr.bf16.mxu0 0
      %3749 = vmatpush1.bf16.msra.mxu0 0
      %3750 = vmatprep.mubr.bf16.mxu0 0
      %3751 = vmatmul.mubr.bf16.gmra.mrb[0].mxu0 %v2320
      %v3752 = vpop.f32.mrb[0].mxu0
      %v3753 = vadd.f32 %v3560, %v3752
      %v3754 = vpop.f32.mrb[0].mxu0
      %v3755 = vadd.f32 %v3562, %v3754
      %v3756 = vpop.f32.mrb[0].mxu0
      %v3757 = vadd.f32 %v3564, %v3756
      %v3758 = vpop.f32.mrb[0].mxu0
      %v3759 = vadd.f32 %v3566, %v3758
      %3760 = vmatprep.mubr.bf16.mxu0 0
      %3761 = vmatmul.mubr.bf16.gmra.mrb[0].mxu0 %v2323
      %v3762 = vpop.f32.mrb[0].mxu0
      %v3763 = vadd.f32 %v3570, %v3762
      %v3764 = vpop.f32.mrb[0].mxu0
      %v3765 = vadd.f32 %v3572, %v3764
      %v3766 = vpop.f32.mrb[0].mxu0
      %v3767 = vadd.f32 %v3574, %v3766
      %v3768 = vpop.f32.mrb[0].mxu0
      %v3769 = vadd.f32 %v3576, %v3768
      %3770 = vmatprep.mubr.bf16.mxu0 0
      %3771 = vmatmul.mubr.bf16.gmra.mrb[0].mxu0 %v2326
      %v3772 = vpop.f32.mrb[0].mxu0
      %v3773 = vadd.f32 %v3580, %v3772
      %v3774 = vpop.f32.mrb[0].mxu0
      %v3775 = vadd.f32 %v3582, %v3774
      %v3776 = vpop.f32.mrb[0].mxu0
      %v3777 = vadd.f32 %v3584, %v3776
      %v3778 = vpop.f32.mrb[0].mxu0
      %v3779 = vadd.f32 %v3586, %v3778
      %3780 = vmatprep.mubr.bf16.mxu0 0
      %3781 = vmatmul.mubr.bf16.gmra.mrb[0].mxu0 %v2329
      %v3782 = vpop.f32.mrb[0].mxu0
      %v3783 = vadd.f32 %v3590, %v3782
      %v3784 = vpop.f32.mrb[0].mxu0
      %v3785 = vadd.f32 %v3592, %v3784
      %v3786 = vpop.f32.mrb[0].mxu0
      %v3787 = vadd.f32 %v3594, %v3786
      %v3788 = vpop.f32.mrb[0].mxu0
      %v3789 = vadd.f32 %v3596, %v3788
      %3790 = vmatprep.mubr.bf16.mxu0 0
      %3791 = vmatmul.mubr.bf16.gmra.mrb[0].mxu0 %v2332
      %v3792 = vpop.f32.mrb[0].mxu0
      %v3793 = vadd.f32 %v3600, %v3792
      %v3794 = vpop.f32.mrb[0].mxu0
      %v3795 = vadd.f32 %v3602, %v3794
      %v3796 = vpop.f32.mrb[0].mxu0
      %v3797 = vadd.f32 %v3604, %v3796
      %v3798 = vpop.f32.mrb[0].mxu0
      %v3799 = vadd.f32 %v3606, %v3798
      %3800 = vmatprep.mubr.bf16.mxu0 0
      %3801 = vmatmul.mubr.bf16.gmra.mrb[0].mxu0 %v2335
      %v3802 = vpop.f32.mrb[0].mxu0
      %v3803 = vadd.f32 %v3610, %v3802
      %v3804 = vpop.f32.mrb[0].mxu0
      %v3805 = vadd.f32 %v3612, %v3804
      %v3806 = vpop.f32.mrb[0].mxu0
      %v3807 = vadd.f32 %v3614, %v3806
      %v3808 = vpop.f32.mrb[0].mxu0
      %v3809 = vadd.f32 %v3616, %v3808
      %3810 = vmatprep.mubr.bf16.mxu0 0
      %3811 = vmatmul.mubr.bf16.gmra.mrb[0].mxu0 %v2338
      %v3812 = vpop.f32.mrb[0].mxu0
      %v3813 = vadd.f32 %v3620, %v3812
      %v3814 = vpop.f32.mrb[0].mxu0
      %v3815 = vadd.f32 %v3622, %v3814
      %v3816 = vpop.f32.mrb[0].mxu0
      %v3817 = vadd.f32 %v3624, %v3816
      %v3818 = vpop.f32.mrb[0].mxu0
      %v3819 = vadd.f32 %v3626, %v3818
      %3820 = vmatprep.mubr.bf16.mxu0 0
      %3821 = vmatmul.mubr.bf16.gmra.mrb[0].mxu0 %v2341
      %v3822 = vpop.f32.mrb[0].mxu0
      %v3823 = vadd.f32 %v3630, %v3822
      %v3824 = vpop.f32.mrb[0].mxu0
      %v3825 = vadd.f32 %v3632, %v3824
      %v3826 = vpop.f32.mrb[0].mxu0
      %v3827 = vadd.f32 %v3634, %v3826
      %v3828 = vpop.f32.mrb[0].mxu0
      %v3829 = vadd.f32 %v3636, %v3828
      %3830 = vmatprep.mubr.bf16.mxu0 0
      %3831 = vmatmul.mubr.bf16.gmra.mrb[0].mxu0 %v2344
      %v3832 = vpop.f32.mrb[0].mxu0
      %v3833 = vadd.f32 %v3640, %v3832
      %v3834 = vpop.f32.mrb[0].mxu0
      %v3835 = vadd.f32 %v3642, %v3834
      %v3836 = vpop.f32.mrb[0].mxu0
      %v3837 = vadd.f32 %v3644, %v3836
      %v3838 = vpop.f32.mrb[0].mxu0
      %v3839 = vadd.f32 %v3646, %v3838
      %3840 = vmatprep.mubr.bf16.mxu0 0
      %3841 = vmatmul.mubr.bf16.gmra.mrb[0].mxu0 %v2347
      %v3842 = vpop.f32.mrb[0].mxu0
      %v3843 = vadd.f32 %v3650, %v3842
      %v3844 = vpop.f32.mrb[0].mxu0
      %v3845 = vadd.f32 %v3652, %v3844
      %v3846 = vpop.f32.mrb[0].mxu0
      %v3847 = vadd.f32 %v3654, %v3846
      %v3848 = vpop.f32.mrb[0].mxu0
      %v3849 = vadd.f32 %v3656, %v3848
      %3850 = vmatprep.mubr.bf16.mxu0 0
      %3851 = vmatmul.mubr.bf16.gmra.mrb[0].mxu0 %v2350
      %v3852 = vpop.f32.mrb[0].mxu0
      %v3853 = vadd.f32 %v3660, %v3852
      %v3854 = vpop.f32.mrb[0].mxu0
      %v3855 = vadd.f32 %v3662, %v3854
      %v3856 = vpop.f32.mrb[0].mxu0
      %v3857 = vadd.f32 %v3664, %v3856
      %v3858 = vpop.f32.mrb[0].mxu0
      %v3859 = vadd.f32 %v3666, %v3858
      %3860 = vmatprep.mubr.bf16.mxu0 0
      %3861 = vmatmul.mubr.bf16.gmra.mrb[0].mxu0 %v2353
      %v3862 = vpop.f32.mrb[0].mxu0
      %v3863 = vadd.f32 %v3670, %v3862
      %v3864 = vpop.f32.mrb[0].mxu0
      %v3865 = vadd.f32 %v3672, %v3864
      %v3866 = vpop.f32.mrb[0].mxu0
      %v3867 = vadd.f32 %v3674, %v3866
      %v3868 = vpop.f32.mrb[0].mxu0
      %v3869 = vadd.f32 %v3676, %v3868
      %3870 = vmatprep.mubr.bf16.mxu0 0
      %3871 = vmatmul.mubr.bf16.gmra.mrb[0].mxu0 %v2356
      %v3872 = vpop.f32.mrb[0].mxu0
      %v3873 = vadd.f32 %v3680, %v3872
      %v3874 = vpop.f32.mrb[0].mxu0
      %v3875 = vadd.f32 %v3682, %v3874
      %v3876 = vpop.f32.mrb[0].mxu0
      %v3877 = vadd.f32 %v3684, %v3876
      %v3878 = vpop.f32.mrb[0].mxu0
      %v3879 = vadd.f32 %v3686, %v3878
      %3880 = vmatprep.mubr.bf16.mxu0 0
      %3881 = vmatmul.mubr.bf16.gmra.mrb[0].mxu0 %v2359
      %v3882 = vpop.f32.mrb[0].mxu0
      %v3883 = vadd.f32 %v3690, %v3882
      %v3884 = vpop.f32.mrb[0].mxu0
      %v3885 = vadd.f32 %v3692, %v3884
      %v3886 = vpop.f32.mrb[0].mxu0
      %v3887 = vadd.f32 %v3694, %v3886
      %v3888 = vpop.f32.mrb[0].mxu0
      %v3889 = vadd.f32 %v3696, %v3888
      %3890 = vmatprep.mubr.bf16.mxu0 0
      %3891 = vmatmul.mubr.bf16.gmra.mrb[0].mxu0 %v2362
      %v3892 = vpop.f32.mrb[0].mxu0
      %v3893 = vadd.f32 %v3700, %v3892
      %v3894 = vpop.f32.mrb[0].mxu0
      %v3895 = vadd.f32 %v3702, %v3894
      %v3896 = vpop.f32.mrb[0].mxu0
      %v3897 = vadd.f32 %v3704, %v3896
      %v3898 = vpop.f32.mrb[0].mxu0
      %v3899 = vadd.f32 %v3706, %v3898
      %3900 = vmatprep.mubr.bf16.mxu0 0
      %3901 = vmatmul.mubr.bf16.gmra.mrb[0].mxu0 %v2365
      %v3902 = vpop.f32.mrb[0].mxu0
      %v3903 = vadd.f32 %v3710, %v3902
      %v3904 = vpop.f32.mrb[0].mxu0
      %v3905 = vadd.f32 %v3712, %v3904
      %v3906 = vpop.f32.mrb[0].mxu0
      %v3907 = vadd.f32 %v3714, %v3906
      %v3908 = vpop.f32.mrb[0].mxu0
      %v3909 = vadd.f32 %v3716, %v3908
      %3910 = vdwg.mxu0
      %v3911 = vmax.f32 %v2981, 0.0
      %v3912 = vmax.f32 %v2983, 0.0
      %v3913 = vmax.f32 %v3753, 0.0
      %v3914 = vmax.f32 %v3755, 0.0
      %v3915 = vmax.f32 %v2985, 0.0
      %v3916 = vmax.f32 %v2987, 0.0
      %v3917 = vmax.f32 %v3757, 0.0
      %v3918 = vmax.f32 %v3759, 0.0
      %v3919 = vmax.f32 %v2991, 0.0
      %v3920 = vmax.f32 %v2993, 0.0
      %v3921 = vmax.f32 %v3763, 0.0
      %v3922 = vmax.f32 %v3765, 0.0
      %v3923 = vmax.f32 %v2995, 0.0
      %v3924 = vmax.f32 %v2997, 0.0
      %v3925 = vmax.f32 %v3767, 0.0
      %v3926 = vmax.f32 %v3769, 0.0
      %v3927 = vmax.f32 %v3001, 0.0
      %v3928 = vmax.f32 %v3003, 0.0
      %v3929 = vmax.f32 %v3773, 0.0
      %v3930 = vmax.f32 %v3775, 0.0
      %v3931 = vmax.f32 %v3005, 0.0
      %v3932 = vmax.f32 %v3007, 0.0
      %v3933 = vmax.f32 %v3777, 0.0
      %v3934 = vmax.f32 %v3779, 0.0
      %v3935 = vmax.f32 %v3011, 0.0
      %v3936 = vmax.f32 %v3013, 0.0
      %v3937 = vmax.f32 %v3783, 0.0
      %v3938 = vmax.f32 %v3785, 0.0
      %v3939 = vmax.f32 %v3015, 0.0
      %v3940 = vmax.f32 %v3017, 0.0
      %v3941 = vmax.f32 %v3787, 0.0
      %v3942 = vmax.f32 %v3789, 0.0
      %v3943 = vmax.f32 %v3021, 0.0
      %v3944 = vmax.f32 %v3023, 0.0
      %v3945 = vmax.f32 %v3793, 0.0
      %v3946 = vmax.f32 %v3795, 0.0
      %v3947 = vmax.f32 %v3025, 0.0
      %v3948 = vmax.f32 %v3027, 0.0
      %v3949 = vmax.f32 %v3797, 0.0
      %v3950 = vmax.f32 %v3799, 0.0
      %v3951 = vmax.f32 %v3031, 0.0
      %v3952 = vmax.f32 %v3033, 0.0
      %v3953 = vmax.f32 %v3803, 0.0
      %v3954 = vmax.f32 %v3805, 0.0
      %v3955 = vmax.f32 %v3035, 0.0
      %v3956 = vmax.f32 %v3037, 0.0
      %v3957 = vmax.f32 %v3807, 0.0
      %v3958 = vmax.f32 %v3809, 0.0
      %v3959 = vmax.f32 %v3041, 0.0
      %v3960 = vmax.f32 %v3043, 0.0
      %v3961 = vmax.f32 %v3813, 0.0
      %v3962 = vmax.f32 %v3815, 0.0
      %v3963 = vmax.f32 %v3045, 0.0
      %v3964 = vmax.f32 %v3047, 0.0
      %v3965 = vmax.f32 %v3817, 0.0
      %v3966 = vmax.f32 %v3819, 0.0
      %v3967 = vmax.f32 %v3051, 0.0
      %v3968 = vmax.f32 %v3053, 0.0
      %v3969 = vmax.f32 %v3823, 0.0
      %v3970 = vmax.f32 %v3825, 0.0
      %v3971 = vmax.f32 %v3055, 0.0
      %v3972 = vmax.f32 %v3057, 0.0
      %v3973 = vmax.f32 %v3827, 0.0
      %v3974 = vmax.f32 %v3829, 0.0
      %v3975 = vmax.f32 %v3061, 0.0
      %v3976 = vmax.f32 %v3063, 0.0
      %v3977 = vmax.f32 %v3833, 0.0
      %v3978 = vmax.f32 %v3835, 0.0
      %v3979 = vmax.f32 %v3065, 0.0
      %v3980 = vmax.f32 %v3067, 0.0
      %v3981 = vmax.f32 %v3837, 0.0
      %v3982 = vmax.f32 %v3839, 0.0
      %v3983 = vmax.f32 %v3071, 0.0
      %v3984 = vmax.f32 %v3073, 0.0
      %v3985 = vmax.f32 %v3843, 0.0
      %v3986 = vmax.f32 %v3845, 0.0
      %v3987 = vmax.f32 %v3075, 0.0
      %v3988 = vmax.f32 %v3077, 0.0
      %v3989 = vmax.f32 %v3847, 0.0
      %v3990 = vmax.f32 %v3849, 0.0
      %v3991 = vmax.f32 %v3081, 0.0
      %v3992 = vmax.f32 %v3083, 0.0
      %v3993 = vmax.f32 %v3853, 0.0
      %v3994 = vmax.f32 %v3855, 0.0
      %v3995 = vmax.f32 %v3085, 0.0
      %v3996 = vmax.f32 %v3087, 0.0
      %v3997 = vmax.f32 %v3857, 0.0
      %v3998 = vmax.f32 %v3859, 0.0
      %v3999 = vmax.f32 %v3091, 0.0
      %v4000 = vmax.f32 %v3093, 0.0
      %v4001 = vmax.f32 %v3863, 0.0
      %v4002 = vmax.f32 %v3865, 0.0
      %v4003 = vmax.f32 %v3095, 0.0
      %v4004 = vmax.f32 %v3097, 0.0
      %v4005 = vmax.f32 %v3867, 0.0
      %v4006 = vmax.f32 %v3869, 0.0
      %v4007 = vmax.f32 %v3101, 0.0
      %v4008 = vmax.f32 %v3103, 0.0
      %v4009 = vmax.f32 %v3873, 0.0
      %v4010 = vmax.f32 %v3875, 0.0
      %v4011 = vmax.f32 %v3105, 0.0
      %v4012 = vmax.f32 %v3107, 0.0
      %v4013 = vmax.f32 %v3877, 0.0
      %v4014 = vmax.f32 %v3879, 0.0
      %v4015 = vmax.f32 %v3111, 0.0
      %v4016 = vmax.f32 %v3113, 0.0
      %v4017 = vmax.f32 %v3883, 0.0
      %v4018 = vmax.f32 %v3885, 0.0
      %v4019 = vmax.f32 %v3115, 0.0
      %v4020 = vmax.f32 %v3117, 0.0
      %v4021 = vmax.f32 %v3887, 0.0
      %v4022 = vmax.f32 %v3889, 0.0
      %v4023 = vmax.f32 %v3121, 0.0
      %v4024 = vmax.f32 %v3123, 0.0
      %v4025 = vmax.f32 %v3893, 0.0
      %v4026 = vmax.f32 %v3895, 0.0
      %v4027 = vmax.f32 %v3125, 0.0
      %v4028 = vmax.f32 %v3127, 0.0
      %v4029 = vmax.f32 %v3897, 0.0
      %v4030 = vmax.f32 %v3899, 0.0
      %v4031 = vmax.f32 %v3131, 0.0
      %v4032 = vmax.f32 %v3133, 0.0
      %v4033 = vmax.f32 %v3903, 0.0
      %v4034 = vmax.f32 %v3905, 0.0
      %v4035 = vmax.f32 %v3135, 0.0
      %v4036 = vmax.f32 %v3137, 0.0
      %v4037 = vmax.f32 %v3907, 0.0
      %v4038 = vmax.f32 %v3909, 0.0
      %v4039 = vpack.c.bf16 %v3915, %v3911
      %v4040 = vpack.c.bf16 %v3916, %v3912
      %v4041 = vpack.c.bf16 %v3917, %v3913
      %v4042 = vpack.c.bf16 %v3918, %v3914
      %v4043 = vpack.c.bf16 %v3923, %v3919
      %v4044 = vpack.c.bf16 %v3924, %v3920
      %v4045 = vpack.c.bf16 %v3925, %v3921
      %v4046 = vpack.c.bf16 %v3926, %v3922
      %v4047 = vpack.c.bf16 %v3931, %v3927
      %v4048 = vpack.c.bf16 %v3932, %v3928
      %v4049 = vpack.c.bf16 %v3933, %v3929
      %v4050 = vpack.c.bf16 %v3934, %v3930
      %v4051 = vpack.c.bf16 %v3939, %v3935
      %v4052 = vpack.c.bf16 %v3940, %v3936
      %v4053 = vpack.c.bf16 %v3941, %v3937
      %v4054 = vpack.c.bf16 %v3942, %v3938
      %v4055 = vpack.c.bf16 %v3947, %v3943
      %v4056 = vpack.c.bf16 %v3948, %v3944
      %v4057 = vpack.c.bf16 %v3949, %v3945
      %v4058 = vpack.c.bf16 %v3950, %v3946
      %v4059 = vpack.c.bf16 %v3955, %v3951
      %v4060 = vpack.c.bf16 %v3956, %v3952
      %v4061 = vpack.c.bf16 %v3957, %v3953
      %v4062 = vpack.c.bf16 %v3958, %v3954
      %v4063 = vpack.c.bf16 %v3963, %v3959
      %v4064 = vpack.c.bf16 %v3964, %v3960
      %v4065 = vpack.c.bf16 %v3965, %v3961
      %v4066 = vpack.c.bf16 %v3966, %v3962
      %v4067 = vpack.c.bf16 %v3971, %v3967
      %v4068 = vpack.c.bf16 %v3972, %v3968
      %v4069 = vpack.c.bf16 %v3973, %v3969
      %v4070 = vpack.c.bf16 %v3974, %v3970
      %v4071 = vpack.c.bf16 %v3979, %v3975
      %v4072 = vpack.c.bf16 %v3980, %v3976
      %v4073 = vpack.c.bf16 %v3981, %v3977
      %v4074 = vpack.c.bf16 %v3982, %v3978
      %v4075 = vpack.c.bf16 %v3987, %v3983
      %v4076 = vpack.c.bf16 %v3988, %v3984
      %v4077 = vpack.c.bf16 %v3989, %v3985
      %v4078 = vpack.c.bf16 %v3990, %v3986
      %v4079 = vpack.c.bf16 %v3995, %v3991
      %v4080 = vpack.c.bf16 %v3996, %v3992
      %v4081 = vpack.c.bf16 %v3997, %v3993
      %v4082 = vpack.c.bf16 %v3998, %v3994
      %v4083 = vpack.c.bf16 %v4003, %v3999
      %v4084 = vpack.c.bf16 %v4004, %v4000
      %v4085 = vpack.c.bf16 %v4005, %v4001
      %v4086 = vpack.c.bf16 %v4006, %v4002
      %v4087 = vpack.c.bf16 %v4011, %v4007
      %v4088 = vpack.c.bf16 %v4012, %v4008
      %v4089 = vpack.c.bf16 %v4013, %v4009
      %v4090 = vpack.c.bf16 %v4014, %v4010
      %v4091 = vpack.c.bf16 %v4019, %v4015
      %v4092 = vpack.c.bf16 %v4020, %v4016
      %v4093 = vpack.c.bf16 %v4021, %v4017
      %v4094 = vpack.c.bf16 %v4022, %v4018
      %v4095 = vpack.c.bf16 %v4027, %v4023
      %v4096 = vpack.c.bf16 %v4028, %v4024
      %v4097 = vpack.c.bf16 %v4029, %v4025
      %v4098 = vpack.c.bf16 %v4030, %v4026
      %v4099 = vpack.c.bf16 %v4035, %v4031
      %v4100 = vpack.c.bf16 %v4036, %v4032
      %v4101 = vpack.c.bf16 %v4037, %v4033
      %v4102 = vpack.c.bf16 %v4038, %v4034
      %v4103 = vld [vmem:[%s4] sm:$0xf]
      %v4104 = vld [vmem:[%s4 + $0x4] sm:$0xf]
      %v4105 = vld [vmem:[%s4 + $0x8] sm:$0xf]
      %v4106 = vld [vmem:[%s4 + $0xc] sm:$0xf]
      %v4107 = vld [vmem:[%s4 + $0x10] sm:$0xf]
      %v4108 = vld [vmem:[%s4 + $0x14] sm:$0xf]
      %v4109 = vld [vmem:[%s4 + $0x18] sm:$0xf]
      %v4110 = vld [vmem:[%s4 + $0x1c] sm:$0xf]
      %v4111 = vld [vmem:[%s4 + $0x20] sm:$0xf]
      %v4112 = vld [vmem:[%s4 + $0x24] sm:$0xf]
      %v4113 = vld [vmem:[%s4 + $0x28] sm:$0xf]
      %v4114 = vld [vmem:[%s4 + $0x2c] sm:$0xf]
      %v4115 = vld [vmem:[%s4 + $0x30] sm:$0xf]
      %v4116 = vld [vmem:[%s4 + $0x34] sm:$0xf]
      %v4117 = vld [vmem:[%s4 + $0x38] sm:$0xf]
      %v4118 = vld [vmem:[%s4 + $0x3c] sm:$0xf]
      %v4119 = vld [vmem:[%s4 + $0x40] sm:$0xf]
      %v4120 = vld [vmem:[%s4 + $0x44] sm:$0xf]
      %v4121 = vld [vmem:[%s4 + $0x48] sm:$0xf]
      %v4122 = vld [vmem:[%s4 + $0x4c] sm:$0xf]
      %v4123 = vld [vmem:[%s4 + $0x50] sm:$0xf]
      %v4124 = vld [vmem:[%s4 + $0x54] sm:$0xf]
      %v4125 = vld [vmem:[%s4 + $0x58] sm:$0xf]
      %v4126 = vld [vmem:[%s4 + $0x5c] sm:$0xf]
      %v4127 = vld [vmem:[%s4 + $0x60] sm:$0xf]
      %v4128 = vld [vmem:[%s4 + $0x64] sm:$0xf]
      %v4129 = vld [vmem:[%s4 + $0x68] sm:$0xf]
      %v4130 = vld [vmem:[%s4 + $0x6c] sm:$0xf]
      %v4131 = vld [vmem:[%s4 + $0x70] sm:$0xf]
      %v4132 = vld [vmem:[%s4 + $0x74] sm:$0xf]
      %v4133 = vld [vmem:[%s4 + $0x78] sm:$0xf]
      %v4134 = vld [vmem:[%s4 + $0x7c] sm:$0xf]
      %v4135 = vld [vmem:[%s4 + $0x80] sm:$0xf]
      %v4136 = vld [vmem:[%s4 + $0x84] sm:$0xf]
      %v4137 = vld [vmem:[%s4 + $0x88] sm:$0xf]
      %v4138 = vld [vmem:[%s4 + $0x8c] sm:$0xf]
      %v4139 = vld [vmem:[%s4 + $0x90] sm:$0xf]
      %v4140 = vld [vmem:[%s4 + $0x94] sm:$0xf]
      %v4141 = vld [vmem:[%s4 + $0x98] sm:$0xf]
      %v4142 = vld [vmem:[%s4 + $0x9c] sm:$0xf]
      %v4143 = vld [vmem:[%s4 + $0xa0] sm:$0xf]
      %v4144 = vld [vmem:[%s4 + $0xa4] sm:$0xf]
      %v4145 = vld [vmem:[%s4 + $0xa8] sm:$0xf]
      %v4146 = vld [vmem:[%s4 + $0xac] sm:$0xf]
      %v4147 = vld [vmem:[%s4 + $0xb0] sm:$0xf]
      %v4148 = vld [vmem:[%s4 + $0xb4] sm:$0xf]
      %v4149 = vld [vmem:[%s4 + $0xb8] sm:$0xf]
      %v4150 = vld [vmem:[%s4 + $0xbc] sm:$0xf]
      %v4151 = vld [vmem:[%s4 + $0xc0] sm:$0xf]
      %v4152 = vld [vmem:[%s4 + $0xc4] sm:$0xf]
      %v4153 = vld [vmem:[%s5] sm:$0x1]
      %v4155 = vlaneseq
      %v4156 = vshrl.u32 %v4155, 7
      %v4157 = vsub.s32 0, %v4156
      %v4158 = vrot.slane %v4153, %v4157
      %v4210 = vunpack.c.l.b16 %v4103
      %v4211 = vunpack.c.l.b16 %v4104
      %v4212 = vunpack.c.l.b16 %v4105
      %v4213 = vunpack.c.l.b16 %v4106
      %v4214 = vunpack.c.l.b16 %v4107
      %v4215 = vunpack.c.l.b16 %v4108
      %v4216 = vunpack.c.l.b16 %v4109
      %v4217 = vunpack.c.l.b16 %v4110
      %v4218 = vunpack.c.l.b16 %v4111
      %v4219 = vunpack.c.l.b16 %v4112
      %v4220 = vunpack.c.l.b16 %v4113
      %v4221 = vunpack.c.l.b16 %v4114
      %v4222 = vunpack.c.l.b16 %v4115
      %v4223 = vunpack.c.l.b16 %v4116
      %v4224 = vunpack.c.l.b16 %v4117
      %v4225 = vunpack.c.l.b16 %v4118
      %v4226 = vunpack.c.l.b16 %v4119
      %v4227 = vunpack.c.l.b16 %v4120
      %v4228 = vunpack.c.l.b16 %v4121
      %v4229 = vunpack.c.l.b16 %v4122
      %v4230 = vunpack.c.l.b16 %v4123
      %v4231 = vunpack.c.l.b16 %v4124
      %v4232 = vunpack.c.l.b16 %v4125
      %v4233 = vunpack.c.l.b16 %v4126
      %v4234 = vunpack.c.l.b16 %v4127
      %v4235 = vunpack.c.l.b16 %v4128
      %v4236 = vunpack.c.l.b16 %v4129
      %v4237 = vunpack.c.l.b16 %v4130
      %v4238 = vunpack.c.l.b16 %v4131
      %v4239 = vunpack.c.l.b16 %v4132
      %v4240 = vunpack.c.l.b16 %v4133
      %v4241 = vunpack.c.l.b16 %v4134
      %v4242 = vunpack.c.l.b16 %v4135
      %v4243 = vunpack.c.l.b16 %v4136
      %v4244 = vunpack.c.l.b16 %v4137
      %v4245 = vunpack.c.l.b16 %v4138
      %v4246 = vunpack.c.l.b16 %v4139
      %v4247 = vunpack.c.l.b16 %v4140
      %v4248 = vunpack.c.l.b16 %v4141
      %v4249 = vunpack.c.l.b16 %v4142
      %v4250 = vunpack.c.l.b16 %v4143
      %v4251 = vunpack.c.l.b16 %v4144
      %v4252 = vunpack.c.l.b16 %v4145
      %v4253 = vunpack.c.l.b16 %v4146
      %v4254 = vunpack.c.l.b16 %v4147
      %v4255 = vunpack.c.l.b16 %v4148
      %v4256 = vunpack.c.l.b16 %v4149
      %v4257 = vunpack.c.l.b16 %v4150
      %v4258 = vunpack.c.l.b16 %v4151
      %v4259 = vunpack.c.l.b16 %v4152
      %v4260 = vpack.c.b16 %v4211, %v4210
      %v4261 = vpack.c.b16 %v4213, %v4212
      %v4262 = vpack.c.b16 %v4215, %v4214
      %v4263 = vpack.c.b16 %v4217, %v4216
      %v4264 = vpack.c.b16 %v4219, %v4218
      %v4265 = vpack.c.b16 %v4221, %v4220
      %v4266 = vpack.c.b16 %v4223, %v4222
      %v4267 = vpack.c.b16 %v4225, %v4224
      %v4268 = vpack.c.b16 %v4227, %v4226
      %v4269 = vpack.c.b16 %v4229, %v4228
      %v4270 = vpack.c.b16 %v4231, %v4230
      %v4271 = vpack.c.b16 %v4233, %v4232
      %v4272 = vpack.c.b16 %v4235, %v4234
      %v4273 = vpack.c.b16 %v4237, %v4236
      %v4274 = vpack.c.b16 %v4239, %v4238
      %v4275 = vpack.c.b16 %v4241, %v4240
      %v4276 = vpack.c.b16 %v4243, %v4242
      %v4277 = vpack.c.b16 %v4245, %v4244
      %v4278 = vpack.c.b16 %v4247, %v4246
      %v4279 = vpack.c.b16 %v4249, %v4248
      %v4280 = vpack.c.b16 %v4251, %v4250
      %v4281 = vpack.c.b16 %v4253, %v4252
      %v4282 = vpack.c.b16 %v4255, %v4254
      %v4283 = vpack.c.b16 %v4257, %v4256
      %v4284 = vpack.c.b16 %v4259, %v4258
      %v4311 = vsel %vm2318, %v4042, 0
      %v4314 = vsel %vm2318, %v4046, 0
      %v4317 = vsel %vm2318, %v4050, 0
      %v4320 = vsel %vm2318, %v4054, 0
      %v4323 = vsel %vm2318, %v4058, 0
      %v4326 = vsel %vm2318, %v4062, 0
      %v4329 = vsel %vm2318, %v4066, 0
      %v4332 = vsel %vm2318, %v4070, 0
      %v4335 = vsel %vm2318, %v4074, 0
      %v4338 = vsel %vm2318, %v4078, 0
      %v4341 = vsel %vm2318, %v4082, 0
      %v4344 = vsel %vm2318, %v4086, 0
      %v4347 = vsel %vm2318, %v4090, 0
      %v4350 = vsel %vm2318, %v4094, 0
      %v4353 = vsel %vm2318, %v4098, 0
      %v4356 = vsel %vm2318, %v4102, 0
      %4358 = vmatprep.subr.bf16.mxu0 0
      %4359 = vmatpush1.bf16.msra.mxu0 %v4260
      %4360 = vmatprep.subr.bf16.mxu0 0
      %4361 = vmatpush1.bf16.msra.mxu0 %v4261
      %4362 = vmatprep.subr.bf16.mxu0 0
      %4363 = vmatpush1.bf16.msra.mxu0 %v4262
      %4364 = vmatprep.subr.bf16.mxu0 0
      %4365 = vmatpush1.bf16.msra.mxu0 %v4263
      %4366 = vmatprep.subr.bf16.mxu0 0
      %4367 = vmatpush1.bf16.msra.mxu0 %v4264
      %4368 = vmatprep.subr.bf16.mxu0 0
      %4369 = vmatpush1.bf16.msra.mxu0 %v4265
      %4370 = vmatprep.subr.bf16.mxu0 0
      %4371 = vmatpush1.bf16.msra.mxu0 %v4266
      %4372 = vmatprep.subr.bf16.mxu0 0
      %4373 = vmatpush1.bf16.msra.mxu0 %v4267
      %4374 = vmatprep.subr.bf16.mxu0 0
      %4375 = vmatpush1.bf16.msra.mxu0 %v4268
      %4376 = vmatprep.subr.bf16.mxu0 0
      %4377 = vmatpush1.bf16.msra.mxu0 %v4269
      %4378 = vmatprep.subr.bf16.mxu0 0
      %4379 = vmatpush1.bf16.msra.mxu0 %v4270
      %4380 = vmatprep.subr.bf16.mxu0 0
      %4381 = vmatpush1.bf16.msra.mxu0 %v4271
      %4382 = vmatprep.subr.bf16.mxu0 0
      %4383 = vmatpush1.bf16.msra.mxu0 %v4272
      %4384 = vmatprep.subr.bf16.mxu0 0
      %4385 = vmatpush1.bf16.msra.mxu0 %v4273
      %4386 = vmatprep.subr.bf16.mxu0 0
      %4387 = vmatpush1.bf16.msra.mxu0 %v4274
      %4388 = vmatprep.subr.bf16.mxu0 0
      %4389 = vmatpush1.bf16.msra.mxu0 %v4275
      %4390 = vmatprep.mubr.bf16.mxu0 %v4040
      %4391 = vmatmul.mubr.bf16.gmra.mrb[0].mxu0 %v4039
      %v4392 = vpop.f32.mrb[0].mxu0
      %v4393 = vadd.f32 %v4158, %v4392
      %v4394 = vpop.f32.mrb[0].mxu0
      %v4395 = vpop.f32.mrb[0].mxu0
      %v4396 = vadd.f32 %v4158, %v4395
      %v4397 = vpop.f32.mrb[0].mxu0
      %4398 = vmatprep.mubr.bf16.mxu0 %v4044
      %4399 = vmatmul.mubr.bf16.gmra.mrb[0].mxu0 %v4043
      %v4400 = vpop.f32.mrb[0].mxu0
      %v4401 = vadd.f32 %v4158, %v4400
      %v4402 = vpop.f32.mrb[0].mxu0
      %v4403 = vpop.f32.mrb[0].mxu0
      %v4404 = vadd.f32 %v4158, %v4403
      %v4405 = vpop.f32.mrb[0].mxu0
      %4406 = vmatprep.mubr.bf16.mxu0 %v4048
      %4407 = vmatmul.mubr.bf16.gmra.mrb[0].mxu0 %v4047
      %v4408 = vpop.f32.mrb[0].mxu0
      %v4409 = vadd.f32 %v4158, %v4408
      %v4410 = vpop.f32.mrb[0].mxu0
      %v4411 = vpop.f32.mrb[0].mxu0
      %v4412 = vadd.f32 %v4158, %v4411
      %v4413 = vpop.f32.mrb[0].mxu0
      %4414 = vmatprep.mubr.bf16.mxu0 %v4052
      %4415 = vmatmul.mubr.bf16.gmra.mrb[0].mxu0 %v4051
      %v4416 = vpop.f32.mrb[0].mxu0
      %v4417 = vadd.f32 %v4158, %v4416
      %v4418 = vpop.f32.mrb[0].mxu0
      %v4419 = vpop.f32.mrb[0].mxu0
      %v4420 = vadd.f32 %v4158, %v4419
      %v4421 = vpop.f32.mrb[0].mxu0
      %4422 = vmatprep.mubr.bf16.mxu0 %v4056
      %4423 = vmatmul.mubr.bf16.gmra.mrb[0].mxu0 %v4055
      %v4424 = vpop.f32.mrb[0].mxu0
      %v4425 = vadd.f32 %v4158, %v4424
      %v4426 = vpop.f32.mrb[0].mxu0
      %v4427 = vpop.f32.mrb[0].mxu0
      %v4428 = vadd.f32 %v4158, %v4427
      %v4429 = vpop.f32.mrb[0].mxu0
      %4430 = vmatprep.mubr.bf16.mxu0 %v4060
      %4431 = vmatmul.mubr.bf16.gmra.mrb[0].mxu0 %v4059
      %v4432 = vpop.f32.mrb[0].mxu0
      %v4433 = vadd.f32 %v4158, %v4432
      %v4434 = vpop.f32.mrb[0].mxu0
      %v4435 = vpop.f32.mrb[0].mxu0
      %v4436 = vadd.f32 %v4158, %v4435
      %v4437 = vpop.f32.mrb[0].mxu0
      %4438 = vmatprep.mubr.bf16.mxu0 %v4064
      %4439 = vmatmul.mubr.bf16.gmra.mrb[0].mxu0 %v4063
      %v4440 = vpop.f32.mrb[0].mxu0
      %v4441 = vadd.f32 %v4158, %v4440
      %v4442 = vpop.f32.mrb[0].mxu0
      %v4443 = vpop.f32.mrb[0].mxu0
      %v4444 = vadd.f32 %v4158, %v4443
      %v4445 = vpop.f32.mrb[0].mxu0
      %4446 = vmatprep.mubr.bf16.mxu0 %v4068
      %4447 = vmatmul.mubr.bf16.gmra.mrb[0].mxu0 %v4067
      %v4448 = vpop.f32.mrb[0].mxu0
      %v4449 = vadd.f32 %v4158, %v4448
      %v4450 = vpop.f32.mrb[0].mxu0
      %v4451 = vpop.f32.mrb[0].mxu0
      %v4452 = vadd.f32 %v4158, %v4451
      %v4453 = vpop.f32.mrb[0].mxu0
      %4454 = vmatprep.mubr.bf16.mxu0 %v4072
      %4455 = vmatmul.mubr.bf16.gmra.mrb[0].mxu0 %v4071
      %v4456 = vpop.f32.mrb[0].mxu0
      %v4457 = vadd.f32 %v4158, %v4456
      %v4458 = vpop.f32.mrb[0].mxu0
      %v4459 = vpop.f32.mrb[0].mxu0
      %v4460 = vadd.f32 %v4158, %v4459
      %v4461 = vpop.f32.mrb[0].mxu0
      %4462 = vmatprep.mubr.bf16.mxu0 %v4076
      %4463 = vmatmul.mubr.bf16.gmra.mrb[0].mxu0 %v4075
      %v4464 = vpop.f32.mrb[0].mxu0
      %v4465 = vadd.f32 %v4158, %v4464
      %v4466 = vpop.f32.mrb[0].mxu0
      %v4467 = vpop.f32.mrb[0].mxu0
      %v4468 = vadd.f32 %v4158, %v4467
      %v4469 = vpop.f32.mrb[0].mxu0
      %4470 = vmatprep.mubr.bf16.mxu0 %v4080
      %4471 = vmatmul.mubr.bf16.gmra.mrb[0].mxu0 %v4079
      %v4472 = vpop.f32.mrb[0].mxu0
      %v4473 = vadd.f32 %v4158, %v4472
      %v4474 = vpop.f32.mrb[0].mxu0
      %v4475 = vpop.f32.mrb[0].mxu0
      %v4476 = vadd.f32 %v4158, %v4475
      %v4477 = vpop.f32.mrb[0].mxu0
      %4478 = vmatprep.mubr.bf16.mxu0 %v4084
      %4479 = vmatmul.mubr.bf16.gmra.mrb[0].mxu0 %v4083
      %v4480 = vpop.f32.mrb[0].mxu0
      %v4481 = vadd.f32 %v4158, %v4480
      %v4482 = vpop.f32.mrb[0].mxu0
      %v4483 = vpop.f32.mrb[0].mxu0
      %v4484 = vadd.f32 %v4158, %v4483
      %v4485 = vpop.f32.mrb[0].mxu0
      %4486 = vmatprep.mubr.bf16.mxu0 %v4088
      %4487 = vmatmul.mubr.bf16.gmra.mrb[0].mxu0 %v4087
      %v4488 = vpop.f32.mrb[0].mxu0
      %v4489 = vadd.f32 %v4158, %v4488
      %v4490 = vpop.f32.mrb[0].mxu0
      %v4491 = vpop.f32.mrb[0].mxu0
      %v4492 = vadd.f32 %v4158, %v4491
      %v4493 = vpop.f32.mrb[0].mxu0
      %4494 = vmatprep.mubr.bf16.mxu0 %v4092
      %4495 = vmatmul.mubr.bf16.gmra.mrb[0].mxu0 %v4091
      %v4496 = vpop.f32.mrb[0].mxu0
      %v4497 = vadd.f32 %v4158, %v4496
      %v4498 = vpop.f32.mrb[0].mxu0
      %v4499 = vpop.f32.mrb[0].mxu0
      %v4500 = vadd.f32 %v4158, %v4499
      %v4501 = vpop.f32.mrb[0].mxu0
      %4502 = vmatprep.mubr.bf16.mxu0 %v4096
      %4503 = vmatmul.mubr.bf16.gmra.mrb[0].mxu0 %v4095
      %v4504 = vpop.f32.mrb[0].mxu0
      %v4505 = vadd.f32 %v4158, %v4504
      %v4506 = vpop.f32.mrb[0].mxu0
      %v4507 = vpop.f32.mrb[0].mxu0
      %v4508 = vadd.f32 %v4158, %v4507
      %v4509 = vpop.f32.mrb[0].mxu0
      %4510 = vmatprep.mubr.bf16.mxu0 %v4100
      %4511 = vmatmul.mubr.bf16.gmra.mrb[0].mxu0 %v4099
      %v4512 = vpop.f32.mrb[0].mxu0
      %v4513 = vadd.f32 %v4158, %v4512
      %v4514 = vpop.f32.mrb[0].mxu0
      %v4515 = vpop.f32.mrb[0].mxu0
      %v4516 = vadd.f32 %v4158, %v4515
      %v4517 = vpop.f32.mrb[0].mxu0
      %4518 = vdwg.mxu0
      %4519 = vmatprep.subr.bf16.mxu0 0
      %4520 = vmatpush1.bf16.msra.mxu0 %v4276
      %4521 = vmatprep.subr.bf16.mxu0 0
      %4522 = vmatpush1.bf16.msra.mxu0 %v4277
      %4523 = vmatprep.subr.bf16.mxu0 0
      %4524 = vmatpush1.bf16.msra.mxu0 %v4278
      %4525 = vmatprep.subr.bf16.mxu0 0
      %4526 = vmatpush1.bf16.msra.mxu0 %v4279
      %4527 = vmatprep.subr.bf16.mxu0 0
      %4528 = vmatpush1.bf16.msra.mxu0 %v4280
      %4529 = vmatprep.subr.bf16.mxu0 0
      %4530 = vmatpush1.bf16.msra.mxu0 %v4281
      %4531 = vmatprep.subr.bf16.mxu0 0
      %4532 = vmatpush1.bf16.msra.mxu0 %v4282
      %4533 = vmatprep.subr.bf16.mxu0 0
      %4534 = vmatpush1.bf16.msra.mxu0 %v4283
      %4535 = vmatprep.subr.bf16.mxu0 0
      %4536 = vmatpush1.bf16.msra.mxu0 %v4284
      %4537 = vmatprep.subr.bf16.mxu0 0
      %4538 = vmatpush1.bf16.msra.mxu0 0
      %4539 = vmatprep.subr.bf16.mxu0 0
      %4540 = vmatpush1.bf16.msra.mxu0 0
      %4541 = vmatprep.subr.bf16.mxu0 0
      %4542 = vmatpush1.bf16.msra.mxu0 0
      %4543 = vmatprep.subr.bf16.mxu0 0
      %4544 = vmatpush1.bf16.msra.mxu0 0
      %4545 = vmatprep.subr.bf16.mxu0 0
      %4546 = vmatpush1.bf16.msra.mxu0 0
      %4547 = vmatprep.subr.bf16.mxu0 0
      %4548 = vmatpush1.bf16.msra.mxu0 0
      %4549 = vmatprep.subr.bf16.mxu0 0
      %4550 = vmatpush1.bf16.msra.mxu0 0
      %4551 = vmatprep.mubr.bf16.mxu0 %v4311
      %4552 = vmatmul.mubr.bf16.gmra.mrb[0].mxu0 %v4041
      %v4553 = vpop.f32.mrb[0].mxu0
      %v4554 = vadd.f32 %v4393, %v4553
      %v4555 = vpop.f32.mrb[0].mxu0
      %v4556 = vpop.f32.mrb[0].mxu0
      %v4557 = vadd.f32 %v4396, %v4556
      %v4558 = vpop.f32.mrb[0].mxu0
      %4559 = vmatprep.mubr.bf16.mxu0 %v4314
      %4560 = vmatmul.mubr.bf16.gmra.mrb[0].mxu0 %v4045
      %v4561 = vpop.f32.mrb[0].mxu0
      %v4562 = vadd.f32 %v4401, %v4561
      %v4563 = vpop.f32.mrb[0].mxu0
      %v4564 = vpop.f32.mrb[0].mxu0
      %v4565 = vadd.f32 %v4404, %v4564
      %v4566 = vpop.f32.mrb[0].mxu0
      %4567 = vmatprep.mubr.bf16.mxu0 %v4317
      %4568 = vmatmul.mubr.bf16.gmra.mrb[0].mxu0 %v4049
      %v4569 = vpop.f32.mrb[0].mxu0
      %v4570 = vadd.f32 %v4409, %v4569
      %v4571 = vpop.f32.mrb[0].mxu0
      %v4572 = vpop.f32.mrb[0].mxu0
      %v4573 = vadd.f32 %v4412, %v4572
      %v4574 = vpop.f32.mrb[0].mxu0
      %4575 = vmatprep.mubr.bf16.mxu0 %v4320
      %4576 = vmatmul.mubr.bf16.gmra.mrb[0].mxu0 %v4053
      %v4577 = vpop.f32.mrb[0].mxu0
      %v4578 = vadd.f32 %v4417, %v4577
      %v4579 = vpop.f32.mrb[0].mxu0
      %v4580 = vpop.f32.mrb[0].mxu0
      %v4581 = vadd.f32 %v4420, %v4580
      %v4582 = vpop.f32.mrb[0].mxu0
      %4583 = vmatprep.mubr.bf16.mxu0 %v4323
      %4584 = vmatmul.mubr.bf16.gmra.mrb[0].mxu0 %v4057
      %v4585 = vpop.f32.mrb[0].mxu0
      %v4586 = vadd.f32 %v4425, %v4585
      %v4587 = vpop.f32.mrb[0].mxu0
      %v4588 = vpop.f32.mrb[0].mxu0
      %v4589 = vadd.f32 %v4428, %v4588
      %v4590 = vpop.f32.mrb[0].mxu0
      %4591 = vmatprep.mubr.bf16.mxu0 %v4326
      %4592 = vmatmul.mubr.bf16.gmra.mrb[0].mxu0 %v4061
      %v4593 = vpop.f32.mrb[0].mxu0
      %v4594 = vadd.f32 %v4433, %v4593
      %v4595 = vpop.f32.mrb[0].mxu0
      %v4596 = vpop.f32.mrb[0].mxu0
      %v4597 = vadd.f32 %v4436, %v4596
      %v4598 = vpop.f32.mrb[0].mxu0
      %4599 = vmatprep.mubr.bf16.mxu0 %v4329
      %4600 = vmatmul.mubr.bf16.gmra.mrb[0].mxu0 %v4065
      %v4601 = vpop.f32.mrb[0].mxu0
      %v4602 = vadd.f32 %v4441, %v4601
      %v4603 = vpop.f32.mrb[0].mxu0
      %v4604 = vpop.f32.mrb[0].mxu0
      %v4605 = vadd.f32 %v4444, %v4604
      %v4606 = vpop.f32.mrb[0].mxu0
      %4607 = vmatprep.mubr.bf16.mxu0 %v4332
      %4608 = vmatmul.mubr.bf16.gmra.mrb[0].mxu0 %v4069
      %v4609 = vpop.f32.mrb[0].mxu0
      %v4610 = vadd.f32 %v4449, %v4609
      %v4611 = vpop.f32.mrb[0].mxu0
      %v4612 = vpop.f32.mrb[0].mxu0
      %v4613 = vadd.f32 %v4452, %v4612
      %v4614 = vpop.f32.mrb[0].mxu0
      %4615 = vmatprep.mubr.bf16.mxu0 %v4335
      %4616 = vmatmul.mubr.bf16.gmra.mrb[0].mxu0 %v4073
      %v4617 = vpop.f32.mrb[0].mxu0
      %v4618 = vadd.f32 %v4457, %v4617
      %v4619 = vpop.f32.mrb[0].mxu0
      %v4620 = vpop.f32.mrb[0].mxu0
      %v4621 = vadd.f32 %v4460, %v4620
      %v4622 = vpop.f32.mrb[0].mxu0
      %4623 = vmatprep.mubr.bf16.mxu0 %v4338
      %4624 = vmatmul.mubr.bf16.gmra.mrb[0].mxu0 %v4077
      %v4625 = vpop.f32.mrb[0].mxu0
      %v4626 = vadd.f32 %v4465, %v4625
      %v4627 = vpop.f32.mrb[0].mxu0
      %v4628 = vpop.f32.mrb[0].mxu0
      %v4629 = vadd.f32 %v4468, %v4628
      %v4630 = vpop.f32.mrb[0].mxu0
      %4631 = vmatprep.mubr.bf16.mxu0 %v4341
      %4632 = vmatmul.mubr.bf16.gmra.mrb[0].mxu0 %v4081
      %v4633 = vpop.f32.mrb[0].mxu0
      %v4634 = vadd.f32 %v4473, %v4633
      %v4635 = vpop.f32.mrb[0].mxu0
      %v4636 = vpop.f32.mrb[0].mxu0
      %v4637 = vadd.f32 %v4476, %v4636
      %v4638 = vpop.f32.mrb[0].mxu0
      %4639 = vmatprep.mubr.bf16.mxu0 %v4344
      %4640 = vmatmul.mubr.bf16.gmra.mrb[0].mxu0 %v4085
      %v4641 = vpop.f32.mrb[0].mxu0
      %v4642 = vadd.f32 %v4481, %v4641
      %v4643 = vpop.f32.mrb[0].mxu0
      %v4644 = vpop.f32.mrb[0].mxu0
      %v4645 = vadd.f32 %v4484, %v4644
      %v4646 = vpop.f32.mrb[0].mxu0
      %4647 = vmatprep.mubr.bf16.mxu0 %v4347
      %4648 = vmatmul.mubr.bf16.gmra.mrb[0].mxu0 %v4089
      %v4649 = vpop.f32.mrb[0].mxu0
      %v4650 = vadd.f32 %v4489, %v4649
      %v4651 = vpop.f32.mrb[0].mxu0
      %v4652 = vpop.f32.mrb[0].mxu0
      %v4653 = vadd.f32 %v4492, %v4652
      %v4654 = vpop.f32.mrb[0].mxu0
      %4655 = vmatprep.mubr.bf16.mxu0 %v4350
      %4656 = vmatmul.mubr.bf16.gmra.mrb[0].mxu0 %v4093
      %v4657 = vpop.f32.mrb[0].mxu0
      %v4658 = vadd.f32 %v4497, %v4657
      %v4659 = vpop.f32.mrb[0].mxu0
      %v4660 = vpop.f32.mrb[0].mxu0
      %v4661 = vadd.f32 %v4500, %v4660
      %v4662 = vpop.f32.mrb[0].mxu0
      %4663 = vmatprep.mubr.bf16.mxu0 %v4353
      %4664 = vmatmul.mubr.bf16.gmra.mrb[0].mxu0 %v4097
      %v4665 = vpop.f32.mrb[0].mxu0
      %v4666 = vadd.f32 %v4505, %v4665
      %v4667 = vpop.f32.mrb[0].mxu0
      %v4668 = vpop.f32.mrb[0].mxu0
      %v4669 = vadd.f32 %v4508, %v4668
      %v4670 = vpop.f32.mrb[0].mxu0
      %4671 = vmatprep.mubr.bf16.mxu0 %v4356
      %4672 = vmatmul.mubr.bf16.gmra.mrb[0].mxu0 %v4101
      %v4673 = vpop.f32.mrb[0].mxu0
      %v4674 = vadd.f32 %v4513, %v4673
      %v4675 = vpop.f32.mrb[0].mxu0
      %v4676 = vpop.f32.mrb[0].mxu0
      %v4677 = vadd.f32 %v4516, %v4676
      %v4678 = vpop.f32.mrb[0].mxu0
      %4679 = vdwg.mxu0
      %4680 = vst [vmem:[%s429] sm:$0xff] %v4554
      %4681 = vst [vmem:[%s429 + $0x8] sm:$0xff] %v4557
      %4682 = vst [vmem:[%s429 + $0x10] sm:$0xff] %v4562
      %4683 = vst [vmem:[%s429 + $0x18] sm:$0xff] %v4565
      %4684 = vst [vmem:[%s429 + $0x20] sm:$0xff] %v4570
      %4685 = vst [vmem:[%s429 + $0x28] sm:$0xff] %v4573
      %4686 = vst [vmem:[%s429 + $0x30] sm:$0xff] %v4578
      %4687 = vst [vmem:[%s429 + $0x38] sm:$0xff] %v4581
      %4688 = vst [vmem:[%s429 + $0x40] sm:$0xff] %v4586
      %4689 = vst [vmem:[%s429 + $0x48] sm:$0xff] %v4589
      %4690 = vst [vmem:[%s429 + $0x50] sm:$0xff] %v4594
      %4691 = vst [vmem:[%s429 + $0x58] sm:$0xff] %v4597
      %4692 = vst [vmem:[%s429 + $0x60] sm:$0xff] %v4602
      %4693 = vst [vmem:[%s429 + $0x68] sm:$0xff] %v4605
      %4694 = vst [vmem:[%s429 + $0x70] sm:$0xff] %v4610
      %4695 = vst [vmem:[%s429 + $0x78] sm:$0xff] %v4613
      %4696 = vst [vmem:[%s429 + $0x80] sm:$0xff] %v4618
      %4697 = vst [vmem:[%s429 + $0x88] sm:$0xff] %v4621
      %4698 = vst [vmem:[%s429 + $0x90] sm:$0xff] %v4626
      %4699 = vst [vmem:[%s429 + $0x98] sm:$0xff] %v4629
      %4700 = vst [vmem:[%s429 + $0xa0] sm:$0xff] %v4634
      %4701 = vst [vmem:[%s429 + $0xa8] sm:$0xff] %v4637
      %4702 = vst [vmem:[%s429 + $0xb0] sm:$0xff] %v4642
      %4703 = vst [vmem:[%s429 + $0xb8] sm:$0xff] %v4645
      %4704 = vst [vmem:[%s429 + $0xc0] sm:$0xff] %v4650
      %4705 = vst [vmem:[%s429 + $0xc8] sm:$0xff] %v4653
      %4706 = vst [vmem:[%s429 + $0xd0] sm:$0xff] %v4658
      %4707 = vst [vmem:[%s429 + $0xd8] sm:$0xff] %v4661
      %4708 = vst [vmem:[%s429 + $0xe0] sm:$0xff] %v4666
      %4709 = vst [vmem:[%s429 + $0xe8] sm:$0xff] %v4669
      %4710 = vst [vmem:[%s429 + $0xf0] sm:$0xff] %v4674
      %4711 = vst [vmem:[%s429 + $0xf8] sm:$0xff] %v4677
      %v4712 = vld [vmem:[%s416] sm:$0xff]
      %v4713 = vld [vmem:[%s416 + $0x8] sm:$0xff]
      %v4714 = vld [vmem:[%s416 + $0x10] sm:$0xff]
      %v4715 = vld [vmem:[%s416 + $0x18] sm:$0xff]
      %v4716 = vld [vmem:[%s416 + $0x20] sm:$0xff]
      %v4717 = vld [vmem:[%s416 + $0x28] sm:$0xff]
      %v4718 = vld [vmem:[%s416 + $0x30] sm:$0xff]
      %v4719 = vld [vmem:[%s416 + $0x38] sm:$0xff]
      %v4720 = vld [vmem:[%s416 + $0x40] sm:$0xff]
      %v4721 = vld [vmem:[%s416 + $0x48] sm:$0xff]
      %v4722 = vld [vmem:[%s416 + $0x50] sm:$0xff]
      %v4723 = vld [vmem:[%s416 + $0x58] sm:$0xff]
      %v4724 = vld [vmem:[%s416 + $0x60] sm:$0xff]
      %v4725 = vld [vmem:[%s416 + $0x68] sm:$0xff]
      %v4726 = vld [vmem:[%s416 + $0x70] sm:$0xff]
      %v4727 = vld [vmem:[%s416 + $0x78] sm:$0xff]
      %v4728 = vld [vmem:[%s416 + $0x80] sm:$0xff]
      %v4729 = vld [vmem:[%s416 + $0x88] sm:$0xff]
      %v4730 = vld [vmem:[%s416 + $0x90] sm:$0xff]
      %v4731 = vld [vmem:[%s416 + $0x98] sm:$0xff]
      %v4732 = vld [vmem:[%s416 + $0xa0] sm:$0xff]
      %v4733 = vld [vmem:[%s416 + $0xa8] sm:$0xff]
      %v4734 = vld [vmem:[%s416 + $0xb0] sm:$0xff]
      %v4735 = vld [vmem:[%s416 + $0xb8] sm:$0xff]
      %v4736 = vld [vmem:[%s416 + $0xc0] sm:$0xff]
      %v4737 = vld [vmem:[%s416 + $0xc8] sm:$0xff]
      %v4738 = vld [vmem:[%s416 + $0xd0] sm:$0xff]
      %v4739 = vld [vmem:[%s416 + $0xd8] sm:$0xff]
      %v4740 = vld [vmem:[%s416 + $0xe0] sm:$0xff]
      %v4741 = vld [vmem:[%s416 + $0xe8] sm:$0xff]
      %v4742 = vld [vmem:[%s416 + $0xf0] sm:$0xff]
      %v4743 = vld [vmem:[%s416 + $0xf8] sm:$0xff]
      %v4744 = vmul.f32 %v4554, 0.5
      %v4745 = vmul.f32 %v4557, 0.5
      %v4746 = vmul.f32 %v4562, 0.5
      %v4747 = vmul.f32 %v4565, 0.5
      %v4748 = vmul.f32 %v4570, 0.5
      %v4749 = vmul.f32 %v4573, 0.5
      %v4750 = vmul.f32 %v4578, 0.5
      %v4751 = vmul.f32 %v4581, 0.5
      %v4752 = vmul.f32 %v4586, 0.5
      %v4753 = vmul.f32 %v4589, 0.5
      %v4754 = vmul.f32 %v4594, 0.5
      %v4755 = vmul.f32 %v4597, 0.5
      %v4756 = vmul.f32 %v4602, 0.5
      %v4757 = vmul.f32 %v4605, 0.5
      %v4758 = vmul.f32 %v4610, 0.5
      %v4759 = vmul.f32 %v4613, 0.5
      %v4760 = vmul.f32 %v4618, 0.5
      %v4761 = vmul.f32 %v4621, 0.5
      %v4762 = vmul.f32 %v4626, 0.5
      %v4763 = vmul.f32 %v4629, 0.5
      %v4764 = vmul.f32 %v4634, 0.5
      %v4765 = vmul.f32 %v4637, 0.5
      %v4766 = vmul.f32 %v4642, 0.5
      %v4767 = vmul.f32 %v4645, 0.5
      %v4768 = vmul.f32 %v4650, 0.5
      %v4769 = vmul.f32 %v4653, 0.5
      %v4770 = vmul.f32 %v4658, 0.5
      %v4771 = vmul.f32 %v4661, 0.5
      %v4772 = vmul.f32 %v4666, 0.5
      %v4773 = vmul.f32 %v4669, 0.5
      %v4774 = vmul.f32 %v4674, 0.5
      %v4775 = vmul.f32 %v4677, 0.5
      %v4776 = vmul.f32 %v4744, 1.442695
      %v4777 = vpow.pop %v4776
      %v4778 = vmul.f32 %v4745, 1.442695
      %v4779 = vpow.pop %v4778
      %v4780 = vmul.f32 %v4746, 1.442695
      %v4781 = vpow.pop %v4780
      %v4782 = vmul.f32 %v4747, 1.442695
      %v4783 = vpow.pop %v4782
      %v4784 = vmul.f32 %v4748, 1.442695
      %v4785 = vpow.pop %v4784
      %v4786 = vmul.f32 %v4749, 1.442695
      %v4787 = vpow.pop %v4786
      %v4788 = vmul.f32 %v4750, 1.442695
      %v4789 = vpow.pop %v4788
      %v4790 = vmul.f32 %v4751, 1.442695
      %v4791 = vpow.pop %v4790
      %v4792 = vmul.f32 %v4752, 1.442695
      %v4793 = vpow.pop %v4792
      %v4794 = vmul.f32 %v4753, 1.442695
      %v4795 = vpow.pop %v4794
      %v4796 = vmul.f32 %v4754, 1.442695
      %v4797 = vpow.pop %v4796
      %v4798 = vmul.f32 %v4755, 1.442695
      %v4799 = vpow.pop %v4798
      %v4800 = vmul.f32 %v4756, 1.442695
      %v4801 = vpow.pop %v4800
      %v4802 = vmul.f32 %v4757, 1.442695
      %v4803 = vpow.pop %v4802
      %v4804 = vmul.f32 %v4758, 1.442695
      %v4805 = vpow.pop %v4804
      %v4806 = vmul.f32 %v4759, 1.442695
      %v4807 = vpow.pop %v4806
      %v4808 = vmul.f32 %v4760, 1.442695
      %v4809 = vpow.pop %v4808
      %v4810 = vmul.f32 %v4761, 1.442695
      %v4811 = vpow.pop %v4810
      %v4812 = vmul.f32 %v4762, 1.442695
      %v4813 = vpow.pop %v4812
      %v4814 = vmul.f32 %v4763, 1.442695
      %v4815 = vpow.pop %v4814
      %v4816 = vmul.f32 %v4764, 1.442695
      %v4817 = vpow.pop %v4816
      %v4818 = vmul.f32 %v4765, 1.442695
      %v4819 = vpow.pop %v4818
      %v4820 = vmul.f32 %v4766, 1.442695
      %v4821 = vpow.pop %v4820
      %v4822 = vmul.f32 %v4767, 1.442695
      %v4823 = vpow.pop %v4822
      %v4824 = vmul.f32 %v4768, 1.442695
      %v4825 = vpow.pop %v4824
      %v4826 = vmul.f32 %v4769, 1.442695
      %v4827 = vpow.pop %v4826
      %v4828 = vmul.f32 %v4770, 1.442695
      %v4829 = vpow.pop %v4828
      %v4830 = vmul.f32 %v4771, 1.442695
      %v4831 = vpow.pop %v4830
      %v4832 = vmul.f32 %v4772, 1.442695
      %v4833 = vpow.pop %v4832
      %v4834 = vmul.f32 %v4773, 1.442695
      %v4835 = vpow.pop %v4834
      %v4836 = vmul.f32 %v4774, 1.442695
      %v4837 = vpow.pop %v4836
      %v4838 = vmul.f32 %v4775, 1.442695
      %v4839 = vpow.pop %v4838
      %4872 = vrot.lane.b32.xlu0 %v4777, 96
      %v4873 = vpop.permute.xlu0 %4872
      %4874 = vrot.lane.b32.xlu0 %v4779, 96
      %v4875 = vpop.permute.xlu0 %4874
      %4876 = vrot.lane.b32.xlu0 %v4781, 96
      %v4877 = vpop.permute.xlu0 %4876
      %4878 = vrot.lane.b32.xlu0 %v4783, 96
      %v4879 = vpop.permute.xlu0 %4878
      %4880 = vrot.lane.b32.xlu0 %v4785, 96
      %v4881 = vpop.permute.xlu0 %4880
      %4882 = vrot.lane.b32.xlu0 %v4787, 96
      %v4883 = vpop.permute.xlu0 %4882
      %4884 = vrot.lane.b32.xlu0 %v4789, 96
      %v4885 = vpop.permute.xlu0 %4884
      %4886 = vrot.lane.b32.xlu0 %v4791, 96
      %v4887 = vpop.permute.xlu0 %4886
      %4888 = vrot.lane.b32.xlu0 %v4793, 96
      %v4889 = vpop.permute.xlu0 %4888
      %4890 = vrot.lane.b32.xlu0 %v4795, 96
      %v4891 = vpop.permute.xlu0 %4890
      %4892 = vrot.lane.b32.xlu0 %v4797, 96
      %v4893 = vpop.permute.xlu0 %4892
      %4894 = vrot.lane.b32.xlu0 %v4799, 96
      %v4895 = vpop.permute.xlu0 %4894
      %4896 = vrot.lane.b32.xlu0 %v4801, 96
      %v4897 = vpop.permute.xlu0 %4896
      %4898 = vrot.lane.b32.xlu0 %v4803, 96
      %v4899 = vpop.permute.xlu0 %4898
      %4900 = vrot.lane.b32.xlu0 %v4805, 96
      %v4901 = vpop.permute.xlu0 %4900
      %4902 = vrot.lane.b32.xlu0 %v4807, 96
      %v4903 = vpop.permute.xlu0 %4902
      %4904 = vrot.lane.b32.xlu0 %v4809, 96
      %v4905 = vpop.permute.xlu0 %4904
      %4906 = vrot.lane.b32.xlu0 %v4811, 96
      %v4907 = vpop.permute.xlu0 %4906
      %4908 = vrot.lane.b32.xlu0 %v4813, 96
      %v4909 = vpop.permute.xlu0 %4908
      %4910 = vrot.lane.b32.xlu0 %v4815, 96
      %v4911 = vpop.permute.xlu0 %4910
      %4912 = vrot.lane.b32.xlu0 %v4817, 96
      %v4913 = vpop.permute.xlu0 %4912
      %4914 = vrot.lane.b32.xlu0 %v4819, 96
      %v4915 = vpop.permute.xlu0 %4914
      %4916 = vrot.lane.b32.xlu0 %v4821, 96
      %v4917 = vpop.permute.xlu0 %4916
      %4918 = vrot.lane.b32.xlu0 %v4823, 96
      %v4919 = vpop.permute.xlu0 %4918
      %4920 = vrot.lane.b32.xlu0 %v4825, 96
      %v4921 = vpop.permute.xlu0 %4920
      %4922 = vrot.lane.b32.xlu0 %v4827, 96
      %v4923 = vpop.permute.xlu0 %4922
      %4924 = vrot.lane.b32.xlu0 %v4829, 96
      %v4925 = vpop.permute.xlu0 %4924
      %4926 = vrot.lane.b32.xlu0 %v4831, 96
      %v4927 = vpop.permute.xlu0 %4926
      %4928 = vrot.lane.b32.xlu0 %v4833, 96
      %v4929 = vpop.permute.xlu0 %4928
      %4930 = vrot.lane.b32.xlu0 %v4835, 96
      %v4931 = vpop.permute.xlu0 %4930
      %4932 = vrot.lane.b32.xlu0 %v4837, 96
      %v4933 = vpop.permute.xlu0 %4932
      %4934 = vrot.lane.b32.xlu0 %v4839, 96
      %v4935 = vpop.permute.xlu0 %4934
      %v4968 = vmul.f32 %v4712, %v4873
      %v4969 = vmul.f32 %v4713, %v4875
      %v4970 = vmul.f32 %v4714, %v4877
      %v4971 = vmul.f32 %v4715, %v4879
      %v4972 = vmul.f32 %v4716, %v4881
      %v4973 = vmul.f32 %v4717, %v4883
      %v4974 = vmul.f32 %v4718, %v4885
      %v4975 = vmul.f32 %v4719, %v4887
      %v4976 = vmul.f32 %v4720, %v4889
      %v4977 = vmul.f32 %v4721, %v4891
      %v4978 = vmul.f32 %v4722, %v4893
      %v4979 = vmul.f32 %v4723, %v4895
      %v4980 = vmul.f32 %v4724, %v4897
      %v4981 = vmul.f32 %v4725, %v4899
      %v4982 = vmul.f32 %v4726, %v4901
      %v4983 = vmul.f32 %v4727, %v4903
      %v4984 = vmul.f32 %v4728, %v4905
      %v4985 = vmul.f32 %v4729, %v4907
      %v4986 = vmul.f32 %v4730, %v4909
      %v4987 = vmul.f32 %v4731, %v4911
      %v4988 = vmul.f32 %v4732, %v4913
      %v4989 = vmul.f32 %v4733, %v4915
      %v4990 = vmul.f32 %v4734, %v4917
      %v4991 = vmul.f32 %v4735, %v4919
      %v4992 = vmul.f32 %v4736, %v4921
      %v4993 = vmul.f32 %v4737, %v4923
      %v4994 = vmul.f32 %v4738, %v4925
      %v4995 = vmul.f32 %v4739, %v4927
      %v4996 = vmul.f32 %v4740, %v4929
      %v4997 = vmul.f32 %v4741, %v4931
      %v4998 = vmul.f32 %v4742, %v4933
      %v4999 = vmul.f32 %v4743, %v4935
      %v5000 = vadd.f32 %v4554, %v4968
      %v5001 = vadd.f32 %v4557, %v4969
      %v5002 = vadd.f32 %v4562, %v4970
      %v5003 = vadd.f32 %v4565, %v4971
      %v5004 = vadd.f32 %v4570, %v4972
      %v5005 = vadd.f32 %v4573, %v4973
      %v5006 = vadd.f32 %v4578, %v4974
      %v5007 = vadd.f32 %v4581, %v4975
      %v5008 = vadd.f32 %v4586, %v4976
      %v5009 = vadd.f32 %v4589, %v4977
      %v5010 = vadd.f32 %v4594, %v4978
      %v5011 = vadd.f32 %v4597, %v4979
      %v5012 = vadd.f32 %v4602, %v4980
      %v5013 = vadd.f32 %v4605, %v4981
      %v5014 = vadd.f32 %v4610, %v4982
      %v5015 = vadd.f32 %v4613, %v4983
      %v5016 = vadd.f32 %v4618, %v4984
      %v5017 = vadd.f32 %v4621, %v4985
      %v5018 = vadd.f32 %v4626, %v4986
      %v5019 = vadd.f32 %v4629, %v4987
      %v5020 = vadd.f32 %v4634, %v4988
      %v5021 = vadd.f32 %v4637, %v4989
      %v5022 = vadd.f32 %v4642, %v4990
      %v5023 = vadd.f32 %v4645, %v4991
      %v5024 = vadd.f32 %v4650, %v4992
      %v5025 = vadd.f32 %v4653, %v4993
      %v5026 = vadd.f32 %v4658, %v4994
      %v5027 = vadd.f32 %v4661, %v4995
      %v5028 = vadd.f32 %v4666, %v4996
      %v5029 = vadd.f32 %v4669, %v4997
      %v5030 = vadd.f32 %v4674, %v4998
      %v5031 = vadd.f32 %v4677, %v4999
      %v5032 = vpack.c.bf16 %v5001, %v5000
      %v5033 = vpack.c.bf16 %v5003, %v5002
      %v5034 = vpack.c.bf16 %v5005, %v5004
      %v5035 = vpack.c.bf16 %v5007, %v5006
      %v5036 = vpack.c.bf16 %v5009, %v5008
      %v5037 = vpack.c.bf16 %v5011, %v5010
      %v5038 = vpack.c.bf16 %v5013, %v5012
      %v5039 = vpack.c.bf16 %v5015, %v5014
      %v5040 = vpack.c.bf16 %v5017, %v5016
      %v5041 = vpack.c.bf16 %v5019, %v5018
      %v5042 = vpack.c.bf16 %v5021, %v5020
      %v5043 = vpack.c.bf16 %v5023, %v5022
      %v5044 = vpack.c.bf16 %v5025, %v5024
      %v5045 = vpack.c.bf16 %v5027, %v5026
      %v5046 = vpack.c.bf16 %v5029, %v5028
      %v5047 = vpack.c.bf16 %v5031, %v5030
      %v5048 = vld [vmem:[%s6] sm:$0xff]
      %v5049 = vld [vmem:[%s6 + $0x8] sm:$0xff]
      %v5050 = vld [vmem:[%s6 + $0x10] sm:$0xff]
      %v5051 = vld [vmem:[%s6 + $0x18] sm:$0xff]
      %v5052 = vld [vmem:[%s6 + $0x20] sm:$0xff]
      %v5053 = vld [vmem:[%s6 + $0x28] sm:$0xff]
      %v5054 = vld [vmem:[%s6 + $0x30] sm:$0xff]
      %v5055 = vld [vmem:[%s6 + $0x38] sm:$0xff]
      %v5056 = vld [vmem:[%s7] sm:$0xf]
      %v5058 = vlaneseq
      %v5059 = vshrl.u32 %v5058, 7
      %v5060 = vsub.s32 0, %v5059
      %v5061 = vrot.slane %v5056, %v5060
      %v5062 = vlaneseq
      %v5063 = vshrl.u32 %v5062, 7
      %v5064 = vsub.s32 1, %v5063
      %v5065 = vrot.slane %v5056, %v5064
      %v5066 = vlaneseq
      %v5067 = vshrl.u32 %v5066, 7
      %v5068 = vsub.s32 2, %v5067
      %v5069 = vrot.slane %v5056, %v5068
      %v5070 = vlaneseq
      %v5071 = vshrl.u32 %v5070, 7
      %v5072 = vsub.s32 3, %v5071
      %v5073 = vrot.slane %v5056, %v5072
      %v5086 = vunpack.c.l.b16 %v5048
      %v5087 = vunpack.c.h.b16 %v5048
      %v5088 = vunpack.c.l.b16 %v5049
      %v5089 = vunpack.c.h.b16 %v5049
      %v5090 = vunpack.c.l.b16 %v5050
      %v5091 = vunpack.c.h.b16 %v5050
      %v5092 = vunpack.c.l.b16 %v5051
      %v5093 = vunpack.c.h.b16 %v5051
      %v5094 = vunpack.c.l.b16 %v5052
      %v5095 = vunpack.c.h.b16 %v5052
      %v5096 = vunpack.c.l.b16 %v5053
      %v5097 = vunpack.c.h.b16 %v5053
      %v5098 = vunpack.c.l.b16 %v5054
      %v5099 = vunpack.c.h.b16 %v5054
      %v5100 = vunpack.c.l.b16 %v5055
      %v5101 = vunpack.c.h.b16 %v5055
      %v5102 = vpack.c.b16 %v5090, %v5086
      %v5103 = vpack.c.b16 %v5091, %v5087
      %v5104 = vpack.c.b16 %v5092, %v5088
      %v5105 = vpack.c.b16 %v5093, %v5089
      %v5106 = vpack.c.b16 %v5098, %v5094
      %v5107 = vpack.c.b16 %v5099, %v5095
      %v5108 = vpack.c.b16 %v5100, %v5096
      %v5109 = vpack.c.b16 %v5101, %v5097
      %vm5118 = vcmask 261120
      %v5120 = vsel %vm5118, %v5032, 0
      %v5123 = vsel %vm5118, %v5033, 0
      %v5126 = vsel %vm5118, %v5034, 0
      %v5129 = vsel %vm5118, %v5035, 0
      %v5132 = vsel %vm5118, %v5036, 0
      %v5135 = vsel %vm5118, %v5037, 0
      %v5138 = vsel %vm5118, %v5038, 0
      %v5141 = vsel %vm5118, %v5039, 0
      %v5144 = vsel %vm5118, %v5040, 0
      %v5147 = vsel %vm5118, %v5041, 0
      %v5150 = vsel %vm5118, %v5042, 0
      %v5153 = vsel %vm5118, %v5043, 0
      %v5156 = vsel %vm5118, %v5044, 0
      %v5159 = vsel %vm5118, %v5045, 0
      %v5162 = vsel %vm5118, %v5046, 0
      %v5165 = vsel %vm5118, %v5047, 0
      %5167 = vmatprep.subr.bf16.mxu0 %v5103
      %5168 = vmatpush1.bf16.msra.mxu0 %v5102
      %5169 = vmatprep.subr.bf16.mxu0 %v5107
      %5170 = vmatpush1.bf16.msra.mxu0 %v5106
      %5171 = vmatprep.subr.bf16.mxu0 0
      %5172 = vmatpush1.bf16.msra.mxu0 0
      %5173 = vmatprep.subr.bf16.mxu0 0
      %5174 = vmatpush1.bf16.msra.mxu0 0
      %5175 = vmatprep.subr.bf16.mxu0 0
      %5176 = vmatpush1.bf16.msra.mxu0 0
      %5177 = vmatprep.subr.bf16.mxu0 0
      %5178 = vmatpush1.bf16.msra.mxu0 0
      %5179 = vmatprep.subr.bf16.mxu0 0
      %5180 = vmatpush1.bf16.msra.mxu0 0
      %5181 = vmatprep.subr.bf16.mxu0 0
      %5182 = vmatpush1.bf16.msra.mxu0 0
      %5183 = vmatprep.subr.bf16.mxu0 0
      %5184 = vmatpush1.bf16.msra.mxu0 0
      %5185 = vmatprep.subr.bf16.mxu0 0
      %5186 = vmatpush1.bf16.msra.mxu0 0
      %5187 = vmatprep.subr.bf16.mxu0 0
      %5188 = vmatpush1.bf16.msra.mxu0 0
      %5189 = vmatprep.subr.bf16.mxu0 0
      %5190 = vmatpush1.bf16.msra.mxu0 0
      %5191 = vmatprep.subr.bf16.mxu0 0
      %5192 = vmatpush1.bf16.msra.mxu0 0
      %5193 = vmatprep.subr.bf16.mxu0 0
      %5194 = vmatpush1.bf16.msra.mxu0 0
      %5195 = vmatprep.subr.bf16.mxu0 0
      %5196 = vmatpush1.bf16.msra.mxu0 0
      %5197 = vmatprep.subr.bf16.mxu0 0
      %5198 = vmatpush1.bf16.msra.mxu0 0
      %5199 = vmatprep.mubr.bf16.mxu0 0
      %5200 = vmatmul.mubr.bf16.gmra.mrb[0].mxu0 %v5120
      %v5201 = vpop.f32.mrb[0].mxu0
      %v5202 = vadd.f32 %v5061, %v5201
      %v5203 = vpop.f32.mrb[0].mxu0
      %v5204 = vadd.f32 %v5065, %v5203
      %v5205 = vpop.f32.mrb[0].mxu0
      %v5206 = vadd.f32 %v5061, %v5205
      %v5207 = vpop.f32.mrb[0].mxu0
      %v5208 = vadd.f32 %v5065, %v5207
      %5209 = vmatprep.mubr.bf16.mxu0 0
      %5210 = vmatmul.mubr.bf16.gmra.mrb[0].mxu0 %v5123
      %v5211 = vpop.f32.mrb[0].mxu0
      %v5212 = vadd.f32 %v5061, %v5211
      %v5213 = vpop.f32.mrb[0].mxu0
      %v5214 = vadd.f32 %v5065, %v5213
      %v5215 = vpop.f32.mrb[0].mxu0
      %v5216 = vadd.f32 %v5061, %v5215
      %v5217 = vpop.f32.mrb[0].mxu0
      %v5218 = vadd.f32 %v5065, %v5217
      %5219 = vmatprep.mubr.bf16.mxu0 0
      %5220 = vmatmul.mubr.bf16.gmra.mrb[0].mxu0 %v5126
      %v5221 = vpop.f32.mrb[0].mxu0
      %v5222 = vadd.f32 %v5061, %v5221
      %v5223 = vpop.f32.mrb[0].mxu0
      %v5224 = vadd.f32 %v5065, %v5223
      %v5225 = vpop.f32.mrb[0].mxu0
      %v5226 = vadd.f32 %v5061, %v5225
      %v5227 = vpop.f32.mrb[0].mxu0
      %v5228 = vadd.f32 %v5065, %v5227
      %5229 = vmatprep.mubr.bf16.mxu0 0
      %5230 = vmatmul.mubr.bf16.gmra.mrb[0].mxu0 %v5129
      %v5231 = vpop.f32.mrb[0].mxu0
      %v5232 = vadd.f32 %v5061, %v5231
      %v5233 = vpop.f32.mrb[0].mxu0
      %v5234 = vadd.f32 %v5065, %v5233
      %v5235 = vpop.f32.mrb[0].mxu0
      %v5236 = vadd.f32 %v5061, %v5235
      %v5237 = vpop.f32.mrb[0].mxu0
      %v5238 = vadd.f32 %v5065, %v5237
      %5239 = vmatprep.mubr.bf16.mxu0 0
      %5240 = vmatmul.mubr.bf16.gmra.mrb[0].mxu0 %v5132
      %v5241 = vpop.f32.mrb[0].mxu0
      %v5242 = vadd.f32 %v5061, %v5241
      %v5243 = vpop.f32.mrb[0].mxu0
      %v5244 = vadd.f32 %v5065, %v5243
      %v5245 = vpop.f32.mrb[0].mxu0
      %v5246 = vadd.f32 %v5061, %v5245
      %v5247 = vpop.f32.mrb[0].mxu0
      %v5248 = vadd.f32 %v5065, %v5247
      %5249 = vmatprep.mubr.bf16.mxu0 0
      %5250 = vmatmul.mubr.bf16.gmra.mrb[0].mxu0 %v5135
      %v5251 = vpop.f32.mrb[0].mxu0
      %v5252 = vadd.f32 %v5061, %v5251
      %v5253 = vpop.f32.mrb[0].mxu0
      %v5254 = vadd.f32 %v5065, %v5253
      %v5255 = vpop.f32.mrb[0].mxu0
      %v5256 = vadd.f32 %v5061, %v5255
      %v5257 = vpop.f32.mrb[0].mxu0
      %v5258 = vadd.f32 %v5065, %v5257
      %5259 = vmatprep.mubr.bf16.mxu0 0
      %5260 = vmatmul.mubr.bf16.gmra.mrb[0].mxu0 %v5138
      %v5261 = vpop.f32.mrb[0].mxu0
      %v5262 = vadd.f32 %v5061, %v5261
      %v5263 = vpop.f32.mrb[0].mxu0
      %v5264 = vadd.f32 %v5065, %v5263
      %v5265 = vpop.f32.mrb[0].mxu0
      %v5266 = vadd.f32 %v5061, %v5265
      %v5267 = vpop.f32.mrb[0].mxu0
      %v5268 = vadd.f32 %v5065, %v5267
      %5269 = vmatprep.mubr.bf16.mxu0 0
      %5270 = vmatmul.mubr.bf16.gmra.mrb[0].mxu0 %v5141
      %v5271 = vpop.f32.mrb[0].mxu0
      %v5272 = vadd.f32 %v5061, %v5271
      %v5273 = vpop.f32.mrb[0].mxu0
      %v5274 = vadd.f32 %v5065, %v5273
      %v5275 = vpop.f32.mrb[0].mxu0
      %v5276 = vadd.f32 %v5061, %v5275
      %v5277 = vpop.f32.mrb[0].mxu0
      %v5278 = vadd.f32 %v5065, %v5277
      %5279 = vmatprep.mubr.bf16.mxu0 0
      %5280 = vmatmul.mubr.bf16.gmra.mrb[0].mxu0 %v5144
      %v5281 = vpop.f32.mrb[0].mxu0
      %v5282 = vadd.f32 %v5061, %v5281
      %v5283 = vpop.f32.mrb[0].mxu0
      %v5284 = vadd.f32 %v5065, %v5283
      %v5285 = vpop.f32.mrb[0].mxu0
      %v5286 = vadd.f32 %v5061, %v5285
      %v5287 = vpop.f32.mrb[0].mxu0
      %v5288 = vadd.f32 %v5065, %v5287
      %5289 = vmatprep.mubr.bf16.mxu0 0
      %5290 = vmatmul.mubr.bf16.gmra.mrb[0].mxu0 %v5147
      %v5291 = vpop.f32.mrb[0].mxu0
      %v5292 = vadd.f32 %v5061, %v5291
      %v5293 = vpop.f32.mrb[0].mxu0
      %v5294 = vadd.f32 %v5065, %v5293
      %v5295 = vpop.f32.mrb[0].mxu0
      %v5296 = vadd.f32 %v5061, %v5295
      %v5297 = vpop.f32.mrb[0].mxu0
      %v5298 = vadd.f32 %v5065, %v5297
      %5299 = vmatprep.mubr.bf16.mxu0 0
      %5300 = vmatmul.mubr.bf16.gmra.mrb[0].mxu0 %v5150
      %v5301 = vpop.f32.mrb[0].mxu0
      %v5302 = vadd.f32 %v5061, %v5301
      %v5303 = vpop.f32.mrb[0].mxu0
      %v5304 = vadd.f32 %v5065, %v5303
      %v5305 = vpop.f32.mrb[0].mxu0
      %v5306 = vadd.f32 %v5061, %v5305
      %v5307 = vpop.f32.mrb[0].mxu0
      %v5308 = vadd.f32 %v5065, %v5307
      %5309 = vmatprep.mubr.bf16.mxu0 0
      %5310 = vmatmul.mubr.bf16.gmra.mrb[0].mxu0 %v5153
      %v5311 = vpop.f32.mrb[0].mxu0
      %v5312 = vadd.f32 %v5061, %v5311
      %v5313 = vpop.f32.mrb[0].mxu0
      %v5314 = vadd.f32 %v5065, %v5313
      %v5315 = vpop.f32.mrb[0].mxu0
      %v5316 = vadd.f32 %v5061, %v5315
      %v5317 = vpop.f32.mrb[0].mxu0
      %v5318 = vadd.f32 %v5065, %v5317
      %5319 = vmatprep.mubr.bf16.mxu0 0
      %5320 = vmatmul.mubr.bf16.gmra.mrb[0].mxu0 %v5156
      %v5321 = vpop.f32.mrb[0].mxu0
      %v5322 = vadd.f32 %v5061, %v5321
      %v5323 = vpop.f32.mrb[0].mxu0
      %v5324 = vadd.f32 %v5065, %v5323
      %v5325 = vpop.f32.mrb[0].mxu0
      %v5326 = vadd.f32 %v5061, %v5325
      %v5327 = vpop.f32.mrb[0].mxu0
      %v5328 = vadd.f32 %v5065, %v5327
      %5329 = vmatprep.mubr.bf16.mxu0 0
      %5330 = vmatmul.mubr.bf16.gmra.mrb[0].mxu0 %v5159
      %v5331 = vpop.f32.mrb[0].mxu0
      %v5332 = vadd.f32 %v5061, %v5331
      %v5333 = vpop.f32.mrb[0].mxu0
      %v5334 = vadd.f32 %v5065, %v5333
      %v5335 = vpop.f32.mrb[0].mxu0
      %v5336 = vadd.f32 %v5061, %v5335
      %v5337 = vpop.f32.mrb[0].mxu0
      %v5338 = vadd.f32 %v5065, %v5337
      %5339 = vmatprep.mubr.bf16.mxu0 0
      %5340 = vmatmul.mubr.bf16.gmra.mrb[0].mxu0 %v5162
      %v5341 = vpop.f32.mrb[0].mxu0
      %v5342 = vadd.f32 %v5061, %v5341
      %v5343 = vpop.f32.mrb[0].mxu0
      %v5344 = vadd.f32 %v5065, %v5343
      %v5345 = vpop.f32.mrb[0].mxu0
      %v5346 = vadd.f32 %v5061, %v5345
      %v5347 = vpop.f32.mrb[0].mxu0
      %v5348 = vadd.f32 %v5065, %v5347
      %5349 = vmatprep.mubr.bf16.mxu0 0
      %5350 = vmatmul.mubr.bf16.gmra.mrb[0].mxu0 %v5165
      %v5351 = vpop.f32.mrb[0].mxu0
      %v5352 = vadd.f32 %v5061, %v5351
      %v5353 = vpop.f32.mrb[0].mxu0
      %v5354 = vadd.f32 %v5065, %v5353
      %v5355 = vpop.f32.mrb[0].mxu0
      %v5356 = vadd.f32 %v5061, %v5355
      %v5357 = vpop.f32.mrb[0].mxu0
      %v5358 = vadd.f32 %v5065, %v5357
      %5359 = vdwg.mxu0
      %5360 = vmatprep.subr.bf16.mxu0 %v5105
      %5361 = vmatpush1.bf16.msra.mxu0 %v5104
      %5362 = vmatprep.subr.bf16.mxu0 %v5109
      %5363 = vmatpush1.bf16.msra.mxu0 %v5108
      %5364 = vmatprep.subr.bf16.mxu0 0
      %5365 = vmatpush1.bf16.msra.mxu0 0
      %5366 = vmatprep.subr.bf16.mxu0 0
      %5367 = vmatpush1.bf16.msra.mxu0 0
      %5368 = vmatprep.subr.bf16.mxu0 0
      %5369 = vmatpush1.bf16.msra.mxu0 0
      %5370 = vmatprep.subr.bf16.mxu0 0
      %5371 = vmatpush1.bf16.msra.mxu0 0
      %5372 = vmatprep.subr.bf16.mxu0 0
      %5373 = vmatpush1.bf16.msra.mxu0 0
      %5374 = vmatprep.subr.bf16.mxu0 0
      %5375 = vmatpush1.bf16.msra.mxu0 0
      %5376 = vmatprep.subr.bf16.mxu0 0
      %5377 = vmatpush1.bf16.msra.mxu0 0
      %5378 = vmatprep.subr.bf16.mxu0 0
      %5379 = vmatpush1.bf16.msra.mxu0 0
      %5380 = vmatprep.subr.bf16.mxu0 0
      %5381 = vmatpush1.bf16.msra.mxu0 0
      %5382 = vmatprep.subr.bf16.mxu0 0
      %5383 = vmatpush1.bf16.msra.mxu0 0
      %5384 = vmatprep.subr.bf16.mxu0 0
      %5385 = vmatpush1.bf16.msra.mxu0 0
      %5386 = vmatprep.subr.bf16.mxu0 0
      %5387 = vmatpush1.bf16.msra.mxu0 0
      %5388 = vmatprep.subr.bf16.mxu0 0
      %5389 = vmatpush1.bf16.msra.mxu0 0
      %5390 = vmatprep.subr.bf16.mxu0 0
      %5391 = vmatpush1.bf16.msra.mxu0 0
      %5392 = vmatprep.mubr.bf16.mxu0 0
      %5393 = vmatmul.mubr.bf16.gmra.mrb[0].mxu0 %v5120
      %v5394 = vpop.f32.mrb[0].mxu0
      %v5395 = vadd.f32 %v5069, %v5394
      %v5396 = vpop.f32.mrb[0].mxu0
      %v5397 = vadd.f32 %v5073, %v5396
      %v5398 = vpop.f32.mrb[0].mxu0
      %v5399 = vadd.f32 %v5069, %v5398
      %v5400 = vpop.f32.mrb[0].mxu0
      %v5401 = vadd.f32 %v5073, %v5400
      %5402 = vmatprep.mubr.bf16.mxu0 0
      %5403 = vmatmul.mubr.bf16.gmra.mrb[0].mxu0 %v5123
      %v5404 = vpop.f32.mrb[0].mxu0
      %v5405 = vadd.f32 %v5069, %v5404
      %v5406 = vpop.f32.mrb[0].mxu0
      %v5407 = vadd.f32 %v5073, %v5406
      %v5408 = vpop.f32.mrb[0].mxu0
      %v5409 = vadd.f32 %v5069, %v5408
      %v5410 = vpop.f32.mrb[0].mxu0
      %v5411 = vadd.f32 %v5073, %v5410
      %5412 = vmatprep.mubr.bf16.mxu0 0
      %5413 = vmatmul.mubr.bf16.gmra.mrb[0].mxu0 %v5126
      %v5414 = vpop.f32.mrb[0].mxu0
      %v5415 = vadd.f32 %v5069, %v5414
      %v5416 = vpop.f32.mrb[0].mxu0
      %v5417 = vadd.f32 %v5073, %v5416
      %v5418 = vpop.f32.mrb[0].mxu0
      %v5419 = vadd.f32 %v5069, %v5418
      %v5420 = vpop.f32.mrb[0].mxu0
      %v5421 = vadd.f32 %v5073, %v5420
      %5422 = vmatprep.mubr.bf16.mxu0 0
      %5423 = vmatmul.mubr.bf16.gmra.mrb[0].mxu0 %v5129
      %v5424 = vpop.f32.mrb[0].mxu0
      %v5425 = vadd.f32 %v5069, %v5424
      %v5426 = vpop.f32.mrb[0].mxu0
      %v5427 = vadd.f32 %v5073, %v5426
      %v5428 = vpop.f32.mrb[0].mxu0
      %v5429 = vadd.f32 %v5069, %v5428
      %v5430 = vpop.f32.mrb[0].mxu0
      %v5431 = vadd.f32 %v5073, %v5430
      %5432 = vmatprep.mubr.bf16.mxu0 0
      %5433 = vmatmul.mubr.bf16.gmra.mrb[0].mxu0 %v5132
      %v5434 = vpop.f32.mrb[0].mxu0
      %v5435 = vadd.f32 %v5069, %v5434
      %v5436 = vpop.f32.mrb[0].mxu0
      %v5437 = vadd.f32 %v5073, %v5436
      %v5438 = vpop.f32.mrb[0].mxu0
      %v5439 = vadd.f32 %v5069, %v5438
      %v5440 = vpop.f32.mrb[0].mxu0
      %v5441 = vadd.f32 %v5073, %v5440
      %5442 = vmatprep.mubr.bf16.mxu0 0
      %5443 = vmatmul.mubr.bf16.gmra.mrb[0].mxu0 %v5135
      %v5444 = vpop.f32.mrb[0].mxu0
      %v5445 = vadd.f32 %v5069, %v5444
      %v5446 = vpop.f32.mrb[0].mxu0
      %v5447 = vadd.f32 %v5073, %v5446
      %v5448 = vpop.f32.mrb[0].mxu0
      %v5449 = vadd.f32 %v5069, %v5448
      %v5450 = vpop.f32.mrb[0].mxu0
      %v5451 = vadd.f32 %v5073, %v5450
      %5452 = vmatprep.mubr.bf16.mxu0 0
      %5453 = vmatmul.mubr.bf16.gmra.mrb[0].mxu0 %v5138
      %v5454 = vpop.f32.mrb[0].mxu0
      %v5455 = vadd.f32 %v5069, %v5454
      %v5456 = vpop.f32.mrb[0].mxu0
      %v5457 = vadd.f32 %v5073, %v5456
      %v5458 = vpop.f32.mrb[0].mxu0
      %v5459 = vadd.f32 %v5069, %v5458
      %v5460 = vpop.f32.mrb[0].mxu0
      %v5461 = vadd.f32 %v5073, %v5460
      %5462 = vmatprep.mubr.bf16.mxu0 0
      %5463 = vmatmul.mubr.bf16.gmra.mrb[0].mxu0 %v5141
      %v5464 = vpop.f32.mrb[0].mxu0
      %v5465 = vadd.f32 %v5069, %v5464
      %v5466 = vpop.f32.mrb[0].mxu0
      %v5467 = vadd.f32 %v5073, %v5466
      %v5468 = vpop.f32.mrb[0].mxu0
      %v5469 = vadd.f32 %v5069, %v5468
      %v5470 = vpop.f32.mrb[0].mxu0
      %v5471 = vadd.f32 %v5073, %v5470
      %5472 = vmatprep.mubr.bf16.mxu0 0
      %5473 = vmatmul.mubr.bf16.gmra.mrb[0].mxu0 %v5144
      %v5474 = vpop.f32.mrb[0].mxu0
      %v5475 = vadd.f32 %v5069, %v5474
      %v5476 = vpop.f32.mrb[0].mxu0
      %v5477 = vadd.f32 %v5073, %v5476
      %v5478 = vpop.f32.mrb[0].mxu0
      %v5479 = vadd.f32 %v5069, %v5478
      %v5480 = vpop.f32.mrb[0].mxu0
      %v5481 = vadd.f32 %v5073, %v5480
      %5482 = vmatprep.mubr.bf16.mxu0 0
      %5483 = vmatmul.mubr.bf16.gmra.mrb[0].mxu0 %v5147
      %v5484 = vpop.f32.mrb[0].mxu0
      %v5485 = vadd.f32 %v5069, %v5484
      %v5486 = vpop.f32.mrb[0].mxu0
      %v5487 = vadd.f32 %v5073, %v5486
      %v5488 = vpop.f32.mrb[0].mxu0
      %v5489 = vadd.f32 %v5069, %v5488
      %v5490 = vpop.f32.mrb[0].mxu0
      %v5491 = vadd.f32 %v5073, %v5490
      %5492 = vmatprep.mubr.bf16.mxu0 0
      %5493 = vmatmul.mubr.bf16.gmra.mrb[0].mxu0 %v5150
      %v5494 = vpop.f32.mrb[0].mxu0
      %v5495 = vadd.f32 %v5069, %v5494
      %v5496 = vpop.f32.mrb[0].mxu0
      %v5497 = vadd.f32 %v5073, %v5496
      %v5498 = vpop.f32.mrb[0].mxu0
      %v5499 = vadd.f32 %v5069, %v5498
      %v5500 = vpop.f32.mrb[0].mxu0
      %v5501 = vadd.f32 %v5073, %v5500
      %5502 = vmatprep.mubr.bf16.mxu0 0
      %5503 = vmatmul.mubr.bf16.gmra.mrb[0].mxu0 %v5153
      %v5504 = vpop.f32.mrb[0].mxu0
      %v5505 = vadd.f32 %v5069, %v5504
      %v5506 = vpop.f32.mrb[0].mxu0
      %v5507 = vadd.f32 %v5073, %v5506
      %v5508 = vpop.f32.mrb[0].mxu0
      %v5509 = vadd.f32 %v5069, %v5508
      %v5510 = vpop.f32.mrb[0].mxu0
      %v5511 = vadd.f32 %v5073, %v5510
      %5512 = vmatprep.mubr.bf16.mxu0 0
      %5513 = vmatmul.mubr.bf16.gmra.mrb[0].mxu0 %v5156
      %v5514 = vpop.f32.mrb[0].mxu0
      %v5515 = vadd.f32 %v5069, %v5514
      %v5516 = vpop.f32.mrb[0].mxu0
      %v5517 = vadd.f32 %v5073, %v5516
      %v5518 = vpop.f32.mrb[0].mxu0
      %v5519 = vadd.f32 %v5069, %v5518
      %v5520 = vpop.f32.mrb[0].mxu0
      %v5521 = vadd.f32 %v5073, %v5520
      %5522 = vmatprep.mubr.bf16.mxu0 0
      %5523 = vmatmul.mubr.bf16.gmra.mrb[0].mxu0 %v5159
      %v5524 = vpop.f32.mrb[0].mxu0
      %v5525 = vadd.f32 %v5069, %v5524
      %v5526 = vpop.f32.mrb[0].mxu0
      %v5527 = vadd.f32 %v5073, %v5526
      %v5528 = vpop.f32.mrb[0].mxu0
      %v5529 = vadd.f32 %v5069, %v5528
      %v5530 = vpop.f32.mrb[0].mxu0
      %v5531 = vadd.f32 %v5073, %v5530
      %5532 = vmatprep.mubr.bf16.mxu0 0
      %5533 = vmatmul.mubr.bf16.gmra.mrb[0].mxu0 %v5162
      %v5534 = vpop.f32.mrb[0].mxu0
      %v5535 = vadd.f32 %v5069, %v5534
      %v5536 = vpop.f32.mrb[0].mxu0
      %v5537 = vadd.f32 %v5073, %v5536
      %v5538 = vpop.f32.mrb[0].mxu0
      %v5539 = vadd.f32 %v5069, %v5538
      %v5540 = vpop.f32.mrb[0].mxu0
      %v5541 = vadd.f32 %v5073, %v5540
      %5542 = vmatprep.mubr.bf16.mxu0 0
      %5543 = vmatmul.mubr.bf16.gmra.mrb[0].mxu0 %v5165
      %v5544 = vpop.f32.mrb[0].mxu0
      %v5545 = vadd.f32 %v5069, %v5544
      %v5546 = vpop.f32.mrb[0].mxu0
      %v5547 = vadd.f32 %v5073, %v5546
      %v5548 = vpop.f32.mrb[0].mxu0
      %v5549 = vadd.f32 %v5069, %v5548
      %v5550 = vpop.f32.mrb[0].mxu0
      %v5551 = vadd.f32 %v5073, %v5550
      %5552 = vdwg.mxu0
      %v5553 = vmax.f32 %v5202, 0.0
      %v5554 = vmax.f32 %v5204, 0.0
      %v5555 = vmax.f32 %v5395, 0.0
      %v5556 = vmax.f32 %v5397, 0.0
      %v5557 = vmax.f32 %v5206, 0.0
      %v5558 = vmax.f32 %v5208, 0.0
      %v5559 = vmax.f32 %v5399, 0.0
      %v5560 = vmax.f32 %v5401, 0.0
      %v5561 = vmax.f32 %v5212, 0.0
      %v5562 = vmax.f32 %v5214, 0.0
      %v5563 = vmax.f32 %v5405, 0.0
      %v5564 = vmax.f32 %v5407, 0.0
      %v5565 = vmax.f32 %v5216, 0.0
      %v5566 = vmax.f32 %v5218, 0.0
      %v5567 = vmax.f32 %v5409, 0.0
      %v5568 = vmax.f32 %v5411, 0.0
      %v5569 = vmax.f32 %v5222, 0.0
      %v5570 = vmax.f32 %v5224, 0.0
      %v5571 = vmax.f32 %v5415, 0.0
      %v5572 = vmax.f32 %v5417, 0.0
      %v5573 = vmax.f32 %v5226, 0.0
      %v5574 = vmax.f32 %v5228, 0.0
      %v5575 = vmax.f32 %v5419, 0.0
      %v5576 = vmax.f32 %v5421, 0.0
      %v5577 = vmax.f32 %v5232, 0.0
      %v5578 = vmax.f32 %v5234, 0.0
      %v5579 = vmax.f32 %v5425, 0.0
      %v5580 = vmax.f32 %v5427, 0.0
      %v5581 = vmax.f32 %v5236, 0.0
      %v5582 = vmax.f32 %v5238, 0.0
      %v5583 = vmax.f32 %v5429, 0.0
      %v5584 = vmax.f32 %v5431, 0.0
      %v5585 = vmax.f32 %v5242, 0.0
      %v5586 = vmax.f32 %v5244, 0.0
      %v5587 = vmax.f32 %v5435, 0.0
      %v5588 = vmax.f32 %v5437, 0.0
      %v5589 = vmax.f32 %v5246, 0.0
      %v5590 = vmax.f32 %v5248, 0.0
      %v5591 = vmax.f32 %v5439, 0.0
      %v5592 = vmax.f32 %v5441, 0.0
      %v5593 = vmax.f32 %v5252, 0.0
      %v5594 = vmax.f32 %v5254, 0.0
      %v5595 = vmax.f32 %v5445, 0.0
      %v5596 = vmax.f32 %v5447, 0.0
      %v5597 = vmax.f32 %v5256, 0.0
      %v5598 = vmax.f32 %v5258, 0.0
      %v5599 = vmax.f32 %v5449, 0.0
      %v5600 = vmax.f32 %v5451, 0.0
      %v5601 = vmax.f32 %v5262, 0.0
      %v5602 = vmax.f32 %v5264, 0.0
      %v5603 = vmax.f32 %v5455, 0.0
      %v5604 = vmax.f32 %v5457, 0.0
      %v5605 = vmax.f32 %v5266, 0.0
      %v5606 = vmax.f32 %v5268, 0.0
      %v5607 = vmax.f32 %v5459, 0.0
      %v5608 = vmax.f32 %v5461, 0.0
      %v5609 = vmax.f32 %v5272, 0.0
      %v5610 = vmax.f32 %v5274, 0.0
      %v5611 = vmax.f32 %v5465, 0.0
      %v5612 = vmax.f32 %v5467, 0.0
      %v5613 = vmax.f32 %v5276, 0.0
      %v5614 = vmax.f32 %v5278, 0.0
      %v5615 = vmax.f32 %v5469, 0.0
      %v5616 = vmax.f32 %v5471, 0.0
      %v5617 = vmax.f32 %v5282, 0.0
      %v5618 = vmax.f32 %v5284, 0.0
      %v5619 = vmax.f32 %v5475, 0.0
      %v5620 = vmax.f32 %v5477, 0.0
      %v5621 = vmax.f32 %v5286, 0.0
      %v5622 = vmax.f32 %v5288, 0.0
      %v5623 = vmax.f32 %v5479, 0.0
      %v5624 = vmax.f32 %v5481, 0.0
      %v5625 = vmax.f32 %v5292, 0.0
      %v5626 = vmax.f32 %v5294, 0.0
      %v5627 = vmax.f32 %v5485, 0.0
      %v5628 = vmax.f32 %v5487, 0.0
      %v5629 = vmax.f32 %v5296, 0.0
      %v5630 = vmax.f32 %v5298, 0.0
      %v5631 = vmax.f32 %v5489, 0.0
      %v5632 = vmax.f32 %v5491, 0.0
      %v5633 = vmax.f32 %v5302, 0.0
      %v5634 = vmax.f32 %v5304, 0.0
      %v5635 = vmax.f32 %v5495, 0.0
      %v5636 = vmax.f32 %v5497, 0.0
      %v5637 = vmax.f32 %v5306, 0.0
      %v5638 = vmax.f32 %v5308, 0.0
      %v5639 = vmax.f32 %v5499, 0.0
      %v5640 = vmax.f32 %v5501, 0.0
      %v5641 = vmax.f32 %v5312, 0.0
      %v5642 = vmax.f32 %v5314, 0.0
      %v5643 = vmax.f32 %v5505, 0.0
      %v5644 = vmax.f32 %v5507, 0.0
      %v5645 = vmax.f32 %v5316, 0.0
      %v5646 = vmax.f32 %v5318, 0.0
      %v5647 = vmax.f32 %v5509, 0.0
      %v5648 = vmax.f32 %v5511, 0.0
      %v5649 = vmax.f32 %v5322, 0.0
      %v5650 = vmax.f32 %v5324, 0.0
      %v5651 = vmax.f32 %v5515, 0.0
      %v5652 = vmax.f32 %v5517, 0.0
      %v5653 = vmax.f32 %v5326, 0.0
      %v5654 = vmax.f32 %v5328, 0.0
      %v5655 = vmax.f32 %v5519, 0.0
      %v5656 = vmax.f32 %v5521, 0.0
      %v5657 = vmax.f32 %v5332, 0.0
      %v5658 = vmax.f32 %v5334, 0.0
      %v5659 = vmax.f32 %v5525, 0.0
      %v5660 = vmax.f32 %v5527, 0.0
      %v5661 = vmax.f32 %v5336, 0.0
      %v5662 = vmax.f32 %v5338, 0.0
      %v5663 = vmax.f32 %v5529, 0.0
      %v5664 = vmax.f32 %v5531, 0.0
      %v5665 = vmax.f32 %v5342, 0.0
      %v5666 = vmax.f32 %v5344, 0.0
      %v5667 = vmax.f32 %v5535, 0.0
      %v5668 = vmax.f32 %v5537, 0.0
      %v5669 = vmax.f32 %v5346, 0.0
      %v5670 = vmax.f32 %v5348, 0.0
      %v5671 = vmax.f32 %v5539, 0.0
      %v5672 = vmax.f32 %v5541, 0.0
      %v5673 = vmax.f32 %v5352, 0.0
      %v5674 = vmax.f32 %v5354, 0.0
      %v5675 = vmax.f32 %v5545, 0.0
      %v5676 = vmax.f32 %v5547, 0.0
      %v5677 = vmax.f32 %v5356, 0.0
      %v5678 = vmax.f32 %v5358, 0.0
      %v5679 = vmax.f32 %v5549, 0.0
      %v5680 = vmax.f32 %v5551, 0.0
      %v5681 = vpack.c.bf16 %v5557, %v5553
      %v5682 = vpack.c.bf16 %v5558, %v5554
      %v5683 = vpack.c.bf16 %v5559, %v5555
      %v5684 = vpack.c.bf16 %v5560, %v5556
      %v5685 = vpack.c.bf16 %v5565, %v5561
      %v5686 = vpack.c.bf16 %v5566, %v5562
      %v5687 = vpack.c.bf16 %v5567, %v5563
      %v5688 = vpack.c.bf16 %v5568, %v5564
      %v5689 = vpack.c.bf16 %v5573, %v5569
      %v5690 = vpack.c.bf16 %v5574, %v5570
      %v5691 = vpack.c.bf16 %v5575, %v5571
      %v5692 = vpack.c.bf16 %v5576, %v5572
      %v5693 = vpack.c.bf16 %v5581, %v5577
      %v5694 = vpack.c.bf16 %v5582, %v5578
      %v5695 = vpack.c.bf16 %v5583, %v5579
      %v5696 = vpack.c.bf16 %v5584, %v5580
      %v5697 = vpack.c.bf16 %v5589, %v5585
      %v5698 = vpack.c.bf16 %v5590, %v5586
      %v5699 = vpack.c.bf16 %v5591, %v5587
      %v5700 = vpack.c.bf16 %v5592, %v5588
      %v5701 = vpack.c.bf16 %v5597, %v5593
      %v5702 = vpack.c.bf16 %v5598, %v5594
      %v5703 = vpack.c.bf16 %v5599, %v5595
      %v5704 = vpack.c.bf16 %v5600, %v5596
      %v5705 = vpack.c.bf16 %v5605, %v5601
      %v5706 = vpack.c.bf16 %v5606, %v5602
      %v5707 = vpack.c.bf16 %v5607, %v5603
      %v5708 = vpack.c.bf16 %v5608, %v5604
      %v5709 = vpack.c.bf16 %v5613, %v5609
      %v5710 = vpack.c.bf16 %v5614, %v5610
      %v5711 = vpack.c.bf16 %v5615, %v5611
      %v5712 = vpack.c.bf16 %v5616, %v5612
      %v5713 = vpack.c.bf16 %v5621, %v5617
      %v5714 = vpack.c.bf16 %v5622, %v5618
      %v5715 = vpack.c.bf16 %v5623, %v5619
      %v5716 = vpack.c.bf16 %v5624, %v5620
      %v5717 = vpack.c.bf16 %v5629, %v5625
      %v5718 = vpack.c.bf16 %v5630, %v5626
      %v5719 = vpack.c.bf16 %v5631, %v5627
      %v5720 = vpack.c.bf16 %v5632, %v5628
      %v5721 = vpack.c.bf16 %v5637, %v5633
      %v5722 = vpack.c.bf16 %v5638, %v5634
      %v5723 = vpack.c.bf16 %v5639, %v5635
      %v5724 = vpack.c.bf16 %v5640, %v5636
      %v5725 = vpack.c.bf16 %v5645, %v5641
      %v5726 = vpack.c.bf16 %v5646, %v5642
      %v5727 = vpack.c.bf16 %v5647, %v5643
      %v5728 = vpack.c.bf16 %v5648, %v5644
      %v5729 = vpack.c.bf16 %v5653, %v5649
      %v5730 = vpack.c.bf16 %v5654, %v5650
      %v5731 = vpack.c.bf16 %v5655, %v5651
      %v5732 = vpack.c.bf16 %v5656, %v5652
      %v5733 = vpack.c.bf16 %v5661, %v5657
      %v5734 = vpack.c.bf16 %v5662, %v5658
      %v5735 = vpack.c.bf16 %v5663, %v5659
      %v5736 = vpack.c.bf16 %v5664, %v5660
      %v5737 = vpack.c.bf16 %v5669, %v5665
      %v5738 = vpack.c.bf16 %v5670, %v5666
      %v5739 = vpack.c.bf16 %v5671, %v5667
      %v5740 = vpack.c.bf16 %v5672, %v5668
      %v5741 = vpack.c.bf16 %v5677, %v5673
      %v5742 = vpack.c.bf16 %v5678, %v5674
      %v5743 = vpack.c.bf16 %v5679, %v5675
      %v5744 = vpack.c.bf16 %v5680, %v5676
      %v5745 = vld [vmem:[%s8] sm:$0xff]
      %v5746 = vld [vmem:[%s8 + $0x8] sm:$0xff]
      %v5747 = vld [vmem:[%s8 + $0x10] sm:$0xff]
      %v5748 = vld [vmem:[%s8 + $0x18] sm:$0xf]
      %v5749 = vld [vmem:[%s8 + $0x1c] sm:$0xff]
      %v5750 = vld [vmem:[%s8 + $0x24] sm:$0xff]
      %v5751 = vld [vmem:[%s8 + $0x2c] sm:$0xff]
      %v5752 = vld [vmem:[%s8 + $0x34] sm:$0xf]
      %v5753 = vld [vmem:[%s8 + $0x38] sm:$0xff]
      %v5754 = vld [vmem:[%s8 + $0x40] sm:$0xff]
      %v5755 = vld [vmem:[%s8 + $0x48] sm:$0xff]
      %v5756 = vld [vmem:[%s8 + $0x50] sm:$0xf]
      %v5757 = vld [vmem:[%s8 + $0x54] sm:$0xff]
      %v5758 = vld [vmem:[%s8 + $0x5c] sm:$0xff]
      %v5759 = vld [vmem:[%s8 + $0x64] sm:$0xff]
      %v5760 = vld [vmem:[%s8 + $0x6c] sm:$0xf]
      %v5761 = vld [vmem:[%s8 + $0x70] sm:$0xff]
      %v5762 = vld [vmem:[%s8 + $0x78] sm:$0xff]
      %v5763 = vld [vmem:[%s8 + $0x80] sm:$0xff]
      %v5764 = vld [vmem:[%s8 + $0x88] sm:$0xf]
      %v5765 = vld [vmem:[%s8 + $0x8c] sm:$0xff]
      %v5766 = vld [vmem:[%s8 + $0x94] sm:$0xff]
      %v5767 = vld [vmem:[%s8 + $0x9c] sm:$0xff]
      %v5768 = vld [vmem:[%s8 + $0xa4] sm:$0xf]
      %v5769 = vld [vmem:[%s8 + $0xa8] sm:$0xff]
      %v5770 = vld [vmem:[%s8 + $0xb0] sm:$0xff]
      %v5771 = vld [vmem:[%s8 + $0xb8] sm:$0xff]
      %v5772 = vld [vmem:[%s8 + $0xc0] sm:$0xf]
      %v5773 = vld [vmem:[%s8 + $0xc4] sm:$0xff]
      %v5774 = vld [vmem:[%s8 + $0xcc] sm:$0xff]
      %v5775 = vld [vmem:[%s8 + $0xd4] sm:$0xff]
      %v5776 = vld [vmem:[%s8 + $0xdc] sm:$0xf]
      %v5777 = vld [vmem:[%s8 + $0xe0] sm:$0xff]
      %v5778 = vld [vmem:[%s8 + $0xe8] sm:$0xff]
      %v5779 = vld [vmem:[%s8 + $0xf0] sm:$0xff]
      %v5780 = vld [vmem:[%s8 + $0xf8] sm:$0xf]
      %v5781 = vld [vmem:[%s8 + $0xfc] sm:$0xff]
      %v5782 = vld [vmem:[%s8 + $0x104] sm:$0xff]
      %v5783 = vld [vmem:[%s8 + $0x10c] sm:$0xff]
      %v5784 = vld [vmem:[%s8 + $0x114] sm:$0xf]
      %v5785 = vld [vmem:[%s8 + $0x118] sm:$0xff]
      %v5786 = vld [vmem:[%s8 + $0x120] sm:$0xff]
      %v5787 = vld [vmem:[%s8 + $0x128] sm:$0xff]
      %v5788 = vld [vmem:[%s8 + $0x130] sm:$0xf]
      %v5789 = vld [vmem:[%s8 + $0x134] sm:$0xff]
      %v5790 = vld [vmem:[%s8 + $0x13c] sm:$0xff]
      %v5791 = vld [vmem:[%s8 + $0x144] sm:$0xff]
      %v5792 = vld [vmem:[%s8 + $0x14c] sm:$0xf]
      %v5793 = vld [vmem:[%s8 + $0x150] sm:$0xff]
      %v5794 = vld [vmem:[%s8 + $0x158] sm:$0xff]
      %v5795 = vld [vmem:[%s8 + $0x160] sm:$0xff]
      %v5796 = vld [vmem:[%s8 + $0x168] sm:$0xf]
      %v5797 = vld [vmem:[%s8 + $0x16c] sm:$0xff]
      %v5798 = vld [vmem:[%s8 + $0x174] sm:$0xff]
      %v5799 = vld [vmem:[%s8 + $0x17c] sm:$0xff]
      %v5800 = vld [vmem:[%s8 + $0x184] sm:$0xf]
      %v5801 = vld [vmem:[%s8 + $0x188] sm:$0xff]
      %v5802 = vld [vmem:[%s8 + $0x190] sm:$0xff]
      %v5803 = vld [vmem:[%s8 + $0x198] sm:$0xff]
      %v5804 = vld [vmem:[%s8 + $0x1a0] sm:$0xf]
      %v5805 = vld [vmem:[%s8 + $0x1a4] sm:$0xff]
      %v5806 = vld [vmem:[%s8 + $0x1ac] sm:$0xff]
      %v5807 = vld [vmem:[%s8 + $0x1b4] sm:$0xff]
      %v5808 = vld [vmem:[%s8 + $0x1bc] sm:$0xf]
      %v5809 = vld [vmem:[%s8 + $0x1c0] sm:$0xff]
      %v5810 = vld [vmem:[%s8 + $0x1c8] sm:$0xff]
      %v5811 = vld [vmem:[%s8 + $0x1d0] sm:$0xff]
      %v5812 = vld [vmem:[%s8 + $0x1d8] sm:$0xf]
      %v5813 = vld [vmem:[%s8 + $0x1dc] sm:$0xff]
      %v5814 = vld [vmem:[%s8 + $0x1e4] sm:$0xff]
      %v5815 = vld [vmem:[%s8 + $0x1ec] sm:$0xff]
      %v5816 = vld [vmem:[%s8 + $0x1f4] sm:$0xf]
      %v5817 = vld [vmem:[%s8 + $0x1f8] sm:$0xff]
      %v5818 = vld [vmem:[%s8 + $0x200] sm:$0xff]
      %v5819 = vld [vmem:[%s8 + $0x208] sm:$0xff]
      %v5820 = vld [vmem:[%s8 + $0x210] sm:$0xf]
      %v5821 = vld [vmem:[%s8 + $0x214] sm:$0xff]
      %v5822 = vld [vmem:[%s8 + $0x21c] sm:$0xff]
      %v5823 = vld [vmem:[%s8 + $0x224] sm:$0xff]
      %v5824 = vld [vmem:[%s8 + $0x22c] sm:$0xf]
      %v5825 = vld [vmem:[%s8 + $0x230] sm:$0xff]
      %v5826 = vld [vmem:[%s8 + $0x238] sm:$0xff]
      %v5827 = vld [vmem:[%s8 + $0x240] sm:$0xff]
      %v5828 = vld [vmem:[%s8 + $0x248] sm:$0xf]
      %v5829 = vld [vmem:[%s8 + $0x24c] sm:$0xff]
      %v5830 = vld [vmem:[%s8 + $0x254] sm:$0xff]
      %v5831 = vld [vmem:[%s8 + $0x25c] sm:$0xff]
      %v5832 = vld [vmem:[%s8 + $0x264] sm:$0xf]
      %v5833 = vld [vmem:[%s8 + $0x268] sm:$0xff]
      %v5834 = vld [vmem:[%s8 + $0x270] sm:$0xff]
      %v5835 = vld [vmem:[%s8 + $0x278] sm:$0xff]
      %v5836 = vld [vmem:[%s8 + $0x280] sm:$0xf]
      %v5837 = vld [vmem:[%s8 + $0x284] sm:$0xff]
      %v5838 = vld [vmem:[%s8 + $0x28c] sm:$0xff]
      %v5839 = vld [vmem:[%s8 + $0x294] sm:$0xff]
      %v5840 = vld [vmem:[%s8 + $0x29c] sm:$0xf]
      %v5841 = vld [vmem:[%s8 + $0x2a0] sm:$0xff]
      %v5842 = vld [vmem:[%s8 + $0x2a8] sm:$0xff]
      %v5843 = vld [vmem:[%s8 + $0x2b0] sm:$0xff]
      %v5844 = vld [vmem:[%s8 + $0x2b8] sm:$0xf]
      %v5845 = vld [vmem:[%s8 + $0x2bc] sm:$0xff]
      %v5846 = vld [vmem:[%s8 + $0x2c4] sm:$0xff]
      %v5847 = vld [vmem:[%s8 + $0x2cc] sm:$0xff]
      %v5848 = vld [vmem:[%s8 + $0x2d4] sm:$0xf]
      %v5849 = vld [vmem:[%s8 + $0x2d8] sm:$0xff]
      %v5850 = vld [vmem:[%s8 + $0x2e0] sm:$0xff]
      %v5851 = vld [vmem:[%s8 + $0x2e8] sm:$0xff]
      %v5852 = vld [vmem:[%s8 + $0x2f0] sm:$0xf]
      %v5853 = vld [vmem:[%s8 + $0x2f4] sm:$0xff]
      %v5854 = vld [vmem:[%s8 + $0x2fc] sm:$0xff]
      %v5855 = vld [vmem:[%s8 + $0x304] sm:$0xff]
      %v5856 = vld [vmem:[%s8 + $0x30c] sm:$0xf]
      %v5857 = vld [vmem:[%s8 + $0x310] sm:$0xff]
      %v5858 = vld [vmem:[%s8 + $0x318] sm:$0xff]
      %v5859 = vld [vmem:[%s8 + $0x320] sm:$0xff]
      %v5860 = vld [vmem:[%s8 + $0x328] sm:$0xf]
      %v5861 = vld [vmem:[%s8 + $0x32c] sm:$0xff]
      %v5862 = vld [vmem:[%s8 + $0x334] sm:$0xff]
      %v5863 = vld [vmem:[%s8 + $0x33c] sm:$0xff]
      %v5864 = vld [vmem:[%s8 + $0x344] sm:$0xf]
      %v5865 = vld [vmem:[%s8 + $0x348] sm:$0xff]
      %v5866 = vld [vmem:[%s8 + $0x350] sm:$0xff]
      %v5867 = vld [vmem:[%s8 + $0x358] sm:$0xff]
      %v5868 = vld [vmem:[%s8 + $0x360] sm:$0xf]
      %v5869 = vld [vmem:[%s8 + $0x364] sm:$0xff]
      %v5870 = vld [vmem:[%s8 + $0x36c] sm:$0xff]
      %v5871 = vld [vmem:[%s8 + $0x374] sm:$0xff]
      %v5872 = vld [vmem:[%s8 + $0x37c] sm:$0xf]
      %v5873 = vld [vmem:[%s8 + $0x380] sm:$0xff]
      %v5874 = vld [vmem:[%s8 + $0x388] sm:$0xff]
      %v5875 = vld [vmem:[%s8 + $0x390] sm:$0xff]
      %v5876 = vld [vmem:[%s8 + $0x398] sm:$0xf]
      %v5877 = vld [vmem:[%s8 + $0x39c] sm:$0xff]
      %v5878 = vld [vmem:[%s8 + $0x3a4] sm:$0xff]
      %v5879 = vld [vmem:[%s8 + $0x3ac] sm:$0xff]
      %v5880 = vld [vmem:[%s8 + $0x3b4] sm:$0xf]
      %v5881 = vld [vmem:[%s8 + $0x3b8] sm:$0xff]
      %v5882 = vld [vmem:[%s8 + $0x3c0] sm:$0xff]
      %v5883 = vld [vmem:[%s8 + $0x3c8] sm:$0xff]
      %v5884 = vld [vmem:[%s8 + $0x3d0] sm:$0xf]
      %v5885 = vld [vmem:[%s8 + $0x3d4] sm:$0xff]
      %v5886 = vld [vmem:[%s8 + $0x3dc] sm:$0xff]
      %v5887 = vld [vmem:[%s8 + $0x3e4] sm:$0xff]
      %v5888 = vld [vmem:[%s8 + $0x3ec] sm:$0xf]
      %v5889 = vld [vmem:[%s8 + $0x3f0] sm:$0xff]
      %v5890 = vld [vmem:[%s8 + $0x3f8] sm:$0xff]
      %v5891 = vld [vmem:[%s8 + $0x400] sm:$0xff]
      %v5892 = vld [vmem:[%s8 + $0x408] sm:$0xf]
      %v5893 = vld [vmem:[%s8 + $0x40c] sm:$0xff]
      %v5894 = vld [vmem:[%s8 + $0x414] sm:$0xff]
      %v5895 = vld [vmem:[%s8 + $0x41c] sm:$0xff]
      %v5896 = vld [vmem:[%s8 + $0x424] sm:$0xf]
      %v5897 = vld [vmem:[%s8 + $0x428] sm:$0xff]
      %v5898 = vld [vmem:[%s8 + $0x430] sm:$0xff]
      %v5899 = vld [vmem:[%s8 + $0x438] sm:$0xff]
      %v5900 = vld [vmem:[%s8 + $0x440] sm:$0xf]
      %v5901 = vld [vmem:[%s8 + $0x444] sm:$0xff]
      %v5902 = vld [vmem:[%s8 + $0x44c] sm:$0xff]
      %v5903 = vld [vmem:[%s8 + $0x454] sm:$0xff]
      %v5904 = vld [vmem:[%s8 + $0x45c] sm:$0xf]
      %v5905 = vld [vmem:[%s8 + $0x460] sm:$0xff]
      %v5906 = vld [vmem:[%s8 + $0x468] sm:$0xff]
      %v5907 = vld [vmem:[%s8 + $0x470] sm:$0xff]
      %v5908 = vld [vmem:[%s8 + $0x478] sm:$0xf]
      %v5909 = vld [vmem:[%s8 + $0x47c] sm:$0xff]
      %v5910 = vld [vmem:[%s8 + $0x484] sm:$0xff]
      %v5911 = vld [vmem:[%s8 + $0x48c] sm:$0xff]
      %v5912 = vld [vmem:[%s8 + $0x494] sm:$0xf]
      %v5913 = vld [vmem:[%s8 + $0x498] sm:$0xff]
      %v5914 = vld [vmem:[%s8 + $0x4a0] sm:$0xff]
      %v5915 = vld [vmem:[%s8 + $0x4a8] sm:$0xff]
      %v5916 = vld [vmem:[%s8 + $0x4b0] sm:$0xf]
      %v5917 = vld [vmem:[%s8 + $0x4b4] sm:$0xff]
      %v5918 = vld [vmem:[%s8 + $0x4bc] sm:$0xff]
      %v5919 = vld [vmem:[%s8 + $0x4c4] sm:$0xff]
      %v5920 = vld [vmem:[%s8 + $0x4cc] sm:$0xf]
      %v5921 = vld [vmem:[%s8 + $0x4d0] sm:$0xff]
      %v5922 = vld [vmem:[%s8 + $0x4d8] sm:$0xff]
      %v5923 = vld [vmem:[%s8 + $0x4e0] sm:$0xff]
      %v5924 = vld [vmem:[%s8 + $0x4e8] sm:$0xf]
      %v5925 = vld [vmem:[%s8 + $0x4ec] sm:$0xff]
      %v5926 = vld [vmem:[%s8 + $0x4f4] sm:$0xff]
      %v5927 = vld [vmem:[%s8 + $0x4fc] sm:$0xff]
      %v5928 = vld [vmem:[%s8 + $0x504] sm:$0xf]
      %v5929 = vld [vmem:[%s8 + $0x508] sm:$0xff]
      %v5930 = vld [vmem:[%s8 + $0x510] sm:$0xff]
      %v5931 = vld [vmem:[%s8 + $0x518] sm:$0xff]
      %v5932 = vld [vmem:[%s8 + $0x520] sm:$0xf]
      %v5933 = vld [vmem:[%s8 + $0x524] sm:$0xff]
      %v5934 = vld [vmem:[%s8 + $0x52c] sm:$0xff]
      %v5935 = vld [vmem:[%s8 + $0x534] sm:$0xff]
      %v5936 = vld [vmem:[%s8 + $0x53c] sm:$0xf]
      %v5937 = vld [vmem:[%s8 + $0x540] sm:$0xff]
      %v5938 = vld [vmem:[%s8 + $0x548] sm:$0xff]
      %v5939 = vld [vmem:[%s8 + $0x550] sm:$0xff]
      %v5940 = vld [vmem:[%s8 + $0x558] sm:$0xf]
      %v5941 = vld [vmem:[%s8 + $0x55c] sm:$0xff]
      %v5942 = vld [vmem:[%s8 + $0x564] sm:$0xff]
      %v5943 = vld [vmem:[%s8 + $0x56c] sm:$0xff]
      %v5944 = vld [vmem:[%s8 + $0x574] sm:$0xf]
      %v5945 = vld [vmem:[%s9] sm:$0x7f]
      %v5947 = vlaneseq
      %v5948 = vshrl.u32 %v5947, 7
      %v5949 = vsub.s32 0, %v5948
      %v5950 = vrot.slane %v5945, %v5949
      %v5951 = vlaneseq
      %v5952 = vshrl.u32 %v5951, 7
      %v5953 = vsub.s32 1, %v5952
      %v5954 = vrot.slane %v5945, %v5953
      %v5955 = vlaneseq
      %v5956 = vshrl.u32 %v5955, 7
      %v5957 = vsub.s32 2, %v5956
      %v5958 = vrot.slane %v5945, %v5957
      %v5959 = vlaneseq
      %v5960 = vshrl.u32 %v5959, 7
      %v5961 = vsub.s32 3, %v5960
      %v5962 = vrot.slane %v5945, %v5961
      %v5963 = vlaneseq
      %v5964 = vshrl.u32 %v5963, 7
      %v5965 = vsub.s32 4, %v5964
      %v5966 = vrot.slane %v5945, %v5965
      %v5967 = vlaneseq
      %v5968 = vshrl.u32 %v5967, 7
      %v5969 = vsub.s32 5, %v5968
      %v5970 = vrot.slane %v5945, %v5969
      %v5971 = vlaneseq
      %v5972 = vshrl.u32 %v5971, 7
      %v5973 = vsub.s32 6, %v5972
      %v5974 = vrot.slane %v5945, %v5973
      %v6182 = vunpack.c.l.b16 %v5745
      %v6183 = vunpack.c.h.b16 %v5745
      %v6184 = vunpack.c.l.b16 %v5746
      %v6185 = vunpack.c.h.b16 %v5746
      %v6186 = vunpack.c.l.b16 %v5747
      %v6187 = vunpack.c.h.b16 %v5747
      %v6188 = vunpack.c.l.b16 %v5748
      %v6189 = vunpack.c.l.b16 %v5749
      %v6190 = vunpack.c.h.b16 %v5749
      %v6191 = vunpack.c.l.b16 %v5750
      %v6192 = vunpack.c.h.b16 %v5750
      %v6193 = vunpack.c.l.b16 %v5751
      %v6194 = vunpack.c.h.b16 %v5751
      %v6195 = vunpack.c.l.b16 %v5752
      %v6196 = vunpack.c.l.b16 %v5753
      %v6197 = vunpack.c.h.b16 %v5753
      %v6198 = vunpack.c.l.b16 %v5754
      %v6199 = vunpack.c.h.b16 %v5754
      %v6200 = vunpack.c.l.b16 %v5755
      %v6201 = vunpack.c.h.b16 %v5755
      %v6202 = vunpack.c.l.b16 %v5756
      %v6203 = vunpack.c.l.b16 %v5757
      %v6204 = vunpack.c.h.b16 %v5757
      %v6205 = vunpack.c.l.b16 %v5758
      %v6206 = vunpack.c.h.b16 %v5758
      %v6207 = vunpack.c.l.b16 %v5759
      %v6208 = vunpack.c.h.b16 %v5759
      %v6209 = vunpack.c.l.b16 %v5760
      %v6210 = vunpack.c.l.b16 %v5761
      %v6211 = vunpack.c.h.b16 %v5761
      %v6212 = vunpack.c.l.b16 %v5762
      %v6213 = vunpack.c.h.b16 %v5762
      %v6214 = vunpack.c.l.b16 %v5763
      %v6215 = vunpack.c.h.b16 %v5763
      %v6216 = vunpack.c.l.b16 %v5764
      %v6217 = vunpack.c.l.b16 %v5765
      %v6218 = vunpack.c.h.b16 %v5765
      %v6219 = vunpack.c.l.b16 %v5766
      %v6220 = vunpack.c.h.b16 %v5766
      %v6221 = vunpack.c.l.b16 %v5767
      %v6222 = vunpack.c.h.b16 %v5767
      %v6223 = vunpack.c.l.b16 %v5768
      %v6224 = vunpack.c.l.b16 %v5769
      %v6225 = vunpack.c.h.b16 %v5769
      %v6226 = vunpack.c.l.b16 %v5770
      %v6227 = vunpack.c.h.b16 %v5770
      %v6228 = vunpack.c.l.b16 %v5771
      %v6229 = vunpack.c.h.b16 %v5771
      %v6230 = vunpack.c.l.b16 %v5772
      %v6231 = vunpack.c.l.b16 %v5773
      %v6232 = vunpack.c.h.b16 %v5773
      %v6233 = vunpack.c.l.b16 %v5774
      %v6234 = vunpack.c.h.b16 %v5774
      %v6235 = vunpack.c.l.b16 %v5775
      %v6236 = vunpack.c.h.b16 %v5775
      %v6237 = vunpack.c.l.b16 %v5776
      %v6238 = vunpack.c.l.b16 %v5777
      %v6239 = vunpack.c.h.b16 %v5777
      %v6240 = vunpack.c.l.b16 %v5778
      %v6241 = vunpack.c.h.b16 %v5778
      %v6242 = vunpack.c.l.b16 %v5779
      %v6243 = vunpack.c.h.b16 %v5779
      %v6244 = vunpack.c.l.b16 %v5780
      %v6245 = vunpack.c.l.b16 %v5781
      %v6246 = vunpack.c.h.b16 %v5781
      %v6247 = vunpack.c.l.b16 %v5782
      %v6248 = vunpack.c.h.b16 %v5782
      %v6249 = vunpack.c.l.b16 %v5783
      %v6250 = vunpack.c.h.b16 %v5783
      %v6251 = vunpack.c.l.b16 %v5784
      %v6252 = vunpack.c.l.b16 %v5785
      %v6253 = vunpack.c.h.b16 %v5785
      %v6254 = vunpack.c.l.b16 %v5786
      %v6255 = vunpack.c.h.b16 %v5786
      %v6256 = vunpack.c.l.b16 %v5787
      %v6257 = vunpack.c.h.b16 %v5787
      %v6258 = vunpack.c.l.b16 %v5788
      %v6259 = vunpack.c.l.b16 %v5789
      %v6260 = vunpack.c.h.b16 %v5789
      %v6261 = vunpack.c.l.b16 %v5790
      %v6262 = vunpack.c.h.b16 %v5790
      %v6263 = vunpack.c.l.b16 %v5791
      %v6264 = vunpack.c.h.b16 %v5791
      %v6265 = vunpack.c.l.b16 %v5792
      %v6266 = vunpack.c.l.b16 %v5793
      %v6267 = vunpack.c.h.b16 %v5793
      %v6268 = vunpack.c.l.b16 %v5794
      %v6269 = vunpack.c.h.b16 %v5794
      %v6270 = vunpack.c.l.b16 %v5795
      %v6271 = vunpack.c.h.b16 %v5795
      %v6272 = vunpack.c.l.b16 %v5796
      %v6273 = vunpack.c.l.b16 %v5797
      %v6274 = vunpack.c.h.b16 %v5797
      %v6275 = vunpack.c.l.b16 %v5798
      %v6276 = vunpack.c.h.b16 %v5798
      %v6277 = vunpack.c.l.b16 %v5799
      %v6278 = vunpack.c.h.b16 %v5799
      %v6279 = vunpack.c.l.b16 %v5800
      %v6280 = vunpack.c.l.b16 %v5801
      %v6281 = vunpack.c.h.b16 %v5801
      %v6282 = vunpack.c.l.b16 %v5802
      %v6283 = vunpack.c.h.b16 %v5802
      %v6284 = vunpack.c.l.b16 %v5803
      %v6285 = vunpack.c.h.b16 %v5803
      %v6286 = vunpack.c.l.b16 %v5804
      %v6287 = vunpack.c.l.b16 %v5805
      %v6288 = vunpack.c.h.b16 %v5805
      %v6289 = vunpack.c.l.b16 %v5806
      %v6290 = vunpack.c.h.b16 %v5806
      %v6291 = vunpack.c.l.b16 %v5807
      %v6292 = vunpack.c.h.b16 %v5807
      %v6293 = vunpack.c.l.b16 %v5808
      %v6294 = vunpack.c.l.b16 %v5809
      %v6295 = vunpack.c.h.b16 %v5809
      %v6296 = vunpack.c.l.b16 %v5810
      %v6297 = vunpack.c.h.b16 %v5810
      %v6298 = vunpack.c.l.b16 %v5811
      %v6299 = vunpack.c.h.b16 %v5811
      %v6300 = vunpack.c.l.b16 %v5812
      %v6301 = vunpack.c.l.b16 %v5813
      %v6302 = vunpack.c.h.b16 %v5813
      %v6303 = vunpack.c.l.b16 %v5814
      %v6304 = vunpack.c.h.b16 %v5814
      %v6305 = vunpack.c.l.b16 %v5815
      %v6306 = vunpack.c.h.b16 %v5815
      %v6307 = vunpack.c.l.b16 %v5816
      %v6308 = vunpack.c.l.b16 %v5817
      %v6309 = vunpack.c.h.b16 %v5817
      %v6310 = vunpack.c.l.b16 %v5818
      %v6311 = vunpack.c.h.b16 %v5818
      %v6312 = vunpack.c.l.b16 %v5819
      %v6313 = vunpack.c.h.b16 %v5819
      %v6314 = vunpack.c.l.b16 %v5820
      %v6315 = vunpack.c.l.b16 %v5821
      %v6316 = vunpack.c.h.b16 %v5821
      %v6317 = vunpack.c.l.b16 %v5822
      %v6318 = vunpack.c.h.b16 %v5822
      %v6319 = vunpack.c.l.b16 %v5823
      %v6320 = vunpack.c.h.b16 %v5823
      %v6321 = vunpack.c.l.b16 %v5824
      %v6322 = vunpack.c.l.b16 %v5825
      %v6323 = vunpack.c.h.b16 %v5825
      %v6324 = vunpack.c.l.b16 %v5826
      %v6325 = vunpack.c.h.b16 %v5826
      %v6326 = vunpack.c.l.b16 %v5827
      %v6327 = vunpack.c.h.b16 %v5827
      %v6328 = vunpack.c.l.b16 %v5828
      %v6329 = vunpack.c.l.b16 %v5829
      %v6330 = vunpack.c.h.b16 %v5829
      %v6331 = vunpack.c.l.b16 %v5830
      %v6332 = vunpack.c.h.b16 %v5830
      %v6333 = vunpack.c.l.b16 %v5831
      %v6334 = vunpack.c.h.b16 %v5831
      %v6335 = vunpack.c.l.b16 %v5832
      %v6336 = vunpack.c.l.b16 %v5833
      %v6337 = vunpack.c.h.b16 %v5833
      %v6338 = vunpack.c.l.b16 %v5834
      %v6339 = vunpack.c.h.b16 %v5834
      %v6340 = vunpack.c.l.b16 %v5835
      %v6341 = vunpack.c.h.b16 %v5835
      %v6342 = vunpack.c.l.b16 %v5836
      %v6343 = vunpack.c.l.b16 %v5837
      %v6344 = vunpack.c.h.b16 %v5837
      %v6345 = vunpack.c.l.b16 %v5838
      %v6346 = vunpack.c.h.b16 %v5838
      %v6347 = vunpack.c.l.b16 %v5839
      %v6348 = vunpack.c.h.b16 %v5839
      %v6349 = vunpack.c.l.b16 %v5840
      %v6350 = vunpack.c.l.b16 %v5841
      %v6351 = vunpack.c.h.b16 %v5841
      %v6352 = vunpack.c.l.b16 %v5842
      %v6353 = vunpack.c.h.b16 %v5842
      %v6354 = vunpack.c.l.b16 %v5843
      %v6355 = vunpack.c.h.b16 %v5843
      %v6356 = vunpack.c.l.b16 %v5844
      %v6357 = vunpack.c.l.b16 %v5845
      %v6358 = vunpack.c.h.b16 %v5845
      %v6359 = vunpack.c.l.b16 %v5846
      %v6360 = vunpack.c.h.b16 %v5846
      %v6361 = vunpack.c.l.b16 %v5847
      %v6362 = vunpack.c.h.b16 %v5847
      %v6363 = vunpack.c.l.b16 %v5848
      %v6364 = vunpack.c.l.b16 %v5849
      %v6365 = vunpack.c.h.b16 %v5849
      %v6366 = vunpack.c.l.b16 %v5850
      %v6367 = vunpack.c.h.b16 %v5850
      %v6368 = vunpack.c.l.b16 %v5851
      %v6369 = vunpack.c.h.b16 %v5851
      %v6370 = vunpack.c.l.b16 %v5852
      %v6371 = vunpack.c.l.b16 %v5853
      %v6372 = vunpack.c.h.b16 %v5853
      %v6373 = vunpack.c.l.b16 %v5854
      %v6374 = vunpack.c.h.b16 %v5854
      %v6375 = vunpack.c.l.b16 %v5855
      %v6376 = vunpack.c.h.b16 %v5855
      %v6377 = vunpack.c.l.b16 %v5856
      %v6378 = vunpack.c.l.b16 %v5857
      %v6379 = vunpack.c.h.b16 %v5857
      %v6380 = vunpack.c.l.b16 %v5858
      %v6381 = vunpack.c.h.b16 %v5858
      %v6382 = vunpack.c.l.b16 %v5859
      %v6383 = vunpack.c.h.b16 %v5859
      %v6384 = vunpack.c.l.b16 %v5860
      %v6385 = vunpack.c.l.b16 %v5861
      %v6386 = vunpack.c.h.b16 %v5861
      %v6387 = vunpack.c.l.b16 %v5862
      %v6388 = vunpack.c.h.b16 %v5862
      %v6389 = vunpack.c.l.b16 %v5863
      %v6390 = vunpack.c.h.b16 %v5863
      %v6391 = vunpack.c.l.b16 %v5864
      %v6392 = vunpack.c.l.b16 %v5865
      %v6393 = vunpack.c.h.b16 %v5865
      %v6394 = vunpack.c.l.b16 %v5866
      %v6395 = vunpack.c.h.b16 %v5866
      %v6396 = vunpack.c.l.b16 %v5867
      %v6397 = vunpack.c.h.b16 %v5867
      %v6398 = vunpack.c.l.b16 %v5868
      %v6399 = vunpack.c.l.b16 %v5869
      %v6400 = vunpack.c.h.b16 %v5869
      %v6401 = vunpack.c.l.b16 %v5870
      %v6402 = vunpack.c.h.b16 %v5870
      %v6403 = vunpack.c.l.b16 %v5871
      %v6404 = vunpack.c.h.b16 %v5871
      %v6405 = vunpack.c.l.b16 %v5872
      %v6406 = vunpack.c.l.b16 %v5873
      %v6407 = vunpack.c.h.b16 %v5873
      %v6408 = vunpack.c.l.b16 %v5874
      %v6409 = vunpack.c.h.b16 %v5874
      %v6410 = vunpack.c.l.b16 %v5875
      %v6411 = vunpack.c.h.b16 %v5875
      %v6412 = vunpack.c.l.b16 %v5876
      %v6413 = vunpack.c.l.b16 %v5877
      %v6414 = vunpack.c.h.b16 %v5877
      %v6415 = vunpack.c.l.b16 %v5878
      %v6416 = vunpack.c.h.b16 %v5878
      %v6417 = vunpack.c.l.b16 %v5879
      %v6418 = vunpack.c.h.b16 %v5879
      %v6419 = vunpack.c.l.b16 %v5880
      %v6420 = vunpack.c.l.b16 %v5881
      %v6421 = vunpack.c.h.b16 %v5881
      %v6422 = vunpack.c.l.b16 %v5882
      %v6423 = vunpack.c.h.b16 %v5882
      %v6424 = vunpack.c.l.b16 %v5883
      %v6425 = vunpack.c.h.b16 %v5883
      %v6426 = vunpack.c.l.b16 %v5884
      %v6427 = vunpack.c.l.b16 %v5885
      %v6428 = vunpack.c.h.b16 %v5885
      %v6429 = vunpack.c.l.b16 %v5886
      %v6430 = vunpack.c.h.b16 %v5886
      %v6431 = vunpack.c.l.b16 %v5887
      %v6432 = vunpack.c.h.b16 %v5887
      %v6433 = vunpack.c.l.b16 %v5888
      %v6434 = vunpack.c.l.b16 %v5889
      %v6435 = vunpack.c.h.b16 %v5889
      %v6436 = vunpack.c.l.b16 %v5890
      %v6437 = vunpack.c.h.b16 %v5890
      %v6438 = vunpack.c.l.b16 %v5891
      %v6439 = vunpack.c.h.b16 %v5891
      %v6440 = vunpack.c.l.b16 %v5892
      %v6441 = vunpack.c.l.b16 %v5893
      %v6442 = vunpack.c.h.b16 %v5893
      %v6443 = vunpack.c.l.b16 %v5894
      %v6444 = vunpack.c.h.b16 %v5894
      %v6445 = vunpack.c.l.b16 %v5895
      %v6446 = vunpack.c.h.b16 %v5895
      %v6447 = vunpack.c.l.b16 %v5896
      %v6448 = vunpack.c.l.b16 %v5897
      %v6449 = vunpack.c.h.b16 %v5897
      %v6450 = vunpack.c.l.b16 %v5898
      %v6451 = vunpack.c.h.b16 %v5898
      %v6452 = vunpack.c.l.b16 %v5899
      %v6453 = vunpack.c.h.b16 %v5899
      %v6454 = vunpack.c.l.b16 %v5900
      %v6455 = vunpack.c.l.b16 %v5901
      %v6456 = vunpack.c.h.b16 %v5901
      %v6457 = vunpack.c.l.b16 %v5902
      %v6458 = vunpack.c.h.b16 %v5902
      %v6459 = vunpack.c.l.b16 %v5903
      %v6460 = vunpack.c.h.b16 %v5903
      %v6461 = vunpack.c.l.b16 %v5904
      %v6462 = vunpack.c.l.b16 %v5905
      %v6463 = vunpack.c.h.b16 %v5905
      %v6464 = vunpack.c.l.b16 %v5906
      %v6465 = vunpack.c.h.b16 %v5906
      %v6466 = vunpack.c.l.b16 %v5907
      %v6467 = vunpack.c.h.b16 %v5907
      %v6468 = vunpack.c.l.b16 %v5908
      %v6469 = vunpack.c.l.b16 %v5909
      %v6470 = vunpack.c.h.b16 %v5909
      %v6471 = vunpack.c.l.b16 %v5910
      %v6472 = vunpack.c.h.b16 %v5910
      %v6473 = vunpack.c.l.b16 %v5911
      %v6474 = vunpack.c.h.b16 %v5911
      %v6475 = vunpack.c.l.b16 %v5912
      %v6476 = vunpack.c.l.b16 %v5913
      %v6477 = vunpack.c.h.b16 %v5913
      %v6478 = vunpack.c.l.b16 %v5914
      %v6479 = vunpack.c.h.b16 %v5914
      %v6480 = vunpack.c.l.b16 %v5915
      %v6481 = vunpack.c.h.b16 %v5915
      %v6482 = vunpack.c.l.b16 %v5916
      %v6483 = vunpack.c.l.b16 %v5917
      %v6484 = vunpack.c.h.b16 %v5917
      %v6485 = vunpack.c.l.b16 %v5918
      %v6486 = vunpack.c.h.b16 %v5918
      %v6487 = vunpack.c.l.b16 %v5919
      %v6488 = vunpack.c.h.b16 %v5919
      %v6489 = vunpack.c.l.b16 %v5920
      %v6490 = vunpack.c.l.b16 %v5921
      %v6491 = vunpack.c.h.b16 %v5921
      %v6492 = vunpack.c.l.b16 %v5922
      %v6493 = vunpack.c.h.b16 %v5922
      %v6494 = vunpack.c.l.b16 %v5923
      %v6495 = vunpack.c.h.b16 %v5923
      %v6496 = vunpack.c.l.b16 %v5924
      %v6497 = vunpack.c.l.b16 %v5925
      %v6498 = vunpack.c.h.b16 %v5925
      %v6499 = vunpack.c.l.b16 %v5926
      %v6500 = vunpack.c.h.b16 %v5926
      %v6501 = vunpack.c.l.b16 %v5927
      %v6502 = vunpack.c.h.b16 %v5927
      %v6503 = vunpack.c.l.b16 %v5928
      %v6504 = vunpack.c.l.b16 %v5929
      %v6505 = vunpack.c.h.b16 %v5929
      %v6506 = vunpack.c.l.b16 %v5930
      %v6507 = vunpack.c.h.b16 %v5930
      %v6508 = vunpack.c.l.b16 %v5931
      %v6509 = vunpack.c.h.b16 %v5931
      %v6510 = vunpack.c.l.b16 %v5932
      %v6511 = vunpack.c.l.b16 %v5933
      %v6512 = vunpack.c.h.b16 %v5933
      %v6513 = vunpack.c.l.b16 %v5934
      %v6514 = vunpack.c.h.b16 %v5934
      %v6515 = vunpack.c.l.b16 %v5935
      %v6516 = vunpack.c.h.b16 %v5935
      %v6517 = vunpack.c.l.b16 %v5936
      %v6518 = vunpack.c.l.b16 %v5937
      %v6519 = vunpack.c.h.b16 %v5937
      %v6520 = vunpack.c.l.b16 %v5938
      %v6521 = vunpack.c.h.b16 %v5938
      %v6522 = vunpack.c.l.b16 %v5939
      %v6523 = vunpack.c.h.b16 %v5939
      %v6524 = vunpack.c.l.b16 %v5940
      %v6525 = vunpack.c.l.b16 %v5941
      %v6526 = vunpack.c.h.b16 %v5941
      %v6527 = vunpack.c.l.b16 %v5942
      %v6528 = vunpack.c.h.b16 %v5942
      %v6529 = vunpack.c.l.b16 %v5943
      %v6530 = vunpack.c.h.b16 %v5943
      %v6531 = vunpack.c.l.b16 %v5944
      %v6532 = vpack.c.b16 %v6189, %v6182
      %v6533 = vpack.c.b16 %v6190, %v6183
      %v6534 = vpack.c.b16 %v6191, %v6184
      %v6535 = vpack.c.b16 %v6192, %v6185
      %v6536 = vpack.c.b16 %v6193, %v6186
      %v6537 = vpack.c.b16 %v6194, %v6187
      %v6538 = vpack.c.b16 %v6195, %v6188
      %v6539 = vpack.c.b16 %v6203, %v6196
      %v6540 = vpack.c.b16 %v6204, %v6197
      %v6541 = vpack.c.b16 %v6205, %v6198
      %v6542 = vpack.c.b16 %v6206, %v6199
      %v6543 = vpack.c.b16 %v6207, %v6200
      %v6544 = vpack.c.b16 %v6208, %v6201
      %v6545 = vpack.c.b16 %v6209, %v6202
      %v6546 = vpack.c.b16 %v6217, %v6210
      %v6547 = vpack.c.b16 %v6218, %v6211
      %v6548 = vpack.c.b16 %v6219, %v6212
      %v6549 = vpack.c.b16 %v6220, %v6213
      %v6550 = vpack.c.b16 %v6221, %v6214
      %v6551 = vpack.c.b16 %v6222, %v6215
      %v6552 = vpack.c.b16 %v6223, %v6216
      %v6553 = vpack.c.b16 %v6231, %v6224
      %v6554 = vpack.c.b16 %v6232, %v6225
      %v6555 = vpack.c.b16 %v6233, %v6226
      %v6556 = vpack.c.b16 %v6234, %v6227
      %v6557 = vpack.c.b16 %v6235, %v6228
      %v6558 = vpack.c.b16 %v6236, %v6229
      %v6559 = vpack.c.b16 %v6237, %v6230
      %v6560 = vpack.c.b16 %v6245, %v6238
      %v6561 = vpack.c.b16 %v6246, %v6239
      %v6562 = vpack.c.b16 %v6247, %v6240
      %v6563 = vpack.c.b16 %v6248, %v6241
      %v6564 = vpack.c.b16 %v6249, %v6242
      %v6565 = vpack.c.b16 %v6250, %v6243
      %v6566 = vpack.c.b16 %v6251, %v6244
      %v6567 = vpack.c.b16 %v6259, %v6252
      %v6568 = vpack.c.b16 %v6260, %v6253
      %v6569 = vpack.c.b16 %v6261, %v6254
      %v6570 = vpack.c.b16 %v6262, %v6255
      %v6571 = vpack.c.b16 %v6263, %v6256
      %v6572 = vpack.c.b16 %v6264, %v6257
      %v6573 = vpack.c.b16 %v6265, %v6258
      %v6574 = vpack.c.b16 %v6273, %v6266
      %v6575 = vpack.c.b16 %v6274, %v6267
      %v6576 = vpack.c.b16 %v6275, %v6268
      %v6577 = vpack.c.b16 %v6276, %v6269
      %v6578 = vpack.c.b16 %v6277, %v6270
      %v6579 = vpack.c.b16 %v6278, %v6271
      %v6580 = vpack.c.b16 %v6279, %v6272
      %v6581 = vpack.c.b16 %v6287, %v6280
      %v6582 = vpack.c.b16 %v6288, %v6281
      %v6583 = vpack.c.b16 %v6289, %v6282
      %v6584 = vpack.c.b16 %v6290, %v6283
      %v6585 = vpack.c.b16 %v6291, %v6284
      %v6586 = vpack.c.b16 %v6292, %v6285
      %v6587 = vpack.c.b16 %v6293, %v6286
      %v6588 = vpack.c.b16 %v6301, %v6294
      %v6589 = vpack.c.b16 %v6302, %v6295
      %v6590 = vpack.c.b16 %v6303, %v6296
      %v6591 = vpack.c.b16 %v6304, %v6297
      %v6592 = vpack.c.b16 %v6305, %v6298
      %v6593 = vpack.c.b16 %v6306, %v6299
      %v6594 = vpack.c.b16 %v6307, %v6300
      %v6595 = vpack.c.b16 %v6315, %v6308
      %v6596 = vpack.c.b16 %v6316, %v6309
      %v6597 = vpack.c.b16 %v6317, %v6310
      %v6598 = vpack.c.b16 %v6318, %v6311
      %v6599 = vpack.c.b16 %v6319, %v6312
      %v6600 = vpack.c.b16 %v6320, %v6313
      %v6601 = vpack.c.b16 %v6321, %v6314
      %v6602 = vpack.c.b16 %v6329, %v6322
      %v6603 = vpack.c.b16 %v6330, %v6323
      %v6604 = vpack.c.b16 %v6331, %v6324
      %v6605 = vpack.c.b16 %v6332, %v6325
      %v6606 = vpack.c.b16 %v6333, %v6326
      %v6607 = vpack.c.b16 %v6334, %v6327
      %v6608 = vpack.c.b16 %v6335, %v6328
      %v6609 = vpack.c.b16 %v6343, %v6336
      %v6610 = vpack.c.b16 %v6344, %v6337
      %v6611 = vpack.c.b16 %v6345, %v6338
      %v6612 = vpack.c.b16 %v6346, %v6339
      %v6613 = vpack.c.b16 %v6347, %v6340
      %v6614 = vpack.c.b16 %v6348, %v6341
      %v6615 = vpack.c.b16 %v6349, %v6342
      %v6616 = vpack.c.b16 %v6357, %v6350
      %v6617 = vpack.c.b16 %v6358, %v6351
      %v6618 = vpack.c.b16 %v6359, %v6352
      %v6619 = vpack.c.b16 %v6360, %v6353
      %v6620 = vpack.c.b16 %v6361, %v6354
      %v6621 = vpack.c.b16 %v6362, %v6355
      %v6622 = vpack.c.b16 %v6363, %v6356
      %v6623 = vpack.c.b16 %v6371, %v6364
      %v6624 = vpack.c.b16 %v6372, %v6365
      %v6625 = vpack.c.b16 %v6373, %v6366
      %v6626 = vpack.c.b16 %v6374, %v6367
      %v6627 = vpack.c.b16 %v6375, %v6368
      %v6628 = vpack.c.b16 %v6376, %v6369
      %v6629 = vpack.c.b16 %v6377, %v6370
      %v6630 = vpack.c.b16 %v6385, %v6378
      %v6631 = vpack.c.b16 %v6386, %v6379
      %v6632 = vpack.c.b16 %v6387, %v6380
      %v6633 = vpack.c.b16 %v6388, %v6381
      %v6634 = vpack.c.b16 %v6389, %v6382
      %v6635 = vpack.c.b16 %v6390, %v6383
      %v6636 = vpack.c.b16 %v6391, %v6384
      %v6637 = vpack.c.b16 %v6399, %v6392
      %v6638 = vpack.c.b16 %v6400, %v6393
      %v6639 = vpack.c.b16 %v6401, %v6394
      %v6640 = vpack.c.b16 %v6402, %v6395
      %v6641 = vpack.c.b16 %v6403, %v6396
      %v6642 = vpack.c.b16 %v6404, %v6397
      %v6643 = vpack.c.b16 %v6405, %v6398
      %v6644 = vpack.c.b16 %v6413, %v6406
      %v6645 = vpack.c.b16 %v6414, %v6407
      %v6646 = vpack.c.b16 %v6415, %v6408
      %v6647 = vpack.c.b16 %v6416, %v6409
      %v6648 = vpack.c.b16 %v6417, %v6410
      %v6649 = vpack.c.b16 %v6418, %v6411
      %v6650 = vpack.c.b16 %v6419, %v6412
      %v6651 = vpack.c.b16 %v6427, %v6420
      %v6652 = vpack.c.b16 %v6428, %v6421
      %v6653 = vpack.c.b16 %v6429, %v6422
      %v6654 = vpack.c.b16 %v6430, %v6423
      %v6655 = vpack.c.b16 %v6431, %v6424
      %v6656 = vpack.c.b16 %v6432, %v6425
      %v6657 = vpack.c.b16 %v6433, %v6426
      %v6658 = vpack.c.b16 %v6441, %v6434
      %v6659 = vpack.c.b16 %v6442, %v6435
      %v6660 = vpack.c.b16 %v6443, %v6436
      %v6661 = vpack.c.b16 %v6444, %v6437
      %v6662 = vpack.c.b16 %v6445, %v6438
      %v6663 = vpack.c.b16 %v6446, %v6439
      %v6664 = vpack.c.b16 %v6447, %v6440
      %v6665 = vpack.c.b16 %v6455, %v6448
      %v6666 = vpack.c.b16 %v6456, %v6449
      %v6667 = vpack.c.b16 %v6457, %v6450
      %v6668 = vpack.c.b16 %v6458, %v6451
      %v6669 = vpack.c.b16 %v6459, %v6452
      %v6670 = vpack.c.b16 %v6460, %v6453
      %v6671 = vpack.c.b16 %v6461, %v6454
      %v6672 = vpack.c.b16 %v6469, %v6462
      %v6673 = vpack.c.b16 %v6470, %v6463
      %v6674 = vpack.c.b16 %v6471, %v6464
      %v6675 = vpack.c.b16 %v6472, %v6465
      %v6676 = vpack.c.b16 %v6473, %v6466
      %v6677 = vpack.c.b16 %v6474, %v6467
      %v6678 = vpack.c.b16 %v6475, %v6468
      %v6679 = vpack.c.b16 %v6483, %v6476
      %v6680 = vpack.c.b16 %v6484, %v6477
      %v6681 = vpack.c.b16 %v6485, %v6478
      %v6682 = vpack.c.b16 %v6486, %v6479
      %v6683 = vpack.c.b16 %v6487, %v6480
      %v6684 = vpack.c.b16 %v6488, %v6481
      %v6685 = vpack.c.b16 %v6489, %v6482
      %v6686 = vpack.c.b16 %v6497, %v6490
      %v6687 = vpack.c.b16 %v6498, %v6491
      %v6688 = vpack.c.b16 %v6499, %v6492
      %v6689 = vpack.c.b16 %v6500, %v6493
      %v6690 = vpack.c.b16 %v6501, %v6494
      %v6691 = vpack.c.b16 %v6502, %v6495
      %v6692 = vpack.c.b16 %v6503, %v6496
      %v6693 = vpack.c.b16 %v6511, %v6504
      %v6694 = vpack.c.b16 %v6512, %v6505
      %v6695 = vpack.c.b16 %v6513, %v6506
      %v6696 = vpack.c.b16 %v6514, %v6507
      %v6697 = vpack.c.b16 %v6515, %v6508
      %v6698 = vpack.c.b16 %v6516, %v6509
      %v6699 = vpack.c.b16 %v6517, %v6510
      %v6700 = vpack.c.b16 %v6525, %v6518
      %v6701 = vpack.c.b16 %v6526, %v6519
      %v6702 = vpack.c.b16 %v6527, %v6520
      %v6703 = vpack.c.b16 %v6528, %v6521
      %v6704 = vpack.c.b16 %v6529, %v6522
      %v6705 = vpack.c.b16 %v6530, %v6523
      %v6706 = vpack.c.b16 %v6531, %v6524
      %v6883 = vsel %vm2318, %v5684, 0
      %v6886 = vsel %vm2318, %v5688, 0
      %v6889 = vsel %vm2318, %v5692, 0
      %v6892 = vsel %vm2318, %v5696, 0
      %v6895 = vsel %vm2318, %v5700, 0
      %v6898 = vsel %vm2318, %v5704, 0
      %v6901 = vsel %vm2318, %v5708, 0
      %v6904 = vsel %vm2318, %v5712, 0
      %v6907 = vsel %vm2318, %v5716, 0
      %v6910 = vsel %vm2318, %v5720, 0
      %v6913 = vsel %vm2318, %v5724, 0
      %v6916 = vsel %vm2318, %v5728, 0
      %v6919 = vsel %vm2318, %v5732, 0
      %v6922 = vsel %vm2318, %v5736, 0
      %v6925 = vsel %vm2318, %v5740, 0
      %v6928 = vsel %vm2318, %v5744, 0
      %6930 = vmatprep.subr.bf16.mxu0 %v6533
      %6931 = vmatpush1.bf16.msra.mxu0 %v6532
      %6932 = vmatprep.subr.bf16.mxu0 %v6540
      %6933 = vmatpush1.bf16.msra.mxu0 %v6539
      %6934 = vmatprep.subr.bf16.mxu0 %v6547
      %6935 = vmatpush1.bf16.msra.mxu0 %v6546
      %6936 = vmatprep.subr.bf16.mxu0 %v6554
      %6937 = vmatpush1.bf16.msra.mxu0 %v6553
      %6938 = vmatprep.subr.bf16.mxu0 %v6561
      %6939 = vmatpush1.bf16.msra.mxu0 %v6560
      %6940 = vmatprep.subr.bf16.mxu0 %v6568
      %6941 = vmatpush1.bf16.msra.mxu0 %v6567
      %6942 = vmatprep.subr.bf16.mxu0 %v6575
      %6943 = vmatpush1.bf16.msra.mxu0 %v6574
      %6944 = vmatprep.subr.bf16.mxu0 %v6582
      %6945 = vmatpush1.bf16.msra.mxu0 %v6581
      %6946 = vmatprep.subr.bf16.mxu0 %v6589
      %6947 = vmatpush1.bf16.msra.mxu0 %v6588
      %6948 = vmatprep.subr.bf16.mxu0 %v6596
      %6949 = vmatpush1.bf16.msra.mxu0 %v6595
      %6950 = vmatprep.subr.bf16.mxu0 %v6603
      %6951 = vmatpush1.bf16.msra.mxu0 %v6602
      %6952 = vmatprep.subr.bf16.mxu0 %v6610
      %6953 = vmatpush1.bf16.msra.mxu0 %v6609
      %6954 = vmatprep.subr.bf16.mxu0 %v6617
      %6955 = vmatpush1.bf16.msra.mxu0 %v6616
      %6956 = vmatprep.subr.bf16.mxu0 %v6624
      %6957 = vmatpush1.bf16.msra.mxu0 %v6623
      %6958 = vmatprep.subr.bf16.mxu0 %v6631
      %6959 = vmatpush1.bf16.msra.mxu0 %v6630
      %6960 = vmatprep.subr.bf16.mxu0 %v6638
      %6961 = vmatpush1.bf16.msra.mxu0 %v6637
      %6962 = vmatprep.mubr.bf16.mxu0 %v5682
      %6963 = vmatmul.mubr.bf16.gmra.mrb[0].mxu0 %v5681
      %v6964 = vpop.f32.mrb[0].mxu0
      %v6965 = vadd.f32 %v5950, %v6964
      %v6966 = vpop.f32.mrb[0].mxu0
      %v6967 = vadd.f32 %v5954, %v6966
      %v6968 = vpop.f32.mrb[0].mxu0
      %v6969 = vadd.f32 %v5950, %v6968
      %v6970 = vpop.f32.mrb[0].mxu0
      %v6971 = vadd.f32 %v5954, %v6970
      %6972 = vmatprep.mubr.bf16.mxu0 %v5686
      %6973 = vmatmul.mubr.bf16.gmra.mrb[0].mxu0 %v5685
      %v6974 = vpop.f32.mrb[0].mxu0
      %v6975 = vadd.f32 %v5950, %v6974
      %v6976 = vpop.f32.mrb[0].mxu0
      %v6977 = vadd.f32 %v5954, %v6976
      %v6978 = vpop.f32.mrb[0].mxu0
      %v6979 = vadd.f32 %v5950, %v6978
      %v6980 = vpop.f32.mrb[0].mxu0
      %v6981 = vadd.f32 %v5954, %v6980
      %6982 = vmatprep.mubr.bf16.mxu0 %v5690
      %6983 = vmatmul.mubr.bf16.gmra.mrb[0].mxu0 %v5689
      %v6984 = vpop.f32.mrb[0].mxu0
      %v6985 = vadd.f32 %v5950, %v6984
      %v6986 = vpop.f32.mrb[0].mxu0
      %v6987 = vadd.f32 %v5954, %v6986
      %v6988 = vpop.f32.mrb[0].mxu0
      %v6989 = vadd.f32 %v5950, %v6988
      %v6990 = vpop.f32.mrb[0].mxu0
      %v6991 = vadd.f32 %v5954, %v6990
      %6992 = vmatprep.mubr.bf16.mxu0 %v5694
      %6993 = vmatmul.mubr.bf16.gmra.mrb[0].mxu0 %v5693
      %v6994 = vpop.f32.mrb[0].mxu0
      %v6995 = vadd.f32 %v5950, %v6994
      %v6996 = vpop.f32.mrb[0].mxu0
      %v6997 = vadd.f32 %v5954, %v6996
      %v6998 = vpop.f32.mrb[0].mxu0
      %v6999 = vadd.f32 %v5950, %v6998
      %v7000 = vpop.f32.mrb[0].mxu0
      %v7001 = vadd.f32 %v5954, %v7000
      %7002 = vmatprep.mubr.bf16.mxu0 %v5698
      %7003 = vmatmul.mubr.bf16.gmra.mrb[0].mxu0 %v5697
      %v7004 = vpop.f32.mrb[0].mxu0
      %v7005 = vadd.f32 %v5950, %v7004
      %v7006 = vpop.f32.mrb[0].mxu0
      %v7007 = vadd.f32 %v5954, %v7006
      %v7008 = vpop.f32.mrb[0].mxu0
      %v7009 = vadd.f32 %v5950, %v7008
      %v7010 = vpop.f32.mrb[0].mxu0
      %v7011 = vadd.f32 %v5954, %v7010
      %7012 = vmatprep.mubr.bf16.mxu0 %v5702
      %7013 = vmatmul.mubr.bf16.gmra.mrb[0].mxu0 %v5701
      %v7014 = vpop.f32.mrb[0].mxu0
      %v7015 = vadd.f32 %v5950, %v7014
      %v7016 = vpop.f32.mrb[0].mxu0
      %v7017 = vadd.f32 %v5954, %v7016
      %v7018 = vpop.f32.mrb[0].mxu0
      %v7019 = vadd.f32 %v5950, %v7018
      %v7020 = vpop.f32.mrb[0].mxu0
      %v7021 = vadd.f32 %v5954, %v7020
      %7022 = vmatprep.mubr.bf16.mxu0 %v5706
      %7023 = vmatmul.mubr.bf16.gmra.mrb[0].mxu0 %v5705
      %v7024 = vpop.f32.mrb[0].mxu0
      %v7025 = vadd.f32 %v5950, %v7024
      %v7026 = vpop.f32.mrb[0].mxu0
      %v7027 = vadd.f32 %v5954, %v7026
      %v7028 = vpop.f32.mrb[0].mxu0
      %v7029 = vadd.f32 %v5950, %v7028
      %v7030 = vpop.f32.mrb[0].mxu0
      %v7031 = vadd.f32 %v5954, %v7030
      %7032 = vmatprep.mubr.bf16.mxu0 %v5710
      %7033 = vmatmul.mubr.bf16.gmra.mrb[0].mxu0 %v5709
      %v7034 = vpop.f32.mrb[0].mxu0
      %v7035 = vadd.f32 %v5950, %v7034
      %v7036 = vpop.f32.mrb[0].mxu0
      %v7037 = vadd.f32 %v5954, %v7036
      %v7038 = vpop.f32.mrb[0].mxu0
      %v7039 = vadd.f32 %v5950, %v7038
      %v7040 = vpop.f32.mrb[0].mxu0
      %v7041 = vadd.f32 %v5954, %v7040
      %7042 = vmatprep.mubr.bf16.mxu0 %v5714
      %7043 = vmatmul.mubr.bf16.gmra.mrb[0].mxu0 %v5713
      %v7044 = vpop.f32.mrb[0].mxu0
      %v7045 = vadd.f32 %v5950, %v7044
      %v7046 = vpop.f32.mrb[0].mxu0
      %v7047 = vadd.f32 %v5954, %v7046
      %v7048 = vpop.f32.mrb[0].mxu0
      %v7049 = vadd.f32 %v5950, %v7048
      %v7050 = vpop.f32.mrb[0].mxu0
      %v7051 = vadd.f32 %v5954, %v7050
      %7052 = vmatprep.mubr.bf16.mxu0 %v5718
      %7053 = vmatmul.mubr.bf16.gmra.mrb[0].mxu0 %v5717
      %v7054 = vpop.f32.mrb[0].mxu0
      %v7055 = vadd.f32 %v5950, %v7054
      %v7056 = vpop.f32.mrb[0].mxu0
      %v7057 = vadd.f32 %v5954, %v7056
      %v7058 = vpop.f32.mrb[0].mxu0
      %v7059 = vadd.f32 %v5950, %v7058
      %v7060 = vpop.f32.mrb[0].mxu0
      %v7061 = vadd.f32 %v5954, %v7060
      %7062 = vmatprep.mubr.bf16.mxu0 %v5722
      %7063 = vmatmul.mubr.bf16.gmra.mrb[0].mxu0 %v5721
      %v7064 = vpop.f32.mrb[0].mxu0
      %v7065 = vadd.f32 %v5950, %v7064
      %v7066 = vpop.f32.mrb[0].mxu0
      %v7067 = vadd.f32 %v5954, %v7066
      %v7068 = vpop.f32.mrb[0].mxu0
      %v7069 = vadd.f32 %v5950, %v7068
      %v7070 = vpop.f32.mrb[0].mxu0
      %v7071 = vadd.f32 %v5954, %v7070
      %7072 = vmatprep.mubr.bf16.mxu0 %v5726
      %7073 = vmatmul.mubr.bf16.gmra.mrb[0].mxu0 %v5725
      %v7074 = vpop.f32.mrb[0].mxu0
      %v7075 = vadd.f32 %v5950, %v7074
      %v7076 = vpop.f32.mrb[0].mxu0
      %v7077 = vadd.f32 %v5954, %v7076
      %v7078 = vpop.f32.mrb[0].mxu0
      %v7079 = vadd.f32 %v5950, %v7078
      %v7080 = vpop.f32.mrb[0].mxu0
      %v7081 = vadd.f32 %v5954, %v7080
      %7082 = vmatprep.mubr.bf16.mxu0 %v5730
      %7083 = vmatmul.mubr.bf16.gmra.mrb[0].mxu0 %v5729
      %v7084 = vpop.f32.mrb[0].mxu0
      %v7085 = vadd.f32 %v5950, %v7084
      %v7086 = vpop.f32.mrb[0].mxu0
      %v7087 = vadd.f32 %v5954, %v7086
      %v7088 = vpop.f32.mrb[0].mxu0
      %v7089 = vadd.f32 %v5950, %v7088
      %v7090 = vpop.f32.mrb[0].mxu0
      %v7091 = vadd.f32 %v5954, %v7090
      %7092 = vmatprep.mubr.bf16.mxu0 %v5734
      %7093 = vmatmul.mubr.bf16.gmra.mrb[0].mxu0 %v5733
      %v7094 = vpop.f32.mrb[0].mxu0
      %v7095 = vadd.f32 %v5950, %v7094
      %v7096 = vpop.f32.mrb[0].mxu0
      %v7097 = vadd.f32 %v5954, %v7096
      %v7098 = vpop.f32.mrb[0].mxu0
      %v7099 = vadd.f32 %v5950, %v7098
      %v7100 = vpop.f32.mrb[0].mxu0
      %v7101 = vadd.f32 %v5954, %v7100
      %7102 = vmatprep.mubr.bf16.mxu0 %v5738
      %7103 = vmatmul.mubr.bf16.gmra.mrb[0].mxu0 %v5737
      %v7104 = vpop.f32.mrb[0].mxu0
      %v7105 = vadd.f32 %v5950, %v7104
      %v7106 = vpop.f32.mrb[0].mxu0
      %v7107 = vadd.f32 %v5954, %v7106
      %v7108 = vpop.f32.mrb[0].mxu0
      %v7109 = vadd.f32 %v5950, %v7108
      %v7110 = vpop.f32.mrb[0].mxu0
      %v7111 = vadd.f32 %v5954, %v7110
      %7112 = vmatprep.mubr.bf16.mxu0 %v5742
      %7113 = vmatmul.mubr.bf16.gmra.mrb[0].mxu0 %v5741
      %v7114 = vpop.f32.mrb[0].mxu0
      %v7115 = vadd.f32 %v5950, %v7114
      %v7116 = vpop.f32.mrb[0].mxu0
      %v7117 = vadd.f32 %v5954, %v7116
      %v7118 = vpop.f32.mrb[0].mxu0
      %v7119 = vadd.f32 %v5950, %v7118
      %v7120 = vpop.f32.mrb[0].mxu0
      %v7121 = vadd.f32 %v5954, %v7120
      %7122 = vdwg.mxu0
      %7123 = vmatprep.subr.bf16.mxu0 %v6645
      %7124 = vmatpush1.bf16.msra.mxu0 %v6644
      %7125 = vmatprep.subr.bf16.mxu0 %v6652
      %7126 = vmatpush1.bf16.msra.mxu0 %v6651
      %7127 = vmatprep.subr.bf16.mxu0 %v6659
      %7128 = vmatpush1.bf16.msra.mxu0 %v6658
      %7129 = vmatprep.subr.bf16.mxu0 %v6666
      %7130 = vmatpush1.bf16.msra.mxu0 %v6665
      %7131 = vmatprep.subr.bf16.mxu0 %v6673
      %7132 = vmatpush1.bf16.msra.mxu0 %v6672
      %7133 = vmatprep.subr.bf16.mxu0 %v6680
      %7134 = vmatpush1.bf16.msra.mxu0 %v6679
      %7135 = vmatprep.subr.bf16.mxu0 %v6687
      %7136 = vmatpush1.bf16.msra.mxu0 %v6686
      %7137 = vmatprep.subr.bf16.mxu0 %v6694
      %7138 = vmatpush1.bf16.msra.mxu0 %v6693
      %7139 = vmatprep.subr.bf16.mxu0 %v6701
      %7140 = vmatpush1.bf16.msra.mxu0 %v6700
      %7141 = vmatprep.subr.bf16.mxu0 0
      %7142 = vmatpush1.bf16.msra.mxu0 0
      %7143 = vmatprep.subr.bf16.mxu0 0
      %7144 = vmatpush1.bf16.msra.mxu0 0
      %7145 = vmatprep.subr.bf16.mxu0 0
      %7146 = vmatpush1.bf16.msra.mxu0 0
      %7147 = vmatprep.subr.bf16.mxu0 0
      %7148 = vmatpush1.bf16.msra.mxu0 0
      %7149 = vmatprep.subr.bf16.mxu0 0
      %7150 = vmatpush1.bf16.msra.mxu0 0
      %7151 = vmatprep.subr.bf16.mxu0 0
      %7152 = vmatpush1.bf16.msra.mxu0 0
      %7153 = vmatprep.subr.bf16.mxu0 0
      %7154 = vmatpush1.bf16.msra.mxu0 0
      %7155 = vmatprep.mubr.bf16.mxu0 %v6883
      %7156 = vmatmul.mubr.bf16.gmra.mrb[0].mxu0 %v5683
      %v7157 = vpop.f32.mrb[0].mxu0
      %v7158 = vadd.f32 %v6965, %v7157
      %v7159 = vpop.f32.mrb[0].mxu0
      %v7160 = vadd.f32 %v6967, %v7159
      %v7161 = vpop.f32.mrb[0].mxu0
      %v7162 = vadd.f32 %v6969, %v7161
      %v7163 = vpop.f32.mrb[0].mxu0
      %v7164 = vadd.f32 %v6971, %v7163
      %7165 = vmatprep.mubr.bf16.mxu0 %v6886
      %7166 = vmatmul.mubr.bf16.gmra.mrb[0].mxu0 %v5687
      %v7167 = vpop.f32.mrb[0].mxu0
      %v7168 = vadd.f32 %v6975, %v7167
      %v7169 = vpop.f32.mrb[0].mxu0
      %v7170 = vadd.f32 %v6977, %v7169
      %v7171 = vpop.f32.mrb[0].mxu0
      %v7172 = vadd.f32 %v6979, %v7171
      %v7173 = vpop.f32.mrb[0].mxu0
      %v7174 = vadd.f32 %v6981, %v7173
      %7175 = vmatprep.mubr.bf16.mxu0 %v6889
      %7176 = vmatmul.mubr.bf16.gmra.mrb[0].mxu0 %v5691
      %v7177 = vpop.f32.mrb[0].mxu0
      %v7178 = vadd.f32 %v6985, %v7177
      %v7179 = vpop.f32.mrb[0].mxu0
      %v7180 = vadd.f32 %v6987, %v7179
      %v7181 = vpop.f32.mrb[0].mxu0
      %v7182 = vadd.f32 %v6989, %v7181
      %v7183 = vpop.f32.mrb[0].mxu0
      %v7184 = vadd.f32 %v6991, %v7183
      %7185 = vmatprep.mubr.bf16.mxu0 %v6892
      %7186 = vmatmul.mubr.bf16.gmra.mrb[0].mxu0 %v5695
      %v7187 = vpop.f32.mrb[0].mxu0
      %v7188 = vadd.f32 %v6995, %v7187
      %v7189 = vpop.f32.mrb[0].mxu0
      %v7190 = vadd.f32 %v6997, %v7189
      %v7191 = vpop.f32.mrb[0].mxu0
      %v7192 = vadd.f32 %v6999, %v7191
      %v7193 = vpop.f32.mrb[0].mxu0
      %v7194 = vadd.f32 %v7001, %v7193
      %7195 = vmatprep.mubr.bf16.mxu0 %v6895
      %7196 = vmatmul.mubr.bf16.gmra.mrb[0].mxu0 %v5699
      %v7197 = vpop.f32.mrb[0].mxu0
      %v7198 = vadd.f32 %v7005, %v7197
      %v7199 = vpop.f32.mrb[0].mxu0
      %v7200 = vadd.f32 %v7007, %v7199
      %v7201 = vpop.f32.mrb[0].mxu0
      %v7202 = vadd.f32 %v7009, %v7201
      %v7203 = vpop.f32.mrb[0].mxu0
      %v7204 = vadd.f32 %v7011, %v7203
      %7205 = vmatprep.mubr.bf16.mxu0 %v6898
      %7206 = vmatmul.mubr.bf16.gmra.mrb[0].mxu0 %v5703
      %v7207 = vpop.f32.mrb[0].mxu0
      %v7208 = vadd.f32 %v7015, %v7207
      %v7209 = vpop.f32.mrb[0].mxu0
      %v7210 = vadd.f32 %v7017, %v7209
      %v7211 = vpop.f32.mrb[0].mxu0
      %v7212 = vadd.f32 %v7019, %v7211
      %v7213 = vpop.f32.mrb[0].mxu0
      %v7214 = vadd.f32 %v7021, %v7213
      %7215 = vmatprep.mubr.bf16.mxu0 %v6901
      %7216 = vmatmul.mubr.bf16.gmra.mrb[0].mxu0 %v5707
      %v7217 = vpop.f32.mrb[0].mxu0
      %v7218 = vadd.f32 %v7025, %v7217
      %v7219 = vpop.f32.mrb[0].mxu0
      %v7220 = vadd.f32 %v7027, %v7219
      %v7221 = vpop.f32.mrb[0].mxu0
      %v7222 = vadd.f32 %v7029, %v7221
      %v7223 = vpop.f32.mrb[0].mxu0
      %v7224 = vadd.f32 %v7031, %v7223
      %7225 = vmatprep.mubr.bf16.mxu0 %v6904
      %7226 = vmatmul.mubr.bf16.gmra.mrb[0].mxu0 %v5711
      %v7227 = vpop.f32.mrb[0].mxu0
      %v7228 = vadd.f32 %v7035, %v7227
      %v7229 = vpop.f32.mrb[0].mxu0
      %v7230 = vadd.f32 %v7037, %v7229
      %v7231 = vpop.f32.mrb[0].mxu0
      %v7232 = vadd.f32 %v7039, %v7231
      %v7233 = vpop.f32.mrb[0].mxu0
      %v7234 = vadd.f32 %v7041, %v7233
      %7235 = vmatprep.mubr.bf16.mxu0 %v6907
      %7236 = vmatmul.mubr.bf16.gmra.mrb[0].mxu0 %v5715
      %v7237 = vpop.f32.mrb[0].mxu0
      %v7238 = vadd.f32 %v7045, %v7237
      %v7239 = vpop.f32.mrb[0].mxu0
      %v7240 = vadd.f32 %v7047, %v7239
      %v7241 = vpop.f32.mrb[0].mxu0
      %v7242 = vadd.f32 %v7049, %v7241
      %v7243 = vpop.f32.mrb[0].mxu0
      %v7244 = vadd.f32 %v7051, %v7243
      %7245 = vmatprep.mubr.bf16.mxu0 %v6910
      %7246 = vmatmul.mubr.bf16.gmra.mrb[0].mxu0 %v5719
      %v7247 = vpop.f32.mrb[0].mxu0
      %v7248 = vadd.f32 %v7055, %v7247
      %v7249 = vpop.f32.mrb[0].mxu0
      %v7250 = vadd.f32 %v7057, %v7249
      %v7251 = vpop.f32.mrb[0].mxu0
      %v7252 = vadd.f32 %v7059, %v7251
      %v7253 = vpop.f32.mrb[0].mxu0
      %v7254 = vadd.f32 %v7061, %v7253
      %7255 = vmatprep.mubr.bf16.mxu0 %v6913
      %7256 = vmatmul.mubr.bf16.gmra.mrb[0].mxu0 %v5723
      %v7257 = vpop.f32.mrb[0].mxu0
      %v7258 = vadd.f32 %v7065, %v7257
      %v7259 = vpop.f32.mrb[0].mxu0
      %v7260 = vadd.f32 %v7067, %v7259
      %v7261 = vpop.f32.mrb[0].mxu0
      %v7262 = vadd.f32 %v7069, %v7261
      %v7263 = vpop.f32.mrb[0].mxu0
      %v7264 = vadd.f32 %v7071, %v7263
      %7265 = vmatprep.mubr.bf16.mxu0 %v6916
      %7266 = vmatmul.mubr.bf16.gmra.mrb[0].mxu0 %v5727
      %v7267 = vpop.f32.mrb[0].mxu0
      %v7268 = vadd.f32 %v7075, %v7267
      %v7269 = vpop.f32.mrb[0].mxu0
      %v7270 = vadd.f32 %v7077, %v7269
      %v7271 = vpop.f32.mrb[0].mxu0
      %v7272 = vadd.f32 %v7079, %v7271
      %v7273 = vpop.f32.mrb[0].mxu0
      %v7274 = vadd.f32 %v7081, %v7273
      %7275 = vmatprep.mubr.bf16.mxu0 %v6919
      %7276 = vmatmul.mubr.bf16.gmra.mrb[0].mxu0 %v5731
      %v7277 = vpop.f32.mrb[0].mxu0
      %v7278 = vadd.f32 %v7085, %v7277
      %v7279 = vpop.f32.mrb[0].mxu0
      %v7280 = vadd.f32 %v7087, %v7279
      %v7281 = vpop.f32.mrb[0].mxu0
      %v7282 = vadd.f32 %v7089, %v7281
      %v7283 = vpop.f32.mrb[0].mxu0
      %v7284 = vadd.f32 %v7091, %v7283
      %7285 = vmatprep.mubr.bf16.mxu0 %v6922
      %7286 = vmatmul.mubr.bf16.gmra.mrb[0].mxu0 %v5735
      %v7287 = vpop.f32.mrb[0].mxu0
      %v7288 = vadd.f32 %v7095, %v7287
      %v7289 = vpop.f32.mrb[0].mxu0
      %v7290 = vadd.f32 %v7097, %v7289
      %v7291 = vpop.f32.mrb[0].mxu0
      %v7292 = vadd.f32 %v7099, %v7291
      %v7293 = vpop.f32.mrb[0].mxu0
      %v7294 = vadd.f32 %v7101, %v7293
      %7295 = vmatprep.mubr.bf16.mxu0 %v6925
      %7296 = vmatmul.mubr.bf16.gmra.mrb[0].mxu0 %v5739
      %v7297 = vpop.f32.mrb[0].mxu0
      %v7298 = vadd.f32 %v7105, %v7297
      %v7299 = vpop.f32.mrb[0].mxu0
      %v7300 = vadd.f32 %v7107, %v7299
      %v7301 = vpop.f32.mrb[0].mxu0
      %v7302 = vadd.f32 %v7109, %v7301
      %v7303 = vpop.f32.mrb[0].mxu0
      %v7304 = vadd.f32 %v7111, %v7303
      %7305 = vmatprep.mubr.bf16.mxu0 %v6928
      %7306 = vmatmul.mubr.bf16.gmra.mrb[0].mxu0 %v5743
      %v7307 = vpop.f32.mrb[0].mxu0
      %v7308 = vadd.f32 %v7115, %v7307
      %v7309 = vpop.f32.mrb[0].mxu0
      %v7310 = vadd.f32 %v7117, %v7309
      %v7311 = vpop.f32.mrb[0].mxu0
      %v7312 = vadd.f32 %v7119, %v7311
      %v7313 = vpop.f32.mrb[0].mxu0
      %v7314 = vadd.f32 %v7121, %v7313
      %7315 = vdwg.mxu0
      %7316 = vmatprep.subr.bf16.mxu0 %v6535
      %7317 = vmatpush1.bf16.msra.mxu0 %v6534
      %7318 = vmatprep.subr.bf16.mxu0 %v6542
      %7319 = vmatpush1.bf16.msra.mxu0 %v6541
      %7320 = vmatprep.subr.bf16.mxu0 %v6549
      %7321 = vmatpush1.bf16.msra.mxu0 %v6548
      %7322 = vmatprep.subr.bf16.mxu0 %v6556
      %7323 = vmatpush1.bf16.msra.mxu0 %v6555
      %7324 = vmatprep.subr.bf16.mxu0 %v6563
      %7325 = vmatpush1.bf16.msra.mxu0 %v6562
      %7326 = vmatprep.subr.bf16.mxu0 %v6570
      %7327 = vmatpush1.bf16.msra.mxu0 %v6569
      %7328 = vmatprep.subr.bf16.mxu0 %v6577
      %7329 = vmatpush1.bf16.msra.mxu0 %v6576
      %7330 = vmatprep.subr.bf16.mxu0 %v6584
      %7331 = vmatpush1.bf16.msra.mxu0 %v6583
      %7332 = vmatprep.subr.bf16.mxu0 %v6591
      %7333 = vmatpush1.bf16.msra.mxu0 %v6590
      %7334 = vmatprep.subr.bf16.mxu0 %v6598
      %7335 = vmatpush1.bf16.msra.mxu0 %v6597
      %7336 = vmatprep.subr.bf16.mxu0 %v6605
      %7337 = vmatpush1.bf16.msra.mxu0 %v6604
      %7338 = vmatprep.subr.bf16.mxu0 %v6612
      %7339 = vmatpush1.bf16.msra.mxu0 %v6611
      %7340 = vmatprep.subr.bf16.mxu0 %v6619
      %7341 = vmatpush1.bf16.msra.mxu0 %v6618
      %7342 = vmatprep.subr.bf16.mxu0 %v6626
      %7343 = vmatpush1.bf16.msra.mxu0 %v6625
      %7344 = vmatprep.subr.bf16.mxu0 %v6633
      %7345 = vmatpush1.bf16.msra.mxu0 %v6632
      %7346 = vmatprep.subr.bf16.mxu0 %v6640
      %7347 = vmatpush1.bf16.msra.mxu0 %v6639
      %7348 = vmatprep.mubr.bf16.mxu0 %v5682
      %7349 = vmatmul.mubr.bf16.gmra.mrb[0].mxu0 %v5681
      %v7350 = vpop.f32.mrb[0].mxu0
      %v7351 = vadd.f32 %v5958, %v7350
      %v7352 = vpop.f32.mrb[0].mxu0
      %v7353 = vadd.f32 %v5962, %v7352
      %v7354 = vpop.f32.mrb[0].mxu0
      %v7355 = vadd.f32 %v5958, %v7354
      %v7356 = vpop.f32.mrb[0].mxu0
      %v7357 = vadd.f32 %v5962, %v7356
      %7358 = vmatprep.mubr.bf16.mxu0 %v5686
      %7359 = vmatmul.mubr.bf16.gmra.mrb[0].mxu0 %v5685
      %v7360 = vpop.f32.mrb[0].mxu0
      %v7361 = vadd.f32 %v5958, %v7360
      %v7362 = vpop.f32.mrb[0].mxu0
      %v7363 = vadd.f32 %v5962, %v7362
      %v7364 = vpop.f32.mrb[0].mxu0
      %v7365 = vadd.f32 %v5958, %v7364
      %v7366 = vpop.f32.mrb[0].mxu0
      %v7367 = vadd.f32 %v5962, %v7366
      %7368 = vmatprep.mubr.bf16.mxu0 %v5690
      %7369 = vmatmul.mubr.bf16.gmra.mrb[0].mxu0 %v5689
      %v7370 = vpop.f32.mrb[0].mxu0
      %v7371 = vadd.f32 %v5958, %v7370
      %v7372 = vpop.f32.mrb[0].mxu0
      %v7373 = vadd.f32 %v5962, %v7372
      %v7374 = vpop.f32.mrb[0].mxu0
      %v7375 = vadd.f32 %v5958, %v7374
      %v7376 = vpop.f32.mrb[0].mxu0
      %v7377 = vadd.f32 %v5962, %v7376
      %7378 = vmatprep.mubr.bf16.mxu0 %v5694
      %7379 = vmatmul.mubr.bf16.gmra.mrb[0].mxu0 %v5693
      %v7380 = vpop.f32.mrb[0].mxu0
      %v7381 = vadd.f32 %v5958, %v7380
      %v7382 = vpop.f32.mrb[0].mxu0
      %v7383 = vadd.f32 %v5962, %v7382
      %v7384 = vpop.f32.mrb[0].mxu0
      %v7385 = vadd.f32 %v5958, %v7384
      %v7386 = vpop.f32.mrb[0].mxu0
      %v7387 = vadd.f32 %v5962, %v7386
      %7388 = vmatprep.mubr.bf16.mxu0 %v5698
      %7389 = vmatmul.mubr.bf16.gmra.mrb[0].mxu0 %v5697
      %v7390 = vpop.f32.mrb[0].mxu0
      %v7391 = vadd.f32 %v5958, %v7390
      %v7392 = vpop.f32.mrb[0].mxu0
      %v7393 = vadd.f32 %v5962, %v7392
      %v7394 = vpop.f32.mrb[0].mxu0
      %v7395 = vadd.f32 %v5958, %v7394
      %v7396 = vpop.f32.mrb[0].mxu0
      %v7397 = vadd.f32 %v5962, %v7396
      %7398 = vmatprep.mubr.bf16.mxu0 %v5702
      %7399 = vmatmul.mubr.bf16.gmra.mrb[0].mxu0 %v5701
      %v7400 = vpop.f32.mrb[0].mxu0
      %v7401 = vadd.f32 %v5958, %v7400
      %v7402 = vpop.f32.mrb[0].mxu0
      %v7403 = vadd.f32 %v5962, %v7402
      %v7404 = vpop.f32.mrb[0].mxu0
      %v7405 = vadd.f32 %v5958, %v7404
      %v7406 = vpop.f32.mrb[0].mxu0
      %v7407 = vadd.f32 %v5962, %v7406
      %7408 = vmatprep.mubr.bf16.mxu0 %v5706
      %7409 = vmatmul.mubr.bf16.gmra.mrb[0].mxu0 %v5705
      %v7410 = vpop.f32.mrb[0].mxu0
      %v7411 = vadd.f32 %v5958, %v7410
      %v7412 = vpop.f32.mrb[0].mxu0
      %v7413 = vadd.f32 %v5962, %v7412
      %v7414 = vpop.f32.mrb[0].mxu0
      %v7415 = vadd.f32 %v5958, %v7414
      %v7416 = vpop.f32.mrb[0].mxu0
      %v7417 = vadd.f32 %v5962, %v7416
      %7418 = vmatprep.mubr.bf16.mxu0 %v5710
      %7419 = vmatmul.mubr.bf16.gmra.mrb[0].mxu0 %v5709
      %v7420 = vpop.f32.mrb[0].mxu0
      %v7421 = vadd.f32 %v5958, %v7420
      %v7422 = vpop.f32.mrb[0].mxu0
      %v7423 = vadd.f32 %v5962, %v7422
      %v7424 = vpop.f32.mrb[0].mxu0
      %v7425 = vadd.f32 %v5958, %v7424
      %v7426 = vpop.f32.mrb[0].mxu0
      %v7427 = vadd.f32 %v5962, %v7426
      %7428 = vmatprep.mubr.bf16.mxu0 %v5714
      %7429 = vmatmul.mubr.bf16.gmra.mrb[0].mxu0 %v5713
      %v7430 = vpop.f32.mrb[0].mxu0
      %v7431 = vadd.f32 %v5958, %v7430
      %v7432 = vpop.f32.mrb[0].mxu0
      %v7433 = vadd.f32 %v5962, %v7432
      %v7434 = vpop.f32.mrb[0].mxu0
      %v7435 = vadd.f32 %v5958, %v7434
      %v7436 = vpop.f32.mrb[0].mxu0
      %v7437 = vadd.f32 %v5962, %v7436
      %7438 = vmatprep.mubr.bf16.mxu0 %v5718
      %7439 = vmatmul.mubr.bf16.gmra.mrb[0].mxu0 %v5717
      %v7440 = vpop.f32.mrb[0].mxu0
      %v7441 = vadd.f32 %v5958, %v7440
      %v7442 = vpop.f32.mrb[0].mxu0
      %v7443 = vadd.f32 %v5962, %v7442
      %v7444 = vpop.f32.mrb[0].mxu0
      %v7445 = vadd.f32 %v5958, %v7444
      %v7446 = vpop.f32.mrb[0].mxu0
      %v7447 = vadd.f32 %v5962, %v7446
      %7448 = vmatprep.mubr.bf16.mxu0 %v5722
      %7449 = vmatmul.mubr.bf16.gmra.mrb[0].mxu0 %v5721
      %v7450 = vpop.f32.mrb[0].mxu0
      %v7451 = vadd.f32 %v5958, %v7450
      %v7452 = vpop.f32.mrb[0].mxu0
      %v7453 = vadd.f32 %v5962, %v7452
      %v7454 = vpop.f32.mrb[0].mxu0
      %v7455 = vadd.f32 %v5958, %v7454
      %v7456 = vpop.f32.mrb[0].mxu0
      %v7457 = vadd.f32 %v5962, %v7456
      %7458 = vmatprep.mubr.bf16.mxu0 %v5726
      %7459 = vmatmul.mubr.bf16.gmra.mrb[0].mxu0 %v5725
      %v7460 = vpop.f32.mrb[0].mxu0
      %v7461 = vadd.f32 %v5958, %v7460
      %v7462 = vpop.f32.mrb[0].mxu0
      %v7463 = vadd.f32 %v5962, %v7462
      %v7464 = vpop.f32.mrb[0].mxu0
      %v7465 = vadd.f32 %v5958, %v7464
      %v7466 = vpop.f32.mrb[0].mxu0
      %v7467 = vadd.f32 %v5962, %v7466
      %7468 = vmatprep.mubr.bf16.mxu0 %v5730
      %7469 = vmatmul.mubr.bf16.gmra.mrb[0].mxu0 %v5729
      %v7470 = vpop.f32.mrb[0].mxu0
      %v7471 = vadd.f32 %v5958, %v7470
      %v7472 = vpop.f32.mrb[0].mxu0
      %v7473 = vadd.f32 %v5962, %v7472
      %v7474 = vpop.f32.mrb[0].mxu0
      %v7475 = vadd.f32 %v5958, %v7474
      %v7476 = vpop.f32.mrb[0].mxu0
      %v7477 = vadd.f32 %v5962, %v7476
      %7478 = vmatprep.mubr.bf16.mxu0 %v5734
      %7479 = vmatmul.mubr.bf16.gmra.mrb[0].mxu0 %v5733
      %v7480 = vpop.f32.mrb[0].mxu0
      %v7481 = vadd.f32 %v5958, %v7480
      %v7482 = vpop.f32.mrb[0].mxu0
      %v7483 = vadd.f32 %v5962, %v7482
      %v7484 = vpop.f32.mrb[0].mxu0
      %v7485 = vadd.f32 %v5958, %v7484
      %v7486 = vpop.f32.mrb[0].mxu0
      %v7487 = vadd.f32 %v5962, %v7486
      %7488 = vmatprep.mubr.bf16.mxu0 %v5738
      %7489 = vmatmul.mubr.bf16.gmra.mrb[0].mxu0 %v5737
      %v7490 = vpop.f32.mrb[0].mxu0
      %v7491 = vadd.f32 %v5958, %v7490
      %v7492 = vpop.f32.mrb[0].mxu0
      %v7493 = vadd.f32 %v5962, %v7492
      %v7494 = vpop.f32.mrb[0].mxu0
      %v7495 = vadd.f32 %v5958, %v7494
      %v7496 = vpop.f32.mrb[0].mxu0
      %v7497 = vadd.f32 %v5962, %v7496
      %7498 = vmatprep.mubr.bf16.mxu0 %v5742
      %7499 = vmatmul.mubr.bf16.gmra.mrb[0].mxu0 %v5741
      %v7500 = vpop.f32.mrb[0].mxu0
      %v7501 = vadd.f32 %v5958, %v7500
      %v7502 = vpop.f32.mrb[0].mxu0
      %v7503 = vadd.f32 %v5962, %v7502
      %v7504 = vpop.f32.mrb[0].mxu0
      %v7505 = vadd.f32 %v5958, %v7504
      %v7506 = vpop.f32.mrb[0].mxu0
      %v7507 = vadd.f32 %v5962, %v7506
      %7508 = vdwg.mxu0
      %7509 = vmatprep.subr.bf16.mxu0 %v6647
      %7510 = vmatpush1.bf16.msra.mxu0 %v6646
      %7511 = vmatprep.subr.bf16.mxu0 %v6654
      %7512 = vmatpush1.bf16.msra.mxu0 %v6653
      %7513 = vmatprep.subr.bf16.mxu0 %v6661
      %7514 = vmatpush1.bf16.msra.mxu0 %v6660
      %7515 = vmatprep.subr.bf16.mxu0 %v6668
      %7516 = vmatpush1.bf16.msra.mxu0 %v6667
      %7517 = vmatprep.subr.bf16.mxu0 %v6675
      %7518 = vmatpush1.bf16.msra.mxu0 %v6674
      %7519 = vmatprep.subr.bf16.mxu0 %v6682
      %7520 = vmatpush1.bf16.msra.mxu0 %v6681
      %7521 = vmatprep.subr.bf16.mxu0 %v6689
      %7522 = vmatpush1.bf16.msra.mxu0 %v6688
      %7523 = vmatprep.subr.bf16.mxu0 %v6696
      %7524 = vmatpush1.bf16.msra.mxu0 %v6695
      %7525 = vmatprep.subr.bf16.mxu0 %v6703
      %7526 = vmatpush1.bf16.msra.mxu0 %v6702
      %7527 = vmatprep.subr.bf16.mxu0 0
      %7528 = vmatpush1.bf16.msra.mxu0 0
      %7529 = vmatprep.subr.bf16.mxu0 0
      %7530 = vmatpush1.bf16.msra.mxu0 0
      %7531 = vmatprep.subr.bf16.mxu0 0
      %7532 = vmatpush1.bf16.msra.mxu0 0
      %7533 = vmatprep.subr.bf16.mxu0 0
      %7534 = vmatpush1.bf16.msra.mxu0 0
      %7535 = vmatprep.subr.bf16.mxu0 0
      %7536 = vmatpush1.bf16.msra.mxu0 0
      %7537 = vmatprep.subr.bf16.mxu0 0
      %7538 = vmatpush1.bf16.msra.mxu0 0
      %7539 = vmatprep.subr.bf16.mxu0 0
      %7540 = vmatpush1.bf16.msra.mxu0 0
      %7541 = vmatprep.mubr.bf16.mxu0 %v6883
      %7542 = vmatmul.mubr.bf16.gmra.mrb[0].mxu0 %v5683
      %v7543 = vpop.f32.mrb[0].mxu0
      %v7544 = vadd.f32 %v7351, %v7543
      %v7545 = vpop.f32.mrb[0].mxu0
      %v7546 = vadd.f32 %v7353, %v7545
      %v7547 = vpop.f32.mrb[0].mxu0
      %v7548 = vadd.f32 %v7355, %v7547
      %v7549 = vpop.f32.mrb[0].mxu0
      %v7550 = vadd.f32 %v7357, %v7549
      %7551 = vmatprep.mubr.bf16.mxu0 %v6886
      %7552 = vmatmul.mubr.bf16.gmra.mrb[0].mxu0 %v5687
      %v7553 = vpop.f32.mrb[0].mxu0
      %v7554 = vadd.f32 %v7361, %v7553
      %v7555 = vpop.f32.mrb[0].mxu0
      %v7556 = vadd.f32 %v7363, %v7555
      %v7557 = vpop.f32.mrb[0].mxu0
      %v7558 = vadd.f32 %v7365, %v7557
      %v7559 = vpop.f32.mrb[0].mxu0
      %v7560 = vadd.f32 %v7367, %v7559
      %7561 = vmatprep.mubr.bf16.mxu0 %v6889
      %7562 = vmatmul.mubr.bf16.gmra.mrb[0].mxu0 %v5691
      %v7563 = vpop.f32.mrb[0].mxu0
      %v7564 = vadd.f32 %v7371, %v7563
      %v7565 = vpop.f32.mrb[0].mxu0
      %v7566 = vadd.f32 %v7373, %v7565
      %v7567 = vpop.f32.mrb[0].mxu0
      %v7568 = vadd.f32 %v7375, %v7567
      %v7569 = vpop.f32.mrb[0].mxu0
      %v7570 = vadd.f32 %v7377, %v7569
      %7571 = vmatprep.mubr.bf16.mxu0 %v6892
      %7572 = vmatmul.mubr.bf16.gmra.mrb[0].mxu0 %v5695
      %v7573 = vpop.f32.mrb[0].mxu0
      %v7574 = vadd.f32 %v7381, %v7573
      %v7575 = vpop.f32.mrb[0].mxu0
      %v7576 = vadd.f32 %v7383, %v7575
      %v7577 = vpop.f32.mrb[0].mxu0
      %v7578 = vadd.f32 %v7385, %v7577
      %v7579 = vpop.f32.mrb[0].mxu0
      %v7580 = vadd.f32 %v7387, %v7579
      %7581 = vmatprep.mubr.bf16.mxu0 %v6895
      %7582 = vmatmul.mubr.bf16.gmra.mrb[0].mxu0 %v5699
      %v7583 = vpop.f32.mrb[0].mxu0
      %v7584 = vadd.f32 %v7391, %v7583
      %v7585 = vpop.f32.mrb[0].mxu0
      %v7586 = vadd.f32 %v7393, %v7585
      %v7587 = vpop.f32.mrb[0].mxu0
      %v7588 = vadd.f32 %v7395, %v7587
      %v7589 = vpop.f32.mrb[0].mxu0
      %v7590 = vadd.f32 %v7397, %v7589
      %7591 = vmatprep.mubr.bf16.mxu0 %v6898
      %7592 = vmatmul.mubr.bf16.gmra.mrb[0].mxu0 %v5703
      %v7593 = vpop.f32.mrb[0].mxu0
      %v7594 = vadd.f32 %v7401, %v7593
      %v7595 = vpop.f32.mrb[0].mxu0
      %v7596 = vadd.f32 %v7403, %v7595
      %v7597 = vpop.f32.mrb[0].mxu0
      %v7598 = vadd.f32 %v7405, %v7597
      %v7599 = vpop.f32.mrb[0].mxu0
      %v7600 = vadd.f32 %v7407, %v7599
      %7601 = vmatprep.mubr.bf16.mxu0 %v6901
      %7602 = vmatmul.mubr.bf16.gmra.mrb[0].mxu0 %v5707
      %v7603 = vpop.f32.mrb[0].mxu0
      %v7604 = vadd.f32 %v7411, %v7603
      %v7605 = vpop.f32.mrb[0].mxu0
      %v7606 = vadd.f32 %v7413, %v7605
      %v7607 = vpop.f32.mrb[0].mxu0
      %v7608 = vadd.f32 %v7415, %v7607
      %v7609 = vpop.f32.mrb[0].mxu0
      %v7610 = vadd.f32 %v7417, %v7609
      %7611 = vmatprep.mubr.bf16.mxu0 %v6904
      %7612 = vmatmul.mubr.bf16.gmra.mrb[0].mxu0 %v5711
      %v7613 = vpop.f32.mrb[0].mxu0
      %v7614 = vadd.f32 %v7421, %v7613
      %v7615 = vpop.f32.mrb[0].mxu0
      %v7616 = vadd.f32 %v7423, %v7615
      %v7617 = vpop.f32.mrb[0].mxu0
      %v7618 = vadd.f32 %v7425, %v7617
      %v7619 = vpop.f32.mrb[0].mxu0
      %v7620 = vadd.f32 %v7427, %v7619
      %7621 = vmatprep.mubr.bf16.mxu0 %v6907
      %7622 = vmatmul.mubr.bf16.gmra.mrb[0].mxu0 %v5715
      %v7623 = vpop.f32.mrb[0].mxu0
      %v7624 = vadd.f32 %v7431, %v7623
      %v7625 = vpop.f32.mrb[0].mxu0
      %v7626 = vadd.f32 %v7433, %v7625
      %v7627 = vpop.f32.mrb[0].mxu0
      %v7628 = vadd.f32 %v7435, %v7627
      %v7629 = vpop.f32.mrb[0].mxu0
      %v7630 = vadd.f32 %v7437, %v7629
      %7631 = vmatprep.mubr.bf16.mxu0 %v6910
      %7632 = vmatmul.mubr.bf16.gmra.mrb[0].mxu0 %v5719
      %v7633 = vpop.f32.mrb[0].mxu0
      %v7634 = vadd.f32 %v7441, %v7633
      %v7635 = vpop.f32.mrb[0].mxu0
      %v7636 = vadd.f32 %v7443, %v7635
      %v7637 = vpop.f32.mrb[0].mxu0
      %v7638 = vadd.f32 %v7445, %v7637
      %v7639 = vpop.f32.mrb[0].mxu0
      %v7640 = vadd.f32 %v7447, %v7639
      %7641 = vmatprep.mubr.bf16.mxu0 %v6913
      %7642 = vmatmul.mubr.bf16.gmra.mrb[0].mxu0 %v5723
      %v7643 = vpop.f32.mrb[0].mxu0
      %v7644 = vadd.f32 %v7451, %v7643
      %v7645 = vpop.f32.mrb[0].mxu0
      %v7646 = vadd.f32 %v7453, %v7645
      %v7647 = vpop.f32.mrb[0].mxu0
      %v7648 = vadd.f32 %v7455, %v7647
      %v7649 = vpop.f32.mrb[0].mxu0
      %v7650 = vadd.f32 %v7457, %v7649
      %7651 = vmatprep.mubr.bf16.mxu0 %v6916
      %7652 = vmatmul.mubr.bf16.gmra.mrb[0].mxu0 %v5727
      %v7653 = vpop.f32.mrb[0].mxu0
      %v7654 = vadd.f32 %v7461, %v7653
      %v7655 = vpop.f32.mrb[0].mxu0
      %v7656 = vadd.f32 %v7463, %v7655
      %v7657 = vpop.f32.mrb[0].mxu0
      %v7658 = vadd.f32 %v7465, %v7657
      %v7659 = vpop.f32.mrb[0].mxu0
      %v7660 = vadd.f32 %v7467, %v7659
      %7661 = vmatprep.mubr.bf16.mxu0 %v6919
      %7662 = vmatmul.mubr.bf16.gmra.mrb[0].mxu0 %v5731
      %v7663 = vpop.f32.mrb[0].mxu0
      %v7664 = vadd.f32 %v7471, %v7663
      %v7665 = vpop.f32.mrb[0].mxu0
      %v7666 = vadd.f32 %v7473, %v7665
      %v7667 = vpop.f32.mrb[0].mxu0
      %v7668 = vadd.f32 %v7475, %v7667
      %v7669 = vpop.f32.mrb[0].mxu0
      %v7670 = vadd.f32 %v7477, %v7669
      %7671 = vmatprep.mubr.bf16.mxu0 %v6922
      %7672 = vmatmul.mubr.bf16.gmra.mrb[0].mxu0 %v5735
      %v7673 = vpop.f32.mrb[0].mxu0
      %v7674 = vadd.f32 %v7481, %v7673
      %v7675 = vpop.f32.mrb[0].mxu0
      %v7676 = vadd.f32 %v7483, %v7675
      %v7677 = vpop.f32.mrb[0].mxu0
      %v7678 = vadd.f32 %v7485, %v7677
      %v7679 = vpop.f32.mrb[0].mxu0
      %v7680 = vadd.f32 %v7487, %v7679
      %7681 = vmatprep.mubr.bf16.mxu0 %v6925
      %7682 = vmatmul.mubr.bf16.gmra.mrb[0].mxu0 %v5739
      %v7683 = vpop.f32.mrb[0].mxu0
      %v7684 = vadd.f32 %v7491, %v7683
      %v7685 = vpop.f32.mrb[0].mxu0
      %v7686 = vadd.f32 %v7493, %v7685
      %v7687 = vpop.f32.mrb[0].mxu0
      %v7688 = vadd.f32 %v7495, %v7687
      %v7689 = vpop.f32.mrb[0].mxu0
      %v7690 = vadd.f32 %v7497, %v7689
      %7691 = vmatprep.mubr.bf16.mxu0 %v6928
      %7692 = vmatmul.mubr.bf16.gmra.mrb[0].mxu0 %v5743
      %v7693 = vpop.f32.mrb[0].mxu0
      %v7694 = vadd.f32 %v7501, %v7693
      %v7695 = vpop.f32.mrb[0].mxu0
      %v7696 = vadd.f32 %v7503, %v7695
      %v7697 = vpop.f32.mrb[0].mxu0
      %v7698 = vadd.f32 %v7505, %v7697
      %v7699 = vpop.f32.mrb[0].mxu0
      %v7700 = vadd.f32 %v7507, %v7699
      %7701 = vdwg.mxu0
      %7702 = vmatprep.subr.bf16.mxu0 %v6537
      %7703 = vmatpush1.bf16.msra.mxu0 %v6536
      %7704 = vmatprep.subr.bf16.mxu0 %v6544
      %7705 = vmatpush1.bf16.msra.mxu0 %v6543
      %7706 = vmatprep.subr.bf16.mxu0 %v6551
      %7707 = vmatpush1.bf16.msra.mxu0 %v6550
      %7708 = vmatprep.subr.bf16.mxu0 %v6558
      %7709 = vmatpush1.bf16.msra.mxu0 %v6557
      %7710 = vmatprep.subr.bf16.mxu0 %v6565
      %7711 = vmatpush1.bf16.msra.mxu0 %v6564
      %7712 = vmatprep.subr.bf16.mxu0 %v6572
      %7713 = vmatpush1.bf16.msra.mxu0 %v6571
      %7714 = vmatprep.subr.bf16.mxu0 %v6579
      %7715 = vmatpush1.bf16.msra.mxu0 %v6578
      %7716 = vmatprep.subr.bf16.mxu0 %v6586
      %7717 = vmatpush1.bf16.msra.mxu0 %v6585
      %7718 = vmatprep.subr.bf16.mxu0 %v6593
      %7719 = vmatpush1.bf16.msra.mxu0 %v6592
      %7720 = vmatprep.subr.bf16.mxu0 %v6600
      %7721 = vmatpush1.bf16.msra.mxu0 %v6599
      %7722 = vmatprep.subr.bf16.mxu0 %v6607
      %7723 = vmatpush1.bf16.msra.mxu0 %v6606
      %7724 = vmatprep.subr.bf16.mxu0 %v6614
      %7725 = vmatpush1.bf16.msra.mxu0 %v6613
      %7726 = vmatprep.subr.bf16.mxu0 %v6621
      %7727 = vmatpush1.bf16.msra.mxu0 %v6620
      %7728 = vmatprep.subr.bf16.mxu0 %v6628
      %7729 = vmatpush1.bf16.msra.mxu0 %v6627
      %7730 = vmatprep.subr.bf16.mxu0 %v6635
      %7731 = vmatpush1.bf16.msra.mxu0 %v6634
      %7732 = vmatprep.subr.bf16.mxu0 %v6642
      %7733 = vmatpush1.bf16.msra.mxu0 %v6641
      %7734 = vmatprep.mubr.bf16.mxu0 %v5682
      %7735 = vmatmul.mubr.bf16.gmra.mrb[0].mxu0 %v5681
      %v7736 = vpop.f32.mrb[0].mxu0
      %v7737 = vadd.f32 %v5966, %v7736
      %v7738 = vpop.f32.mrb[0].mxu0
      %v7739 = vadd.f32 %v5970, %v7738
      %v7740 = vpop.f32.mrb[0].mxu0
      %v7741 = vadd.f32 %v5966, %v7740
      %v7742 = vpop.f32.mrb[0].mxu0
      %v7743 = vadd.f32 %v5970, %v7742
      %7744 = vmatprep.mubr.bf16.mxu0 %v5686
      %7745 = vmatmul.mubr.bf16.gmra.mrb[0].mxu0 %v5685
      %v7746 = vpop.f32.mrb[0].mxu0
      %v7747 = vadd.f32 %v5966, %v7746
      %v7748 = vpop.f32.mrb[0].mxu0
      %v7749 = vadd.f32 %v5970, %v7748
      %v7750 = vpop.f32.mrb[0].mxu0
      %v7751 = vadd.f32 %v5966, %v7750
      %v7752 = vpop.f32.mrb[0].mxu0
      %v7753 = vadd.f32 %v5970, %v7752
      %7754 = vmatprep.mubr.bf16.mxu0 %v5690
      %7755 = vmatmul.mubr.bf16.gmra.mrb[0].mxu0 %v5689
      %v7756 = vpop.f32.mrb[0].mxu0
      %v7757 = vadd.f32 %v5966, %v7756
      %v7758 = vpop.f32.mrb[0].mxu0
      %v7759 = vadd.f32 %v5970, %v7758
      %v7760 = vpop.f32.mrb[0].mxu0
      %v7761 = vadd.f32 %v5966, %v7760
      %v7762 = vpop.f32.mrb[0].mxu0
      %v7763 = vadd.f32 %v5970, %v7762
      %7764 = vmatprep.mubr.bf16.mxu0 %v5694
      %7765 = vmatmul.mubr.bf16.gmra.mrb[0].mxu0 %v5693
      %v7766 = vpop.f32.mrb[0].mxu0
      %v7767 = vadd.f32 %v5966, %v7766
      %v7768 = vpop.f32.mrb[0].mxu0
      %v7769 = vadd.f32 %v5970, %v7768
      %v7770 = vpop.f32.mrb[0].mxu0
      %v7771 = vadd.f32 %v5966, %v7770
      %v7772 = vpop.f32.mrb[0].mxu0
      %v7773 = vadd.f32 %v5970, %v7772
      %7774 = vmatprep.mubr.bf16.mxu0 %v5698
      %7775 = vmatmul.mubr.bf16.gmra.mrb[0].mxu0 %v5697
      %v7776 = vpop.f32.mrb[0].mxu0
      %v7777 = vadd.f32 %v5966, %v7776
      %v7778 = vpop.f32.mrb[0].mxu0
      %v7779 = vadd.f32 %v5970, %v7778
      %v7780 = vpop.f32.mrb[0].mxu0
      %v7781 = vadd.f32 %v5966, %v7780
      %v7782 = vpop.f32.mrb[0].mxu0
      %v7783 = vadd.f32 %v5970, %v7782
      %7784 = vmatprep.mubr.bf16.mxu0 %v5702
      %7785 = vmatmul.mubr.bf16.gmra.mrb[0].mxu0 %v5701
      %v7786 = vpop.f32.mrb[0].mxu0
      %v7787 = vadd.f32 %v5966, %v7786
      %v7788 = vpop.f32.mrb[0].mxu0
      %v7789 = vadd.f32 %v5970, %v7788
      %v7790 = vpop.f32.mrb[0].mxu0
      %v7791 = vadd.f32 %v5966, %v7790
      %v7792 = vpop.f32.mrb[0].mxu0
      %v7793 = vadd.f32 %v5970, %v7792
      %7794 = vmatprep.mubr.bf16.mxu0 %v5706
      %7795 = vmatmul.mubr.bf16.gmra.mrb[0].mxu0 %v5705
      %v7796 = vpop.f32.mrb[0].mxu0
      %v7797 = vadd.f32 %v5966, %v7796
      %v7798 = vpop.f32.mrb[0].mxu0
      %v7799 = vadd.f32 %v5970, %v7798
      %v7800 = vpop.f32.mrb[0].mxu0
      %v7801 = vadd.f32 %v5966, %v7800
      %v7802 = vpop.f32.mrb[0].mxu0
      %v7803 = vadd.f32 %v5970, %v7802
      %7804 = vmatprep.mubr.bf16.mxu0 %v5710
      %7805 = vmatmul.mubr.bf16.gmra.mrb[0].mxu0 %v5709
      %v7806 = vpop.f32.mrb[0].mxu0
      %v7807 = vadd.f32 %v5966, %v7806
      %v7808 = vpop.f32.mrb[0].mxu0
      %v7809 = vadd.f32 %v5970, %v7808
      %v7810 = vpop.f32.mrb[0].mxu0
      %v7811 = vadd.f32 %v5966, %v7810
      %v7812 = vpop.f32.mrb[0].mxu0
      %v7813 = vadd.f32 %v5970, %v7812
      %7814 = vmatprep.mubr.bf16.mxu0 %v5714
      %7815 = vmatmul.mubr.bf16.gmra.mrb[0].mxu0 %v5713
      %v7816 = vpop.f32.mrb[0].mxu0
      %v7817 = vadd.f32 %v5966, %v7816
      %v7818 = vpop.f32.mrb[0].mxu0
      %v7819 = vadd.f32 %v5970, %v7818
      %v7820 = vpop.f32.mrb[0].mxu0
      %v7821 = vadd.f32 %v5966, %v7820
      %v7822 = vpop.f32.mrb[0].mxu0
      %v7823 = vadd.f32 %v5970, %v7822
      %7824 = vmatprep.mubr.bf16.mxu0 %v5718
      %7825 = vmatmul.mubr.bf16.gmra.mrb[0].mxu0 %v5717
      %v7826 = vpop.f32.mrb[0].mxu0
      %v7827 = vadd.f32 %v5966, %v7826
      %v7828 = vpop.f32.mrb[0].mxu0
      %v7829 = vadd.f32 %v5970, %v7828
      %v7830 = vpop.f32.mrb[0].mxu0
      %v7831 = vadd.f32 %v5966, %v7830
      %v7832 = vpop.f32.mrb[0].mxu0
      %v7833 = vadd.f32 %v5970, %v7832
      %7834 = vmatprep.mubr.bf16.mxu0 %v5722
      %7835 = vmatmul.mubr.bf16.gmra.mrb[0].mxu0 %v5721
      %v7836 = vpop.f32.mrb[0].mxu0
      %v7837 = vadd.f32 %v5966, %v7836
      %v7838 = vpop.f32.mrb[0].mxu0
      %v7839 = vadd.f32 %v5970, %v7838
      %v7840 = vpop.f32.mrb[0].mxu0
      %v7841 = vadd.f32 %v5966, %v7840
      %v7842 = vpop.f32.mrb[0].mxu0
      %v7843 = vadd.f32 %v5970, %v7842
      %7844 = vmatprep.mubr.bf16.mxu0 %v5726
      %7845 = vmatmul.mubr.bf16.gmra.mrb[0].mxu0 %v5725
      %v7846 = vpop.f32.mrb[0].mxu0
      %v7847 = vadd.f32 %v5966, %v7846
      %v7848 = vpop.f32.mrb[0].mxu0
      %v7849 = vadd.f32 %v5970, %v7848
      %v7850 = vpop.f32.mrb[0].mxu0
      %v7851 = vadd.f32 %v5966, %v7850
      %v7852 = vpop.f32.mrb[0].mxu0
      %v7853 = vadd.f32 %v5970, %v7852
      %7854 = vmatprep.mubr.bf16.mxu0 %v5730
      %7855 = vmatmul.mubr.bf16.gmra.mrb[0].mxu0 %v5729
      %v7856 = vpop.f32.mrb[0].mxu0
      %v7857 = vadd.f32 %v5966, %v7856
      %v7858 = vpop.f32.mrb[0].mxu0
      %v7859 = vadd.f32 %v5970, %v7858
      %v7860 = vpop.f32.mrb[0].mxu0
      %v7861 = vadd.f32 %v5966, %v7860
      %v7862 = vpop.f32.mrb[0].mxu0
      %v7863 = vadd.f32 %v5970, %v7862
      %7864 = vmatprep.mubr.bf16.mxu0 %v5734
      %7865 = vmatmul.mubr.bf16.gmra.mrb[0].mxu0 %v5733
      %v7866 = vpop.f32.mrb[0].mxu0
      %v7867 = vadd.f32 %v5966, %v7866
      %v7868 = vpop.f32.mrb[0].mxu0
      %v7869 = vadd.f32 %v5970, %v7868
      %v7870 = vpop.f32.mrb[0].mxu0
      %v7871 = vadd.f32 %v5966, %v7870
      %v7872 = vpop.f32.mrb[0].mxu0
      %v7873 = vadd.f32 %v5970, %v7872
      %7874 = vmatprep.mubr.bf16.mxu0 %v5738
      %7875 = vmatmul.mubr.bf16.gmra.mrb[0].mxu0 %v5737
      %v7876 = vpop.f32.mrb[0].mxu0
      %v7877 = vadd.f32 %v5966, %v7876
      %v7878 = vpop.f32.mrb[0].mxu0
      %v7879 = vadd.f32 %v5970, %v7878
      %v7880 = vpop.f32.mrb[0].mxu0
      %v7881 = vadd.f32 %v5966, %v7880
      %v7882 = vpop.f32.mrb[0].mxu0
      %v7883 = vadd.f32 %v5970, %v7882
      %7884 = vmatprep.mubr.bf16.mxu0 %v5742
      %7885 = vmatmul.mubr.bf16.gmra.mrb[0].mxu0 %v5741
      %v7886 = vpop.f32.mrb[0].mxu0
      %v7887 = vadd.f32 %v5966, %v7886
      %v7888 = vpop.f32.mrb[0].mxu0
      %v7889 = vadd.f32 %v5970, %v7888
      %v7890 = vpop.f32.mrb[0].mxu0
      %v7891 = vadd.f32 %v5966, %v7890
      %v7892 = vpop.f32.mrb[0].mxu0
      %v7893 = vadd.f32 %v5970, %v7892
      %7894 = vdwg.mxu0
      %7895 = vmatprep.subr.bf16.mxu0 %v6649
      %7896 = vmatpush1.bf16.msra.mxu0 %v6648
      %7897 = vmatprep.subr.bf16.mxu0 %v6656
      %7898 = vmatpush1.bf16.msra.mxu0 %v6655
      %7899 = vmatprep.subr.bf16.mxu0 %v6663
      %7900 = vmatpush1.bf16.msra.mxu0 %v6662
      %7901 = vmatprep.subr.bf16.mxu0 %v6670
      %7902 = vmatpush1.bf16.msra.mxu0 %v6669
      %7903 = vmatprep.subr.bf16.mxu0 %v6677
      %7904 = vmatpush1.bf16.msra.mxu0 %v6676
      %7905 = vmatprep.subr.bf16.mxu0 %v6684
      %7906 = vmatpush1.bf16.msra.mxu0 %v6683
      %7907 = vmatprep.subr.bf16.mxu0 %v6691
      %7908 = vmatpush1.bf16.msra.mxu0 %v6690
      %7909 = vmatprep.subr.bf16.mxu0 %v6698
      %7910 = vmatpush1.bf16.msra.mxu0 %v6697
      %7911 = vmatprep.subr.bf16.mxu0 %v6705
      %7912 = vmatpush1.bf16.msra.mxu0 %v6704
      %7913 = vmatprep.subr.bf16.mxu0 0
      %7914 = vmatpush1.bf16.msra.mxu0 0
      %7915 = vmatprep.subr.bf16.mxu0 0
      %7916 = vmatpush1.bf16.msra.mxu0 0
      %7917 = vmatprep.subr.bf16.mxu0 0
      %7918 = vmatpush1.bf16.msra.mxu0 0
      %7919 = vmatprep.subr.bf16.mxu0 0
      %7920 = vmatpush1.bf16.msra.mxu0 0
      %7921 = vmatprep.subr.bf16.mxu0 0
      %7922 = vmatpush1.bf16.msra.mxu0 0
      %7923 = vmatprep.subr.bf16.mxu0 0
      %7924 = vmatpush1.bf16.msra.mxu0 0
      %7925 = vmatprep.subr.bf16.mxu0 0
      %7926 = vmatpush1.bf16.msra.mxu0 0
      %7927 = vmatprep.mubr.bf16.mxu0 %v6883
      %7928 = vmatmul.mubr.bf16.gmra.mrb[0].mxu0 %v5683
      %v7929 = vpop.f32.mrb[0].mxu0
      %v7930 = vadd.f32 %v7737, %v7929
      %v7931 = vpop.f32.mrb[0].mxu0
      %v7932 = vadd.f32 %v7739, %v7931
      %v7933 = vpop.f32.mrb[0].mxu0
      %v7934 = vadd.f32 %v7741, %v7933
      %v7935 = vpop.f32.mrb[0].mxu0
      %v7936 = vadd.f32 %v7743, %v7935
      %7937 = vmatprep.mubr.bf16.mxu0 %v6886
      %7938 = vmatmul.mubr.bf16.gmra.mrb[0].mxu0 %v5687
      %v7939 = vpop.f32.mrb[0].mxu0
      %v7940 = vadd.f32 %v7747, %v7939
      %v7941 = vpop.f32.mrb[0].mxu0
      %v7942 = vadd.f32 %v7749, %v7941
      %v7943 = vpop.f32.mrb[0].mxu0
      %v7944 = vadd.f32 %v7751, %v7943
      %v7945 = vpop.f32.mrb[0].mxu0
      %v7946 = vadd.f32 %v7753, %v7945
      %7947 = vmatprep.mubr.bf16.mxu0 %v6889
      %7948 = vmatmul.mubr.bf16.gmra.mrb[0].mxu0 %v5691
      %v7949 = vpop.f32.mrb[0].mxu0
      %v7950 = vadd.f32 %v7757, %v7949
      %v7951 = vpop.f32.mrb[0].mxu0
      %v7952 = vadd.f32 %v7759, %v7951
      %v7953 = vpop.f32.mrb[0].mxu0
      %v7954 = vadd.f32 %v7761, %v7953
      %v7955 = vpop.f32.mrb[0].mxu0
      %v7956 = vadd.f32 %v7763, %v7955
      %7957 = vmatprep.mubr.bf16.mxu0 %v6892
      %7958 = vmatmul.mubr.bf16.gmra.mrb[0].mxu0 %v5695
      %v7959 = vpop.f32.mrb[0].mxu0
      %v7960 = vadd.f32 %v7767, %v7959
      %v7961 = vpop.f32.mrb[0].mxu0
      %v7962 = vadd.f32 %v7769, %v7961
      %v7963 = vpop.f32.mrb[0].mxu0
      %v7964 = vadd.f32 %v7771, %v7963
      %v7965 = vpop.f32.mrb[0].mxu0
      %v7966 = vadd.f32 %v7773, %v7965
      %7967 = vmatprep.mubr.bf16.mxu0 %v6895
      %7968 = vmatmul.mubr.bf16.gmra.mrb[0].mxu0 %v5699
      %v7969 = vpop.f32.mrb[0].mxu0
      %v7970 = vadd.f32 %v7777, %v7969
      %v7971 = vpop.f32.mrb[0].mxu0
      %v7972 = vadd.f32 %v7779, %v7971
      %v7973 = vpop.f32.mrb[0].mxu0
      %v7974 = vadd.f32 %v7781, %v7973
      %v7975 = vpop.f32.mrb[0].mxu0
      %v7976 = vadd.f32 %v7783, %v7975
      %7977 = vmatprep.mubr.bf16.mxu0 %v6898
      %7978 = vmatmul.mubr.bf16.gmra.mrb[0].mxu0 %v5703
      %v7979 = vpop.f32.mrb[0].mxu0
      %v7980 = vadd.f32 %v7787, %v7979
      %v7981 = vpop.f32.mrb[0].mxu0
      %v7982 = vadd.f32 %v7789, %v7981
      %v7983 = vpop.f32.mrb[0].mxu0
      %v7984 = vadd.f32 %v7791, %v7983
      %v7985 = vpop.f32.mrb[0].mxu0
      %v7986 = vadd.f32 %v7793, %v7985
      %7987 = vmatprep.mubr.bf16.mxu0 %v6901
      %7988 = vmatmul.mubr.bf16.gmra.mrb[0].mxu0 %v5707
      %v7989 = vpop.f32.mrb[0].mxu0
      %v7990 = vadd.f32 %v7797, %v7989
      %v7991 = vpop.f32.mrb[0].mxu0
      %v7992 = vadd.f32 %v7799, %v7991
      %v7993 = vpop.f32.mrb[0].mxu0
      %v7994 = vadd.f32 %v7801, %v7993
      %v7995 = vpop.f32.mrb[0].mxu0
      %v7996 = vadd.f32 %v7803, %v7995
      %7997 = vmatprep.mubr.bf16.mxu0 %v6904
      %7998 = vmatmul.mubr.bf16.gmra.mrb[0].mxu0 %v5711
      %v7999 = vpop.f32.mrb[0].mxu0
      %v8000 = vadd.f32 %v7807, %v7999
      %v8001 = vpop.f32.mrb[0].mxu0
      %v8002 = vadd.f32 %v7809, %v8001
      %v8003 = vpop.f32.mrb[0].mxu0
      %v8004 = vadd.f32 %v7811, %v8003
      %v8005 = vpop.f32.mrb[0].mxu0
      %v8006 = vadd.f32 %v7813, %v8005
      %8007 = vmatprep.mubr.bf16.mxu0 %v6907
      %8008 = vmatmul.mubr.bf16.gmra.mrb[0].mxu0 %v5715
      %v8009 = vpop.f32.mrb[0].mxu0
      %v8010 = vadd.f32 %v7817, %v8009
      %v8011 = vpop.f32.mrb[0].mxu0
      %v8012 = vadd.f32 %v7819, %v8011
      %v8013 = vpop.f32.mrb[0].mxu0
      %v8014 = vadd.f32 %v7821, %v8013
      %v8015 = vpop.f32.mrb[0].mxu0
      %v8016 = vadd.f32 %v7823, %v8015
      %8017 = vmatprep.mubr.bf16.mxu0 %v6910
      %8018 = vmatmul.mubr.bf16.gmra.mrb[0].mxu0 %v5719
      %v8019 = vpop.f32.mrb[0].mxu0
      %v8020 = vadd.f32 %v7827, %v8019
      %v8021 = vpop.f32.mrb[0].mxu0
      %v8022 = vadd.f32 %v7829, %v8021
      %v8023 = vpop.f32.mrb[0].mxu0
      %v8024 = vadd.f32 %v7831, %v8023
      %v8025 = vpop.f32.mrb[0].mxu0
      %v8026 = vadd.f32 %v7833, %v8025
      %8027 = vmatprep.mubr.bf16.mxu0 %v6913
      %8028 = vmatmul.mubr.bf16.gmra.mrb[0].mxu0 %v5723
      %v8029 = vpop.f32.mrb[0].mxu0
      %v8030 = vadd.f32 %v7837, %v8029
      %v8031 = vpop.f32.mrb[0].mxu0
      %v8032 = vadd.f32 %v7839, %v8031
      %v8033 = vpop.f32.mrb[0].mxu0
      %v8034 = vadd.f32 %v7841, %v8033
      %v8035 = vpop.f32.mrb[0].mxu0
      %v8036 = vadd.f32 %v7843, %v8035
      %8037 = vmatprep.mubr.bf16.mxu0 %v6916
      %8038 = vmatmul.mubr.bf16.gmra.mrb[0].mxu0 %v5727
      %v8039 = vpop.f32.mrb[0].mxu0
      %v8040 = vadd.f32 %v7847, %v8039
      %v8041 = vpop.f32.mrb[0].mxu0
      %v8042 = vadd.f32 %v7849, %v8041
      %v8043 = vpop.f32.mrb[0].mxu0
      %v8044 = vadd.f32 %v7851, %v8043
      %v8045 = vpop.f32.mrb[0].mxu0
      %v8046 = vadd.f32 %v7853, %v8045
      %8047 = vmatprep.mubr.bf16.mxu0 %v6919
      %8048 = vmatmul.mubr.bf16.gmra.mrb[0].mxu0 %v5731
      %v8049 = vpop.f32.mrb[0].mxu0
      %v8050 = vadd.f32 %v7857, %v8049
      %v8051 = vpop.f32.mrb[0].mxu0
      %v8052 = vadd.f32 %v7859, %v8051
      %v8053 = vpop.f32.mrb[0].mxu0
      %v8054 = vadd.f32 %v7861, %v8053
      %v8055 = vpop.f32.mrb[0].mxu0
      %v8056 = vadd.f32 %v7863, %v8055
      %8057 = vmatprep.mubr.bf16.mxu0 %v6922
      %8058 = vmatmul.mubr.bf16.gmra.mrb[0].mxu0 %v5735
      %v8059 = vpop.f32.mrb[0].mxu0
      %v8060 = vadd.f32 %v7867, %v8059
      %v8061 = vpop.f32.mrb[0].mxu0
      %v8062 = vadd.f32 %v7869, %v8061
      %v8063 = vpop.f32.mrb[0].mxu0
      %v8064 = vadd.f32 %v7871, %v8063
      %v8065 = vpop.f32.mrb[0].mxu0
      %v8066 = vadd.f32 %v7873, %v8065
      %8067 = vmatprep.mubr.bf16.mxu0 %v6925
      %8068 = vmatmul.mubr.bf16.gmra.mrb[0].mxu0 %v5739
      %v8069 = vpop.f32.mrb[0].mxu0
      %v8070 = vadd.f32 %v7877, %v8069
      %v8071 = vpop.f32.mrb[0].mxu0
      %v8072 = vadd.f32 %v7879, %v8071
      %v8073 = vpop.f32.mrb[0].mxu0
      %v8074 = vadd.f32 %v7881, %v8073
      %v8075 = vpop.f32.mrb[0].mxu0
      %v8076 = vadd.f32 %v7883, %v8075
      %8077 = vmatprep.mubr.bf16.mxu0 %v6928
      %8078 = vmatmul.mubr.bf16.gmra.mrb[0].mxu0 %v5743
      %v8079 = vpop.f32.mrb[0].mxu0
      %v8080 = vadd.f32 %v7887, %v8079
      %v8081 = vpop.f32.mrb[0].mxu0
      %v8082 = vadd.f32 %v7889, %v8081
      %v8083 = vpop.f32.mrb[0].mxu0
      %v8084 = vadd.f32 %v7891, %v8083
      %v8085 = vpop.f32.mrb[0].mxu0
      %v8086 = vadd.f32 %v7893, %v8085
      %8087 = vdwg.mxu0
      %8088 = vmatprep.subr.bf16.mxu0 0
      %8089 = vmatpush1.bf16.msra.mxu0 %v6538
      %8090 = vmatprep.subr.bf16.mxu0 0
      %8091 = vmatpush1.bf16.msra.mxu0 %v6545
      %8092 = vmatprep.subr.bf16.mxu0 0
      %8093 = vmatpush1.bf16.msra.mxu0 %v6552
      %8094 = vmatprep.subr.bf16.mxu0 0
      %8095 = vmatpush1.bf16.msra.mxu0 %v6559
      %8096 = vmatprep.subr.bf16.mxu0 0
      %8097 = vmatpush1.bf16.msra.mxu0 %v6566
      %8098 = vmatprep.subr.bf16.mxu0 0
      %8099 = vmatpush1.bf16.msra.mxu0 %v6573
      %8100 = vmatprep.subr.bf16.mxu0 0
      %8101 = vmatpush1.bf16.msra.mxu0 %v6580
      %8102 = vmatprep.subr.bf16.mxu0 0
      %8103 = vmatpush1.bf16.msra.mxu0 %v6587
      %8104 = vmatprep.subr.bf16.mxu0 0
      %8105 = vmatpush1.bf16.msra.mxu0 %v6594
      %8106 = vmatprep.subr.bf16.mxu0 0
      %8107 = vmatpush1.bf16.msra.mxu0 %v6601
      %8108 = vmatprep.subr.bf16.mxu0 0
      %8109 = vmatpush1.bf16.msra.mxu0 %v6608
      %8110 = vmatprep.subr.bf16.mxu0 0
      %8111 = vmatpush1.bf16.msra.mxu0 %v6615
      %8112 = vmatprep.subr.bf16.mxu0 0
      %8113 = vmatpush1.bf16.msra.mxu0 %v6622
      %8114 = vmatprep.subr.bf16.mxu0 0
      %8115 = vmatpush1.bf16.msra.mxu0 %v6629
      %8116 = vmatprep.subr.bf16.mxu0 0
      %8117 = vmatpush1.bf16.msra.mxu0 %v6636
      %8118 = vmatprep.subr.bf16.mxu0 0
      %8119 = vmatpush1.bf16.msra.mxu0 %v6643
      %8120 = vmatprep.mubr.bf16.mxu0 %v5682
      %8121 = vmatmul.mubr.bf16.gmra.mrb[0].mxu0 %v5681
      %v8122 = vpop.f32.mrb[0].mxu0
      %v8123 = vadd.f32 %v5974, %v8122
      %v8124 = vpop.f32.mrb[0].mxu0
      %v8125 = vpop.f32.mrb[0].mxu0
      %v8126 = vadd.f32 %v5974, %v8125
      %v8127 = vpop.f32.mrb[0].mxu0
      %8128 = vmatprep.mubr.bf16.mxu0 %v5686
      %8129 = vmatmul.mubr.bf16.gmra.mrb[0].mxu0 %v5685
      %v8130 = vpop.f32.mrb[0].mxu0
      %v8131 = vadd.f32 %v5974, %v8130
      %v8132 = vpop.f32.mrb[0].mxu0
      %v8133 = vpop.f32.mrb[0].mxu0
      %v8134 = vadd.f32 %v5974, %v8133
      %v8135 = vpop.f32.mrb[0].mxu0
      %8136 = vmatprep.mubr.bf16.mxu0 %v5690
      %8137 = vmatmul.mubr.bf16.gmra.mrb[0].mxu0 %v5689
      %v8138 = vpop.f32.mrb[0].mxu0
      %v8139 = vadd.f32 %v5974, %v8138
      %v8140 = vpop.f32.mrb[0].mxu0
      %v8141 = vpop.f32.mrb[0].mxu0
      %v8142 = vadd.f32 %v5974, %v8141
      %v8143 = vpop.f32.mrb[0].mxu0
      %8144 = vmatprep.mubr.bf16.mxu0 %v5694
      %8145 = vmatmul.mubr.bf16.gmra.mrb[0].mxu0 %v5693
      %v8146 = vpop.f32.mrb[0].mxu0
      %v8147 = vadd.f32 %v5974, %v8146
      %v8148 = vpop.f32.mrb[0].mxu0
      %v8149 = vpop.f32.mrb[0].mxu0
      %v8150 = vadd.f32 %v5974, %v8149
      %v8151 = vpop.f32.mrb[0].mxu0
      %8152 = vmatprep.mubr.bf16.mxu0 %v5698
      %8153 = vmatmul.mubr.bf16.gmra.mrb[0].mxu0 %v5697
      %v8154 = vpop.f32.mrb[0].mxu0
      %v8155 = vadd.f32 %v5974, %v8154
      %v8156 = vpop.f32.mrb[0].mxu0
      %v8157 = vpop.f32.mrb[0].mxu0
      %v8158 = vadd.f32 %v5974, %v8157
      %v8159 = vpop.f32.mrb[0].mxu0
      %8160 = vmatprep.mubr.bf16.mxu0 %v5702
      %8161 = vmatmul.mubr.bf16.gmra.mrb[0].mxu0 %v5701
      %v8162 = vpop.f32.mrb[0].mxu0
      %v8163 = vadd.f32 %v5974, %v8162
      %v8164 = vpop.f32.mrb[0].mxu0
      %v8165 = vpop.f32.mrb[0].mxu0
      %v8166 = vadd.f32 %v5974, %v8165
      %v8167 = vpop.f32.mrb[0].mxu0
      %8168 = vmatprep.mubr.bf16.mxu0 %v5706
      %8169 = vmatmul.mubr.bf16.gmra.mrb[0].mxu0 %v5705
      %v8170 = vpop.f32.mrb[0].mxu0
      %v8171 = vadd.f32 %v5974, %v8170
      %v8172 = vpop.f32.mrb[0].mxu0
      %v8173 = vpop.f32.mrb[0].mxu0
      %v8174 = vadd.f32 %v5974, %v8173
      %v8175 = vpop.f32.mrb[0].mxu0
      %8176 = vmatprep.mubr.bf16.mxu0 %v5710
      %8177 = vmatmul.mubr.bf16.gmra.mrb[0].mxu0 %v5709
      %v8178 = vpop.f32.mrb[0].mxu0
      %v8179 = vadd.f32 %v5974, %v8178
      %v8180 = vpop.f32.mrb[0].mxu0
      %v8181 = vpop.f32.mrb[0].mxu0
      %v8182 = vadd.f32 %v5974, %v8181
      %v8183 = vpop.f32.mrb[0].mxu0
      %8184 = vmatprep.mubr.bf16.mxu0 %v5714
      %8185 = vmatmul.mubr.bf16.gmra.mrb[0].mxu0 %v5713
      %v8186 = vpop.f32.mrb[0].mxu0
      %v8187 = vadd.f32 %v5974, %v8186
      %v8188 = vpop.f32.mrb[0].mxu0
      %v8189 = vpop.f32.mrb[0].mxu0
      %v8190 = vadd.f32 %v5974, %v8189
      %v8191 = vpop.f32.mrb[0].mxu0
      %8192 = vmatprep.mubr.bf16.mxu0 %v5718
      %8193 = vmatmul.mubr.bf16.gmra.mrb[0].mxu0 %v5717
      %v8194 = vpop.f32.mrb[0].mxu0
      %v8195 = vadd.f32 %v5974, %v8194
      %v8196 = vpop.f32.mrb[0].mxu0
      %v8197 = vpop.f32.mrb[0].mxu0
      %v8198 = vadd.f32 %v5974, %v8197
      %v8199 = vpop.f32.mrb[0].mxu0
      %8200 = vmatprep.mubr.bf16.mxu0 %v5722
      %8201 = vmatmul.mubr.bf16.gmra.mrb[0].mxu0 %v5721
      %v8202 = vpop.f32.mrb[0].mxu0
      %v8203 = vadd.f32 %v5974, %v8202
      %v8204 = vpop.f32.mrb[0].mxu0
      %v8205 = vpop.f32.mrb[0].mxu0
      %v8206 = vadd.f32 %v5974, %v8205
      %v8207 = vpop.f32.mrb[0].mxu0
      %8208 = vmatprep.mubr.bf16.mxu0 %v5726
      %8209 = vmatmul.mubr.bf16.gmra.mrb[0].mxu0 %v5725
      %v8210 = vpop.f32.mrb[0].mxu0
      %v8211 = vadd.f32 %v5974, %v8210
      %v8212 = vpop.f32.mrb[0].mxu0
      %v8213 = vpop.f32.mrb[0].mxu0
      %v8214 = vadd.f32 %v5974, %v8213
      %v8215 = vpop.f32.mrb[0].mxu0
      %8216 = vmatprep.mubr.bf16.mxu0 %v5730
      %8217 = vmatmul.mubr.bf16.gmra.mrb[0].mxu0 %v5729
      %v8218 = vpop.f32.mrb[0].mxu0
      %v8219 = vadd.f32 %v5974, %v8218
      %v8220 = vpop.f32.mrb[0].mxu0
      %v8221 = vpop.f32.mrb[0].mxu0
      %v8222 = vadd.f32 %v5974, %v8221
      %v8223 = vpop.f32.mrb[0].mxu0
      %8224 = vmatprep.mubr.bf16.mxu0 %v5734
      %8225 = vmatmul.mubr.bf16.gmra.mrb[0].mxu0 %v5733
      %v8226 = vpop.f32.mrb[0].mxu0
      %v8227 = vadd.f32 %v5974, %v8226
      %v8228 = vpop.f32.mrb[0].mxu0
      %v8229 = vpop.f32.mrb[0].mxu0
      %v8230 = vadd.f32 %v5974, %v8229
      %v8231 = vpop.f32.mrb[0].mxu0
      %8232 = vmatprep.mubr.bf16.mxu0 %v5738
      %8233 = vmatmul.mubr.bf16.gmra.mrb[0].mxu0 %v5737
      %v8234 = vpop.f32.mrb[0].mxu0
      %v8235 = vadd.f32 %v5974, %v8234
      %v8236 = vpop.f32.mrb[0].mxu0
      %v8237 = vpop.f32.mrb[0].mxu0
      %v8238 = vadd.f32 %v5974, %v8237
      %v8239 = vpop.f32.mrb[0].mxu0
      %8240 = vmatprep.mubr.bf16.mxu0 %v5742
      %8241 = vmatmul.mubr.bf16.gmra.mrb[0].mxu0 %v5741
      %v8242 = vpop.f32.mrb[0].mxu0
      %v8243 = vadd.f32 %v5974, %v8242
      %v8244 = vpop.f32.mrb[0].mxu0
      %v8245 = vpop.f32.mrb[0].mxu0
      %v8246 = vadd.f32 %v5974, %v8245
      %v8247 = vpop.f32.mrb[0].mxu0
      %8248 = vdwg.mxu0
      %8249 = vmatprep.subr.bf16.mxu0 0
      %8250 = vmatpush1.bf16.msra.mxu0 %v6650
      %8251 = vmatprep.subr.bf16.mxu0 0
      %8252 = vmatpush1.bf16.msra.mxu0 %v6657
      %8253 = vmatprep.subr.bf16.mxu0 0
      %8254 = vmatpush1.bf16.msra.mxu0 %v6664
      %8255 = vmatprep.subr.bf16.mxu0 0
      %8256 = vmatpush1.bf16.msra.mxu0 %v6671
      %8257 = vmatprep.subr.bf16.mxu0 0
      %8258 = vmatpush1.bf16.msra.mxu0 %v6678
      %8259 = vmatprep.subr.bf16.mxu0 0
      %8260 = vmatpush1.bf16.msra.mxu0 %v6685
      %8261 = vmatprep.subr.bf16.mxu0 0
      %8262 = vmatpush1.bf16.msra.mxu0 %v6692
      %8263 = vmatprep.subr.bf16.mxu0 0
      %8264 = vmatpush1.bf16.msra.mxu0 %v6699
      %8265 = vmatprep.subr.bf16.mxu0 0
      %8266 = vmatpush1.bf16.msra.mxu0 %v6706
      %8267 = vmatprep.subr.bf16.mxu0 0
      %8268 = vmatpush1.bf16.msra.mxu0 0
      %8269 = vmatprep.subr.bf16.mxu0 0
      %8270 = vmatpush1.bf16.msra.mxu0 0
      %8271 = vmatprep.subr.bf16.mxu0 0
      %8272 = vmatpush1.bf16.msra.mxu0 0
      %8273 = vmatprep.subr.bf16.mxu0 0
      %8274 = vmatpush1.bf16.msra.mxu0 0
      %8275 = vmatprep.subr.bf16.mxu0 0
      %8276 = vmatpush1.bf16.msra.mxu0 0
      %8277 = vmatprep.subr.bf16.mxu0 0
      %8278 = vmatpush1.bf16.msra.mxu0 0
      %8279 = vmatprep.subr.bf16.mxu0 0
      %8280 = vmatpush1.bf16.msra.mxu0 0
      %8281 = vmatprep.mubr.bf16.mxu0 %v6883
      %8282 = vmatmul.mubr.bf16.gmra.mrb[0].mxu0 %v5683
      %v8283 = vpop.f32.mrb[0].mxu0
      %v8284 = vadd.f32 %v8123, %v8283
      %v8285 = vpop.f32.mrb[0].mxu0
      %v8286 = vpop.f32.mrb[0].mxu0
      %v8287 = vadd.f32 %v8126, %v8286
      %v8288 = vpop.f32.mrb[0].mxu0
      %8289 = vmatprep.mubr.bf16.mxu0 %v6886
      %8290 = vmatmul.mubr.bf16.gmra.mrb[0].mxu0 %v5687
      %v8291 = vpop.f32.mrb[0].mxu0
      %v8292 = vadd.f32 %v8131, %v8291
      %v8293 = vpop.f32.mrb[0].mxu0
      %v8294 = vpop.f32.mrb[0].mxu0
      %v8295 = vadd.f32 %v8134, %v8294
      %v8296 = vpop.f32.mrb[0].mxu0
      %8297 = vmatprep.mubr.bf16.mxu0 %v6889
      %8298 = vmatmul.mubr.bf16.gmra.mrb[0].mxu0 %v5691
      %v8299 = vpop.f32.mrb[0].mxu0
      %v8300 = vadd.f32 %v8139, %v8299
      %v8301 = vpop.f32.mrb[0].mxu0
      %v8302 = vpop.f32.mrb[0].mxu0
      %v8303 = vadd.f32 %v8142, %v8302
      %v8304 = vpop.f32.mrb[0].mxu0
      %8305 = vmatprep.mubr.bf16.mxu0 %v6892
      %8306 = vmatmul.mubr.bf16.gmra.mrb[0].mxu0 %v5695
      %v8307 = vpop.f32.mrb[0].mxu0
      %v8308 = vadd.f32 %v8147, %v8307
      %v8309 = vpop.f32.mrb[0].mxu0
      %v8310 = vpop.f32.mrb[0].mxu0
      %v8311 = vadd.f32 %v8150, %v8310
      %v8312 = vpop.f32.mrb[0].mxu0
      %8313 = vmatprep.mubr.bf16.mxu0 %v6895
      %8314 = vmatmul.mubr.bf16.gmra.mrb[0].mxu0 %v5699
      %v8315 = vpop.f32.mrb[0].mxu0
      %v8316 = vadd.f32 %v8155, %v8315
      %v8317 = vpop.f32.mrb[0].mxu0
      %v8318 = vpop.f32.mrb[0].mxu0
      %v8319 = vadd.f32 %v8158, %v8318
      %v8320 = vpop.f32.mrb[0].mxu0
      %8321 = vmatprep.mubr.bf16.mxu0 %v6898
      %8322 = vmatmul.mubr.bf16.gmra.mrb[0].mxu0 %v5703
      %v8323 = vpop.f32.mrb[0].mxu0
      %v8324 = vadd.f32 %v8163, %v8323
      %v8325 = vpop.f32.mrb[0].mxu0
      %v8326 = vpop.f32.mrb[0].mxu0
      %v8327 = vadd.f32 %v8166, %v8326
      %v8328 = vpop.f32.mrb[0].mxu0
      %8329 = vmatprep.mubr.bf16.mxu0 %v6901
      %8330 = vmatmul.mubr.bf16.gmra.mrb[0].mxu0 %v5707
      %v8331 = vpop.f32.mrb[0].mxu0
      %v8332 = vadd.f32 %v8171, %v8331
      %v8333 = vpop.f32.mrb[0].mxu0
      %v8334 = vpop.f32.mrb[0].mxu0
      %v8335 = vadd.f32 %v8174, %v8334
      %v8336 = vpop.f32.mrb[0].mxu0
      %8337 = vmatprep.mubr.bf16.mxu0 %v6904
      %8338 = vmatmul.mubr.bf16.gmra.mrb[0].mxu0 %v5711
      %v8339 = vpop.f32.mrb[0].mxu0
      %v8340 = vadd.f32 %v8179, %v8339
      %v8341 = vpop.f32.mrb[0].mxu0
      %v8342 = vpop.f32.mrb[0].mxu0
      %v8343 = vadd.f32 %v8182, %v8342
      %v8344 = vpop.f32.mrb[0].mxu0
      %8345 = vmatprep.mubr.bf16.mxu0 %v6907
      %8346 = vmatmul.mubr.bf16.gmra.mrb[0].mxu0 %v5715
      %v8347 = vpop.f32.mrb[0].mxu0
      %v8348 = vadd.f32 %v8187, %v8347
      %v8349 = vpop.f32.mrb[0].mxu0
      %v8350 = vpop.f32.mrb[0].mxu0
      %v8351 = vadd.f32 %v8190, %v8350
      %v8352 = vpop.f32.mrb[0].mxu0
      %8353 = vmatprep.mubr.bf16.mxu0 %v6910
      %8354 = vmatmul.mubr.bf16.gmra.mrb[0].mxu0 %v5719
      %v8355 = vpop.f32.mrb[0].mxu0
      %v8356 = vadd.f32 %v8195, %v8355
      %v8357 = vpop.f32.mrb[0].mxu0
      %v8358 = vpop.f32.mrb[0].mxu0
      %v8359 = vadd.f32 %v8198, %v8358
      %v8360 = vpop.f32.mrb[0].mxu0
      %8361 = vmatprep.mubr.bf16.mxu0 %v6913
      %8362 = vmatmul.mubr.bf16.gmra.mrb[0].mxu0 %v5723
      %v8363 = vpop.f32.mrb[0].mxu0
      %v8364 = vadd.f32 %v8203, %v8363
      %v8365 = vpop.f32.mrb[0].mxu0
      %v8366 = vpop.f32.mrb[0].mxu0
      %v8367 = vadd.f32 %v8206, %v8366
      %v8368 = vpop.f32.mrb[0].mxu0
      %8369 = vmatprep.mubr.bf16.mxu0 %v6916
      %8370 = vmatmul.mubr.bf16.gmra.mrb[0].mxu0 %v5727
      %v8371 = vpop.f32.mrb[0].mxu0
      %v8372 = vadd.f32 %v8211, %v8371
      %v8373 = vpop.f32.mrb[0].mxu0
      %v8374 = vpop.f32.mrb[0].mxu0
      %v8375 = vadd.f32 %v8214, %v8374
      %v8376 = vpop.f32.mrb[0].mxu0
      %8377 = vmatprep.mubr.bf16.mxu0 %v6919
      %8378 = vmatmul.mubr.bf16.gmra.mrb[0].mxu0 %v5731
      %v8379 = vpop.f32.mrb[0].mxu0
      %v8380 = vadd.f32 %v8219, %v8379
      %v8381 = vpop.f32.mrb[0].mxu0
      %v8382 = vpop.f32.mrb[0].mxu0
      %v8383 = vadd.f32 %v8222, %v8382
      %v8384 = vpop.f32.mrb[0].mxu0
      %8385 = vmatprep.mubr.bf16.mxu0 %v6922
      %8386 = vmatmul.mubr.bf16.gmra.mrb[0].mxu0 %v5735
      %v8387 = vpop.f32.mrb[0].mxu0
      %v8388 = vadd.f32 %v8227, %v8387
      %v8389 = vpop.f32.mrb[0].mxu0
      %v8390 = vpop.f32.mrb[0].mxu0
      %v8391 = vadd.f32 %v8230, %v8390
      %v8392 = vpop.f32.mrb[0].mxu0
      %8393 = vmatprep.mubr.bf16.mxu0 %v6925
      %8394 = vmatmul.mubr.bf16.gmra.mrb[0].mxu0 %v5739
      %v8395 = vpop.f32.mrb[0].mxu0
      %v8396 = vadd.f32 %v8235, %v8395
      %v8397 = vpop.f32.mrb[0].mxu0
      %v8398 = vpop.f32.mrb[0].mxu0
      %v8399 = vadd.f32 %v8238, %v8398
      %v8400 = vpop.f32.mrb[0].mxu0
      %8401 = vmatprep.mubr.bf16.mxu0 %v6928
      %8402 = vmatmul.mubr.bf16.gmra.mrb[0].mxu0 %v5743
      %v8403 = vpop.f32.mrb[0].mxu0
      %v8404 = vadd.f32 %v8243, %v8403
      %v8405 = vpop.f32.mrb[0].mxu0
      %v8406 = vpop.f32.mrb[0].mxu0
      %v8407 = vadd.f32 %v8246, %v8406
      %v8408 = vpop.f32.mrb[0].mxu0
      %8409 = vdwg.mxu0
      %v8410 = vsub.f32 0.0, %v7158
      %v8411 = vsub.f32 0.0, %v7160
      %v8412 = vsub.f32 0.0, %v7544
      %v8413 = vsub.f32 0.0, %v7546
      %v8414 = vsub.f32 0.0, %v7930
      %v8415 = vsub.f32 0.0, %v7932
      %v8416 = vsub.f32 0.0, %v8284
      %v8417 = vsub.f32 0.0, %v7162
      %v8418 = vsub.f32 0.0, %v7164
      %v8419 = vsub.f32 0.0, %v7548
      %v8420 = vsub.f32 0.0, %v7550
      %v8421 = vsub.f32 0.0, %v7934
      %v8422 = vsub.f32 0.0, %v7936
      %v8423 = vsub.f32 0.0, %v8287
      %v8424 = vsub.f32 0.0, %v7168
      %v8425 = vsub.f32 0.0, %v7170
      %v8426 = vsub.f32 0.0, %v7554
      %v8427 = vsub.f32 0.0, %v7556
      %v8428 = vsub.f32 0.0, %v7940
      %v8429 = vsub.f32 0.0, %v7942
      %v8430 = vsub.f32 0.0, %v8292
      %v8431 = vsub.f32 0.0, %v7172
      %v8432 = vsub.f32 0.0, %v7174
      %v8433 = vsub.f32 0.0, %v7558
      %v8434 = vsub.f32 0.0, %v7560
      %v8435 = vsub.f32 0.0, %v7944
      %v8436 = vsub.f32 0.0, %v7946
      %v8437 = vsub.f32 0.0, %v8295
      %v8438 = vsub.f32 0.0, %v7178
      %v8439 = vsub.f32 0.0, %v7180
      %v8440 = vsub.f32 0.0, %v7564
      %v8441 = vsub.f32 0.0, %v7566
      %v8442 = vsub.f32 0.0, %v7950
      %v8443 = vsub.f32 0.0, %v7952
      %v8444 = vsub.f32 0.0, %v8300
      %v8445 = vsub.f32 0.0, %v7182
      %v8446 = vsub.f32 0.0, %v7184
      %v8447 = vsub.f32 0.0, %v7568
      %v8448 = vsub.f32 0.0, %v7570
      %v8449 = vsub.f32 0.0, %v7954
      %v8450 = vsub.f32 0.0, %v7956
      %v8451 = vsub.f32 0.0, %v8303
      %v8452 = vsub.f32 0.0, %v7188
      %v8453 = vsub.f32 0.0, %v7190
      %v8454 = vsub.f32 0.0, %v7574
      %v8455 = vsub.f32 0.0, %v7576
      %v8456 = vsub.f32 0.0, %v7960
      %v8457 = vsub.f32 0.0, %v7962
      %v8458 = vsub.f32 0.0, %v8308
      %v8459 = vsub.f32 0.0, %v7192
      %v8460 = vsub.f32 0.0, %v7194
      %v8461 = vsub.f32 0.0, %v7578
      %v8462 = vsub.f32 0.0, %v7580
      %v8463 = vsub.f32 0.0, %v7964
      %v8464 = vsub.f32 0.0, %v7966
      %v8465 = vsub.f32 0.0, %v8311
      %v8466 = vsub.f32 0.0, %v7198
      %v8467 = vsub.f32 0.0, %v7200
      %v8468 = vsub.f32 0.0, %v7584
      %v8469 = vsub.f32 0.0, %v7586
      %v8470 = vsub.f32 0.0, %v7970
      %v8471 = vsub.f32 0.0, %v7972
      %v8472 = vsub.f32 0.0, %v8316
      %v8473 = vsub.f32 0.0, %v7202
      %v8474 = vsub.f32 0.0, %v7204
      %v8475 = vsub.f32 0.0, %v7588
      %v8476 = vsub.f32 0.0, %v7590
      %v8477 = vsub.f32 0.0, %v7974
      %v8478 = vsub.f32 0.0, %v7976
      %v8479 = vsub.f32 0.0, %v8319
      %v8480 = vsub.f32 0.0, %v7208
      %v8481 = vsub.f32 0.0, %v7210
      %v8482 = vsub.f32 0.0, %v7594
      %v8483 = vsub.f32 0.0, %v7596
      %v8484 = vsub.f32 0.0, %v7980
      %v8485 = vsub.f32 0.0, %v7982
      %v8486 = vsub.f32 0.0, %v8324
      %v8487 = vsub.f32 0.0, %v7212
      %v8488 = vsub.f32 0.0, %v7214
      %v8489 = vsub.f32 0.0, %v7598
      %v8490 = vsub.f32 0.0, %v7600
      %v8491 = vsub.f32 0.0, %v7984
      %v8492 = vsub.f32 0.0, %v7986
      %v8493 = vsub.f32 0.0, %v8327
      %v8494 = vsub.f32 0.0, %v7218
      %v8495 = vsub.f32 0.0, %v7220
      %v8496 = vsub.f32 0.0, %v7604
      %v8497 = vsub.f32 0.0, %v7606
      %v8498 = vsub.f32 0.0, %v7990
      %v8499 = vsub.f32 0.0, %v7992
      %v8500 = vsub.f32 0.0, %v8332
      %v8501 = vsub.f32 0.0, %v7222
      %v8502 = vsub.f32 0.0, %v7224
      %v8503 = vsub.f32 0.0, %v7608
      %v8504 = vsub.f32 0.0, %v7610
      %v8505 = vsub.f32 0.0, %v7994
      %v8506 = vsub.f32 0.0, %v7996
      %v8507 = vsub.f32 0.0, %v8335
      %v8508 = vsub.f32 0.0, %v7228
      %v8509 = vsub.f32 0.0, %v7230
      %v8510 = vsub.f32 0.0, %v7614
      %v8511 = vsub.f32 0.0, %v7616
      %v8512 = vsub.f32 0.0, %v8000
      %v8513 = vsub.f32 0.0, %v8002
      %v8514 = vsub.f32 0.0, %v8340
      %v8515 = vsub.f32 0.0, %v7232
      %v8516 = vsub.f32 0.0, %v7234
      %v8517 = vsub.f32 0.0, %v7618
      %v8518 = vsub.f32 0.0, %v7620
      %v8519 = vsub.f32 0.0, %v8004
      %v8520 = vsub.f32 0.0, %v8006
      %v8521 = vsub.f32 0.0, %v8343
      %v8522 = vsub.f32 0.0, %v7238
      %v8523 = vsub.f32 0.0, %v7240
      %v8524 = vsub.f32 0.0, %v7624
      %v8525 = vsub.f32 0.0, %v7626
      %v8526 = vsub.f32 0.0, %v8010
      %v8527 = vsub.f32 0.0, %v8012
      %v8528 = vsub.f32 0.0, %v8348
      %v8529 = vsub.f32 0.0, %v7242
      %v8530 = vsub.f32 0.0, %v7244
      %v8531 = vsub.f32 0.0, %v7628
      %v8532 = vsub.f32 0.0, %v7630
      %v8533 = vsub.f32 0.0, %v8014
      %v8534 = vsub.f32 0.0, %v8016
      %v8535 = vsub.f32 0.0, %v8351
      %v8536 = vsub.f32 0.0, %v7248
      %v8537 = vsub.f32 0.0, %v7250
      %v8538 = vsub.f32 0.0, %v7634
      %v8539 = vsub.f32 0.0, %v7636
      %v8540 = vsub.f32 0.0, %v8020
      %v8541 = vsub.f32 0.0, %v8022
      %v8542 = vsub.f32 0.0, %v8356
      %v8543 = vsub.f32 0.0, %v7252
      %v8544 = vsub.f32 0.0, %v7254
      %v8545 = vsub.f32 0.0, %v7638
      %v8546 = vsub.f32 0.0, %v7640
      %v8547 = vsub.f32 0.0, %v8024
      %v8548 = vsub.f32 0.0, %v8026
      %v8549 = vsub.f32 0.0, %v8359
      %v8550 = vsub.f32 0.0, %v7258
      %v8551 = vsub.f32 0.0, %v7260
      %v8552 = vsub.f32 0.0, %v7644
      %v8553 = vsub.f32 0.0, %v7646
      %v8554 = vsub.f32 0.0, %v8030
      %v8555 = vsub.f32 0.0, %v8032
      %v8556 = vsub.f32 0.0, %v8364
      %v8557 = vsub.f32 0.0, %v7262
      %v8558 = vsub.f32 0.0, %v7264
      %v8559 = vsub.f32 0.0, %v7648
      %v8560 = vsub.f32 0.0, %v7650
      %v8561 = vsub.f32 0.0, %v8034
      %v8562 = vsub.f32 0.0, %v8036
      %v8563 = vsub.f32 0.0, %v8367
      %v8564 = vsub.f32 0.0, %v7268
      %v8565 = vsub.f32 0.0, %v7270
      %v8566 = vsub.f32 0.0, %v7654
      %v8567 = vsub.f32 0.0, %v7656
      %v8568 = vsub.f32 0.0, %v8040
      %v8569 = vsub.f32 0.0, %v8042
      %v8570 = vsub.f32 0.0, %v8372
      %v8571 = vsub.f32 0.0, %v7272
      %v8572 = vsub.f32 0.0, %v7274
      %v8573 = vsub.f32 0.0, %v7658
      %v8574 = vsub.f32 0.0, %v7660
      %v8575 = vsub.f32 0.0, %v8044
      %v8576 = vsub.f32 0.0, %v8046
      %v8577 = vsub.f32 0.0, %v8375
      %v8578 = vsub.f32 0.0, %v7278
      %v8579 = vsub.f32 0.0, %v7280
      %v8580 = vsub.f32 0.0, %v7664
      %v8581 = vsub.f32 0.0, %v7666
      %v8582 = vsub.f32 0.0, %v8050
      %v8583 = vsub.f32 0.0, %v8052
      %v8584 = vsub.f32 0.0, %v8380
      %v8585 = vsub.f32 0.0, %v7282
      %v8586 = vsub.f32 0.0, %v7284
      %v8587 = vsub.f32 0.0, %v7668
      %v8588 = vsub.f32 0.0, %v7670
      %v8589 = vsub.f32 0.0, %v8054
      %v8590 = vsub.f32 0.0, %v8056
      %v8591 = vsub.f32 0.0, %v8383
      %v8592 = vsub.f32 0.0, %v7288
      %v8593 = vsub.f32 0.0, %v7290
      %v8594 = vsub.f32 0.0, %v7674
      %v8595 = vsub.f32 0.0, %v7676
      %v8596 = vsub.f32 0.0, %v8060
      %v8597 = vsub.f32 0.0, %v8062
      %v8598 = vsub.f32 0.0, %v8388
      %v8599 = vsub.f32 0.0, %v7292
      %v8600 = vsub.f32 0.0, %v7294
      %v8601 = vsub.f32 0.0, %v7678
      %v8602 = vsub.f32 0.0, %v7680
      %v8603 = vsub.f32 0.0, %v8064
      %v8604 = vsub.f32 0.0, %v8066
      %v8605 = vsub.f32 0.0, %v8391
      %v8606 = vsub.f32 0.0, %v7298
      %v8607 = vsub.f32 0.0, %v7300
      %v8608 = vsub.f32 0.0, %v7684
      %v8609 = vsub.f32 0.0, %v7686
      %v8610 = vsub.f32 0.0, %v8070
      %v8611 = vsub.f32 0.0, %v8072
      %v8612 = vsub.f32 0.0, %v8396
      %v8613 = vsub.f32 0.0, %v7302
      %v8614 = vsub.f32 0.0, %v7304
      %v8615 = vsub.f32 0.0, %v7688
      %v8616 = vsub.f32 0.0, %v7690
      %v8617 = vsub.f32 0.0, %v8074
      %v8618 = vsub.f32 0.0, %v8076
      %v8619 = vsub.f32 0.0, %v8399
      %v8620 = vsub.f32 0.0, %v7308
      %v8621 = vsub.f32 0.0, %v7310
      %v8622 = vsub.f32 0.0, %v7694
      %v8623 = vsub.f32 0.0, %v7696
      %v8624 = vsub.f32 0.0, %v8080
      %v8625 = vsub.f32 0.0, %v8082
      %v8626 = vsub.f32 0.0, %v8404
      %v8627 = vsub.f32 0.0, %v7312
      %v8628 = vsub.f32 0.0, %v7314
      %v8629 = vsub.f32 0.0, %v7698
      %v8630 = vsub.f32 0.0, %v7700
      %v8631 = vsub.f32 0.0, %v8084
      %v8632 = vsub.f32 0.0, %v8086
      %v8633 = vsub.f32 0.0, %v8407
      %v8634 = vmul.f32 %v8410, 1.442695
      %v8635 = vpow.pop %v8634
      %v8636 = vmul.f32 %v8411, 1.442695
      %v8637 = vpow.pop %v8636
      %v8638 = vmul.f32 %v8412, 1.442695
      %v8639 = vpow.pop %v8638
      %v8640 = vmul.f32 %v8413, 1.442695
      %v8641 = vpow.pop %v8640
      %v8642 = vmul.f32 %v8414, 1.442695
      %v8643 = vpow.pop %v8642
      %v8644 = vmul.f32 %v8415, 1.442695
      %v8645 = vpow.pop %v8644
      %v8646 = vmul.f32 %v8416, 1.442695
      %v8647 = vpow.pop %v8646
      %v8648 = vmul.f32 %v8417, 1.442695
      %v8649 = vpow.pop %v8648
      %v8650 = vmul.f32 %v8418, 1.442695
      %v8651 = vpow.pop %v8650
      %v8652 = vmul.f32 %v8419, 1.442695
      %v8653 = vpow.pop %v8652
      %v8654 = vmul.f32 %v8420, 1.442695
      %v8655 = vpow.pop %v8654
      %v8656 = vmul.f32 %v8421, 1.442695
      %v8657 = vpow.pop %v8656
      %v8658 = vmul.f32 %v8422, 1.442695
      %v8659 = vpow.pop %v8658
      %v8660 = vmul.f32 %v8423, 1.442695
      %v8661 = vpow.pop %v8660
      %v8662 = vmul.f32 %v8424, 1.442695
      %v8663 = vpow.pop %v8662
      %v8664 = vmul.f32 %v8425, 1.442695
      %v8665 = vpow.pop %v8664
      %v8666 = vmul.f32 %v8426, 1.442695
      %v8667 = vpow.pop %v8666
      %v8668 = vmul.f32 %v8427, 1.442695
      %v8669 = vpow.pop %v8668
      %v8670 = vmul.f32 %v8428, 1.442695
      %v8671 = vpow.pop %v8670
      %v8672 = vmul.f32 %v8429, 1.442695
      %v8673 = vpow.pop %v8672
      %v8674 = vmul.f32 %v8430, 1.442695
      %v8675 = vpow.pop %v8674
      %v8676 = vmul.f32 %v8431, 1.442695
      %v8677 = vpow.pop %v8676
      %v8678 = vmul.f32 %v8432, 1.442695
      %v8679 = vpow.pop %v8678
      %v8680 = vmul.f32 %v8433, 1.442695
      %v8681 = vpow.pop %v8680
      %v8682 = vmul.f32 %v8434, 1.442695
      %v8683 = vpow.pop %v8682
      %v8684 = vmul.f32 %v8435, 1.442695
      %v8685 = vpow.pop %v8684
      %v8686 = vmul.f32 %v8436, 1.442695
      %v8687 = vpow.pop %v8686
      %v8688 = vmul.f32 %v8437, 1.442695
      %v8689 = vpow.pop %v8688
      %v8690 = vmul.f32 %v8438, 1.442695
      %v8691 = vpow.pop %v8690
      %v8692 = vmul.f32 %v8439, 1.442695
      %v8693 = vpow.pop %v8692
      %v8694 = vmul.f32 %v8440, 1.442695
      %v8695 = vpow.pop %v8694
      %v8696 = vmul.f32 %v8441, 1.442695
      %v8697 = vpow.pop %v8696
      %v8698 = vmul.f32 %v8442, 1.442695
      %v8699 = vpow.pop %v8698
      %v8700 = vmul.f32 %v8443, 1.442695
      %v8701 = vpow.pop %v8700
      %v8702 = vmul.f32 %v8444, 1.442695
      %v8703 = vpow.pop %v8702
      %v8704 = vmul.f32 %v8445, 1.442695
      %v8705 = vpow.pop %v8704
      %v8706 = vmul.f32 %v8446, 1.442695
      %v8707 = vpow.pop %v8706
      %v8708 = vmul.f32 %v8447, 1.442695
      %v8709 = vpow.pop %v8708
      %v8710 = vmul.f32 %v8448, 1.442695
      %v8711 = vpow.pop %v8710
      %v8712 = vmul.f32 %v8449, 1.442695
      %v8713 = vpow.pop %v8712
      %v8714 = vmul.f32 %v8450, 1.442695
      %v8715 = vpow.pop %v8714
      %v8716 = vmul.f32 %v8451, 1.442695
      %v8717 = vpow.pop %v8716
      %v8718 = vmul.f32 %v8452, 1.442695
      %v8719 = vpow.pop %v8718
      %v8720 = vmul.f32 %v8453, 1.442695
      %v8721 = vpow.pop %v8720
      %v8722 = vmul.f32 %v8454, 1.442695
      %v8723 = vpow.pop %v8722
      %v8724 = vmul.f32 %v8455, 1.442695
      %v8725 = vpow.pop %v8724
      %v8726 = vmul.f32 %v8456, 1.442695
      %v8727 = vpow.pop %v8726
      %v8728 = vmul.f32 %v8457, 1.442695
      %v8729 = vpow.pop %v8728
      %v8730 = vmul.f32 %v8458, 1.442695
      %v8731 = vpow.pop %v8730
      %v8732 = vmul.f32 %v8459, 1.442695
      %v8733 = vpow.pop %v8732
      %v8734 = vmul.f32 %v8460, 1.442695
      %v8735 = vpow.pop %v8734
      %v8736 = vmul.f32 %v8461, 1.442695
      %v8737 = vpow.pop %v8736
      %v8738 = vmul.f32 %v8462, 1.442695
      %v8739 = vpow.pop %v8738
      %v8740 = vmul.f32 %v8463, 1.442695
      %v8741 = vpow.pop %v8740
      %v8742 = vmul.f32 %v8464, 1.442695
      %v8743 = vpow.pop %v8742
      %v8744 = vmul.f32 %v8465, 1.442695
      %v8745 = vpow.pop %v8744
      %v8746 = vmul.f32 %v8466, 1.442695
      %v8747 = vpow.pop %v8746
      %v8748 = vmul.f32 %v8467, 1.442695
      %v8749 = vpow.pop %v8748
      %v8750 = vmul.f32 %v8468, 1.442695
      %v8751 = vpow.pop %v8750
      %v8752 = vmul.f32 %v8469, 1.442695
      %v8753 = vpow.pop %v8752
      %v8754 = vmul.f32 %v8470, 1.442695
      %v8755 = vpow.pop %v8754
      %v8756 = vmul.f32 %v8471, 1.442695
      %v8757 = vpow.pop %v8756
      %v8758 = vmul.f32 %v8472, 1.442695
      %v8759 = vpow.pop %v8758
      %v8760 = vmul.f32 %v8473, 1.442695
      %v8761 = vpow.pop %v8760
      %v8762 = vmul.f32 %v8474, 1.442695
      %v8763 = vpow.pop %v8762
      %v8764 = vmul.f32 %v8475, 1.442695
      %v8765 = vpow.pop %v8764
      %v8766 = vmul.f32 %v8476, 1.442695
      %v8767 = vpow.pop %v8766
      %v8768 = vmul.f32 %v8477, 1.442695
      %v8769 = vpow.pop %v8768
      %v8770 = vmul.f32 %v8478, 1.442695
      %v8771 = vpow.pop %v8770
      %v8772 = vmul.f32 %v8479, 1.442695
      %v8773 = vpow.pop %v8772
      %v8774 = vmul.f32 %v8480, 1.442695
      %v8775 = vpow.pop %v8774
      %v8776 = vmul.f32 %v8481, 1.442695
      %v8777 = vpow.pop %v8776
      %v8778 = vmul.f32 %v8482, 1.442695
      %v8779 = vpow.pop %v8778
      %v8780 = vmul.f32 %v8483, 1.442695
      %v8781 = vpow.pop %v8780
      %v8782 = vmul.f32 %v8484, 1.442695
      %v8783 = vpow.pop %v8782
      %v8784 = vmul.f32 %v8485, 1.442695
      %v8785 = vpow.pop %v8784
      %v8786 = vmul.f32 %v8486, 1.442695
      %v8787 = vpow.pop %v8786
      %v8788 = vmul.f32 %v8487, 1.442695
      %v8789 = vpow.pop %v8788
      %v8790 = vmul.f32 %v8488, 1.442695
      %v8791 = vpow.pop %v8790
      %v8792 = vmul.f32 %v8489, 1.442695
      %v8793 = vpow.pop %v8792
      %v8794 = vmul.f32 %v8490, 1.442695
      %v8795 = vpow.pop %v8794
      %v8796 = vmul.f32 %v8491, 1.442695
      %v8797 = vpow.pop %v8796
      %v8798 = vmul.f32 %v8492, 1.442695
      %v8799 = vpow.pop %v8798
      %v8800 = vmul.f32 %v8493, 1.442695
      %v8801 = vpow.pop %v8800
      %v8802 = vmul.f32 %v8494, 1.442695
      %v8803 = vpow.pop %v8802
      %v8804 = vmul.f32 %v8495, 1.442695
      %v8805 = vpow.pop %v8804
      %v8806 = vmul.f32 %v8496, 1.442695
      %v8807 = vpow.pop %v8806
      %v8808 = vmul.f32 %v8497, 1.442695
      %v8809 = vpow.pop %v8808
      %v8810 = vmul.f32 %v8498, 1.442695
      %v8811 = vpow.pop %v8810
      %v8812 = vmul.f32 %v8499, 1.442695
      %v8813 = vpow.pop %v8812
      %v8814 = vmul.f32 %v8500, 1.442695
      %v8815 = vpow.pop %v8814
      %v8816 = vmul.f32 %v8501, 1.442695
      %v8817 = vpow.pop %v8816
      %v8818 = vmul.f32 %v8502, 1.442695
      %v8819 = vpow.pop %v8818
      %v8820 = vmul.f32 %v8503, 1.442695
      %v8821 = vpow.pop %v8820
      %v8822 = vmul.f32 %v8504, 1.442695
      %v8823 = vpow.pop %v8822
      %v8824 = vmul.f32 %v8505, 1.442695
      %v8825 = vpow.pop %v8824
      %v8826 = vmul.f32 %v8506, 1.442695
      %v8827 = vpow.pop %v8826
      %v8828 = vmul.f32 %v8507, 1.442695
      %v8829 = vpow.pop %v8828
      %v8830 = vmul.f32 %v8508, 1.442695
      %v8831 = vpow.pop %v8830
      %v8832 = vmul.f32 %v8509, 1.442695
      %v8833 = vpow.pop %v8832
      %v8834 = vmul.f32 %v8510, 1.442695
      %v8835 = vpow.pop %v8834
      %v8836 = vmul.f32 %v8511, 1.442695
      %v8837 = vpow.pop %v8836
      %v8838 = vmul.f32 %v8512, 1.442695
      %v8839 = vpow.pop %v8838
      %v8840 = vmul.f32 %v8513, 1.442695
      %v8841 = vpow.pop %v8840
      %v8842 = vmul.f32 %v8514, 1.442695
      %v8843 = vpow.pop %v8842
      %v8844 = vmul.f32 %v8515, 1.442695
      %v8845 = vpow.pop %v8844
      %v8846 = vmul.f32 %v8516, 1.442695
      %v8847 = vpow.pop %v8846
      %v8848 = vmul.f32 %v8517, 1.442695
      %v8849 = vpow.pop %v8848
      %v8850 = vmul.f32 %v8518, 1.442695
      %v8851 = vpow.pop %v8850
      %v8852 = vmul.f32 %v8519, 1.442695
      %v8853 = vpow.pop %v8852
      %v8854 = vmul.f32 %v8520, 1.442695
      %v8855 = vpow.pop %v8854
      %v8856 = vmul.f32 %v8521, 1.442695
      %v8857 = vpow.pop %v8856
      %v8858 = vmul.f32 %v8522, 1.442695
      %v8859 = vpow.pop %v8858
      %v8860 = vmul.f32 %v8523, 1.442695
      %v8861 = vpow.pop %v8860
      %v8862 = vmul.f32 %v8524, 1.442695
      %v8863 = vpow.pop %v8862
      %v8864 = vmul.f32 %v8525, 1.442695
      %v8865 = vpow.pop %v8864
      %v8866 = vmul.f32 %v8526, 1.442695
      %v8867 = vpow.pop %v8866
      %v8868 = vmul.f32 %v8527, 1.442695
      %v8869 = vpow.pop %v8868
      %v8870 = vmul.f32 %v8528, 1.442695
      %v8871 = vpow.pop %v8870
      %v8872 = vmul.f32 %v8529, 1.442695
      %v8873 = vpow.pop %v8872
      %v8874 = vmul.f32 %v8530, 1.442695
      %v8875 = vpow.pop %v8874
      %v8876 = vmul.f32 %v8531, 1.442695
      %v8877 = vpow.pop %v8876
      %v8878 = vmul.f32 %v8532, 1.442695
      %v8879 = vpow.pop %v8878
      %v8880 = vmul.f32 %v8533, 1.442695
      %v8881 = vpow.pop %v8880
      %v8882 = vmul.f32 %v8534, 1.442695
      %v8883 = vpow.pop %v8882
      %v8884 = vmul.f32 %v8535, 1.442695
      %v8885 = vpow.pop %v8884
      %v8886 = vmul.f32 %v8536, 1.442695
      %v8887 = vpow.pop %v8886
      %v8888 = vmul.f32 %v8537, 1.442695
      %v8889 = vpow.pop %v8888
      %v8890 = vmul.f32 %v8538, 1.442695
      %v8891 = vpow.pop %v8890
      %v8892 = vmul.f32 %v8539, 1.442695
      %v8893 = vpow.pop %v8892
      %v8894 = vmul.f32 %v8540, 1.442695
      %v8895 = vpow.pop %v8894
      %v8896 = vmul.f32 %v8541, 1.442695
      %v8897 = vpow.pop %v8896
      %v8898 = vmul.f32 %v8542, 1.442695
      %v8899 = vpow.pop %v8898
      %v8900 = vmul.f32 %v8543, 1.442695
      %v8901 = vpow.pop %v8900
      %v8902 = vmul.f32 %v8544, 1.442695
      %v8903 = vpow.pop %v8902
      %v8904 = vmul.f32 %v8545, 1.442695
      %v8905 = vpow.pop %v8904
      %v8906 = vmul.f32 %v8546, 1.442695
      %v8907 = vpow.pop %v8906
      %v8908 = vmul.f32 %v8547, 1.442695
      %v8909 = vpow.pop %v8908
      %v8910 = vmul.f32 %v8548, 1.442695
      %v8911 = vpow.pop %v8910
      %v8912 = vmul.f32 %v8549, 1.442695
      %v8913 = vpow.pop %v8912
      %v8914 = vmul.f32 %v8550, 1.442695
      %v8915 = vpow.pop %v8914
      %v8916 = vmul.f32 %v8551, 1.442695
      %v8917 = vpow.pop %v8916
      %v8918 = vmul.f32 %v8552, 1.442695
      %v8919 = vpow.pop %v8918
      %v8920 = vmul.f32 %v8553, 1.442695
      %v8921 = vpow.pop %v8920
      %v8922 = vmul.f32 %v8554, 1.442695
      %v8923 = vpow.pop %v8922
      %v8924 = vmul.f32 %v8555, 1.442695
      %v8925 = vpow.pop %v8924
      %v8926 = vmul.f32 %v8556, 1.442695
      %v8927 = vpow.pop %v8926
      %v8928 = vmul.f32 %v8557, 1.442695
      %v8929 = vpow.pop %v8928
      %v8930 = vmul.f32 %v8558, 1.442695
      %v8931 = vpow.pop %v8930
      %v8932 = vmul.f32 %v8559, 1.442695
      %v8933 = vpow.pop %v8932
      %v8934 = vmul.f32 %v8560, 1.442695
      %v8935 = vpow.pop %v8934
      %v8936 = vmul.f32 %v8561, 1.442695
      %v8937 = vpow.pop %v8936
      %v8938 = vmul.f32 %v8562, 1.442695
      %v8939 = vpow.pop %v8938
      %v8940 = vmul.f32 %v8563, 1.442695
      %v8941 = vpow.pop %v8940
      %v8942 = vmul.f32 %v8564, 1.442695
      %v8943 = vpow.pop %v8942
      %v8944 = vmul.f32 %v8565, 1.442695
      %v8945 = vpow.pop %v8944
      %v8946 = vmul.f32 %v8566, 1.442695
      %v8947 = vpow.pop %v8946
      %v8948 = vmul.f32 %v8567, 1.442695
      %v8949 = vpow.pop %v8948
      %v8950 = vmul.f32 %v8568, 1.442695
      %v8951 = vpow.pop %v8950
      %v8952 = vmul.f32 %v8569, 1.442695
      %v8953 = vpow.pop %v8952
      %v8954 = vmul.f32 %v8570, 1.442695
      %v8955 = vpow.pop %v8954
      %v8956 = vmul.f32 %v8571, 1.442695
      %v8957 = vpow.pop %v8956
      %v8958 = vmul.f32 %v8572, 1.442695
      %v8959 = vpow.pop %v8958
      %v8960 = vmul.f32 %v8573, 1.442695
      %v8961 = vpow.pop %v8960
      %v8962 = vmul.f32 %v8574, 1.442695
      %v8963 = vpow.pop %v8962
      %v8964 = vmul.f32 %v8575, 1.442695
      %v8965 = vpow.pop %v8964
      %v8966 = vmul.f32 %v8576, 1.442695
      %v8967 = vpow.pop %v8966
      %v8968 = vmul.f32 %v8577, 1.442695
      %v8969 = vpow.pop %v8968
      %v8970 = vmul.f32 %v8578, 1.442695
      %v8971 = vpow.pop %v8970
      %v8972 = vmul.f32 %v8579, 1.442695
      %v8973 = vpow.pop %v8972
      %v8974 = vmul.f32 %v8580, 1.442695
      %v8975 = vpow.pop %v8974
      %v8976 = vmul.f32 %v8581, 1.442695
      %v8977 = vpow.pop %v8976
      %v8978 = vmul.f32 %v8582, 1.442695
      %v8979 = vpow.pop %v8978
      %v8980 = vmul.f32 %v8583, 1.442695
      %v8981 = vpow.pop %v8980
      %v8982 = vmul.f32 %v8584, 1.442695
      %v8983 = vpow.pop %v8982
      %v8984 = vmul.f32 %v8585, 1.442695
      %v8985 = vpow.pop %v8984
      %v8986 = vmul.f32 %v8586, 1.442695
      %v8987 = vpow.pop %v8986
      %v8988 = vmul.f32 %v8587, 1.442695
      %v8989 = vpow.pop %v8988
      %v8990 = vmul.f32 %v8588, 1.442695
      %v8991 = vpow.pop %v8990
      %v8992 = vmul.f32 %v8589, 1.442695
      %v8993 = vpow.pop %v8992
      %v8994 = vmul.f32 %v8590, 1.442695
      %v8995 = vpow.pop %v8994
      %v8996 = vmul.f32 %v8591, 1.442695
      %v8997 = vpow.pop %v8996
      %v8998 = vmul.f32 %v8592, 1.442695
      %v8999 = vpow.pop %v8998
      %v9000 = vmul.f32 %v8593, 1.442695
      %v9001 = vpow.pop %v9000
      %v9002 = vmul.f32 %v8594, 1.442695
      %v9003 = vpow.pop %v9002
      %v9004 = vmul.f32 %v8595, 1.442695
      %v9005 = vpow.pop %v9004
      %v9006 = vmul.f32 %v8596, 1.442695
      %v9007 = vpow.pop %v9006
      %v9008 = vmul.f32 %v8597, 1.442695
      %v9009 = vpow.pop %v9008
      %v9010 = vmul.f32 %v8598, 1.442695
      %v9011 = vpow.pop %v9010
      %v9012 = vmul.f32 %v8599, 1.442695
      %v9013 = vpow.pop %v9012
      %v9014 = vmul.f32 %v8600, 1.442695
      %v9015 = vpow.pop %v9014
      %v9016 = vmul.f32 %v8601, 1.442695
      %v9017 = vpow.pop %v9016
      %v9018 = vmul.f32 %v8602, 1.442695
      %v9019 = vpow.pop %v9018
      %v9020 = vmul.f32 %v8603, 1.442695
      %v9021 = vpow.pop %v9020
      %v9022 = vmul.f32 %v8604, 1.442695
      %v9023 = vpow.pop %v9022
      %v9024 = vmul.f32 %v8605, 1.442695
      %v9025 = vpow.pop %v9024
      %v9026 = vmul.f32 %v8606, 1.442695
      %v9027 = vpow.pop %v9026
      %v9028 = vmul.f32 %v8607, 1.442695
      %v9029 = vpow.pop %v9028
      %v9030 = vmul.f32 %v8608, 1.442695
      %v9031 = vpow.pop %v9030
      %v9032 = vmul.f32 %v8609, 1.442695
      %v9033 = vpow.pop %v9032
      %v9034 = vmul.f32 %v8610, 1.442695
      %v9035 = vpow.pop %v9034
      %v9036 = vmul.f32 %v8611, 1.442695
      %v9037 = vpow.pop %v9036
      %v9038 = vmul.f32 %v8612, 1.442695
      %v9039 = vpow.pop %v9038
      %v9040 = vmul.f32 %v8613, 1.442695
      %v9041 = vpow.pop %v9040
      %v9042 = vmul.f32 %v8614, 1.442695
      %v9043 = vpow.pop %v9042
      %v9044 = vmul.f32 %v8615, 1.442695
      %v9045 = vpow.pop %v9044
      %v9046 = vmul.f32 %v8616, 1.442695
      %v9047 = vpow.pop %v9046
      %v9048 = vmul.f32 %v8617, 1.442695
      %v9049 = vpow.pop %v9048
      %v9050 = vmul.f32 %v8618, 1.442695
      %v9051 = vpow.pop %v9050
      %v9052 = vmul.f32 %v8619, 1.442695
      %v9053 = vpow.pop %v9052
      %v9054 = vmul.f32 %v8620, 1.442695
      %v9055 = vpow.pop %v9054
      %v9056 = vmul.f32 %v8621, 1.442695
      %v9057 = vpow.pop %v9056
      %v9058 = vmul.f32 %v8622, 1.442695
      %v9059 = vpow.pop %v9058
      %v9060 = vmul.f32 %v8623, 1.442695
      %v9061 = vpow.pop %v9060
      %v9062 = vmul.f32 %v8624, 1.442695
      %v9063 = vpow.pop %v9062
      %v9064 = vmul.f32 %v8625, 1.442695
      %v9065 = vpow.pop %v9064
      %v9066 = vmul.f32 %v8626, 1.442695
      %v9067 = vpow.pop %v9066
      %v9068 = vmul.f32 %v8627, 1.442695
      %v9069 = vpow.pop %v9068
      %v9070 = vmul.f32 %v8628, 1.442695
      %v9071 = vpow.pop %v9070
      %v9072 = vmul.f32 %v8629, 1.442695
      %v9073 = vpow.pop %v9072
      %v9074 = vmul.f32 %v8630, 1.442695
      %v9075 = vpow.pop %v9074
      %v9076 = vmul.f32 %v8631, 1.442695
      %v9077 = vpow.pop %v9076
      %v9078 = vmul.f32 %v8632, 1.442695
      %v9079 = vpow.pop %v9078
      %v9080 = vmul.f32 %v8633, 1.442695
      %v9081 = vpow.pop %v9080
      %v9082 = vadd.f32 %v8635, 1.0
      %v9083 = vadd.f32 %v8637, 1.0
      %v9084 = vadd.f32 %v8639, 1.0
      %v9085 = vadd.f32 %v8641, 1.0
      %v9086 = vadd.f32 %v8643, 1.0
      %v9087 = vadd.f32 %v8645, 1.0
      %v9088 = vadd.f32 %v8647, 1.0
      %v9089 = vadd.f32 %v8649, 1.0
      %v9090 = vadd.f32 %v8651, 1.0
      %v9091 = vadd.f32 %v8653, 1.0
      %v9092 = vadd.f32 %v8655, 1.0
      %v9093 = vadd.f32 %v8657, 1.0
      %v9094 = vadd.f32 %v8659, 1.0
      %v9095 = vadd.f32 %v8661, 1.0
      %v9096 = vadd.f32 %v8663, 1.0
      %v9097 = vadd.f32 %v8665, 1.0
      %v9098 = vadd.f32 %v8667, 1.0
      %v9099 = vadd.f32 %v8669, 1.0
      %v9100 = vadd.f32 %v8671, 1.0
      %v9101 = vadd.f32 %v8673, 1.0
      %v9102 = vadd.f32 %v8675, 1.0
      %v9103 = vadd.f32 %v8677, 1.0
      %v9104 = vadd.f32 %v8679, 1.0
      %v9105 = vadd.f32 %v8681, 1.0
      %v9106 = vadd.f32 %v8683, 1.0
      %v9107 = vadd.f32 %v8685, 1.0
      %v9108 = vadd.f32 %v8687, 1.0
      %v9109 = vadd.f32 %v8689, 1.0
      %v9110 = vadd.f32 %v8691, 1.0
      %v9111 = vadd.f32 %v8693, 1.0
      %v9112 = vadd.f32 %v8695, 1.0
      %v9113 = vadd.f32 %v8697, 1.0
      %v9114 = vadd.f32 %v8699, 1.0
      %v9115 = vadd.f32 %v8701, 1.0
      %v9116 = vadd.f32 %v8703, 1.0
      %v9117 = vadd.f32 %v8705, 1.0
      %v9118 = vadd.f32 %v8707, 1.0
      %v9119 = vadd.f32 %v8709, 1.0
      %v9120 = vadd.f32 %v8711, 1.0
      %v9121 = vadd.f32 %v8713, 1.0
      %v9122 = vadd.f32 %v8715, 1.0
      %v9123 = vadd.f32 %v8717, 1.0
      %v9124 = vadd.f32 %v8719, 1.0
      %v9125 = vadd.f32 %v8721, 1.0
      %v9126 = vadd.f32 %v8723, 1.0
      %v9127 = vadd.f32 %v8725, 1.0
      %v9128 = vadd.f32 %v8727, 1.0
      %v9129 = vadd.f32 %v8729, 1.0
      %v9130 = vadd.f32 %v8731, 1.0
      %v9131 = vadd.f32 %v8733, 1.0
      %v9132 = vadd.f32 %v8735, 1.0
      %v9133 = vadd.f32 %v8737, 1.0
      %v9134 = vadd.f32 %v8739, 1.0
      %v9135 = vadd.f32 %v8741, 1.0
      %v9136 = vadd.f32 %v8743, 1.0
      %v9137 = vadd.f32 %v8745, 1.0
      %v9138 = vadd.f32 %v8747, 1.0
      %v9139 = vadd.f32 %v8749, 1.0
      %v9140 = vadd.f32 %v8751, 1.0
      %v9141 = vadd.f32 %v8753, 1.0
      %v9142 = vadd.f32 %v8755, 1.0
      %v9143 = vadd.f32 %v8757, 1.0
      %v9144 = vadd.f32 %v8759, 1.0
      %v9145 = vadd.f32 %v8761, 1.0
      %v9146 = vadd.f32 %v8763, 1.0
      %v9147 = vadd.f32 %v8765, 1.0
      %v9148 = vadd.f32 %v8767, 1.0
      %v9149 = vadd.f32 %v8769, 1.0
      %v9150 = vadd.f32 %v8771, 1.0
      %v9151 = vadd.f32 %v8773, 1.0
      %v9152 = vadd.f32 %v8775, 1.0
      %v9153 = vadd.f32 %v8777, 1.0
      %v9154 = vadd.f32 %v8779, 1.0
      %v9155 = vadd.f32 %v8781, 1.0
      %v9156 = vadd.f32 %v8783, 1.0
      %v9157 = vadd.f32 %v8785, 1.0
      %v9158 = vadd.f32 %v8787, 1.0
      %v9159 = vadd.f32 %v8789, 1.0
      %v9160 = vadd.f32 %v8791, 1.0
      %v9161 = vadd.f32 %v8793, 1.0
      %v9162 = vadd.f32 %v8795, 1.0
      %v9163 = vadd.f32 %v8797, 1.0
      %v9164 = vadd.f32 %v8799, 1.0
      %v9165 = vadd.f32 %v8801, 1.0
      %v9166 = vadd.f32 %v8803, 1.0
      %v9167 = vadd.f32 %v8805, 1.0
      %v9168 = vadd.f32 %v8807, 1.0
      %v9169 = vadd.f32 %v8809, 1.0
      %v9170 = vadd.f32 %v8811, 1.0
      %v9171 = vadd.f32 %v8813, 1.0
      %v9172 = vadd.f32 %v8815, 1.0
      %v9173 = vadd.f32 %v8817, 1.0
      %v9174 = vadd.f32 %v8819, 1.0
      %v9175 = vadd.f32 %v8821, 1.0
      %v9176 = vadd.f32 %v8823, 1.0
      %v9177 = vadd.f32 %v8825, 1.0
      %v9178 = vadd.f32 %v8827, 1.0
      %v9179 = vadd.f32 %v8829, 1.0
      %v9180 = vadd.f32 %v8831, 1.0
      %v9181 = vadd.f32 %v8833, 1.0
      %v9182 = vadd.f32 %v8835, 1.0
      %v9183 = vadd.f32 %v8837, 1.0
      %v9184 = vadd.f32 %v8839, 1.0
      %v9185 = vadd.f32 %v8841, 1.0
      %v9186 = vadd.f32 %v8843, 1.0
      %v9187 = vadd.f32 %v8845, 1.0
      %v9188 = vadd.f32 %v8847, 1.0
      %v9189 = vadd.f32 %v8849, 1.0
      %v9190 = vadd.f32 %v8851, 1.0
      %v9191 = vadd.f32 %v8853, 1.0
      %v9192 = vadd.f32 %v8855, 1.0
      %v9193 = vadd.f32 %v8857, 1.0
      %v9194 = vadd.f32 %v8859, 1.0
      %v9195 = vadd.f32 %v8861, 1.0
      %v9196 = vadd.f32 %v8863, 1.0
      %v9197 = vadd.f32 %v8865, 1.0
      %v9198 = vadd.f32 %v8867, 1.0
      %v9199 = vadd.f32 %v8869, 1.0
      %v9200 = vadd.f32 %v8871, 1.0
      %v9201 = vadd.f32 %v8873, 1.0
      %v9202 = vadd.f32 %v8875, 1.0
      %v9203 = vadd.f32 %v8877, 1.0
      %v9204 = vadd.f32 %v8879, 1.0
      %v9205 = vadd.f32 %v8881, 1.0
      %v9206 = vadd.f32 %v8883, 1.0
      %v9207 = vadd.f32 %v8885, 1.0
      %v9208 = vadd.f32 %v8887, 1.0
      %v9209 = vadd.f32 %v8889, 1.0
      %v9210 = vadd.f32 %v8891, 1.0
      %v9211 = vadd.f32 %v8893, 1.0
      %v9212 = vadd.f32 %v8895, 1.0
      %v9213 = vadd.f32 %v8897, 1.0
      %v9214 = vadd.f32 %v8899, 1.0
      %v9215 = vadd.f32 %v8901, 1.0
      %v9216 = vadd.f32 %v8903, 1.0
      %v9217 = vadd.f32 %v8905, 1.0
      %v9218 = vadd.f32 %v8907, 1.0
      %v9219 = vadd.f32 %v8909, 1.0
      %v9220 = vadd.f32 %v8911, 1.0
      %v9221 = vadd.f32 %v8913, 1.0
      %v9222 = vadd.f32 %v8915, 1.0
      %v9223 = vadd.f32 %v8917, 1.0
      %v9224 = vadd.f32 %v8919, 1.0
      %v9225 = vadd.f32 %v8921, 1.0
      %v9226 = vadd.f32 %v8923, 1.0
      %v9227 = vadd.f32 %v8925, 1.0
      %v9228 = vadd.f32 %v8927, 1.0
      %v9229 = vadd.f32 %v8929, 1.0
      %v9230 = vadd.f32 %v8931, 1.0
      %v9231 = vadd.f32 %v8933, 1.0
      %v9232 = vadd.f32 %v8935, 1.0
      %v9233 = vadd.f32 %v8937, 1.0
      %v9234 = vadd.f32 %v8939, 1.0
      %v9235 = vadd.f32 %v8941, 1.0
      %v9236 = vadd.f32 %v8943, 1.0
      %v9237 = vadd.f32 %v8945, 1.0
      %v9238 = vadd.f32 %v8947, 1.0
      %v9239 = vadd.f32 %v8949, 1.0
      %v9240 = vadd.f32 %v8951, 1.0
      %v9241 = vadd.f32 %v8953, 1.0
      %v9242 = vadd.f32 %v8955, 1.0
      %v9243 = vadd.f32 %v8957, 1.0
      %v9244 = vadd.f32 %v8959, 1.0
      %v9245 = vadd.f32 %v8961, 1.0
      %v9246 = vadd.f32 %v8963, 1.0
      %v9247 = vadd.f32 %v8965, 1.0
      %v9248 = vadd.f32 %v8967, 1.0
      %v9249 = vadd.f32 %v8969, 1.0
      %v9250 = vadd.f32 %v8971, 1.0
      %v9251 = vadd.f32 %v8973, 1.0
      %v9252 = vadd.f32 %v8975, 1.0
      %v9253 = vadd.f32 %v8977, 1.0
      %v9254 = vadd.f32 %v8979, 1.0
      %v9255 = vadd.f32 %v8981, 1.0
      %v9256 = vadd.f32 %v8983, 1.0
      %v9257 = vadd.f32 %v8985, 1.0
      %v9258 = vadd.f32 %v8987, 1.0
      %v9259 = vadd.f32 %v8989, 1.0
      %v9260 = vadd.f32 %v8991, 1.0
      %v9261 = vadd.f32 %v8993, 1.0
      %v9262 = vadd.f32 %v8995, 1.0
      %v9263 = vadd.f32 %v8997, 1.0
      %v9264 = vadd.f32 %v8999, 1.0
      %v9265 = vadd.f32 %v9001, 1.0
      %v9266 = vadd.f32 %v9003, 1.0
      %v9267 = vadd.f32 %v9005, 1.0
      %v9268 = vadd.f32 %v9007, 1.0
      %v9269 = vadd.f32 %v9009, 1.0
      %v9270 = vadd.f32 %v9011, 1.0
      %v9271 = vadd.f32 %v9013, 1.0
      %v9272 = vadd.f32 %v9015, 1.0
      %v9273 = vadd.f32 %v9017, 1.0
      %v9274 = vadd.f32 %v9019, 1.0
      %v9275 = vadd.f32 %v9021, 1.0
      %v9276 = vadd.f32 %v9023, 1.0
      %v9277 = vadd.f32 %v9025, 1.0
      %v9278 = vadd.f32 %v9027, 1.0
      %v9279 = vadd.f32 %v9029, 1.0
      %v9280 = vadd.f32 %v9031, 1.0
      %v9281 = vadd.f32 %v9033, 1.0
      %v9282 = vadd.f32 %v9035, 1.0
      %v9283 = vadd.f32 %v9037, 1.0
      %v9284 = vadd.f32 %v9039, 1.0
      %v9285 = vadd.f32 %v9041, 1.0
      %v9286 = vadd.f32 %v9043, 1.0
      %v9287 = vadd.f32 %v9045, 1.0
      %v9288 = vadd.f32 %v9047, 1.0
      %v9289 = vadd.f32 %v9049, 1.0
      %v9290 = vadd.f32 %v9051, 1.0
      %v9291 = vadd.f32 %v9053, 1.0
      %v9292 = vadd.f32 %v9055, 1.0
      %v9293 = vadd.f32 %v9057, 1.0
      %v9294 = vadd.f32 %v9059, 1.0
      %v9295 = vadd.f32 %v9061, 1.0
      %v9296 = vadd.f32 %v9063, 1.0
      %v9297 = vadd.f32 %v9065, 1.0
      %v9298 = vadd.f32 %v9067, 1.0
      %v9299 = vadd.f32 %v9069, 1.0
      %v9300 = vadd.f32 %v9071, 1.0
      %v9301 = vadd.f32 %v9073, 1.0
      %v9302 = vadd.f32 %v9075, 1.0
      %v9303 = vadd.f32 %v9077, 1.0
      %v9304 = vadd.f32 %v9079, 1.0
      %v9305 = vadd.f32 %v9081, 1.0
      %v9306 = vrcp.pop %v9082
      %v9307 = vrcp.pop %v9083
      %v9308 = vrcp.pop %v9084
      %v9309 = vrcp.pop %v9085
      %v9310 = vrcp.pop %v9086
      %v9311 = vrcp.pop %v9087
      %v9312 = vrcp.pop %v9088
      %v9313 = vrcp.pop %v9089
      %v9314 = vrcp.pop %v9090
      %v9315 = vrcp.pop %v9091
      %v9316 = vrcp.pop %v9092
      %v9317 = vrcp.pop %v9093
      %v9318 = vrcp.pop %v9094
      %v9319 = vrcp.pop %v9095
      %v9320 = vrcp.pop %v9096
      %v9321 = vrcp.pop %v9097
      %v9322 = vrcp.pop %v9098
      %v9323 = vrcp.pop %v9099
      %v9324 = vrcp.pop %v9100
      %v9325 = vrcp.pop %v9101
      %v9326 = vrcp.pop %v9102
      %v9327 = vrcp.pop %v9103
      %v9328 = vrcp.pop %v9104
      %v9329 = vrcp.pop %v9105
      %v9330 = vrcp.pop %v9106
      %v9331 = vrcp.pop %v9107
      %v9332 = vrcp.pop %v9108
      %v9333 = vrcp.pop %v9109
      %v9334 = vrcp.pop %v9110
      %v9335 = vrcp.pop %v9111
      %v9336 = vrcp.pop %v9112
      %v9337 = vrcp.pop %v9113
      %v9338 = vrcp.pop %v9114
      %v9339 = vrcp.pop %v9115
      %v9340 = vrcp.pop %v9116
      %v9341 = vrcp.pop %v9117
      %v9342 = vrcp.pop %v9118
      %v9343 = vrcp.pop %v9119
      %v9344 = vrcp.pop %v9120
      %v9345 = vrcp.pop %v9121
      %v9346 = vrcp.pop %v9122
      %v9347 = vrcp.pop %v9123
      %v9348 = vrcp.pop %v9124
      %v9349 = vrcp.pop %v9125
      %v9350 = vrcp.pop %v9126
      %v9351 = vrcp.pop %v9127
      %v9352 = vrcp.pop %v9128
      %v9353 = vrcp.pop %v9129
      %v9354 = vrcp.pop %v9130
      %v9355 = vrcp.pop %v9131
      %v9356 = vrcp.pop %v9132
      %v9357 = vrcp.pop %v9133
      %v9358 = vrcp.pop %v9134
      %v9359 = vrcp.pop %v9135
      %v9360 = vrcp.pop %v9136
      %v9361 = vrcp.pop %v9137
      %v9362 = vrcp.pop %v9138
      %v9363 = vrcp.pop %v9139
      %v9364 = vrcp.pop %v9140
      %v9365 = vrcp.pop %v9141
      %v9366 = vrcp.pop %v9142
      %v9367 = vrcp.pop %v9143
      %v9368 = vrcp.pop %v9144
      %v9369 = vrcp.pop %v9145
      %v9370 = vrcp.pop %v9146
      %v9371 = vrcp.pop %v9147
      %v9372 = vrcp.pop %v9148
      %v9373 = vrcp.pop %v9149
      %v9374 = vrcp.pop %v9150
      %v9375 = vrcp.pop %v9151
      %v9376 = vrcp.pop %v9152
      %v9377 = vrcp.pop %v9153
      %v9378 = vrcp.pop %v9154
      %v9379 = vrcp.pop %v9155
      %v9380 = vrcp.pop %v9156
      %v9381 = vrcp.pop %v9157
      %v9382 = vrcp.pop %v9158
      %v9383 = vrcp.pop %v9159
      %v9384 = vrcp.pop %v9160
      %v9385 = vrcp.pop %v9161
      %v9386 = vrcp.pop %v9162
      %v9387 = vrcp.pop %v9163
      %v9388 = vrcp.pop %v9164
      %v9389 = vrcp.pop %v9165
      %v9390 = vrcp.pop %v9166
      %v9391 = vrcp.pop %v9167
      %v9392 = vrcp.pop %v9168
      %v9393 = vrcp.pop %v9169
      %v9394 = vrcp.pop %v9170
      %v9395 = vrcp.pop %v9171
      %v9396 = vrcp.pop %v9172
      %v9397 = vrcp.pop %v9173
      %v9398 = vrcp.pop %v9174
      %v9399 = vrcp.pop %v9175
      %v9400 = vrcp.pop %v9176
      %v9401 = vrcp.pop %v9177
      %v9402 = vrcp.pop %v9178
      %v9403 = vrcp.pop %v9179
      %v9404 = vrcp.pop %v9180
      %v9405 = vrcp.pop %v9181
      %v9406 = vrcp.pop %v9182
      %v9407 = vrcp.pop %v9183
      %v9408 = vrcp.pop %v9184
      %v9409 = vrcp.pop %v9185
      %v9410 = vrcp.pop %v9186
      %v9411 = vrcp.pop %v9187
      %v9412 = vrcp.pop %v9188
      %v9413 = vrcp.pop %v9189
      %v9414 = vrcp.pop %v9190
      %v9415 = vrcp.pop %v9191
      %v9416 = vrcp.pop %v9192
      %v9417 = vrcp.pop %v9193
      %v9418 = vrcp.pop %v9194
      %v9419 = vrcp.pop %v9195
      %v9420 = vrcp.pop %v9196
      %v9421 = vrcp.pop %v9197
      %v9422 = vrcp.pop %v9198
      %v9423 = vrcp.pop %v9199
      %v9424 = vrcp.pop %v9200
      %v9425 = vrcp.pop %v9201
      %v9426 = vrcp.pop %v9202
      %v9427 = vrcp.pop %v9203
      %v9428 = vrcp.pop %v9204
      %v9429 = vrcp.pop %v9205
      %v9430 = vrcp.pop %v9206
      %v9431 = vrcp.pop %v9207
      %v9432 = vrcp.pop %v9208
      %v9433 = vrcp.pop %v9209
      %v9434 = vrcp.pop %v9210
      %v9435 = vrcp.pop %v9211
      %v9436 = vrcp.pop %v9212
      %v9437 = vrcp.pop %v9213
      %v9438 = vrcp.pop %v9214
      %v9439 = vrcp.pop %v9215
      %v9440 = vrcp.pop %v9216
      %v9441 = vrcp.pop %v9217
      %v9442 = vrcp.pop %v9218
      %v9443 = vrcp.pop %v9219
      %v9444 = vrcp.pop %v9220
      %v9445 = vrcp.pop %v9221
      %v9446 = vrcp.pop %v9222
      %v9447 = vrcp.pop %v9223
      %v9448 = vrcp.pop %v9224
      %v9449 = vrcp.pop %v9225
      %v9450 = vrcp.pop %v9226
      %v9451 = vrcp.pop %v9227
      %v9452 = vrcp.pop %v9228
      %v9453 = vrcp.pop %v9229
      %v9454 = vrcp.pop %v9230
      %v9455 = vrcp.pop %v9231
      %v9456 = vrcp.pop %v9232
      %v9457 = vrcp.pop %v9233
      %v9458 = vrcp.pop %v9234
      %v9459 = vrcp.pop %v9235
      %v9460 = vrcp.pop %v9236
      %v9461 = vrcp.pop %v9237
      %v9462 = vrcp.pop %v9238
      %v9463 = vrcp.pop %v9239
      %v9464 = vrcp.pop %v9240
      %v9465 = vrcp.pop %v9241
      %v9466 = vrcp.pop %v9242
      %v9467 = vrcp.pop %v9243
      %v9468 = vrcp.pop %v9244
      %v9469 = vrcp.pop %v9245
      %v9470 = vrcp.pop %v9246
      %v9471 = vrcp.pop %v9247
      %v9472 = vrcp.pop %v9248
      %v9473 = vrcp.pop %v9249
      %v9474 = vrcp.pop %v9250
      %v9475 = vrcp.pop %v9251
      %v9476 = vrcp.pop %v9252
      %v9477 = vrcp.pop %v9253
      %v9478 = vrcp.pop %v9254
      %v9479 = vrcp.pop %v9255
      %v9480 = vrcp.pop %v9256
      %v9481 = vrcp.pop %v9257
      %v9482 = vrcp.pop %v9258
      %v9483 = vrcp.pop %v9259
      %v9484 = vrcp.pop %v9260
      %v9485 = vrcp.pop %v9261
      %v9486 = vrcp.pop %v9262
      %v9487 = vrcp.pop %v9263
      %v9488 = vrcp.pop %v9264
      %v9489 = vrcp.pop %v9265
      %v9490 = vrcp.pop %v9266
      %v9491 = vrcp.pop %v9267
      %v9492 = vrcp.pop %v9268
      %v9493 = vrcp.pop %v9269
      %v9494 = vrcp.pop %v9270
      %v9495 = vrcp.pop %v9271
      %v9496 = vrcp.pop %v9272
      %v9497 = vrcp.pop %v9273
      %v9498 = vrcp.pop %v9274
      %v9499 = vrcp.pop %v9275
      %v9500 = vrcp.pop %v9276
      %v9501 = vrcp.pop %v9277
      %v9502 = vrcp.pop %v9278
      %v9503 = vrcp.pop %v9279
      %v9504 = vrcp.pop %v9280
      %v9505 = vrcp.pop %v9281
      %v9506 = vrcp.pop %v9282
      %v9507 = vrcp.pop %v9283
      %v9508 = vrcp.pop %v9284
      %v9509 = vrcp.pop %v9285
      %v9510 = vrcp.pop %v9286
      %v9511 = vrcp.pop %v9287
      %v9512 = vrcp.pop %v9288
      %v9513 = vrcp.pop %v9289
      %v9514 = vrcp.pop %v9290
      %v9515 = vrcp.pop %v9291
      %v9516 = vrcp.pop %v9292
      %v9517 = vrcp.pop %v9293
      %v9518 = vrcp.pop %v9294
      %v9519 = vrcp.pop %v9295
      %v9520 = vrcp.pop %v9296
      %v9521 = vrcp.pop %v9297
      %v9522 = vrcp.pop %v9298
      %v9523 = vrcp.pop %v9299
      %v9524 = vrcp.pop %v9300
      %v9525 = vrcp.pop %v9301
      %v9526 = vrcp.pop %v9302
      %v9527 = vrcp.pop %v9303
      %v9528 = vrcp.pop %v9304
      %v9529 = vrcp.pop %v9305
      %9530 = vst [vmem:[%s423] sm:$0xff] %v9306
      %9531 = vst [vmem:[%s423 + $0x8] sm:$0xff] %v9307
      %9532 = vst [vmem:[%s423 + $0x10] sm:$0xff] %v9308
      %9533 = vst [vmem:[%s423 + $0x18] sm:$0xff] %v9309
      %9534 = vst [vmem:[%s423 + $0x20] sm:$0xff] %v9310
      %9535 = vst [vmem:[%s423 + $0x28] sm:$0xff] %v9311
      %9536 = vst.msk [vmem:[%s423 + $0x30] sm:$0xff] %vm2318, %v9312
      %9537 = vst [vmem:[%s423 + $0x38] sm:$0xff] %v9313
      %9538 = vst [vmem:[%s423 + $0x40] sm:$0xff] %v9314
      %9539 = vst [vmem:[%s423 + $0x48] sm:$0xff] %v9315
      %9540 = vst [vmem:[%s423 + $0x50] sm:$0xff] %v9316
      %9541 = vst [vmem:[%s423 + $0x58] sm:$0xff] %v9317
      %9542 = vst [vmem:[%s423 + $0x60] sm:$0xff] %v9318
      %9543 = vst.msk [vmem:[%s423 + $0x68] sm:$0xff] %vm2318, %v9319
      %9544 = vst [vmem:[%s423 + $0x70] sm:$0xff] %v9320
      %9545 = vst [vmem:[%s423 + $0x78] sm:$0xff] %v9321
      %9546 = vst [vmem:[%s423 + $0x80] sm:$0xff] %v9322
      %9547 = vst [vmem:[%s423 + $0x88] sm:$0xff] %v9323
      %9548 = vst [vmem:[%s423 + $0x90] sm:$0xff] %v9324
      %9549 = vst [vmem:[%s423 + $0x98] sm:$0xff] %v9325
      %9550 = vst.msk [vmem:[%s423 + $0xa0] sm:$0xff] %vm2318, %v9326
      %9551 = vst [vmem:[%s423 + $0xa8] sm:$0xff] %v9327
      %9552 = vst [vmem:[%s423 + $0xb0] sm:$0xff] %v9328
      %9553 = vst [vmem:[%s423 + $0xb8] sm:$0xff] %v9329
      %9554 = vst [vmem:[%s423 + $0xc0] sm:$0xff] %v9330
      %9555 = vst [vmem:[%s423 + $0xc8] sm:$0xff] %v9331
      %9556 = vst [vmem:[%s423 + $0xd0] sm:$0xff] %v9332
      %9557 = vst.msk [vmem:[%s423 + $0xd8] sm:$0xff] %vm2318, %v9333
      %9558 = vst [vmem:[%s423 + $0xe0] sm:$0xff] %v9334
      %9559 = vst [vmem:[%s423 + $0xe8] sm:$0xff] %v9335
      %9560 = vst [vmem:[%s423 + $0xf0] sm:$0xff] %v9336
      %9561 = vst [vmem:[%s423 + $0xf8] sm:$0xff] %v9337
      %9562 = vst [vmem:[%s423 + $0x100] sm:$0xff] %v9338
      %9563 = vst [vmem:[%s423 + $0x108] sm:$0xff] %v9339
      %9564 = vst.msk [vmem:[%s423 + $0x110] sm:$0xff] %vm2318, %v9340
      %9565 = vst [vmem:[%s423 + $0x118] sm:$0xff] %v9341
      %9566 = vst [vmem:[%s423 + $0x120] sm:$0xff] %v9342
      %9567 = vst [vmem:[%s423 + $0x128] sm:$0xff] %v9343
      %9568 = vst [vmem:[%s423 + $0x130] sm:$0xff] %v9344
      %9569 = vst [vmem:[%s423 + $0x138] sm:$0xff] %v9345
      %9570 = vst [vmem:[%s423 + $0x140] sm:$0xff] %v9346
      %9571 = vst.msk [vmem:[%s423 + $0x148] sm:$0xff] %vm2318, %v9347
      %9572 = vst [vmem:[%s423 + $0x150] sm:$0xff] %v9348
      %9573 = vst [vmem:[%s423 + $0x158] sm:$0xff] %v9349
      %9574 = vst [vmem:[%s423 + $0x160] sm:$0xff] %v9350
      %9575 = vst [vmem:[%s423 + $0x168] sm:$0xff] %v9351
      %9576 = vst [vmem:[%s423 + $0x170] sm:$0xff] %v9352
      %9577 = vst [vmem:[%s423 + $0x178] sm:$0xff] %v9353
      %9578 = vst.msk [vmem:[%s423 + $0x180] sm:$0xff] %vm2318, %v9354
      %9579 = vst [vmem:[%s423 + $0x188] sm:$0xff] %v9355
      %9580 = vst [vmem:[%s423 + $0x190] sm:$0xff] %v9356
      %9581 = vst [vmem:[%s423 + $0x198] sm:$0xff] %v9357
      %9582 = vst [vmem:[%s423 + $0x1a0] sm:$0xff] %v9358
      %9583 = vst [vmem:[%s423 + $0x1a8] sm:$0xff] %v9359
      %9584 = vst [vmem:[%s423 + $0x1b0] sm:$0xff] %v9360
      %9585 = vst.msk [vmem:[%s423 + $0x1b8] sm:$0xff] %vm2318, %v9361
      %9586 = vst [vmem:[%s423 + $0x1c0] sm:$0xff] %v9362
      %9587 = vst [vmem:[%s423 + $0x1c8] sm:$0xff] %v9363
      %9588 = vst [vmem:[%s423 + $0x1d0] sm:$0xff] %v9364
      %9589 = vst [vmem:[%s423 + $0x1d8] sm:$0xff] %v9365
      %9590 = vst [vmem:[%s423 + $0x1e0] sm:$0xff] %v9366
      %9591 = vst [vmem:[%s423 + $0x1e8] sm:$0xff] %v9367
      %9592 = vst.msk [vmem:[%s423 + $0x1f0] sm:$0xff] %vm2318, %v9368
      %9593 = vst [vmem:[%s423 + $0x1f8] sm:$0xff] %v9369
      %9594 = vst [vmem:[%s423 + $0x200] sm:$0xff] %v9370
      %9595 = vst [vmem:[%s423 + $0x208] sm:$0xff] %v9371
      %9596 = vst [vmem:[%s423 + $0x210] sm:$0xff] %v9372
      %9597 = vst [vmem:[%s423 + $0x218] sm:$0xff] %v9373
      %9598 = vst [vmem:[%s423 + $0x220] sm:$0xff] %v9374
      %9599 = vst.msk [vmem:[%s423 + $0x228] sm:$0xff] %vm2318, %v9375
      %9600 = vst [vmem:[%s423 + $0x230] sm:$0xff] %v9376
      %9601 = vst [vmem:[%s423 + $0x238] sm:$0xff] %v9377
      %9602 = vst [vmem:[%s423 + $0x240] sm:$0xff] %v9378
      %9603 = vst [vmem:[%s423 + $0x248] sm:$0xff] %v9379
      %9604 = vst [vmem:[%s423 + $0x250] sm:$0xff] %v9380
      %9605 = vst [vmem:[%s423 + $0x258] sm:$0xff] %v9381
      %9606 = vst.msk [vmem:[%s423 + $0x260] sm:$0xff] %vm2318, %v9382
      %9607 = vst [vmem:[%s423 + $0x268] sm:$0xff] %v9383
      %9608 = vst [vmem:[%s423 + $0x270] sm:$0xff] %v9384
      %9609 = vst [vmem:[%s423 + $0x278] sm:$0xff] %v9385
      %9610 = vst [vmem:[%s423 + $0x280] sm:$0xff] %v9386
      %9611 = vst [vmem:[%s423 + $0x288] sm:$0xff] %v9387
      %9612 = vst [vmem:[%s423 + $0x290] sm:$0xff] %v9388
      %9613 = vst.msk [vmem:[%s423 + $0x298] sm:$0xff] %vm2318, %v9389
      %9614 = vst [vmem:[%s423 + $0x2a0] sm:$0xff] %v9390
      %9615 = vst [vmem:[%s423 + $0x2a8] sm:$0xff] %v9391
      %9616 = vst [vmem:[%s423 + $0x2b0] sm:$0xff] %v9392
      %9617 = vst [vmem:[%s423 + $0x2b8] sm:$0xff] %v9393
      %9618 = vst [vmem:[%s423 + $0x2c0] sm:$0xff] %v9394
      %9619 = vst [vmem:[%s423 + $0x2c8] sm:$0xff] %v9395
      %9620 = vst.msk [vmem:[%s423 + $0x2d0] sm:$0xff] %vm2318, %v9396
      %9621 = vst [vmem:[%s423 + $0x2d8] sm:$0xff] %v9397
      %9622 = vst [vmem:[%s423 + $0x2e0] sm:$0xff] %v9398
      %9623 = vst [vmem:[%s423 + $0x2e8] sm:$0xff] %v9399
      %9624 = vst [vmem:[%s423 + $0x2f0] sm:$0xff] %v9400
      %9625 = vst [vmem:[%s423 + $0x2f8] sm:$0xff] %v9401
      %9626 = vst [vmem:[%s423 + $0x300] sm:$0xff] %v9402
      %9627 = vst.msk [vmem:[%s423 + $0x308] sm:$0xff] %vm2318, %v9403
      %9628 = vst [vmem:[%s423 + $0x310] sm:$0xff] %v9404
      %9629 = vst [vmem:[%s423 + $0x318] sm:$0xff] %v9405
      %9630 = vst [vmem:[%s423 + $0x320] sm:$0xff] %v9406
      %9631 = vst [vmem:[%s423 + $0x328] sm:$0xff] %v9407
      %9632 = vst [vmem:[%s423 + $0x330] sm:$0xff] %v9408
      %9633 = vst [vmem:[%s423 + $0x338] sm:$0xff] %v9409
      %9634 = vst.msk [vmem:[%s423 + $0x340] sm:$0xff] %vm2318, %v9410
      %9635 = vst [vmem:[%s423 + $0x348] sm:$0xff] %v9411
      %9636 = vst [vmem:[%s423 + $0x350] sm:$0xff] %v9412
      %9637 = vst [vmem:[%s423 + $0x358] sm:$0xff] %v9413
      %9638 = vst [vmem:[%s423 + $0x360] sm:$0xff] %v9414
      %9639 = vst [vmem:[%s423 + $0x368] sm:$0xff] %v9415
      %9640 = vst [vmem:[%s423 + $0x370] sm:$0xff] %v9416
      %9641 = vst.msk [vmem:[%s423 + $0x378] sm:$0xff] %vm2318, %v9417
      %9642 = vst [vmem:[%s423 + $0x380] sm:$0xff] %v9418
      %9643 = vst [vmem:[%s423 + $0x388] sm:$0xff] %v9419
      %9644 = vst [vmem:[%s423 + $0x390] sm:$0xff] %v9420
      %9645 = vst [vmem:[%s423 + $0x398] sm:$0xff] %v9421
      %9646 = vst [vmem:[%s423 + $0x3a0] sm:$0xff] %v9422
      %9647 = vst [vmem:[%s423 + $0x3a8] sm:$0xff] %v9423
      %9648 = vst.msk [vmem:[%s423 + $0x3b0] sm:$0xff] %vm2318, %v9424
      %9649 = vst [vmem:[%s423 + $0x3b8] sm:$0xff] %v9425
      %9650 = vst [vmem:[%s423 + $0x3c0] sm:$0xff] %v9426
      %9651 = vst [vmem:[%s423 + $0x3c8] sm:$0xff] %v9427
      %9652 = vst [vmem:[%s423 + $0x3d0] sm:$0xff] %v9428
      %9653 = vst [vmem:[%s423 + $0x3d8] sm:$0xff] %v9429
      %9654 = vst [vmem:[%s423 + $0x3e0] sm:$0xff] %v9430
      %9655 = vst.msk [vmem:[%s423 + $0x3e8] sm:$0xff] %vm2318, %v9431
      %9656 = vst [vmem:[%s423 + $0x3f0] sm:$0xff] %v9432
      %9657 = vst [vmem:[%s423 + $0x3f8] sm:$0xff] %v9433
      %9658 = vst [vmem:[%s423 + $0x400] sm:$0xff] %v9434
      %9659 = vst [vmem:[%s423 + $0x408] sm:$0xff] %v9435
      %9660 = vst [vmem:[%s423 + $0x410] sm:$0xff] %v9436
      %9661 = vst [vmem:[%s423 + $0x418] sm:$0xff] %v9437
      %9662 = vst.msk [vmem:[%s423 + $0x420] sm:$0xff] %vm2318, %v9438
      %9663 = vst [vmem:[%s423 + $0x428] sm:$0xff] %v9439
      %9664 = vst [vmem:[%s423 + $0x430] sm:$0xff] %v9440
      %9665 = vst [vmem:[%s423 + $0x438] sm:$0xff] %v9441
      %9666 = vst [vmem:[%s423 + $0x440] sm:$0xff] %v9442
      %9667 = vst [vmem:[%s423 + $0x448] sm:$0xff] %v9443
      %9668 = vst [vmem:[%s423 + $0x450] sm:$0xff] %v9444
      %9669 = vst.msk [vmem:[%s423 + $0x458] sm:$0xff] %vm2318, %v9445
      %9670 = vst [vmem:[%s423 + $0x460] sm:$0xff] %v9446
      %9671 = vst [vmem:[%s423 + $0x468] sm:$0xff] %v9447
      %9672 = vst [vmem:[%s423 + $0x470] sm:$0xff] %v9448
      %9673 = vst [vmem:[%s423 + $0x478] sm:$0xff] %v9449
      %9674 = vst [vmem:[%s423 + $0x480] sm:$0xff] %v9450
      %9675 = vst [vmem:[%s423 + $0x488] sm:$0xff] %v9451
      %9676 = vst.msk [vmem:[%s423 + $0x490] sm:$0xff] %vm2318, %v9452
      %9677 = vst [vmem:[%s423 + $0x498] sm:$0xff] %v9453
      %9678 = vst [vmem:[%s423 + $0x4a0] sm:$0xff] %v9454
      %9679 = vst [vmem:[%s423 + $0x4a8] sm:$0xff] %v9455
      %9680 = vst [vmem:[%s423 + $0x4b0] sm:$0xff] %v9456
      %9681 = vst [vmem:[%s423 + $0x4b8] sm:$0xff] %v9457
      %9682 = vst [vmem:[%s423 + $0x4c0] sm:$0xff] %v9458
      %9683 = vst.msk [vmem:[%s423 + $0x4c8] sm:$0xff] %vm2318, %v9459
      %9684 = vst [vmem:[%s423 + $0x4d0] sm:$0xff] %v9460
      %9685 = vst [vmem:[%s423 + $0x4d8] sm:$0xff] %v9461
      %9686 = vst [vmem:[%s423 + $0x4e0] sm:$0xff] %v9462
      %9687 = vst [vmem:[%s423 + $0x4e8] sm:$0xff] %v9463
      %9688 = vst [vmem:[%s423 + $0x4f0] sm:$0xff] %v9464
      %9689 = vst [vmem:[%s423 + $0x4f8] sm:$0xff] %v9465
      %9690 = vst.msk [vmem:[%s423 + $0x500] sm:$0xff] %vm2318, %v9466
      %9691 = vst [vmem:[%s423 + $0x508] sm:$0xff] %v9467
      %9692 = vst [vmem:[%s423 + $0x510] sm:$0xff] %v9468
      %9693 = vst [vmem:[%s423 + $0x518] sm:$0xff] %v9469
      %9694 = vst [vmem:[%s423 + $0x520] sm:$0xff] %v9470
      %9695 = vst [vmem:[%s423 + $0x528] sm:$0xff] %v9471
      %9696 = vst [vmem:[%s423 + $0x530] sm:$0xff] %v9472
      %9697 = vst.msk [vmem:[%s423 + $0x538] sm:$0xff] %vm2318, %v9473
      %9698 = vst [vmem:[%s423 + $0x540] sm:$0xff] %v9474
      %9699 = vst [vmem:[%s423 + $0x548] sm:$0xff] %v9475
      %9700 = vst [vmem:[%s423 + $0x550] sm:$0xff] %v9476
      %9701 = vst [vmem:[%s423 + $0x558] sm:$0xff] %v9477
      %9702 = vst [vmem:[%s423 + $0x560] sm:$0xff] %v9478
      %9703 = vst [vmem:[%s423 + $0x568] sm:$0xff] %v9479
      %9704 = vst.msk [vmem:[%s423 + $0x570] sm:$0xff] %vm2318, %v9480
      %9705 = vst [vmem:[%s423 + $0x578] sm:$0xff] %v9481
      %9706 = vst [vmem:[%s423 + $0x580] sm:$0xff] %v9482
      %9707 = vst [vmem:[%s423 + $0x588] sm:$0xff] %v9483
      %9708 = vst [vmem:[%s423 + $0x590] sm:$0xff] %v9484
      %9709 = vst [vmem:[%s423 + $0x598] sm:$0xff] %v9485
      %9710 = vst [vmem:[%s423 + $0x5a0] sm:$0xff] %v9486
      %9711 = vst.msk [vmem:[%s423 + $0x5a8] sm:$0xff] %vm2318, %v9487
      %9712 = vst [vmem:[%s423 + $0x5b0] sm:$0xff] %v9488
      %9713 = vst [vmem:[%s423 + $0x5b8] sm:$0xff] %v9489
      %9714 = vst [vmem:[%s423 + $0x5c0] sm:$0xff] %v9490
      %9715 = vst [vmem:[%s423 + $0x5c8] sm:$0xff] %v9491
      %9716 = vst [vmem:[%s423 + $0x5d0] sm:$0xff] %v9492
      %9717 = vst [vmem:[%s423 + $0x5d8] sm:$0xff] %v9493
      %9718 = vst.msk [vmem:[%s423 + $0x5e0] sm:$0xff] %vm2318, %v9494
      %9719 = vst [vmem:[%s423 + $0x5e8] sm:$0xff] %v9495
      %9720 = vst [vmem:[%s423 + $0x5f0] sm:$0xff] %v9496
      %9721 = vst [vmem:[%s423 + $0x5f8] sm:$0xff] %v9497
      %9722 = vst [vmem:[%s423 + $0x600] sm:$0xff] %v9498
      %9723 = vst [vmem:[%s423 + $0x608] sm:$0xff] %v9499
      %9724 = vst [vmem:[%s423 + $0x610] sm:$0xff] %v9500
      %9725 = vst.msk [vmem:[%s423 + $0x618] sm:$0xff] %vm2318, %v9501
      %9726 = vst [vmem:[%s423 + $0x620] sm:$0xff] %v9502
      %9727 = vst [vmem:[%s423 + $0x628] sm:$0xff] %v9503
      %9728 = vst [vmem:[%s423 + $0x630] sm:$0xff] %v9504
      %9729 = vst [vmem:[%s423 + $0x638] sm:$0xff] %v9505
      %9730 = vst [vmem:[%s423 + $0x640] sm:$0xff] %v9506
      %9731 = vst [vmem:[%s423 + $0x648] sm:$0xff] %v9507
      %9732 = vst.msk [vmem:[%s423 + $0x650] sm:$0xff] %vm2318, %v9508
      %9733 = vst [vmem:[%s423 + $0x658] sm:$0xff] %v9509
      %9734 = vst [vmem:[%s423 + $0x660] sm:$0xff] %v9510
      %9735 = vst [vmem:[%s423 + $0x668] sm:$0xff] %v9511
      %9736 = vst [vmem:[%s423 + $0x670] sm:$0xff] %v9512
      %9737 = vst [vmem:[%s423 + $0x678] sm:$0xff] %v9513
      %9738 = vst [vmem:[%s423 + $0x680] sm:$0xff] %v9514
      %9739 = vst.msk [vmem:[%s423 + $0x688] sm:$0xff] %vm2318, %v9515
      %9740 = vst [vmem:[%s423 + $0x690] sm:$0xff] %v9516
      %9741 = vst [vmem:[%s423 + $0x698] sm:$0xff] %v9517
      %9742 = vst [vmem:[%s423 + $0x6a0] sm:$0xff] %v9518
      %9743 = vst [vmem:[%s423 + $0x6a8] sm:$0xff] %v9519
      %9744 = vst [vmem:[%s423 + $0x6b0] sm:$0xff] %v9520
      %9745 = vst [vmem:[%s423 + $0x6b8] sm:$0xff] %v9521
      %9746 = vst.msk [vmem:[%s423 + $0x6c0] sm:$0xff] %vm2318, %v9522
      %9747 = vst [vmem:[%s423 + $0x6c8] sm:$0xff] %v9523
      %9748 = vst [vmem:[%s423 + $0x6d0] sm:$0xff] %v9524
      %9749 = vst [vmem:[%s423 + $0x6d8] sm:$0xff] %v9525
      %9750 = vst [vmem:[%s423 + $0x6e0] sm:$0xff] %v9526
      %9751 = vst [vmem:[%s423 + $0x6e8] sm:$0xff] %v9527
      %9752 = vst [vmem:[%s423 + $0x6f0] sm:$0xff] %v9528
      %9753 = vst.msk [vmem:[%s423 + $0x6f8] sm:$0xff] %vm2318, %v9529
      %s9754 = smul.u32 32, %s23
      %p9755 = scmp.lt.s32.totalorder %s9754, 63
      %s9756 = scalar_select %p9755, %s9754, 63
      %s9757 = smul.addr %s9756, 7
      %s9758 = smul.addr %s9757, 8
      %s9759 = scalar_lea.vmem %s10, %s9758
      %s9760 = smul.u32 32, %s23
      %p9761 = scmp.lt.s32.totalorder %s9760, 63
      %s9762 = scalar_select %p9761, %s9760, 63
      %s9763 = smul.addr %s9762, 8
      %s9764 = scalar_lea.vmem %s11, %s9763
      // Predicated region
      $region61: #{vae_forward.1} parent=59 // pred_check
        %p9765 = pneg %p261
      $region62: #{vae_forward.1} parent=59 // pred_check_branch
        %9767 = sbr.rel (%p9765) target = $region64
      $region63: #{vae_forward.1} parent=59 // pred_region
        %s9768 = smul.u32 32, %s23
      $region64: #{vae_forward.1} parent=59 // pred_fallthru
        _
      // Predicated region
      $region65: #{vae_forward.1} parent=59 // pred_check
        %p9769 = pneg %p287
      $region66: #{vae_forward.1} parent=59 // pred_check_branch
        %9771 = sbr.rel (%p9769) target = $region68
      $region67: #{vae_forward.1} parent=59 // pred_region
        %s9772 = smul.u32 32, %s23
      $region68: #{vae_forward.1} parent=59 // pred_fallthru
        _
    $region60: #{vae_forward.1} parent=5 // pred_fallthru
      _
    %p9773 = scmp.le.s32.totalorder 2, %s18
    // Predicated region
    $region69: #{vae_forward.1} parent=5 // pred_check
      %p9774 = pneg %p9773
    $region70: #{vae_forward.1} parent=5 // pred_check_branch
      %9776 = sbr.rel (%p9774) target = $region72
    $region71: #{vae_forward.1} parent=5 // pred_region
      %s9777 = ssub.s32 %s18, 2
      // Predicated region
      $region73: #{vae_forward.1} parent=71 // pred_check
        %p9778 = pneg %p267
      $region74: #{vae_forward.1} parent=71 // pred_check_branch
        %9780 = sbr.rel (%p9778) target = $region76
      $region75: #{vae_forward.1} parent=71 // pred_region
        %s9781 = smul.u32 32, %s24
        %p9782 = scmp.lt.s32.totalorder %s9781, 63
        %s9783 = scalar_select %p9782, %s9781, 63
        %s9784 = smul.addr %s9783, 7
        %s9785 = smul.addr %s9784, 8
        %s9786 = scalar_lea.vmem %s10, %s9785
      $region76: #{vae_forward.1} parent=71 // pred_fallthru
        _
      // Predicated region
      $region77: #{vae_forward.1} parent=71 // pred_check
        %p9787 = pneg %p293
      $region78: #{vae_forward.1} parent=71 // pred_check_branch
        %9789 = sbr.rel (%p9787) target = $region80
      $region79: #{vae_forward.1} parent=71 // pred_region
        %s9790 = smul.u32 32, %s24
        %p9791 = scmp.lt.s32.totalorder %s9790, 63
        %s9792 = scalar_select %p9791, %s9790, 63
        %s9793 = smul.addr %s9792, 8
        %s9794 = scalar_lea.vmem %s11, %s9793
      $region80: #{vae_forward.1} parent=71 // pred_fallthru
        _
    $region72: #{vae_forward.1} parent=5 // pred_fallthru
      _
  $region6: #{vae_forward.1} parent=0 // loop_footer
    %s22 = sadd.s32 1, %s18
  $region7: #{vae_forward.1} parent=0 // loop_footer_branch
    %17 = sbr.rel target = $region3
  $region8: #{vae_forward.1} parent=0 // loop_exit
    _

</llo_original>
